<compile_context>
chip_gen: v6e
topology: v6e:2x2x1
jax: 0.10.0
libtpu: 0.0.40
codegen_flags: <defaults>
</compile_context>

<pallas_src>
import functools
import math

import jax
import jax.numpy as jnp
from jax.experimental import pallas as pl
from jax.experimental.pallas import tpu as pltpu

# ----------------------------- scaled-down MBartConfig -----------------------------
VOCAB = 64
D_MODEL = 32
N_HEADS = 4
HEAD_DIM = D_MODEL // N_HEADS
FFN = 64
MAX_POS = 64
PAD_INDEX = 1                      # tokenizer.pad_index
LABEL_SMOOTHING = 0.2              # cfg['label_smoothing']
EMBED_SCALE = math.sqrt(D_MODEL)   # input_embed_scale = sqrt(d_model); also mBART embed_scale
NEG_INF = -1e9
ATTN_SCALE = 1.0 / math.sqrt(HEAD_DIM)
LANE = 128


def _round_up(x, m):
    return (x + m - 1) // m * m


# ----------------------------- packed-vector slab layout (static) -----------------------------
# Every 1-D parameter occupies one 128-lane row of the vector slab.
_VEC_SPECS = (
    ("final_logits_bias", VOCAB),
    ("enc_ln_emb_g", D_MODEL), ("enc_ln_emb_b", D_MODEL),
    ("enc_final_ln_g", D_MODEL), ("enc_final_ln_b", D_MODEL),
    ("dec_ln_emb_g", D_MODEL), ("dec_ln_emb_b", D_MODEL),
    ("dec_final_ln_g", D_MODEL), ("dec_final_ln_b", D_MODEL),
    ("e_sa_ln_g", D_MODEL), ("e_sa_ln_b", D_MODEL),
    ("e_sa_bqkv", 3 * D_MODEL), ("e_sa_bo", D_MODEL),
    ("e_fln_g", D_MODEL), ("e_fln_b", D_MODEL),
    ("e_fc1_b", FFN), ("e_fc2_b", D_MODEL),
    ("d_sa_ln_g", D_MODEL), ("d_sa_ln_b", D_MODEL),
    ("d_sa_bqkv", 3 * D_MODEL), ("d_sa_bo", D_MODEL),
    ("d_ca_ln_g", D_MODEL), ("d_ca_ln_b", D_MODEL),
    ("d_ca_bq", D_MODEL), ("d_ca_bkv", 2 * D_MODEL), ("d_ca_bo", D_MODEL),
    ("d_fln_g", D_MODEL), ("d_fln_b", D_MODEL),
    ("d_fc1_b", FFN), ("d_fc2_b", D_MODEL),
)
_VEC_ROW = {name: i for i, (name, _) in enumerate(_VEC_SPECS)}
_VEC_LEN = {name: n for name, n in _VEC_SPECS}
_VEC_SLAB_ROWS = _round_up(len(_VEC_SPECS), 8)


# ----------------------------- single fused Pallas kernel -----------------------------
def _forward_kernel(enc_emb_ref, dec_emb_ref, labels_ref, mask_ref, vec_ref, mat_ref,
                    out_ref, loss_ref, *, B, Ts, Tt, mat_layout):
    D, V, H, HD = D_MODEL, VOCAB, N_HEADS, HEAD_DIM
    Ne, Nd = B * Ts, B * Tt

    # -------- static slab accessors (zero-cost static ref windows) --------
    def vec(name):
        r = _VEC_ROW[name]
        return vec_ref[r:r + 1, :_VEC_LEN[name]]            # (1, n)

    def mat(name):
        off, r, c = mat_layout[name]
        return mat_ref[off:off + r, :c]                      # (r, c)

    # -------- in-kernel helpers (all VMEM-resident values) --------
    def ln(x, gname, bname):
        mu = jnp.mean(x, axis=-1, keepdims=True)
        var = jnp.mean(jnp.square(x - mu), axis=-1, keepdims=True)
        return (x - mu) * jax.lax.rsqrt(var + 1e-5) * vec(gname) + vec(bname)

    def linear(x, wname, bname, act=None):
        # TODO(synk): cast matmul operands to bf16 (keep f32 accum) for the full-size model.
        y = jnp.dot(x, mat(wname), preferred_element_type=jnp.float32) + vec(bname)
        if act == "gelu":
            # TODO(synk): HF mBART uses exact (erf) GELU; tanh approximation kept for lowering safety.
            y = jax.nn.gelu(y, approximate=True)
        return y

    def attn(q2d, k2d, v2d, Tq, Tk, bias):
        """Multi-head attention on (B*Tq, D)/(B*Tk, D) activations; bias broadcastable to (B,Tq,Tk)."""
        q3 = q2d.reshape(B, Tq, D)
        k3 = k2d.reshape(B, Tk, D)
        v3 = v2d.reshape(B, Tk, D)
        heads = []
        # TODO(synk): fold heads into one multi-batch-dim contraction ('bqhc,bkhc->bhqk') once the
        #             Mosaic dot_general lowering is verified for 2 batch dims at head_dim=8; kept
        #             as a static 4-way unroll here to guarantee clean lowering.
        for head in range(H):
            lo, hi = head * HD, (head + 1) * HD
            s = jnp.einsum("bqd,bkd->bqk", q3[:, :, lo:hi], k3[:, :, lo:hi],
                           preferred_element_type=jnp.float32) * ATTN_SCALE + bias
            s = s - jnp.max(s, axis=-1, keepdims=True)
            p = jnp.exp(s)
            p = p * pl.reciprocal(jnp.sum(p, axis=-1, keepdims=True), approx=True)  # EUP, not VALU
            heads.append(jnp.einsum("bqk,bkd->bqd", p, v3[:, :, lo:hi],
                                    preferred_element_type=jnp.float32))
        return jnp.concatenate(heads, axis=-1).reshape(B * Tq, D)

    # -------- attention-mask biases built in-kernel (never materialized in HBM) --------
    key_bias = jnp.where(mask_ref[...] == 1, 0.0, NEG_INF)[:, None, :]            # (B, 1, Ts)
    row = jax.lax.broadcasted_iota(jnp.int32, (Tt, Tt), 0)
    col = jax.lax.broadcasted_iota(jnp.int32, (Tt, Tt), 1)
    causal_bias = jnp.where(col <= row, 0.0, NEG_INF)[None]                        # (1, Tt, Tt)

    # -------- mBART encoder (pre-LN) --------
    h = (enc_emb_ref[...].reshape(B, Ts, D) + mat("enc_pos")[None]).reshape(Ne, D)
    h = ln(h, "enc_ln_emb_g", "enc_ln_emb_b")

    x = ln(h, "e_sa_ln_g", "e_sa_ln_b")
    qkv = linear(x, "e_sa_wqkv", "e_sa_bqkv")                                      # fused QKV (Ne, 3D)
    o = attn(qkv[:, :D], qkv[:, D:2 * D], qkv[:, 2 * D:], Ts, Ts, key_bias)
    h = h + linear(o, "e_sa_wo", "e_sa_bo")

    x = ln(h, "e_fln_g", "e_fln_b")
    h = h + linear(linear(x, "e_fc1_w", "e_fc1_b", act="gelu"), "e_fc2_w", "e_fc2_b")
    enc_out = ln(h, "enc_final_ln_g", "enc_final_ln_b")                            # (Ne, D)

    # -------- mBART decoder (pre-LN) --------
    d = (dec_emb_ref[...].reshape(B, Tt, D) + mat("dec_pos")[None]).reshape(Nd, D)
    d = ln(d, "dec_ln_emb_g", "dec_ln_emb_b")

    x = ln(d, "d_sa_ln_g", "d_sa_ln_b")
    qkv = linear(x, "d_sa_wqkv", "d_sa_bqkv")
    o = attn(qkv[:, :D], qkv[:, D:2 * D], qkv[:, 2 * D:], Tt, Tt, causal_bias)
    d = d + linear(o, "d_sa_wo", "d_sa_bo")

    x = ln(d, "d_ca_ln_g", "d_ca_ln_b")
    q = linear(x, "d_ca_wq", "d_ca_bq")
    kv = linear(enc_out, "d_ca_wkv", "d_ca_bkv")                                   # fused KV (Ne, 2D)
    o = attn(q, kv[:, :D], kv[:, D:], Tt, Ts, key_bias)
    d = d + linear(o, "d_ca_wo", "d_ca_bo")

    x = ln(d, "d_fln_g", "d_fln_b")
    d = d + linear(linear(x, "d_fc1_w", "d_fc1_b", act="gelu"), "d_fc2_w", "d_fc2_b")
    dec_out = ln(d, "dec_final_ln_g", "dec_final_ln_b")                            # (Nd, D)

    # -------- tied lm_head + final_logits_bias (contract dim 1 of both: no weight transpose) --------
    logits = jax.lax.dot_general(dec_out, mat("shared"),
                                 dimension_numbers=(((1,), (1,)), ((), ())),
                                 preferred_element_type=jnp.float32)
    logits = logits + vec("final_logits_bias")                                     # (Nd, V)

    # -------- log_softmax --------
    m = jnp.max(logits, axis=-1, keepdims=True)
    lse = jnp.log(jnp.sum(jnp.exp(logits - m), axis=-1, keepdims=True)) + m
    logp = logits - lse

    # Lane-dense single store: logits || logp -> (Nd, 2V = 128); split on the host.
    out_ref[...] = jnp.concatenate([logits, logp], axis=-1)

    # -------- closed-form label-smoothed KLDiv (reduction='sum') --------
    # Smoothed target takes only 3 values: (1-eps) at target, eps/(V-2) elsewhere, 0 at pad
    # column and on pad-target rows, so the loss needs only row-sum(logp), logp[target] and
    # logp[pad]; no full-vocab log() pass or (Nd, V) where-masked temporaries.
    tgt = labels_ref[...]                                                          # (Nd, 1) int32
    vio = jax.lax.broadcasted_iota(jnp.int32, (Nd, V), 1)
    logp_tgt = jnp.sum(jnp.where(vio == tgt, logp, 0.0), axis=-1, keepdims=True)   # gather via one-hot
    logp_pad = logp[:, PAD_INDEX:PAD_INDEX + 1]                                    # static lane slice
    row_sum = jnp.sum(logp, axis=-1, keepdims=True)
    eps = LABEL_SMOOTHING
    fill = eps / (V - 2)
    const_h = (1.0 - eps) * math.log(1.0 - eps) + eps * math.log(fill)             # sum t*log t per row
    row_loss = const_h - (1.0 - eps) * logp_tgt - fill * (row_sum - logp_tgt - logp_pad)
    valid = (tgt != PAD_INDEX).astype(jnp.float32)                                 # zero pad-target rows
    loss_ref[0] = jnp.sum(row_loss * valid)                                        # scalar via SMEM


# ----------------------------- host-side glue -----------------------------
def shift_tokens_right(input_ids, pad_token_id):
    """mBART-style shift: last non-pad token wraps to the front."""
    non_pad = (input_ids != pad_token_id).astype(jnp.int32)
    idx_eos = jnp.sum(non_pad, axis=1) - 1
    start = jnp.take_along_axis(input_ids, idx_eos[:, None], axis=1)
    return jnp.concatenate([start, input_ids[:, :-1]], axis=1)


def _pack_weights(params, Ts, Tt):
    """Pack all parameters into one vector slab + one matrix slab (128-lane padded)."""
    enc, dec = params["enc_layer"], params["dec_layer"]

    def qkv_cat(a):
        return (jnp.concatenate([a["wq"], a["wk"], a["wv"]], axis=1),
                jnp.concatenate([a["bq"], a["bk"], a["bv"]]))

    e_wqkv, e_bqkv = qkv_cat(enc["self_attn"])
    d_wqkv, d_bqkv = qkv_cat(dec["self_attn"])
    ca = dec["cross_attn"]

    vecs = {
        "final_logits_bias": params["final_logits_bias"],
        "enc_ln_emb_g": params["enc_ln_emb"]["g"], "enc_ln_emb_b": params["enc_ln_emb"]["b"],
        "enc_final_ln_g": params["enc_final_ln"]["g"], "enc_final_ln_b": params["enc_final_ln"]["b"],
        "dec_ln_emb_g": params["dec_ln_emb"]["g"], "dec_ln_emb_b": params["dec_ln_emb"]["b"],
        "dec_final_ln_g": params["dec_final_ln"]["g"], "dec_final_ln_b": params["dec_final_ln"]["b"],
        "e_sa_ln_g": enc["self_attn_ln"]["g"], "e_sa_ln_b": enc["self_attn_ln"]["b"],
        "e_sa_bqkv": e_bqkv, "e_sa_bo": enc["self_attn"]["bo"],
        "e_fln_g": enc["final_ln"]["g"], "e_fln_b": enc["final_ln"]["b"],
        "e_fc1_b": enc["fc1_b"], "e_fc2_b": enc["fc2_b"],
        "d_sa_ln_g": dec["self_attn_ln"]["g"], "d_sa_ln_b": dec["self_attn_ln"]["b"],
        "d_sa_bqkv": d_bqkv, "d_sa_bo": dec["self_attn"]["bo"],
        "d_ca_ln_g": dec["cross_attn_ln"]["g"], "d_ca_ln_b": dec["cross_attn_ln"]["b"],
        "d_ca_bq": ca["bq"], "d_ca_bkv": jnp.concatenate([ca["bk"], ca["bv"]]), "d_ca_bo": ca["bo"],
        "d_fln_g": dec["final_ln"]["g"], "d_fln_b": dec["final_ln"]["b"],
        "d_fc1_b": dec["fc1_b"], "d_fc2_b": dec["fc2_b"],
    }
    vec_rows = [jnp.pad(vecs[name].reshape(1, -1).astype(jnp.float32), ((0, 0), (0, LANE - n)))
                for name, n in _VEC_SPECS]
    n_pad = _VEC_SLAB_ROWS - len(_VEC_SPECS)
    if n_pad:
        vec_rows.append(jnp.zeros((n_pad, LANE), jnp.float32))
    vec_slab = jnp.concatenate(vec_rows, axis=0)                                   # (32, 128)

    mats = [
        ("shared", params["shared"]),
        ("enc_pos", params["enc_pos"][2:2 + Ts]),        # mBART positional offset 2
        ("dec_pos", params["dec_pos"][2:2 + Tt]),
        ("e_sa_wqkv", e_wqkv), ("e_sa_wo", enc["self_attn"]["wo"]),
        ("e_fc1_w", enc["fc1_w"]), ("e_fc2_w", enc["fc2_w"]),
        ("d_sa_wqkv", d_wqkv), ("d_sa_wo", dec["self_attn"]["wo"]),
        ("d_ca_wq", ca["wq"]), ("d_ca_wkv", jnp.concatenate([ca["wk"], ca["wv"]], axis=1)),
        ("d_ca_wo", ca["wo"]),
        ("d_fc1_w", dec["fc1_w"]), ("d_fc2_w", dec["fc2_w"]),
    ]
    blocks, layout, off = [], {}, 0
    for name, m in mats:
        r, c = m.shape
        rp = _round_up(r, 8)
        layout[name] = (off, r, c)
        blocks.append(jnp.pad(m.astype(jnp.float32), ((0, rp - r), (0, LANE - c))))
        off += rp
    mat_slab = jnp.concatenate(blocks, axis=0)                                     # (~496, 128)
    return vec_slab, mat_slab, layout


def translation_forward(params, input_ids, attention_mask, labels):
    B, Ts = input_ids.shape
    Tt = labels.shape[1]

    # prepare_gloss_inputs: gloss_embedding(input_ids) * input_embed_scale  (tiny host gather)
    inputs_embeds = jnp.take(params["gloss_embedding"], input_ids, axis=0) * EMBED_SCALE
    # decoder_input_ids = shift_tokens_right(labels); decoder token embedding (tied 'shared' table)
    decoder_input_ids = shift_tokens_right(labels, PAD_INDEX)
    dec_embeds = jnp.take(params["shared"], decoder_input_ids, axis=0) * EMBED_SCALE

    vec_slab, mat_slab, mat_layout = _pack_weights(params, Ts, Tt)
    kern = functools.partial(_forward_kernel, B=B, Ts=Ts, Tt=Tt, mat_layout=mat_layout)

    fused, loss = pl.pallas_call(
        kern,
        out_shape=(jax.ShapeDtypeStruct((B * Tt, 2 * VOCAB), jnp.float32),   # logits || log_probs
                   jax.ShapeDtypeStruct((1,), jnp.float32)),                 # summed smoothed loss
        out_specs=(pl.BlockSpec(memory_space=pltpu.MemorySpace.VMEM),
                   pl.BlockSpec(memory_space=pltpu.MemorySpace.SMEM)),
        # TODO(synk): for the full-size model add a grid ("parallel" rows, "arbitrary" vocab tiles)
        #             + vmem_limit_bytes so both v7x TensorCores are used and VMEM fits.
    )(inputs_embeds.reshape(B * Ts, D_MODEL).astype(jnp.float32),
      dec_embeds.reshape(B * Tt, D_MODEL).astype(jnp.float32),
      labels.reshape(B * Tt, 1).astype(jnp.int32),
      attention_mask.astype(jnp.int32),
      vec_slab, mat_slab)

    logits = fused[:, :VOCAB].reshape(B, Tt, VOCAB)
    log_probs = fused[:, VOCAB:].reshape(B, Tt, VOCAB)
    return {
        "logits": logits,
        "log_probs": log_probs,
        "translation_loss": loss[0] / B,        # batch_loss_sum / batch_size (matches reference)
        "transformer_inputs": {"inputs_embeds": inputs_embeds,
                               "attention_mask": attention_mask,
                               "labels": labels},
    }


# ----------------------------- deterministic parameter init -----------------------------
def init_params(key):
    ks = iter(jax.random.split(key, 64))

    def w(*shape):
        return 0.02 * jax.random.normal(next(ks), shape, jnp.float32)

    def ln():
        return {"g": jnp.ones((D_MODEL,), jnp.float32), "b": jnp.zeros((D_MODEL,), jnp.float32)}

    def attn():
        return {"wq": w(D_MODEL, D_MODEL), "bq": jnp.zeros((D_MODEL,), jnp.float32),
                "wk": w(D_MODEL, D_MODEL), "bk": jnp.zeros((D_MODEL,), jnp.float32),
                "wv": w(D_MODEL, D_MODEL), "bv": jnp.zeros((D_MODEL,), jnp.float32),
                "wo": w(D_MODEL, D_MODEL), "bo": jnp.zeros((D_MODEL,), jnp.float32)}

    gloss_emb = w(VOCAB, D_MODEL).at[PAD_INDEX].set(0.0)   # nn.Embedding(padding_idx=pad)
    shared = w(VOCAB, D_MODEL).at[PAD_INDEX].set(0.0)
    return {
        "gloss_embedding": gloss_emb,
        "shared": shared,
        "final_logits_bias": jnp.zeros((VOCAB,), jnp.float32),
        "enc_pos": w(MAX_POS + 2, D_MODEL),
        "dec_pos": w(MAX_POS + 2, D_MODEL),
        "enc_ln_emb": ln(), "dec_ln_emb": ln(),
        "enc_final_ln": ln(), "dec_final_ln": ln(),
        "enc_layer": {"self_attn": attn(), "self_attn_ln": ln(), "final_ln": ln(),
                      "fc1_w": w(D_MODEL, FFN), "fc1_b": jnp.zeros((FFN,), jnp.float32),
                      "fc2_w": w(FFN, D_MODEL), "fc2_b": jnp.zeros((D_MODEL,), jnp.float32)},
        "dec_layer": {"self_attn": attn(), "self_attn_ln": ln(),
                      "cross_attn": attn(), "cross_attn_ln": ln(), "final_ln": ln(),
                      "fc1_w": w(D_MODEL, FFN), "fc1_b": jnp.zeros((FFN,), jnp.float32),
                      "fc2_w": w(FFN, D_MODEL), "fc2_b": jnp.zeros((D_MODEL,), jnp.float32)},
    }


if __name__ == "__main__":
    key = jax.random.PRNGKey(0)
    pkey, ikey, lkey = jax.random.split(key, 3)
    params = init_params(pkey)

    B, Ts, Tt = 2, 8, 8
    input_ids = jax.random.randint(ikey, (B, Ts), 3, VOCAB, dtype=jnp.int32)
    attention_mask = jnp.ones((B, Ts), jnp.int32).at[:, -1].set(0)
    input_ids = jnp.where(attention_mask == 1, input_ids, PAD_INDEX)
    labels = jax.random.randint(lkey, (B, Tt), 3, VOCAB, dtype=jnp.int32)
    labels = labels.at[:, -2:].set(PAD_INDEX)

    fwd = jax.jit(translation_forward)
    out = fwd(params, input_ids, attention_mask, labels)
    jax.block_until_ready(out)
    print("KERNEL_OK")
</pallas_src>

<mosaic_0001>
module attributes {stable_mosaic.version = 11 : i64} {
  func.func @_forward_kernel(%arg0: memref<16x32xf32, #tpu.memory_space<vmem>>, %arg1: memref<16x32xf32, #tpu.memory_space<vmem>>, %arg2: memref<16x1xi32, #tpu.memory_space<vmem>>, %arg3: memref<2x8xi32, #tpu.memory_space<vmem>>, %arg4: memref<32x128xf32, #tpu.memory_space<vmem>>, %arg5: memref<496x128xf32, #tpu.memory_space<vmem>>, %arg6: memref<16x128xf32, #tpu.memory_space<vmem>>, %arg7: memref<1xf32, #tpu.memory_space<smem>>) attributes {dimension_semantics = [], scalar_prefetch = 0 : i64, scratch_operands = 0 : i64, tpu.core_type = #tpu.core_type<tc>} {
    %c0 = arith.constant 0 : index
    %c0_0 = arith.constant 0 : index
    %0 = vector.load %arg3[%c0, %c0_0] : memref<2x8xi32, #tpu.memory_space<vmem>>, vector<2x8xi32>
    %c1_i32 = arith.constant 1 : i32
    %1 = vector.broadcast %c1_i32 : i32 to vector<2x8xi32>
    %2 = arith.cmpi eq, %0, %1 : vector<2x8xi32>
    %cst = arith.constant 0.000000e+00 : f32
    %cst_1 = arith.constant -1.000000e+09 : f32
    %3 = vector.broadcast %cst : f32 to vector<2x8xf32>
    %4 = vector.broadcast %cst_1 : f32 to vector<2x8xf32>
    %5 = arith.select %2, %3, %4 : vector<2x8xi1>, vector<2x8xf32>
    %6 = vector.shape_cast %5 : vector<2x8xf32> to vector<2x1x8xf32>
    %7 = tpu.iota {dimensions = array<i32: 0>} : vector<8x8xi32>
    %8 = tpu.iota {dimensions = array<i32: 1>} : vector<8x8xi32>
    %9 = arith.cmpi sle, %8, %7 : vector<8x8xi32>
    %cst_2 = arith.constant 0.000000e+00 : f32
    %cst_3 = arith.constant -1.000000e+09 : f32
    %10 = vector.broadcast %cst_2 : f32 to vector<8x8xf32>
    %11 = vector.broadcast %cst_3 : f32 to vector<8x8xf32>
    %12 = arith.select %9, %10, %11 : vector<8x8xi1>, vector<8x8xf32>
    %13 = vector.shape_cast %12 : vector<8x8xf32> to vector<1x8x8xf32>
    %c0_4 = arith.constant 0 : index
    %c0_5 = arith.constant 0 : index
    %14 = vector.load %arg0[%c0_4, %c0_5] : memref<16x32xf32, #tpu.memory_space<vmem>>, vector<16x32xf32>
    %15 = vector.shape_cast %14 : vector<16x32xf32> to vector<2x8x32xf32>
    %c64 = arith.constant 64 : index
    %c0_6 = arith.constant 0 : index
    %16 = vector.load %arg5[%c64, %c0_6] : memref<496x128xf32, #tpu.memory_space<vmem>>, vector<8x32xf32>
    %17 = vector.shape_cast %16 : vector<8x32xf32> to vector<1x8x32xf32>
    %18 = vector.broadcast %17 : vector<1x8x32xf32> to vector<2x8x32xf32>
    %19 = arith.addf %15, %18 : vector<2x8x32xf32>
    %20 = vector.shape_cast %19 : vector<2x8x32xf32> to vector<16x32xf32>
    %cst_7 = arith.constant dense<0.000000e+00> : vector<16xf32>
    %21 = vector.multi_reduction <add>, %20, %cst_7 [1] : vector<16x32xf32> to vector<16xf32>
    %22 = vector.shape_cast %21 : vector<16xf32> to vector<16x1xf32>
    %cst_8 = arith.constant 3.200000e+01 : f32
    %23 = vector.broadcast %cst_8 : f32 to vector<16x1xf32>
    %24 = arith.divf %22, %23 : vector<16x1xf32>
    %25 = vector.broadcast %24 : vector<16x1xf32> to vector<16x32xf32>
    %26 = arith.subf %20, %25 : vector<16x32xf32>
    %27 = arith.mulf %26, %26 : vector<16x32xf32>
    %cst_9 = arith.constant dense<0.000000e+00> : vector<16xf32>
    %28 = vector.multi_reduction <add>, %27, %cst_9 [1] : vector<16x32xf32> to vector<16xf32>
    %29 = vector.shape_cast %28 : vector<16xf32> to vector<16x1xf32>
    %cst_10 = arith.constant 3.200000e+01 : f32
    %30 = vector.broadcast %cst_10 : f32 to vector<16x1xf32>
    %31 = arith.divf %29, %30 : vector<16x1xf32>
    %32 = vector.broadcast %24 : vector<16x1xf32> to vector<16x32xf32>
    %33 = arith.subf %20, %32 : vector<16x32xf32>
    %cst_11 = arith.constant 9.99999974E-6 : f32
    %34 = vector.broadcast %cst_11 : f32 to vector<16x1xf32>
    %35 = arith.addf %31, %34 : vector<16x1xf32>
    %36 = math.rsqrt %35 : vector<16x1xf32>
    %37 = vector.broadcast %36 : vector<16x1xf32> to vector<16x32xf32>
    %38 = arith.mulf %33, %37 : vector<16x32xf32>
    %c1 = arith.constant 1 : index
    %c0_12 = arith.constant 0 : index
    %39 = vector.load %arg4[%c1, %c0_12] : memref<32x128xf32, #tpu.memory_space<vmem>>, vector<1x32xf32>
    %40 = vector.broadcast %39 : vector<1x32xf32> to vector<16x32xf32>
    %41 = arith.mulf %38, %40 : vector<16x32xf32>
    %c2 = arith.constant 2 : index
    %c0_13 = arith.constant 0 : index
    %42 = vector.load %arg4[%c2, %c0_13] : memref<32x128xf32, #tpu.memory_space<vmem>>, vector<1x32xf32>
    %43 = vector.broadcast %42 : vector<1x32xf32> to vector<16x32xf32>
    %44 = arith.addf %41, %43 : vector<16x32xf32>
    %cst_14 = arith.constant dense<0.000000e+00> : vector<16xf32>
    %45 = vector.multi_reduction <add>, %44, %cst_14 [1] : vector<16x32xf32> to vector<16xf32>
    %46 = vector.shape_cast %45 : vector<16xf32> to vector<16x1xf32>
    %cst_15 = arith.constant 3.200000e+01 : f32
    %47 = vector.broadcast %cst_15 : f32 to vector<16x1xf32>
    %48 = arith.divf %46, %47 : vector<16x1xf32>
    %49 = vector.broadcast %48 : vector<16x1xf32> to vector<16x32xf32>
    %50 = arith.subf %44, %49 : vector<16x32xf32>
    %51 = arith.mulf %50, %50 : vector<16x32xf32>
    %cst_16 = arith.constant dense<0.000000e+00> : vector<16xf32>
    %52 = vector.multi_reduction <add>, %51, %cst_16 [1] : vector<16x32xf32> to vector<16xf32>
    %53 = vector.shape_cast %52 : vector<16xf32> to vector<16x1xf32>
    %cst_17 = arith.constant 3.200000e+01 : f32
    %54 = vector.broadcast %cst_17 : f32 to vector<16x1xf32>
    %55 = arith.divf %53, %54 : vector<16x1xf32>
    %56 = vector.broadcast %48 : vector<16x1xf32> to vector<16x32xf32>
    %57 = arith.subf %44, %56 : vector<16x32xf32>
    %cst_18 = arith.constant 9.99999974E-6 : f32
    %58 = vector.broadcast %cst_18 : f32 to vector<16x1xf32>
    %59 = arith.addf %55, %58 : vector<16x1xf32>
    %60 = math.rsqrt %59 : vector<16x1xf32>
    %61 = vector.broadcast %60 : vector<16x1xf32> to vector<16x32xf32>
    %62 = arith.mulf %57, %61 : vector<16x32xf32>
    %c9 = arith.constant 9 : index
    %c0_19 = arith.constant 0 : index
    %63 = vector.load %arg4[%c9, %c0_19] : memref<32x128xf32, #tpu.memory_space<vmem>>, vector<1x32xf32>
    %64 = vector.broadcast %63 : vector<1x32xf32> to vector<16x32xf32>
    %65 = arith.mulf %62, %64 : vector<16x32xf32>
    %c10 = arith.constant 10 : index
    %c0_20 = arith.constant 0 : index
    %66 = vector.load %arg4[%c10, %c0_20] : memref<32x128xf32, #tpu.memory_space<vmem>>, vector<1x32xf32>
    %67 = vector.broadcast %66 : vector<1x32xf32> to vector<16x32xf32>
    %68 = arith.addf %65, %67 : vector<16x32xf32>
    %c80 = arith.constant 80 : index
    %c0_21 = arith.constant 0 : index
    %69 = vector.load %arg5[%c80, %c0_21] : memref<496x128xf32, #tpu.memory_space<vmem>>, vector<32x96xf32>
    %cst_22 = arith.constant dense<0.000000e+00> : vector<16x96xf32>
    %70 = tpu.matmul %68, %69, %cst_22 {dimension_numbers = #tpu.dot_dimension_numbers<[1], [0], [0], [1], [0, 0, 1, 1], [], []>} : vector<16x32xf32>, vector<32x96xf32>, vector<16x96xf32> -> vector<16x96xf32>
    %c11 = arith.constant 11 : index
    %c0_23 = arith.constant 0 : index
    %71 = vector.load %arg4[%c11, %c0_23] : memref<32x128xf32, #tpu.memory_space<vmem>>, vector<1x96xf32>
    %72 = vector.broadcast %71 : vector<1x96xf32> to vector<16x96xf32>
    %73 = arith.addf %70, %72 : vector<16x96xf32>
    %74 = vector.extract_strided_slice %73 {offsets = [0, 0], sizes = [16, 32], strides = [1, 1]} : vector<16x96xf32> to vector<16x32xf32>
    %75 = vector.extract_strided_slice %73 {offsets = [0, 32], sizes = [16, 32], strides = [1, 1]} : vector<16x96xf32> to vector<16x32xf32>
    %76 = vector.extract_strided_slice %73 {offsets = [0, 64], sizes = [16, 32], strides = [1, 1]} : vector<16x96xf32> to vector<16x32xf32>
    %77 = vector.shape_cast %74 : vector<16x32xf32> to vector<2x8x32xf32>
    %78 = vector.shape_cast %75 : vector<16x32xf32> to vector<2x8x32xf32>
    %79 = vector.shape_cast %76 : vector<16x32xf32> to vector<2x8x32xf32>
    %80 = vector.extract_strided_slice %77 {offsets = [0, 0, 0], sizes = [2, 8, 8], strides = [1, 1, 1]} : vector<2x8x32xf32> to vector<2x8x8xf32>
    %81 = vector.extract_strided_slice %78 {offsets = [0, 0, 0], sizes = [2, 8, 8], strides = [1, 1, 1]} : vector<2x8x32xf32> to vector<2x8x8xf32>
    "tpu.trace_start"() <{level = 10 : i32, message = "bqd,bkd->bqk"}> : () -> ()
    %cst_24 = arith.constant dense<0.000000e+00> : vector<2x8x8xf32>
    %82 = tpu.matmul %80, %81, %cst_24 {dimension_numbers = #tpu.dot_dimension_numbers<[2], [2], [1], [1], [0, 0, 0, 1, 1, 1], [0], [0]>} : vector<2x8x8xf32>, vector<2x8x8xf32>, vector<2x8x8xf32> -> vector<2x8x8xf32>
    "tpu.trace_stop"() : () -> ()
    %cst_25 = arith.constant 0.353553385 : f32
    %83 = vector.broadcast %cst_25 : f32 to vector<2x8x8xf32>
    %84 = arith.mulf %82, %83 : vector<2x8x8xf32>
    %85 = vector.broadcast %6 : vector<2x1x8xf32> to vector<2x8x8xf32>
    %86 = arith.addf %84, %85 : vector<2x8x8xf32>
    %cst_26 = arith.constant dense<0xFF800000> : vector<2x8xf32>
    %87 = vector.multi_reduction <maximumf>, %86, %cst_26 [2] : vector<2x8x8xf32> to vector<2x8xf32>
    %88 = vector.shape_cast %87 : vector<2x8xf32> to vector<2x8x1xf32>
    %89 = vector.broadcast %88 : vector<2x8x1xf32> to vector<2x8x8xf32>
    %90 = arith.subf %86, %89 : vector<2x8x8xf32>
    %91 = math.exp %90 : vector<2x8x8xf32>
    %cst_27 = arith.constant dense<0.000000e+00> : vector<2x8xf32>
    %92 = vector.multi_reduction <add>, %91, %cst_27 [2] : vector<2x8x8xf32> to vector<2x8xf32>
    %93 = vector.shape_cast %92 : vector<2x8xf32> to vector<2x8x1xf32>
    %94 = tpu.reciprocal %93 {approx = true} : vector<2x8x1xf32> -> vector<2x8x1xf32>
    %95 = vector.broadcast %94 : vector<2x8x1xf32> to vector<2x8x8xf32>
    %96 = arith.mulf %91, %95 : vector<2x8x8xf32>
    %97 = vector.extract_strided_slice %79 {offsets = [0, 0, 0], sizes = [2, 8, 8], strides = [1, 1, 1]} : vector<2x8x32xf32> to vector<2x8x8xf32>
    "tpu.trace_start"() <{level = 10 : i32, message = "bqk,bkd->bqd"}> : () -> ()
    %cst_28 = arith.constant dense<0.000000e+00> : vector<2x8x8xf32>
    %98 = tpu.matmul %96, %97, %cst_28 {dimension_numbers = #tpu.dot_dimension_numbers<[2], [1], [1], [2], [0, 0, 0, 1, 1, 2], [0], [0]>} : vector<2x8x8xf32>, vector<2x8x8xf32>, vector<2x8x8xf32> -> vector<2x8x8xf32>
    "tpu.trace_stop"() : () -> ()
    %99 = vector.extract_strided_slice %77 {offsets = [0, 0, 8], sizes = [2, 8, 8], strides = [1, 1, 1]} : vector<2x8x32xf32> to vector<2x8x8xf32>
    %100 = vector.extract_strided_slice %78 {offsets = [0, 0, 8], sizes = [2, 8, 8], strides = [1, 1, 1]} : vector<2x8x32xf32> to vector<2x8x8xf32>
    "tpu.trace_start"() <{level = 10 : i32, message = "bqd,bkd->bqk"}> : () -> ()
    %cst_29 = arith.constant dense<0.000000e+00> : vector<2x8x8xf32>
    %101 = tpu.matmul %99, %100, %cst_29 {dimension_numbers = #tpu.dot_dimension_numbers<[2], [2], [1], [1], [0, 0, 0, 1, 1, 1], [0], [0]>} : vector<2x8x8xf32>, vector<2x8x8xf32>, vector<2x8x8xf32> -> vector<2x8x8xf32>
    "tpu.trace_stop"() : () -> ()
    %cst_30 = arith.constant 0.353553385 : f32
    %102 = vector.broadcast %cst_30 : f32 to vector<2x8x8xf32>
    %103 = arith.mulf %101, %102 : vector<2x8x8xf32>
    %104 = vector.broadcast %6 : vector<2x1x8xf32> to vector<2x8x8xf32>
    %105 = arith.addf %103, %104 : vector<2x8x8xf32>
    %cst_31 = arith.constant dense<0xFF800000> : vector<2x8xf32>
    %106 = vector.multi_reduction <maximumf>, %105, %cst_31 [2] : vector<2x8x8xf32> to vector<2x8xf32>
    %107 = vector.shape_cast %106 : vector<2x8xf32> to vector<2x8x1xf32>
    %108 = vector.broadcast %107 : vector<2x8x1xf32> to vector<2x8x8xf32>
    %109 = arith.subf %105, %108 : vector<2x8x8xf32>
    %110 = math.exp %109 : vector<2x8x8xf32>
    %cst_32 = arith.constant dense<0.000000e+00> : vector<2x8xf32>
    %111 = vector.multi_reduction <add>, %110, %cst_32 [2] : vector<2x8x8xf32> to vector<2x8xf32>
    %112 = vector.shape_cast %111 : vector<2x8xf32> to vector<2x8x1xf32>
    %113 = tpu.reciprocal %112 {approx = true} : vector<2x8x1xf32> -> vector<2x8x1xf32>
    %114 = vector.broadcast %113 : vector<2x8x1xf32> to vector<2x8x8xf32>
    %115 = arith.mulf %110, %114 : vector<2x8x8xf32>
    %116 = vector.extract_strided_slice %79 {offsets = [0, 0, 8], sizes = [2, 8, 8], strides = [1, 1, 1]} : vector<2x8x32xf32> to vector<2x8x8xf32>
    "tpu.trace_start"() <{level = 10 : i32, message = "bqk,bkd->bqd"}> : () -> ()
    %cst_33 = arith.constant dense<0.000000e+00> : vector<2x8x8xf32>
    %117 = tpu.matmul %115, %116, %cst_33 {dimension_numbers = #tpu.dot_dimension_numbers<[2], [1], [1], [2], [0, 0, 0, 1, 1, 2], [0], [0]>} : vector<2x8x8xf32>, vector<2x8x8xf32>, vector<2x8x8xf32> -> vector<2x8x8xf32>
    "tpu.trace_stop"() : () -> ()
    %118 = vector.extract_strided_slice %77 {offsets = [0, 0, 16], sizes = [2, 8, 8], strides = [1, 1, 1]} : vector<2x8x32xf32> to vector<2x8x8xf32>
    %119 = vector.extract_strided_slice %78 {offsets = [0, 0, 16], sizes = [2, 8, 8], strides = [1, 1, 1]} : vector<2x8x32xf32> to vector<2x8x8xf32>
    "tpu.trace_start"() <{level = 10 : i32, message = "bqd,bkd->bqk"}> : () -> ()
    %cst_34 = arith.constant dense<0.000000e+00> : vector<2x8x8xf32>
    %120 = tpu.matmul %118, %119, %cst_34 {dimension_numbers = #tpu.dot_dimension_numbers<[2], [2], [1], [1], [0, 0, 0, 1, 1, 1], [0], [0]>} : vector<2x8x8xf32>, vector<2x8x8xf32>, vector<2x8x8xf32> -> vector<2x8x8xf32>
    "tpu.trace_stop"() : () -> ()
    %cst_35 = arith.constant 0.353553385 : f32
    %121 = vector.broadcast %cst_35 : f32 to vector<2x8x8xf32>
    %122 = arith.mulf %120, %121 : vector<2x8x8xf32>
    %123 = vector.broadcast %6 : vector<2x1x8xf32> to vector<2x8x8xf32>
    %124 = arith.addf %122, %123 : vector<2x8x8xf32>
    %cst_36 = arith.constant dense<0xFF800000> : vector<2x8xf32>
    %125 = vector.multi_reduction <maximumf>, %124, %cst_36 [2] : vector<2x8x8xf32> to vector<2x8xf32>
    %126 = vector.shape_cast %125 : vector<2x8xf32> to vector<2x8x1xf32>
    %127 = vector.broadcast %126 : vector<2x8x1xf32> to vector<2x8x8xf32>
    %128 = arith.subf %124, %127 : vector<2x8x8xf32>
    %129 = math.exp %128 : vector<2x8x8xf32>
    %cst_37 = arith.constant dense<0.000000e+00> : vector<2x8xf32>
    %130 = vector.multi_reduction <add>, %129, %cst_37 [2] : vector<2x8x8xf32> to vector<2x8xf32>
    %131 = vector.shape_cast %130 : vector<2x8xf32> to vector<2x8x1xf32>
    %132 = tpu.reciprocal %131 {approx = true} : vector<2x8x1xf32> -> vector<2x8x1xf32>
    %133 = vector.broadcast %132 : vector<2x8x1xf32> to vector<2x8x8xf32>
    %134 = arith.mulf %129, %133 : vector<2x8x8xf32>
    %135 = vector.extract_strided_slice %79 {offsets = [0, 0, 16], sizes = [2, 8, 8], strides = [1, 1, 1]} : vector<2x8x32xf32> to vector<2x8x8xf32>
    "tpu.trace_start"() <{level = 10 : i32, message = "bqk,bkd->bqd"}> : () -> ()
    %cst_38 = arith.constant dense<0.000000e+00> : vector<2x8x8xf32>
    %136 = tpu.matmul %134, %135, %cst_38 {dimension_numbers = #tpu.dot_dimension_numbers<[2], [1], [1], [2], [0, 0, 0, 1, 1, 2], [0], [0]>} : vector<2x8x8xf32>, vector<2x8x8xf32>, vector<2x8x8xf32> -> vector<2x8x8xf32>
    "tpu.trace_stop"() : () -> ()
    %137 = vector.extract_strided_slice %77 {offsets = [0, 0, 24], sizes = [2, 8, 8], strides = [1, 1, 1]} : vector<2x8x32xf32> to vector<2x8x8xf32>
    %138 = vector.extract_strided_slice %78 {offsets = [0, 0, 24], sizes = [2, 8, 8], strides = [1, 1, 1]} : vector<2x8x32xf32> to vector<2x8x8xf32>
    "tpu.trace_start"() <{level = 10 : i32, message = "bqd,bkd->bqk"}> : () -> ()
    %cst_39 = arith.constant dense<0.000000e+00> : vector<2x8x8xf32>
    %139 = tpu.matmul %137, %138, %cst_39 {dimension_numbers = #tpu.dot_dimension_numbers<[2], [2], [1], [1], [0, 0, 0, 1, 1, 1], [0], [0]>} : vector<2x8x8xf32>, vector<2x8x8xf32>, vector<2x8x8xf32> -> vector<2x8x8xf32>
    "tpu.trace_stop"() : () -> ()
    %cst_40 = arith.constant 0.353553385 : f32
    %140 = vector.broadcast %cst_40 : f32 to vector<2x8x8xf32>
    %141 = arith.mulf %139, %140 : vector<2x8x8xf32>
    %142 = vector.broadcast %6 : vector<2x1x8xf32> to vector<2x8x8xf32>
    %143 = arith.addf %141, %142 : vector<2x8x8xf32>
    %cst_41 = arith.constant dense<0xFF800000> : vector<2x8xf32>
    %144 = vector.multi_reduction <maximumf>, %143, %cst_41 [2] : vector<2x8x8xf32> to vector<2x8xf32>
    %145 = vector.shape_cast %144 : vector<2x8xf32> to vector<2x8x1xf32>
    %146 = vector.broadcast %145 : vector<2x8x1xf32> to vector<2x8x8xf32>
    %147 = arith.subf %143, %146 : vector<2x8x8xf32>
    %148 = math.exp %147 : vector<2x8x8xf32>
    %cst_42 = arith.constant dense<0.000000e+00> : vector<2x8xf32>
    %149 = vector.multi_reduction <add>, %148, %cst_42 [2] : vector<2x8x8xf32> to vector<2x8xf32>
    %150 = vector.shape_cast %149 : vector<2x8xf32> to vector<2x8x1xf32>
    %151 = tpu.reciprocal %150 {approx = true} : vector<2x8x1xf32> -> vector<2x8x1xf32>
    %152 = vector.broadcast %151 : vector<2x8x1xf32> to vector<2x8x8xf32>
    %153 = arith.mulf %148, %152 : vector<2x8x8xf32>
    %154 = vector.extract_strided_slice %79 {offsets = [0, 0, 24], sizes = [2, 8, 8], strides = [1, 1, 1]} : vector<2x8x32xf32> to vector<2x8x8xf32>
    "tpu.trace_start"() <{level = 10 : i32, message = "bqk,bkd->bqd"}> : () -> ()
    %cst_43 = arith.constant dense<0.000000e+00> : vector<2x8x8xf32>
    %155 = tpu.matmul %153, %154, %cst_43 {dimension_numbers = #tpu.dot_dimension_numbers<[2], [1], [1], [2], [0, 0, 0, 1, 1, 2], [0], [0]>} : vector<2x8x8xf32>, vector<2x8x8xf32>, vector<2x8x8xf32> -> vector<2x8x8xf32>
    "tpu.trace_stop"() : () -> ()
    %156 = tpu.concatenate %98, %117, %136, %155 in 2 : vector<2x8x8xf32>, vector<2x8x8xf32>, vector<2x8x8xf32>, vector<2x8x8xf32> -> vector<2x8x32xf32>
    %157 = vector.shape_cast %156 : vector<2x8x32xf32> to vector<16x32xf32>
    %c112 = arith.constant 112 : index
    %c0_44 = arith.constant 0 : index
    %158 = vector.load %arg5[%c112, %c0_44] : memref<496x128xf32, #tpu.memory_space<vmem>>, vector<32x32xf32>
    %cst_45 = arith.constant dense<0.000000e+00> : vector<16x32xf32>
    %159 = tpu.matmul %157, %158, %cst_45 {dimension_numbers = #tpu.dot_dimension_numbers<[1], [0], [0], [1], [0, 0, 1, 1], [], []>} : vector<16x32xf32>, vector<32x32xf32>, vector<16x32xf32> -> vector<16x32xf32>
    %c12 = arith.constant 12 : index
    %c0_46 = arith.constant 0 : index
    %160 = vector.load %arg4[%c12, %c0_46] : memref<32x128xf32, #tpu.memory_space<vmem>>, vector<1x32xf32>
    %161 = vector.broadcast %160 : vector<1x32xf32> to vector<16x32xf32>
    %162 = arith.addf %159, %161 : vector<16x32xf32>
    %163 = arith.addf %44, %162 : vector<16x32xf32>
    %cst_47 = arith.constant dense<0.000000e+00> : vector<16xf32>
    %164 = vector.multi_reduction <add>, %163, %cst_47 [1] : vector<16x32xf32> to vector<16xf32>
    %165 = vector.shape_cast %164 : vector<16xf32> to vector<16x1xf32>
    %cst_48 = arith.constant 3.200000e+01 : f32
    %166 = vector.broadcast %cst_48 : f32 to vector<16x1xf32>
    %167 = arith.divf %165, %166 : vector<16x1xf32>
    %168 = vector.broadcast %167 : vector<16x1xf32> to vector<16x32xf32>
    %169 = arith.subf %163, %168 : vector<16x32xf32>
    %170 = arith.mulf %169, %169 : vector<16x32xf32>
    %cst_49 = arith.constant dense<0.000000e+00> : vector<16xf32>
    %171 = vector.multi_reduction <add>, %170, %cst_49 [1] : vector<16x32xf32> to vector<16xf32>
    %172 = vector.shape_cast %171 : vector<16xf32> to vector<16x1xf32>
    %cst_50 = arith.constant 3.200000e+01 : f32
    %173 = vector.broadcast %cst_50 : f32 to vector<16x1xf32>
    %174 = arith.divf %172, %173 : vector<16x1xf32>
    %175 = vector.broadcast %167 : vector<16x1xf32> to vector<16x32xf32>
    %176 = arith.subf %163, %175 : vector<16x32xf32>
    %cst_51 = arith.constant 9.99999974E-6 : f32
    %177 = vector.broadcast %cst_51 : f32 to vector<16x1xf32>
    %178 = arith.addf %174, %177 : vector<16x1xf32>
    %179 = math.rsqrt %178 : vector<16x1xf32>
    %180 = vector.broadcast %179 : vector<16x1xf32> to vector<16x32xf32>
    %181 = arith.mulf %176, %180 : vector<16x32xf32>
    %c13 = arith.constant 13 : index
    %c0_52 = arith.constant 0 : index
    %182 = vector.load %arg4[%c13, %c0_52] : memref<32x128xf32, #tpu.memory_space<vmem>>, vector<1x32xf32>
    %183 = vector.broadcast %182 : vector<1x32xf32> to vector<16x32xf32>
    %184 = arith.mulf %181, %183 : vector<16x32xf32>
    %c14 = arith.constant 14 : index
    %c0_53 = arith.constant 0 : index
    %185 = vector.load %arg4[%c14, %c0_53] : memref<32x128xf32, #tpu.memory_space<vmem>>, vector<1x32xf32>
    %186 = vector.broadcast %185 : vector<1x32xf32> to vector<16x32xf32>
    %187 = arith.addf %184, %186 : vector<16x32xf32>
    %c144 = arith.constant 144 : index
    %c0_54 = arith.constant 0 : index
    %188 = vector.load %arg5[%c144, %c0_54] : memref<496x128xf32, #tpu.memory_space<vmem>>, vector<32x64xf32>
    %cst_55 = arith.constant dense<0.000000e+00> : vector<16x64xf32>
    %189 = tpu.matmul %187, %188, %cst_55 {dimension_numbers = #tpu.dot_dimension_numbers<[1], [0], [0], [1], [0, 0, 1, 1], [], []>} : vector<16x32xf32>, vector<32x64xf32>, vector<16x64xf32> -> vector<16x64xf32>
    %c15 = arith.constant 15 : index
    %c0_56 = arith.constant 0 : index
    %190 = vector.load %arg4[%c15, %c0_56] : memref<32x128xf32, #tpu.memory_space<vmem>>, vector<1x64xf32>
    %191 = vector.broadcast %190 : vector<1x64xf32> to vector<16x64xf32>
    %192 = arith.addf %189, %191 : vector<16x64xf32>
    %193 = arith.mulf %192, %192 : vector<16x64xf32>
    %194 = arith.mulf %192, %193 : vector<16x64xf32>
    %cst_57 = arith.constant 4.471500e-02 : f32
    %195 = vector.broadcast %cst_57 : f32 to vector<16x64xf32>
    %196 = arith.mulf %195, %194 : vector<16x64xf32>
    %197 = arith.addf %192, %196 : vector<16x64xf32>
    %cst_58 = arith.constant 0.797884583 : f32
    %198 = vector.broadcast %cst_58 : f32 to vector<16x64xf32>
    %199 = arith.mulf %198, %197 : vector<16x64xf32>
    %200 = math.tanh %199 : vector<16x64xf32>
    %cst_59 = arith.constant 1.000000e+00 : f32
    %201 = vector.broadcast %cst_59 : f32 to vector<16x64xf32>
    %202 = arith.addf %201, %200 : vector<16x64xf32>
    %cst_60 = arith.constant 5.000000e-01 : f32
    %203 = vector.broadcast %cst_60 : f32 to vector<16x64xf32>
    %204 = arith.mulf %203, %202 : vector<16x64xf32>
    %205 = arith.mulf %192, %204 : vector<16x64xf32>
    %c176 = arith.constant 176 : index
    %c0_61 = arith.constant 0 : index
    %206 = vector.load %arg5[%c176, %c0_61] : memref<496x128xf32, #tpu.memory_space<vmem>>, vector<64x32xf32>
    %cst_62 = arith.constant dense<0.000000e+00> : vector<16x32xf32>
    %207 = tpu.matmul %205, %206, %cst_62 {dimension_numbers = #tpu.dot_dimension_numbers<[1], [0], [0], [1], [0, 0, 1, 1], [], []>} : vector<16x64xf32>, vector<64x32xf32>, vector<16x32xf32> -> vector<16x32xf32>
    %c16 = arith.constant 16 : index
    %c0_63 = arith.constant 0 : index
    %208 = vector.load %arg4[%c16, %c0_63] : memref<32x128xf32, #tpu.memory_space<vmem>>, vector<1x32xf32>
    %209 = vector.broadcast %208 : vector<1x32xf32> to vector<16x32xf32>
    %210 = arith.addf %207, %209 : vector<16x32xf32>
    %211 = arith.addf %163, %210 : vector<16x32xf32>
    %cst_64 = arith.constant dense<0.000000e+00> : vector<16xf32>
    %212 = vector.multi_reduction <add>, %211, %cst_64 [1] : vector<16x32xf32> to vector<16xf32>
    %213 = vector.shape_cast %212 : vector<16xf32> to vector<16x1xf32>
    %cst_65 = arith.constant 3.200000e+01 : f32
    %214 = vector.broadcast %cst_65 : f32 to vector<16x1xf32>
    %215 = arith.divf %213, %214 : vector<16x1xf32>
    %216 = vector.broadcast %215 : vector<16x1xf32> to vector<16x32xf32>
    %217 = arith.subf %211, %216 : vector<16x32xf32>
    %218 = arith.mulf %217, %217 : vector<16x32xf32>
    %cst_66 = arith.constant dense<0.000000e+00> : vector<16xf32>
    %219 = vector.multi_reduction <add>, %218, %cst_66 [1] : vector<16x32xf32> to vector<16xf32>
    %220 = vector.shape_cast %219 : vector<16xf32> to vector<16x1xf32>
    %cst_67 = arith.constant 3.200000e+01 : f32
    %221 = vector.broadcast %cst_67 : f32 to vector<16x1xf32>
    %222 = arith.divf %220, %221 : vector<16x1xf32>
    %223 = vector.broadcast %215 : vector<16x1xf32> to vector<16x32xf32>
    %224 = arith.subf %211, %223 : vector<16x32xf32>
    %cst_68 = arith.constant 9.99999974E-6 : f32
    %225 = vector.broadcast %cst_68 : f32 to vector<16x1xf32>
    %226 = arith.addf %222, %225 : vector<16x1xf32>
    %227 = math.rsqrt %226 : vector<16x1xf32>
    %228 = vector.broadcast %227 : vector<16x1xf32> to vector<16x32xf32>
    %229 = arith.mulf %224, %228 : vector<16x32xf32>
    %c3 = arith.constant 3 : index
    %c0_69 = arith.constant 0 : index
    %230 = vector.load %arg4[%c3, %c0_69] : memref<32x128xf32, #tpu.memory_space<vmem>>, vector<1x32xf32>
    %231 = vector.broadcast %230 : vector<1x32xf32> to vector<16x32xf32>
    %232 = arith.mulf %229, %231 : vector<16x32xf32>
    %c4 = arith.constant 4 : index
    %c0_70 = arith.constant 0 : index
    %233 = vector.load %arg4[%c4, %c0_70] : memref<32x128xf32, #tpu.memory_space<vmem>>, vector<1x32xf32>
    %234 = vector.broadcast %233 : vector<1x32xf32> to vector<16x32xf32>
    %235 = arith.addf %232, %234 : vector<16x32xf32>
    %c0_71 = arith.constant 0 : index
    %c0_72 = arith.constant 0 : index
    %236 = vector.load %arg1[%c0_71, %c0_72] : memref<16x32xf32, #tpu.memory_space<vmem>>, vector<16x32xf32>
    %237 = vector.shape_cast %236 : vector<16x32xf32> to vector<2x8x32xf32>
    %c72 = arith.constant 72 : index
    %c0_73 = arith.constant 0 : index
    %238 = vector.load %arg5[%c72, %c0_73] : memref<496x128xf32, #tpu.memory_space<vmem>>, vector<8x32xf32>
    %239 = vector.shape_cast %238 : vector<8x32xf32> to vector<1x8x32xf32>
    %240 = vector.broadcast %239 : vector<1x8x32xf32> to vector<2x8x32xf32>
    %241 = arith.addf %237, %240 : vector<2x8x32xf32>
    %242 = vector.shape_cast %241 : vector<2x8x32xf32> to vector<16x32xf32>
    %cst_74 = arith.constant dense<0.000000e+00> : vector<16xf32>
    %243 = vector.multi_reduction <add>, %242, %cst_74 [1] : vector<16x32xf32> to vector<16xf32>
    %244 = vector.shape_cast %243 : vector<16xf32> to vector<16x1xf32>
    %cst_75 = arith.constant 3.200000e+01 : f32
    %245 = vector.broadcast %cst_75 : f32 to vector<16x1xf32>
    %246 = arith.divf %244, %245 : vector<16x1xf32>
    %247 = vector.broadcast %246 : vector<16x1xf32> to vector<16x32xf32>
    %248 = arith.subf %242, %247 : vector<16x32xf32>
    %249 = arith.mulf %248, %248 : vector<16x32xf32>
    %cst_76 = arith.constant dense<0.000000e+00> : vector<16xf32>
    %250 = vector.multi_reduction <add>, %249, %cst_76 [1] : vector<16x32xf32> to vector<16xf32>
    %251 = vector.shape_cast %250 : vector<16xf32> to vector<16x1xf32>
    %cst_77 = arith.constant 3.200000e+01 : f32
    %252 = vector.broadcast %cst_77 : f32 to vector<16x1xf32>
    %253 = arith.divf %251, %252 : vector<16x1xf32>
    %254 = vector.broadcast %246 : vector<16x1xf32> to vector<16x32xf32>
    %255 = arith.subf %242, %254 : vector<16x32xf32>
    %cst_78 = arith.constant 9.99999974E-6 : f32
    %256 = vector.broadcast %cst_78 : f32 to vector<16x1xf32>
    %257 = arith.addf %253, %256 : vector<16x1xf32>
    %258 = math.rsqrt %257 : vector<16x1xf32>
    %259 = vector.broadcast %258 : vector<16x1xf32> to vector<16x32xf32>
    %260 = arith.mulf %255, %259 : vector<16x32xf32>
    %c5 = arith.constant 5 : index
    %c0_79 = arith.constant 0 : index
    %261 = vector.load %arg4[%c5, %c0_79] : memref<32x128xf32, #tpu.memory_space<vmem>>, vector<1x32xf32>
    %262 = vector.broadcast %261 : vector<1x32xf32> to vector<16x32xf32>
    %263 = arith.mulf %260, %262 : vector<16x32xf32>
    %c6 = arith.constant 6 : index
    %c0_80 = arith.constant 0 : index
    %264 = vector.load %arg4[%c6, %c0_80] : memref<32x128xf32, #tpu.memory_space<vmem>>, vector<1x32xf32>
    %265 = vector.broadcast %264 : vector<1x32xf32> to vector<16x32xf32>
    %266 = arith.addf %263, %265 : vector<16x32xf32>
    %cst_81 = arith.constant dense<0.000000e+00> : vector<16xf32>
    %267 = vector.multi_reduction <add>, %266, %cst_81 [1] : vector<16x32xf32> to vector<16xf32>
    %268 = vector.shape_cast %267 : vector<16xf32> to vector<16x1xf32>
    %cst_82 = arith.constant 3.200000e+01 : f32
    %269 = vector.broadcast %cst_82 : f32 to vector<16x1xf32>
    %270 = arith.divf %268, %269 : vector<16x1xf32>
    %271 = vector.broadcast %270 : vector<16x1xf32> to vector<16x32xf32>
    %272 = arith.subf %266, %271 : vector<16x32xf32>
    %273 = arith.mulf %272, %272 : vector<16x32xf32>
    %cst_83 = arith.constant dense<0.000000e+00> : vector<16xf32>
    %274 = vector.multi_reduction <add>, %273, %cst_83 [1] : vector<16x32xf32> to vector<16xf32>
    %275 = vector.shape_cast %274 : vector<16xf32> to vector<16x1xf32>
    %cst_84 = arith.constant 3.200000e+01 : f32
    %276 = vector.broadcast %cst_84 : f32 to vector<16x1xf32>
    %277 = arith.divf %275, %276 : vector<16x1xf32>
    %278 = vector.broadcast %270 : vector<16x1xf32> to vector<16x32xf32>
    %279 = arith.subf %266, %278 : vector<16x32xf32>
    %cst_85 = arith.constant 9.99999974E-6 : f32
    %280 = vector.broadcast %cst_85 : f32 to vector<16x1xf32>
    %281 = arith.addf %277, %280 : vector<16x1xf32>
    %282 = math.rsqrt %281 : vector<16x1xf32>
    %283 = vector.broadcast %282 : vector<16x1xf32> to vector<16x32xf32>
    %284 = arith.mulf %279, %283 : vector<16x32xf32>
    %c17 = arith.constant 17 : index
    %c0_86 = arith.constant 0 : index
    %285 = vector.load %arg4[%c17, %c0_86] : memref<32x128xf32, #tpu.memory_space<vmem>>, vector<1x32xf32>
    %286 = vector.broadcast %285 : vector<1x32xf32> to vector<16x32xf32>
    %287 = arith.mulf %284, %286 : vector<16x32xf32>
    %c18 = arith.constant 18 : index
    %c0_87 = arith.constant 0 : index
    %288 = vector.load %arg4[%c18, %c0_87] : memref<32x128xf32, #tpu.memory_space<vmem>>, vector<1x32xf32>
    %289 = vector.broadcast %288 : vector<1x32xf32> to vector<16x32xf32>
    %290 = arith.addf %287, %289 : vector<16x32xf32>
    %c240 = arith.constant 240 : index
    %c0_88 = arith.constant 0 : index
    %291 = vector.load %arg5[%c240, %c0_88] : memref<496x128xf32, #tpu.memory_space<vmem>>, vector<32x96xf32>
    %cst_89 = arith.constant dense<0.000000e+00> : vector<16x96xf32>
    %292 = tpu.matmul %290, %291, %cst_89 {dimension_numbers = #tpu.dot_dimension_numbers<[1], [0], [0], [1], [0, 0, 1, 1], [], []>} : vector<16x32xf32>, vector<32x96xf32>, vector<16x96xf32> -> vector<16x96xf32>
    %c19 = arith.constant 19 : index
    %c0_90 = arith.constant 0 : index
    %293 = vector.load %arg4[%c19, %c0_90] : memref<32x128xf32, #tpu.memory_space<vmem>>, vector<1x96xf32>
    %294 = vector.broadcast %293 : vector<1x96xf32> to vector<16x96xf32>
    %295 = arith.addf %292, %294 : vector<16x96xf32>
    %296 = vector.extract_strided_slice %295 {offsets = [0, 0], sizes = [16, 32], strides = [1, 1]} : vector<16x96xf32> to vector<16x32xf32>
    %297 = vector.extract_strided_slice %295 {offsets = [0, 32], sizes = [16, 32], strides = [1, 1]} : vector<16x96xf32> to vector<16x32xf32>
    %298 = vector.extract_strided_slice %295 {offsets = [0, 64], sizes = [16, 32], strides = [1, 1]} : vector<16x96xf32> to vector<16x32xf32>
    %299 = vector.shape_cast %296 : vector<16x32xf32> to vector<2x8x32xf32>
    %300 = vector.shape_cast %297 : vector<16x32xf32> to vector<2x8x32xf32>
    %301 = vector.shape_cast %298 : vector<16x32xf32> to vector<2x8x32xf32>
    %302 = vector.extract_strided_slice %299 {offsets = [0, 0, 0], sizes = [2, 8, 8], strides = [1, 1, 1]} : vector<2x8x32xf32> to vector<2x8x8xf32>
    %303 = vector.extract_strided_slice %300 {offsets = [0, 0, 0], sizes = [2, 8, 8], strides = [1, 1, 1]} : vector<2x8x32xf32> to vector<2x8x8xf32>
    "tpu.trace_start"() <{level = 10 : i32, message = "bqd,bkd->bqk"}> : () -> ()
    %cst_91 = arith.constant dense<0.000000e+00> : vector<2x8x8xf32>
    %304 = tpu.matmul %302, %303, %cst_91 {dimension_numbers = #tpu.dot_dimension_numbers<[2], [2], [1], [1], [0, 0, 0, 1, 1, 1], [0], [0]>} : vector<2x8x8xf32>, vector<2x8x8xf32>, vector<2x8x8xf32> -> vector<2x8x8xf32>
    "tpu.trace_stop"() : () -> ()
    %cst_92 = arith.constant 0.353553385 : f32
    %305 = vector.broadcast %cst_92 : f32 to vector<2x8x8xf32>
    %306 = arith.mulf %304, %305 : vector<2x8x8xf32>
    %307 = vector.broadcast %13 : vector<1x8x8xf32> to vector<2x8x8xf32>
    %308 = arith.addf %306, %307 : vector<2x8x8xf32>
    %cst_93 = arith.constant dense<0xFF800000> : vector<2x8xf32>
    %309 = vector.multi_reduction <maximumf>, %308, %cst_93 [2] : vector<2x8x8xf32> to vector<2x8xf32>
    %310 = vector.shape_cast %309 : vector<2x8xf32> to vector<2x8x1xf32>
    %311 = vector.broadcast %310 : vector<2x8x1xf32> to vector<2x8x8xf32>
    %312 = arith.subf %308, %311 : vector<2x8x8xf32>
    %313 = math.exp %312 : vector<2x8x8xf32>
    %cst_94 = arith.constant dense<0.000000e+00> : vector<2x8xf32>
    %314 = vector.multi_reduction <add>, %313, %cst_94 [2] : vector<2x8x8xf32> to vector<2x8xf32>
    %315 = vector.shape_cast %314 : vector<2x8xf32> to vector<2x8x1xf32>
    %316 = tpu.reciprocal %315 {approx = true} : vector<2x8x1xf32> -> vector<2x8x1xf32>
    %317 = vector.broadcast %316 : vector<2x8x1xf32> to vector<2x8x8xf32>
    %318 = arith.mulf %313, %317 : vector<2x8x8xf32>
    %319 = vector.extract_strided_slice %301 {offsets = [0, 0, 0], sizes = [2, 8, 8], strides = [1, 1, 1]} : vector<2x8x32xf32> to vector<2x8x8xf32>
    "tpu.trace_start"() <{level = 10 : i32, message = "bqk,bkd->bqd"}> : () -> ()
    %cst_95 = arith.constant dense<0.000000e+00> : vector<2x8x8xf32>
    %320 = tpu.matmul %318, %319, %cst_95 {dimension_numbers = #tpu.dot_dimension_numbers<[2], [1], [1], [2], [0, 0, 0, 1, 1, 2], [0], [0]>} : vector<2x8x8xf32>, vector<2x8x8xf32>, vector<2x8x8xf32> -> vector<2x8x8xf32>
    "tpu.trace_stop"() : () -> ()
    %321 = vector.extract_strided_slice %299 {offsets = [0, 0, 8], sizes = [2, 8, 8], strides = [1, 1, 1]} : vector<2x8x32xf32> to vector<2x8x8xf32>
    %322 = vector.extract_strided_slice %300 {offsets = [0, 0, 8], sizes = [2, 8, 8], strides = [1, 1, 1]} : vector<2x8x32xf32> to vector<2x8x8xf32>
    "tpu.trace_start"() <{level = 10 : i32, message = "bqd,bkd->bqk"}> : () -> ()
    %cst_96 = arith.constant dense<0.000000e+00> : vector<2x8x8xf32>
    %323 = tpu.matmul %321, %322, %cst_96 {dimension_numbers = #tpu.dot_dimension_numbers<[2], [2], [1], [1], [0, 0, 0, 1, 1, 1], [0], [0]>} : vector<2x8x8xf32>, vector<2x8x8xf32>, vector<2x8x8xf32> -> vector<2x8x8xf32>
    "tpu.trace_stop"() : () -> ()
    %cst_97 = arith.constant 0.353553385 : f32
    %324 = vector.broadcast %cst_97 : f32 to vector<2x8x8xf32>
    %325 = arith.mulf %323, %324 : vector<2x8x8xf32>
    %326 = vector.broadcast %13 : vector<1x8x8xf32> to vector<2x8x8xf32>
    %327 = arith.addf %325, %326 : vector<2x8x8xf32>
    %cst_98 = arith.constant dense<0xFF800000> : vector<2x8xf32>
    %328 = vector.multi_reduction <maximumf>, %327, %cst_98 [2] : vector<2x8x8xf32> to vector<2x8xf32>
    %329 = vector.shape_cast %328 : vector<2x8xf32> to vector<2x8x1xf32>
    %330 = vector.broadcast %329 : vector<2x8x1xf32> to vector<2x8x8xf32>
    %331 = arith.subf %327, %330 : vector<2x8x8xf32>
    %332 = math.exp %331 : vector<2x8x8xf32>
    %cst_99 = arith.constant dense<0.000000e+00> : vector<2x8xf32>
    %333 = vector.multi_reduction <add>, %332, %cst_99 [2] : vector<2x8x8xf32> to vector<2x8xf32>
    %334 = vector.shape_cast %333 : vector<2x8xf32> to vector<2x8x1xf32>
    %335 = tpu.reciprocal %334 {approx = true} : vector<2x8x1xf32> -> vector<2x8x1xf32>
    %336 = vector.broadcast %335 : vector<2x8x1xf32> to vector<2x8x8xf32>
    %337 = arith.mulf %332, %336 : vector<2x8x8xf32>
    %338 = vector.extract_strided_slice %301 {offsets = [0, 0, 8], sizes = [2, 8, 8], strides = [1, 1, 1]} : vector<2x8x32xf32> to vector<2x8x8xf32>
    "tpu.trace_start"() <{level = 10 : i32, message = "bqk,bkd->bqd"}> : () -> ()
    %cst_100 = arith.constant dense<0.000000e+00> : vector<2x8x8xf32>
    %339 = tpu.matmul %337, %338, %cst_100 {dimension_numbers = #tpu.dot_dimension_numbers<[2], [1], [1], [2], [0, 0, 0, 1, 1, 2], [0], [0]>} : vector<2x8x8xf32>, vector<2x8x8xf32>, vector<2x8x8xf32> -> vector<2x8x8xf32>
    "tpu.trace_stop"() : () -> ()
    %340 = vector.extract_strided_slice %299 {offsets = [0, 0, 16], sizes = [2, 8, 8], strides = [1, 1, 1]} : vector<2x8x32xf32> to vector<2x8x8xf32>
    %341 = vector.extract_strided_slice %300 {offsets = [0, 0, 16], sizes = [2, 8, 8], strides = [1, 1, 1]} : vector<2x8x32xf32> to vector<2x8x8xf32>
    "tpu.trace_start"() <{level = 10 : i32, message = "bqd,bkd->bqk"}> : () -> ()
    %cst_101 = arith.constant dense<0.000000e+00> : vector<2x8x8xf32>
    %342 = tpu.matmul %340, %341, %cst_101 {dimension_numbers = #tpu.dot_dimension_numbers<[2], [2], [1], [1], [0, 0, 0, 1, 1, 1], [0], [0]>} : vector<2x8x8xf32>, vector<2x8x8xf32>, vector<2x8x8xf32> -> vector<2x8x8xf32>
    "tpu.trace_stop"() : () -> ()
    %cst_102 = arith.constant 0.353553385 : f32
    %343 = vector.broadcast %cst_102 : f32 to vector<2x8x8xf32>
    %344 = arith.mulf %342, %343 : vector<2x8x8xf32>
    %345 = vector.broadcast %13 : vector<1x8x8xf32> to vector<2x8x8xf32>
    %346 = arith.addf %344, %345 : vector<2x8x8xf32>
    %cst_103 = arith.constant dense<0xFF800000> : vector<2x8xf32>
    %347 = vector.multi_reduction <maximumf>, %346, %cst_103 [2] : vector<2x8x8xf32> to vector<2x8xf32>
    %348 = vector.shape_cast %347 : vector<2x8xf32> to vector<2x8x1xf32>
    %349 = vector.broadcast %348 : vector<2x8x1xf32> to vector<2x8x8xf32>
    %350 = arith.subf %346, %349 : vector<2x8x8xf32>
    %351 = math.exp %350 : vector<2x8x8xf32>
    %cst_104 = arith.constant dense<0.000000e+00> : vector<2x8xf32>
    %352 = vector.multi_reduction <add>, %351, %cst_104 [2] : vector<2x8x8xf32> to vector<2x8xf32>
    %353 = vector.shape_cast %352 : vector<2x8xf32> to vector<2x8x1xf32>
    %354 = tpu.reciprocal %353 {approx = true} : vector<2x8x1xf32> -> vector<2x8x1xf32>
    %355 = vector.broadcast %354 : vector<2x8x1xf32> to vector<2x8x8xf32>
    %356 = arith.mulf %351, %355 : vector<2x8x8xf32>
    %357 = vector.extract_strided_slice %301 {offsets = [0, 0, 16], sizes = [2, 8, 8], strides = [1, 1, 1]} : vector<2x8x32xf32> to vector<2x8x8xf32>
    "tpu.trace_start"() <{level = 10 : i32, message = "bqk,bkd->bqd"}> : () -> ()
    %cst_105 = arith.constant dense<0.000000e+00> : vector<2x8x8xf32>
    %358 = tpu.matmul %356, %357, %cst_105 {dimension_numbers = #tpu.dot_dimension_numbers<[2], [1], [1], [2], [0, 0, 0, 1, 1, 2], [0], [0]>} : vector<2x8x8xf32>, vector<2x8x8xf32>, vector<2x8x8xf32> -> vector<2x8x8xf32>
    "tpu.trace_stop"() : () -> ()
    %359 = vector.extract_strided_slice %299 {offsets = [0, 0, 24], sizes = [2, 8, 8], strides = [1, 1, 1]} : vector<2x8x32xf32> to vector<2x8x8xf32>
    %360 = vector.extract_strided_slice %300 {offsets = [0, 0, 24], sizes = [2, 8, 8], strides = [1, 1, 1]} : vector<2x8x32xf32> to vector<2x8x8xf32>
    "tpu.trace_start"() <{level = 10 : i32, message = "bqd,bkd->bqk"}> : () -> ()
    %cst_106 = arith.constant dense<0.000000e+00> : vector<2x8x8xf32>
    %361 = tpu.matmul %359, %360, %cst_106 {dimension_numbers = #tpu.dot_dimension_numbers<[2], [2], [1], [1], [0, 0, 0, 1, 1, 1], [0], [0]>} : vector<2x8x8xf32>, vector<2x8x8xf32>, vector<2x8x8xf32> -> vector<2x8x8xf32>
    "tpu.trace_stop"() : () -> ()
    %cst_107 = arith.constant 0.353553385 : f32
    %362 = vector.broadcast %cst_107 : f32 to vector<2x8x8xf32>
    %363 = arith.mulf %361, %362 : vector<2x8x8xf32>
    %364 = vector.broadcast %13 : vector<1x8x8xf32> to vector<2x8x8xf32>
    %365 = arith.addf %363, %364 : vector<2x8x8xf32>
    %cst_108 = arith.constant dense<0xFF800000> : vector<2x8xf32>
    %366 = vector.multi_reduction <maximumf>, %365, %cst_108 [2] : vector<2x8x8xf32> to vector<2x8xf32>
    %367 = vector.shape_cast %366 : vector<2x8xf32> to vector<2x8x1xf32>
    %368 = vector.broadcast %367 : vector<2x8x1xf32> to vector<2x8x8xf32>
    %369 = arith.subf %365, %368 : vector<2x8x8xf32>
    %370 = math.exp %369 : vector<2x8x8xf32>
    %cst_109 = arith.constant dense<0.000000e+00> : vector<2x8xf32>
    %371 = vector.multi_reduction <add>, %370, %cst_109 [2] : vector<2x8x8xf32> to vector<2x8xf32>
    %372 = vector.shape_cast %371 : vector<2x8xf32> to vector<2x8x1xf32>
    %373 = tpu.reciprocal %372 {approx = true} : vector<2x8x1xf32> -> vector<2x8x1xf32>
    %374 = vector.broadcast %373 : vector<2x8x1xf32> to vector<2x8x8xf32>
    %375 = arith.mulf %370, %374 : vector<2x8x8xf32>
    %376 = vector.extract_strided_slice %301 {offsets = [0, 0, 24], sizes = [2, 8, 8], strides = [1, 1, 1]} : vector<2x8x32xf32> to vector<2x8x8xf32>
    "tpu.trace_start"() <{level = 10 : i32, message = "bqk,bkd->bqd"}> : () -> ()
    %cst_110 = arith.constant dense<0.000000e+00> : vector<2x8x8xf32>
    %377 = tpu.matmul %375, %376, %cst_110 {dimension_numbers = #tpu.dot_dimension_numbers<[2], [1], [1], [2], [0, 0, 0, 1, 1, 2], [0], [0]>} : vector<2x8x8xf32>, vector<2x8x8xf32>, vector<2x8x8xf32> -> vector<2x8x8xf32>
    "tpu.trace_stop"() : () -> ()
    %378 = tpu.concatenate %320, %339, %358, %377 in 2 : vector<2x8x8xf32>, vector<2x8x8xf32>, vector<2x8x8xf32>, vector<2x8x8xf32> -> vector<2x8x32xf32>
    %379 = vector.shape_cast %378 : vector<2x8x32xf32> to vector<16x32xf32>
    %c272 = arith.constant 272 : index
    %c0_111 = arith.constant 0 : index
    %380 = vector.load %arg5[%c272, %c0_111] : memref<496x128xf32, #tpu.memory_space<vmem>>, vector<32x32xf32>
    %cst_112 = arith.constant dense<0.000000e+00> : vector<16x32xf32>
    %381 = tpu.matmul %379, %380, %cst_112 {dimension_numbers = #tpu.dot_dimension_numbers<[1], [0], [0], [1], [0, 0, 1, 1], [], []>} : vector<16x32xf32>, vector<32x32xf32>, vector<16x32xf32> -> vector<16x32xf32>
    %c20 = arith.constant 20 : index
    %c0_113 = arith.constant 0 : index
    %382 = vector.load %arg4[%c20, %c0_113] : memref<32x128xf32, #tpu.memory_space<vmem>>, vector<1x32xf32>
    %383 = vector.broadcast %382 : vector<1x32xf32> to vector<16x32xf32>
    %384 = arith.addf %381, %383 : vector<16x32xf32>
    %385 = arith.addf %266, %384 : vector<16x32xf32>
    %cst_114 = arith.constant dense<0.000000e+00> : vector<16xf32>
    %386 = vector.multi_reduction <add>, %385, %cst_114 [1] : vector<16x32xf32> to vector<16xf32>
    %387 = vector.shape_cast %386 : vector<16xf32> to vector<16x1xf32>
    %cst_115 = arith.constant 3.200000e+01 : f32
    %388 = vector.broadcast %cst_115 : f32 to vector<16x1xf32>
    %389 = arith.divf %387, %388 : vector<16x1xf32>
    %390 = vector.broadcast %389 : vector<16x1xf32> to vector<16x32xf32>
    %391 = arith.subf %385, %390 : vector<16x32xf32>
    %392 = arith.mulf %391, %391 : vector<16x32xf32>
    %cst_116 = arith.constant dense<0.000000e+00> : vector<16xf32>
    %393 = vector.multi_reduction <add>, %392, %cst_116 [1] : vector<16x32xf32> to vector<16xf32>
    %394 = vector.shape_cast %393 : vector<16xf32> to vector<16x1xf32>
    %cst_117 = arith.constant 3.200000e+01 : f32
    %395 = vector.broadcast %cst_117 : f32 to vector<16x1xf32>
    %396 = arith.divf %394, %395 : vector<16x1xf32>
    %397 = vector.broadcast %389 : vector<16x1xf32> to vector<16x32xf32>
    %398 = arith.subf %385, %397 : vector<16x32xf32>
    %cst_118 = arith.constant 9.99999974E-6 : f32
    %399 = vector.broadcast %cst_118 : f32 to vector<16x1xf32>
    %400 = arith.addf %396, %399 : vector<16x1xf32>
    %401 = math.rsqrt %400 : vector<16x1xf32>
    %402 = vector.broadcast %401 : vector<16x1xf32> to vector<16x32xf32>
    %403 = arith.mulf %398, %402 : vector<16x32xf32>
    %c21 = arith.constant 21 : index
    %c0_119 = arith.constant 0 : index
    %404 = vector.load %arg4[%c21, %c0_119] : memref<32x128xf32, #tpu.memory_space<vmem>>, vector<1x32xf32>
    %405 = vector.broadcast %404 : vector<1x32xf32> to vector<16x32xf32>
    %406 = arith.mulf %403, %405 : vector<16x32xf32>
    %c22 = arith.constant 22 : index
    %c0_120 = arith.constant 0 : index
    %407 = vector.load %arg4[%c22, %c0_120] : memref<32x128xf32, #tpu.memory_space<vmem>>, vector<1x32xf32>
    %408 = vector.broadcast %407 : vector<1x32xf32> to vector<16x32xf32>
    %409 = arith.addf %406, %408 : vector<16x32xf32>
    %c304 = arith.constant 304 : index
    %c0_121 = arith.constant 0 : index
    %410 = vector.load %arg5[%c304, %c0_121] : memref<496x128xf32, #tpu.memory_space<vmem>>, vector<32x32xf32>
    %cst_122 = arith.constant dense<0.000000e+00> : vector<16x32xf32>
    %411 = tpu.matmul %409, %410, %cst_122 {dimension_numbers = #tpu.dot_dimension_numbers<[1], [0], [0], [1], [0, 0, 1, 1], [], []>} : vector<16x32xf32>, vector<32x32xf32>, vector<16x32xf32> -> vector<16x32xf32>
    %c23 = arith.constant 23 : index
    %c0_123 = arith.constant 0 : index
    %412 = vector.load %arg4[%c23, %c0_123] : memref<32x128xf32, #tpu.memory_space<vmem>>, vector<1x32xf32>
    %413 = vector.broadcast %412 : vector<1x32xf32> to vector<16x32xf32>
    %414 = arith.addf %411, %413 : vector<16x32xf32>
    %c336 = arith.constant 336 : index
    %c0_124 = arith.constant 0 : index
    %415 = vector.load %arg5[%c336, %c0_124] : memref<496x128xf32, #tpu.memory_space<vmem>>, vector<32x64xf32>
    %cst_125 = arith.constant dense<0.000000e+00> : vector<16x64xf32>
    %416 = tpu.matmul %235, %415, %cst_125 {dimension_numbers = #tpu.dot_dimension_numbers<[1], [0], [0], [1], [0, 0, 1, 1], [], []>} : vector<16x32xf32>, vector<32x64xf32>, vector<16x64xf32> -> vector<16x64xf32>
    %c24 = arith.constant 24 : index
    %c0_126 = arith.constant 0 : index
    %417 = vector.load %arg4[%c24, %c0_126] : memref<32x128xf32, #tpu.memory_space<vmem>>, vector<1x64xf32>
    %418 = vector.broadcast %417 : vector<1x64xf32> to vector<16x64xf32>
    %419 = arith.addf %416, %418 : vector<16x64xf32>
    %420 = vector.extract_strided_slice %419 {offsets = [0, 0], sizes = [16, 32], strides = [1, 1]} : vector<16x64xf32> to vector<16x32xf32>
    %421 = vector.extract_strided_slice %419 {offsets = [0, 32], sizes = [16, 32], strides = [1, 1]} : vector<16x64xf32> to vector<16x32xf32>
    %422 = vector.shape_cast %414 : vector<16x32xf32> to vector<2x8x32xf32>
    %423 = vector.shape_cast %420 : vector<16x32xf32> to vector<2x8x32xf32>
    %424 = vector.shape_cast %421 : vector<16x32xf32> to vector<2x8x32xf32>
    %425 = vector.extract_strided_slice %422 {offsets = [0, 0, 0], sizes = [2, 8, 8], strides = [1, 1, 1]} : vector<2x8x32xf32> to vector<2x8x8xf32>
    %426 = vector.extract_strided_slice %423 {offsets = [0, 0, 0], sizes = [2, 8, 8], strides = [1, 1, 1]} : vector<2x8x32xf32> to vector<2x8x8xf32>
    "tpu.trace_start"() <{level = 10 : i32, message = "bqd,bkd->bqk"}> : () -> ()
    %cst_127 = arith.constant dense<0.000000e+00> : vector<2x8x8xf32>
    %427 = tpu.matmul %425, %426, %cst_127 {dimension_numbers = #tpu.dot_dimension_numbers<[2], [2], [1], [1], [0, 0, 0, 1, 1, 1], [0], [0]>} : vector<2x8x8xf32>, vector<2x8x8xf32>, vector<2x8x8xf32> -> vector<2x8x8xf32>
    "tpu.trace_stop"() : () -> ()
    %cst_128 = arith.constant 0.353553385 : f32
    %428 = vector.broadcast %cst_128 : f32 to vector<2x8x8xf32>
    %429 = arith.mulf %427, %428 : vector<2x8x8xf32>
    %430 = vector.broadcast %6 : vector<2x1x8xf32> to vector<2x8x8xf32>
    %431 = arith.addf %429, %430 : vector<2x8x8xf32>
    %cst_129 = arith.constant dense<0xFF800000> : vector<2x8xf32>
    %432 = vector.multi_reduction <maximumf>, %431, %cst_129 [2] : vector<2x8x8xf32> to vector<2x8xf32>
    %433 = vector.shape_cast %432 : vector<2x8xf32> to vector<2x8x1xf32>
    %434 = vector.broadcast %433 : vector<2x8x1xf32> to vector<2x8x8xf32>
    %435 = arith.subf %431, %434 : vector<2x8x8xf32>
    %436 = math.exp %435 : vector<2x8x8xf32>
    %cst_130 = arith.constant dense<0.000000e+00> : vector<2x8xf32>
    %437 = vector.multi_reduction <add>, %436, %cst_130 [2] : vector<2x8x8xf32> to vector<2x8xf32>
    %438 = vector.shape_cast %437 : vector<2x8xf32> to vector<2x8x1xf32>
    %439 = tpu.reciprocal %438 {approx = true} : vector<2x8x1xf32> -> vector<2x8x1xf32>
    %440 = vector.broadcast %439 : vector<2x8x1xf32> to vector<2x8x8xf32>
    %441 = arith.mulf %436, %440 : vector<2x8x8xf32>
    %442 = vector.extract_strided_slice %424 {offsets = [0, 0, 0], sizes = [2, 8, 8], strides = [1, 1, 1]} : vector<2x8x32xf32> to vector<2x8x8xf32>
    "tpu.trace_start"() <{level = 10 : i32, message = "bqk,bkd->bqd"}> : () -> ()
    %cst_131 = arith.constant dense<0.000000e+00> : vector<2x8x8xf32>
    %443 = tpu.matmul %441, %442, %cst_131 {dimension_numbers = #tpu.dot_dimension_numbers<[2], [1], [1], [2], [0, 0, 0, 1, 1, 2], [0], [0]>} : vector<2x8x8xf32>, vector<2x8x8xf32>, vector<2x8x8xf32> -> vector<2x8x8xf32>
    "tpu.trace_stop"() : () -> ()
    %444 = vector.extract_strided_slice %422 {offsets = [0, 0, 8], sizes = [2, 8, 8], strides = [1, 1, 1]} : vector<2x8x32xf32> to vector<2x8x8xf32>
    %445 = vector.extract_strided_slice %423 {offsets = [0, 0, 8], sizes = [2, 8, 8], strides = [1, 1, 1]} : vector<2x8x32xf32> to vector<2x8x8xf32>
    "tpu.trace_start"() <{level = 10 : i32, message = "bqd,bkd->bqk"}> : () -> ()
    %cst_132 = arith.constant dense<0.000000e+00> : vector<2x8x8xf32>
    %446 = tpu.matmul %444, %445, %cst_132 {dimension_numbers = #tpu.dot_dimension_numbers<[2], [2], [1], [1], [0, 0, 0, 1, 1, 1], [0], [0]>} : vector<2x8x8xf32>, vector<2x8x8xf32>, vector<2x8x8xf32> -> vector<2x8x8xf32>
    "tpu.trace_stop"() : () -> ()
    %cst_133 = arith.constant 0.353553385 : f32
    %447 = vector.broadcast %cst_133 : f32 to vector<2x8x8xf32>
    %448 = arith.mulf %446, %447 : vector<2x8x8xf32>
    %449 = vector.broadcast %6 : vector<2x1x8xf32> to vector<2x8x8xf32>
    %450 = arith.addf %448, %449 : vector<2x8x8xf32>
    %cst_134 = arith.constant dense<0xFF800000> : vector<2x8xf32>
    %451 = vector.multi_reduction <maximumf>, %450, %cst_134 [2] : vector<2x8x8xf32> to vector<2x8xf32>
    %452 = vector.shape_cast %451 : vector<2x8xf32> to vector<2x8x1xf32>
    %453 = vector.broadcast %452 : vector<2x8x1xf32> to vector<2x8x8xf32>
    %454 = arith.subf %450, %453 : vector<2x8x8xf32>
    %455 = math.exp %454 : vector<2x8x8xf32>
    %cst_135 = arith.constant dense<0.000000e+00> : vector<2x8xf32>
    %456 = vector.multi_reduction <add>, %455, %cst_135 [2] : vector<2x8x8xf32> to vector<2x8xf32>
    %457 = vector.shape_cast %456 : vector<2x8xf32> to vector<2x8x1xf32>
    %458 = tpu.reciprocal %457 {approx = true} : vector<2x8x1xf32> -> vector<2x8x1xf32>
    %459 = vector.broadcast %458 : vector<2x8x1xf32> to vector<2x8x8xf32>
    %460 = arith.mulf %455, %459 : vector<2x8x8xf32>
    %461 = vector.extract_strided_slice %424 {offsets = [0, 0, 8], sizes = [2, 8, 8], strides = [1, 1, 1]} : vector<2x8x32xf32> to vector<2x8x8xf32>
    "tpu.trace_start"() <{level = 10 : i32, message = "bqk,bkd->bqd"}> : () -> ()
    %cst_136 = arith.constant dense<0.000000e+00> : vector<2x8x8xf32>
    %462 = tpu.matmul %460, %461, %cst_136 {dimension_numbers = #tpu.dot_dimension_numbers<[2], [1], [1], [2], [0, 0, 0, 1, 1, 2], [0], [0]>} : vector<2x8x8xf32>, vector<2x8x8xf32>, vector<2x8x8xf32> -> vector<2x8x8xf32>
    "tpu.trace_stop"() : () -> ()
    %463 = vector.extract_strided_slice %422 {offsets = [0, 0, 16], sizes = [2, 8, 8], strides = [1, 1, 1]} : vector<2x8x32xf32> to vector<2x8x8xf32>
    %464 = vector.extract_strided_slice %423 {offsets = [0, 0, 16], sizes = [2, 8, 8], strides = [1, 1, 1]} : vector<2x8x32xf32> to vector<2x8x8xf32>
    "tpu.trace_start"() <{level = 10 : i32, message = "bqd,bkd->bqk"}> : () -> ()
    %cst_137 = arith.constant dense<0.000000e+00> : vector<2x8x8xf32>
    %465 = tpu.matmul %463, %464, %cst_137 {dimension_numbers = #tpu.dot_dimension_numbers<[2], [2], [1], [1], [0, 0, 0, 1, 1, 1], [0], [0]>} : vector<2x8x8xf32>, vector<2x8x8xf32>, vector<2x8x8xf32> -> vector<2x8x8xf32>
    "tpu.trace_stop"() : () -> ()
    %cst_138 = arith.constant 0.353553385 : f32
    %466 = vector.broadcast %cst_138 : f32 to vector<2x8x8xf32>
    %467 = arith.mulf %465, %466 : vector<2x8x8xf32>
    %468 = vector.broadcast %6 : vector<2x1x8xf32> to vector<2x8x8xf32>
    %469 = arith.addf %467, %468 : vector<2x8x8xf32>
    %cst_139 = arith.constant dense<0xFF800000> : vector<2x8xf32>
    %470 = vector.multi_reduction <maximumf>, %469, %cst_139 [2] : vector<2x8x8xf32> to vector<2x8xf32>
    %471 = vector.shape_cast %470 : vector<2x8xf32> to vector<2x8x1xf32>
    %472 = vector.broadcast %471 : vector<2x8x1xf32> to vector<2x8x8xf32>
    %473 = arith.subf %469, %472 : vector<2x8x8xf32>
    %474 = math.exp %473 : vector<2x8x8xf32>
    %cst_140 = arith.constant dense<0.000000e+00> : vector<2x8xf32>
    %475 = vector.multi_reduction <add>, %474, %cst_140 [2] : vector<2x8x8xf32> to vector<2x8xf32>
    %476 = vector.shape_cast %475 : vector<2x8xf32> to vector<2x8x1xf32>
    %477 = tpu.reciprocal %476 {approx = true} : vector<2x8x1xf32> -> vector<2x8x1xf32>
    %478 = vector.broadcast %477 : vector<2x8x1xf32> to vector<2x8x8xf32>
    %479 = arith.mulf %474, %478 : vector<2x8x8xf32>
    %480 = vector.extract_strided_slice %424 {offsets = [0, 0, 16], sizes = [2, 8, 8], strides = [1, 1, 1]} : vector<2x8x32xf32> to vector<2x8x8xf32>
    "tpu.trace_start"() <{level = 10 : i32, message = "bqk,bkd->bqd"}> : () -> ()
    %cst_141 = arith.constant dense<0.000000e+00> : vector<2x8x8xf32>
    %481 = tpu.matmul %479, %480, %cst_141 {dimension_numbers = #tpu.dot_dimension_numbers<[2], [1], [1], [2], [0, 0, 0, 1, 1, 2], [0], [0]>} : vector<2x8x8xf32>, vector<2x8x8xf32>, vector<2x8x8xf32> -> vector<2x8x8xf32>
    "tpu.trace_stop"() : () -> ()
    %482 = vector.extract_strided_slice %422 {offsets = [0, 0, 24], sizes = [2, 8, 8], strides = [1, 1, 1]} : vector<2x8x32xf32> to vector<2x8x8xf32>
    %483 = vector.extract_strided_slice %423 {offsets = [0, 0, 24], sizes = [2, 8, 8], strides = [1, 1, 1]} : vector<2x8x32xf32> to vector<2x8x8xf32>
    "tpu.trace_start"() <{level = 10 : i32, message = "bqd,bkd->bqk"}> : () -> ()
    %cst_142 = arith.constant dense<0.000000e+00> : vector<2x8x8xf32>
    %484 = tpu.matmul %482, %483, %cst_142 {dimension_numbers = #tpu.dot_dimension_numbers<[2], [2], [1], [1], [0, 0, 0, 1, 1, 1], [0], [0]>} : vector<2x8x8xf32>, vector<2x8x8xf32>, vector<2x8x8xf32> -> vector<2x8x8xf32>
    "tpu.trace_stop"() : () -> ()
    %cst_143 = arith.constant 0.353553385 : f32
    %485 = vector.broadcast %cst_143 : f32 to vector<2x8x8xf32>
    %486 = arith.mulf %484, %485 : vector<2x8x8xf32>
    %487 = vector.broadcast %6 : vector<2x1x8xf32> to vector<2x8x8xf32>
    %488 = arith.addf %486, %487 : vector<2x8x8xf32>
    %cst_144 = arith.constant dense<0xFF800000> : vector<2x8xf32>
    %489 = vector.multi_reduction <maximumf>, %488, %cst_144 [2] : vector<2x8x8xf32> to vector<2x8xf32>
    %490 = vector.shape_cast %489 : vector<2x8xf32> to vector<2x8x1xf32>
    %491 = vector.broadcast %490 : vector<2x8x1xf32> to vector<2x8x8xf32>
    %492 = arith.subf %488, %491 : vector<2x8x8xf32>
    %493 = math.exp %492 : vector<2x8x8xf32>
    %cst_145 = arith.constant dense<0.000000e+00> : vector<2x8xf32>
    %494 = vector.multi_reduction <add>, %493, %cst_145 [2] : vector<2x8x8xf32> to vector<2x8xf32>
    %495 = vector.shape_cast %494 : vector<2x8xf32> to vector<2x8x1xf32>
    %496 = tpu.reciprocal %495 {approx = true} : vector<2x8x1xf32> -> vector<2x8x1xf32>
    %497 = vector.broadcast %496 : vector<2x8x1xf32> to vector<2x8x8xf32>
    %498 = arith.mulf %493, %497 : vector<2x8x8xf32>
    %499 = vector.extract_strided_slice %424 {offsets = [0, 0, 24], sizes = [2, 8, 8], strides = [1, 1, 1]} : vector<2x8x32xf32> to vector<2x8x8xf32>
    "tpu.trace_start"() <{level = 10 : i32, message = "bqk,bkd->bqd"}> : () -> ()
    %cst_146 = arith.constant dense<0.000000e+00> : vector<2x8x8xf32>
    %500 = tpu.matmul %498, %499, %cst_146 {dimension_numbers = #tpu.dot_dimension_numbers<[2], [1], [1], [2], [0, 0, 0, 1, 1, 2], [0], [0]>} : vector<2x8x8xf32>, vector<2x8x8xf32>, vector<2x8x8xf32> -> vector<2x8x8xf32>
    "tpu.trace_stop"() : () -> ()
    %501 = tpu.concatenate %443, %462, %481, %500 in 2 : vector<2x8x8xf32>, vector<2x8x8xf32>, vector<2x8x8xf32>, vector<2x8x8xf32> -> vector<2x8x32xf32>
    %502 = vector.shape_cast %501 : vector<2x8x32xf32> to vector<16x32xf32>
    %c368 = arith.constant 368 : index
    %c0_147 = arith.constant 0 : index
    %503 = vector.load %arg5[%c368, %c0_147] : memref<496x128xf32, #tpu.memory_space<vmem>>, vector<32x32xf32>
    %cst_148 = arith.constant dense<0.000000e+00> : vector<16x32xf32>
    %504 = tpu.matmul %502, %503, %cst_148 {dimension_numbers = #tpu.dot_dimension_numbers<[1], [0], [0], [1], [0, 0, 1, 1], [], []>} : vector<16x32xf32>, vector<32x32xf32>, vector<16x32xf32> -> vector<16x32xf32>
    %c25 = arith.constant 25 : index
    %c0_149 = arith.constant 0 : index
    %505 = vector.load %arg4[%c25, %c0_149] : memref<32x128xf32, #tpu.memory_space<vmem>>, vector<1x32xf32>
    %506 = vector.broadcast %505 : vector<1x32xf32> to vector<16x32xf32>
    %507 = arith.addf %504, %506 : vector<16x32xf32>
    %508 = arith.addf %385, %507 : vector<16x32xf32>
    %cst_150 = arith.constant dense<0.000000e+00> : vector<16xf32>
    %509 = vector.multi_reduction <add>, %508, %cst_150 [1] : vector<16x32xf32> to vector<16xf32>
    %510 = vector.shape_cast %509 : vector<16xf32> to vector<16x1xf32>
    %cst_151 = arith.constant 3.200000e+01 : f32
    %511 = vector.broadcast %cst_151 : f32 to vector<16x1xf32>
    %512 = arith.divf %510, %511 : vector<16x1xf32>
    %513 = vector.broadcast %512 : vector<16x1xf32> to vector<16x32xf32>
    %514 = arith.subf %508, %513 : vector<16x32xf32>
    %515 = arith.mulf %514, %514 : vector<16x32xf32>
    %cst_152 = arith.constant dense<0.000000e+00> : vector<16xf32>
    %516 = vector.multi_reduction <add>, %515, %cst_152 [1] : vector<16x32xf32> to vector<16xf32>
    %517 = vector.shape_cast %516 : vector<16xf32> to vector<16x1xf32>
    %cst_153 = arith.constant 3.200000e+01 : f32
    %518 = vector.broadcast %cst_153 : f32 to vector<16x1xf32>
    %519 = arith.divf %517, %518 : vector<16x1xf32>
    %520 = vector.broadcast %512 : vector<16x1xf32> to vector<16x32xf32>
    %521 = arith.subf %508, %520 : vector<16x32xf32>
    %cst_154 = arith.constant 9.99999974E-6 : f32
    %522 = vector.broadcast %cst_154 : f32 to vector<16x1xf32>
    %523 = arith.addf %519, %522 : vector<16x1xf32>
    %524 = math.rsqrt %523 : vector<16x1xf32>
    %525 = vector.broadcast %524 : vector<16x1xf32> to vector<16x32xf32>
    %526 = arith.mulf %521, %525 : vector<16x32xf32>
    %c26 = arith.constant 26 : index
    %c0_155 = arith.constant 0 : index
    %527 = vector.load %arg4[%c26, %c0_155] : memref<32x128xf32, #tpu.memory_space<vmem>>, vector<1x32xf32>
    %528 = vector.broadcast %527 : vector<1x32xf32> to vector<16x32xf32>
    %529 = arith.mulf %526, %528 : vector<16x32xf32>
    %c27 = arith.constant 27 : index
    %c0_156 = arith.constant 0 : index
    %530 = vector.load %arg4[%c27, %c0_156] : memref<32x128xf32, #tpu.memory_space<vmem>>, vector<1x32xf32>
    %531 = vector.broadcast %530 : vector<1x32xf32> to vector<16x32xf32>
    %532 = arith.addf %529, %531 : vector<16x32xf32>
    %c400 = arith.constant 400 : index
    %c0_157 = arith.constant 0 : index
    %533 = vector.load %arg5[%c400, %c0_157] : memref<496x128xf32, #tpu.memory_space<vmem>>, vector<32x64xf32>
    %cst_158 = arith.constant dense<0.000000e+00> : vector<16x64xf32>
    %534 = tpu.matmul %532, %533, %cst_158 {dimension_numbers = #tpu.dot_dimension_numbers<[1], [0], [0], [1], [0, 0, 1, 1], [], []>} : vector<16x32xf32>, vector<32x64xf32>, vector<16x64xf32> -> vector<16x64xf32>
    %c28 = arith.constant 28 : index
    %c0_159 = arith.constant 0 : index
    %535 = vector.load %arg4[%c28, %c0_159] : memref<32x128xf32, #tpu.memory_space<vmem>>, vector<1x64xf32>
    %536 = vector.broadcast %535 : vector<1x64xf32> to vector<16x64xf32>
    %537 = arith.addf %534, %536 : vector<16x64xf32>
    %538 = arith.mulf %537, %537 : vector<16x64xf32>
    %539 = arith.mulf %537, %538 : vector<16x64xf32>
    %cst_160 = arith.constant 4.471500e-02 : f32
    %540 = vector.broadcast %cst_160 : f32 to vector<16x64xf32>
    %541 = arith.mulf %540, %539 : vector<16x64xf32>
    %542 = arith.addf %537, %541 : vector<16x64xf32>
    %cst_161 = arith.constant 0.797884583 : f32
    %543 = vector.broadcast %cst_161 : f32 to vector<16x64xf32>
    %544 = arith.mulf %543, %542 : vector<16x64xf32>
    %545 = math.tanh %544 : vector<16x64xf32>
    %cst_162 = arith.constant 1.000000e+00 : f32
    %546 = vector.broadcast %cst_162 : f32 to vector<16x64xf32>
    %547 = arith.addf %546, %545 : vector<16x64xf32>
    %cst_163 = arith.constant 5.000000e-01 : f32
    %548 = vector.broadcast %cst_163 : f32 to vector<16x64xf32>
    %549 = arith.mulf %548, %547 : vector<16x64xf32>
    %550 = arith.mulf %537, %549 : vector<16x64xf32>
    %c432 = arith.constant 432 : index
    %c0_164 = arith.constant 0 : index
    %551 = vector.load %arg5[%c432, %c0_164] : memref<496x128xf32, #tpu.memory_space<vmem>>, vector<64x32xf32>
    %cst_165 = arith.constant dense<0.000000e+00> : vector<16x32xf32>
    %552 = tpu.matmul %550, %551, %cst_165 {dimension_numbers = #tpu.dot_dimension_numbers<[1], [0], [0], [1], [0, 0, 1, 1], [], []>} : vector<16x64xf32>, vector<64x32xf32>, vector<16x32xf32> -> vector<16x32xf32>
    %c29 = arith.constant 29 : index
    %c0_166 = arith.constant 0 : index
    %553 = vector.load %arg4[%c29, %c0_166] : memref<32x128xf32, #tpu.memory_space<vmem>>, vector<1x32xf32>
    %554 = vector.broadcast %553 : vector<1x32xf32> to vector<16x32xf32>
    %555 = arith.addf %552, %554 : vector<16x32xf32>
    %556 = arith.addf %508, %555 : vector<16x32xf32>
    %cst_167 = arith.constant dense<0.000000e+00> : vector<16xf32>
    %557 = vector.multi_reduction <add>, %556, %cst_167 [1] : vector<16x32xf32> to vector<16xf32>
    %558 = vector.shape_cast %557 : vector<16xf32> to vector<16x1xf32>
    %cst_168 = arith.constant 3.200000e+01 : f32
    %559 = vector.broadcast %cst_168 : f32 to vector<16x1xf32>
    %560 = arith.divf %558, %559 : vector<16x1xf32>
    %561 = vector.broadcast %560 : vector<16x1xf32> to vector<16x32xf32>
    %562 = arith.subf %556, %561 : vector<16x32xf32>
    %563 = arith.mulf %562, %562 : vector<16x32xf32>
    %cst_169 = arith.constant dense<0.000000e+00> : vector<16xf32>
    %564 = vector.multi_reduction <add>, %563, %cst_169 [1] : vector<16x32xf32> to vector<16xf32>
    %565 = vector.shape_cast %564 : vector<16xf32> to vector<16x1xf32>
    %cst_170 = arith.constant 3.200000e+01 : f32
    %566 = vector.broadcast %cst_170 : f32 to vector<16x1xf32>
    %567 = arith.divf %565, %566 : vector<16x1xf32>
    %568 = vector.broadcast %560 : vector<16x1xf32> to vector<16x32xf32>
    %569 = arith.subf %556, %568 : vector<16x32xf32>
    %cst_171 = arith.constant 9.99999974E-6 : f32
    %570 = vector.broadcast %cst_171 : f32 to vector<16x1xf32>
    %571 = arith.addf %567, %570 : vector<16x1xf32>
    %572 = math.rsqrt %571 : vector<16x1xf32>
    %573 = vector.broadcast %572 : vector<16x1xf32> to vector<16x32xf32>
    %574 = arith.mulf %569, %573 : vector<16x32xf32>
    %c7 = arith.constant 7 : index
    %c0_172 = arith.constant 0 : index
    %575 = vector.load %arg4[%c7, %c0_172] : memref<32x128xf32, #tpu.memory_space<vmem>>, vector<1x32xf32>
    %576 = vector.broadcast %575 : vector<1x32xf32> to vector<16x32xf32>
    %577 = arith.mulf %574, %576 : vector<16x32xf32>
    %c8 = arith.constant 8 : index
    %c0_173 = arith.constant 0 : index
    %578 = vector.load %arg4[%c8, %c0_173] : memref<32x128xf32, #tpu.memory_space<vmem>>, vector<1x32xf32>
    %579 = vector.broadcast %578 : vector<1x32xf32> to vector<16x32xf32>
    %580 = arith.addf %577, %579 : vector<16x32xf32>
    %c0_174 = arith.constant 0 : index
    %c0_175 = arith.constant 0 : index
    %581 = vector.load %arg5[%c0_174, %c0_175] : memref<496x128xf32, #tpu.memory_space<vmem>>, vector<64x32xf32>
    %cst_176 = arith.constant dense<0.000000e+00> : vector<16x64xf32>
    %582 = tpu.matmul %580, %581, %cst_176 {dimension_numbers = #tpu.dot_dimension_numbers<[1], [1], [0], [0], [0, 0, 1, 0], [], []>} : vector<16x32xf32>, vector<64x32xf32>, vector<16x64xf32> -> vector<16x64xf32>
    %c0_177 = arith.constant 0 : index
    %c0_178 = arith.constant 0 : index
    %583 = vector.load %arg4[%c0_177, %c0_178] : memref<32x128xf32, #tpu.memory_space<vmem>>, vector<1x64xf32>
    %584 = vector.broadcast %583 : vector<1x64xf32> to vector<16x64xf32>
    %585 = arith.addf %582, %584 : vector<16x64xf32>
    %cst_179 = arith.constant dense<0xFF800000> : vector<16xf32>
    %586 = vector.multi_reduction <maximumf>, %585, %cst_179 [1] : vector<16x64xf32> to vector<16xf32>
    %587 = vector.shape_cast %586 : vector<16xf32> to vector<16x1xf32>
    %588 = vector.broadcast %587 : vector<16x1xf32> to vector<16x64xf32>
    %589 = arith.subf %585, %588 : vector<16x64xf32>
    %590 = math.exp %589 : vector<16x64xf32>
    %cst_180 = arith.constant dense<0.000000e+00> : vector<16xf32>
    %591 = vector.multi_reduction <add>, %590, %cst_180 [1] : vector<16x64xf32> to vector<16xf32>
    %592 = vector.shape_cast %591 : vector<16xf32> to vector<16x1xf32>
    %593 = math.log %592 : vector<16x1xf32>
    %594 = arith.addf %593, %587 : vector<16x1xf32>
    %595 = vector.broadcast %594 : vector<16x1xf32> to vector<16x64xf32>
    %596 = arith.subf %585, %595 : vector<16x64xf32>
    %597 = tpu.concatenate %585, %596 in 1 : vector<16x64xf32>, vector<16x64xf32> -> vector<16x128xf32>
    %c0_181 = arith.constant 0 : index
    %c0_182 = arith.constant 0 : index
    %598 = vector.load %arg6[%c0_181, %c0_182] : memref<16x128xf32, #tpu.memory_space<vmem>>, vector<16x128xf32>
    tpu.vector_store %arg6[%c0_181, %c0_182], %597 {strides = array<i32>} : memref<16x128xf32, #tpu.memory_space<vmem>>, vector<16x128xf32>,
    %c0_183 = arith.constant 0 : index
    %c0_184 = arith.constant 0 : index
    %599 = vector.load %arg2[%c0_183, %c0_184] : memref<16x1xi32, #tpu.memory_space<vmem>>, vector<16x1xi32>
    %600 = tpu.iota {dimensions = array<i32: 1>} : vector<16x64xi32>
    %601 = vector.broadcast %599 : vector<16x1xi32> to vector<16x64xi32>
    %602 = arith.cmpi eq, %600, %601 : vector<16x64xi32>
    %cst_185 = arith.constant 0.000000e+00 : f32
    %603 = vector.broadcast %cst_185 : f32 to vector<16x64xf32>
    %604 = arith.select %602, %596, %603 : vector<16x64xi1>, vector<16x64xf32>
    %cst_186 = arith.constant dense<0.000000e+00> : vector<16xf32>
    %605 = vector.multi_reduction <add>, %604, %cst_186 [1] : vector<16x64xf32> to vector<16xf32>
    %606 = vector.shape_cast %605 : vector<16xf32> to vector<16x1xf32>
    %607 = vector.extract_strided_slice %596 {offsets = [0, 1], sizes = [16, 1], strides = [1, 1]} : vector<16x64xf32> to vector<16x1xf32>
    %cst_187 = arith.constant dense<0.000000e+00> : vector<16xf32>
    %608 = vector.multi_reduction <add>, %596, %cst_187 [1] : vector<16x64xf32> to vector<16xf32>
    %609 = vector.shape_cast %608 : vector<16xf32> to vector<16x1xf32>
    %cst_188 = arith.constant 8.000000e-01 : f32
    %610 = vector.broadcast %cst_188 : f32 to vector<16x1xf32>
    %611 = arith.mulf %610, %606 : vector<16x1xf32>
    %cst_189 = arith.constant -1.32582927 : f32
    %612 = vector.broadcast %cst_189 : f32 to vector<16x1xf32>
    %613 = arith.subf %612, %611 : vector<16x1xf32>
    %614 = arith.subf %609, %606 : vector<16x1xf32>
    %615 = arith.subf %614, %607 : vector<16x1xf32>
    %cst_190 = arith.constant 0.0032258064 : f32
    %616 = vector.broadcast %cst_190 : f32 to vector<16x1xf32>
    %617 = arith.mulf %616, %615 : vector<16x1xf32>
    %618 = arith.subf %613, %617 : vector<16x1xf32>
    %c1_i32_191 = arith.constant 1 : i32
    %619 = vector.broadcast %c1_i32_191 : i32 to vector<16x1xi32>
    %620 = arith.cmpi ne, %599, %619 : vector<16x1xi32>
    %621 = arith.extui %620 : vector<16x1xi1> to vector<16x1xi32>
    %622 = arith.sitofp %621 : vector<16x1xi32> to vector<16x1xf32>
    %623 = arith.mulf %618, %622 : vector<16x1xf32>
    %624 = vector.shape_cast %623 : vector<16x1xf32> to vector<1x16x1xf32>
    %cst_192 = arith.constant dense<0.000000e+00> : vector<1xf32>
    %625 = vector.multi_reduction <add>, %624, %cst_192 [1, 2] : vector<1x16x1xf32> to vector<1xf32>
    %626 = vector.shape_cast %625 : vector<1xf32> to vector<1x1x1xf32>
    %627 = vector.extract %626[0, 0, 0] : f32 from vector<1x1x1xf32>
    %c0_193 = arith.constant 0 : index
    %628 = memref.load %arg7[%c0_193] : memref<1xf32, #tpu.memory_space<smem>>
    memref.store %627, %arg7[%c0_193] : memref<1xf32, #tpu.memory_space<smem>>
    return
  }
}

</mosaic_0001>

<llo_original>
// kernel: translation_forward.1
$region0: #{translation_forward.1}
  #allocation0 [shape = 'u32[]', space=smem, size = 0x4, offset = 0x4, fixed_abs, tag = 'smem constant byte address 0x4 - core index']
  #allocation1 [shape = 'u32[144,128]{1,0:T(1,128)}', space=vmem, size = 0x12000, scoped, tag = 'internal scratch']
  %s0 = inlined_call_operand.vmem [shape: f32[16,32], index: 0, kind: input, shape index: {}]
  %s1 = inlined_call_operand.vmem [shape: f32[16,32], index: 1, kind: input, shape index: {}]
  %s2 = inlined_call_operand.vmem [shape: s32[16,1], index: 2, kind: input, shape index: {}]
  %s3 = inlined_call_operand.vmem [shape: s32[2,8], index: 3, kind: input, shape index: {}]
  %s4 = inlined_call_operand.vmem [shape: f32[32,128], index: 4, kind: input, shape index: {}]
  %s5 = inlined_call_operand.vmem [shape: f32[496,128], index: 5, kind: input, shape index: {}]
  %s6 = inlined_call_operand.vmem [shape: f32[16,128], index: 6, kind: output, shape index: {0}]
  %s7 = inlined_call_operand.hbm [shape: f32[1], index: 7, kind: output, shape index: {1}]
  %8 = xla_tuple %s6, %s7
  %s9 = sld [smem:[#allocation0]]
  $region42: #{translation_forward.1} parent=0
    _
  %s11 = ssub.s32 1, %s9
  %s12 = scalar_select 0, %s11, %s9
  $region1: #{translation_forward.1} parent=0
    #allocation2 [shape = 'u8[512]{0}', space=smem, size = 0x200, scoped, tag = 'output window, operand 1, single buffered']
    #allocation3 [shape = 's32[1]{0}', space=sflag, size = 0x4, scoped, tag = 'scoped memory for translation_forward.1']
    %13 = vsyncpa [#allocation3], 0
    // Predicated region
    $region2: #{translation_forward.1} parent=1 // pred_check
      _
    $region3: #{translation_forward.1} parent=1 // pred_check_branch
      %15 = sbr.rel (0) target = $region5
    $region4: #{translation_forward.1} parent=1 // pred_region
      _
    $region5: #{translation_forward.1} parent=1 // pred_fallthru
      _
    // Predicated region
    $region6: #{translation_forward.1} parent=1 // pred_check
      _
    $region7: #{translation_forward.1} parent=1 // pred_check_branch
      %17 = sbr.rel (0) target = $region9
    $region8: #{translation_forward.1} parent=1 // pred_region
      _
    $region9: #{translation_forward.1} parent=1 // pred_fallthru
      _
    // Predicated region
    $region10: #{translation_forward.1} parent=1 // pred_check
      _
    $region11: #{translation_forward.1} parent=1 // pred_check_branch
      %19 = sbr.rel (0) target = $region13
    $region12: #{translation_forward.1} parent=1 // pred_region
      _
    $region13: #{translation_forward.1} parent=1 // pred_fallthru
      _
    // Predicated region
    $region14: #{translation_forward.1} parent=1 // pred_check
      _
    $region15: #{translation_forward.1} parent=1 // pred_check_branch
      %21 = sbr.rel (0) target = $region17
    $region16: #{translation_forward.1} parent=1 // pred_region
      _
    $region17: #{translation_forward.1} parent=1 // pred_fallthru
      _
    // Predicated region
    $region18: #{translation_forward.1} parent=1 // pred_check
      _
    $region19: #{translation_forward.1} parent=1 // pred_check_branch
      %23 = sbr.rel (0) target = $region21
    $region20: #{translation_forward.1} parent=1 // pred_region
      _
    $region21: #{translation_forward.1} parent=1 // pred_fallthru
      _
    // Predicated region
    $region22: #{translation_forward.1} parent=1 // pred_check
      _
    $region23: #{translation_forward.1} parent=1 // pred_check_branch
      %25 = sbr.rel (0) target = $region25
    $region24: #{translation_forward.1} parent=1 // pred_region
      _
    $region25: #{translation_forward.1} parent=1 // pred_fallthru
      _
    %v26 = vld [vmem:[%s3] sm:$0x3]
    %vm27 = vcmp.eq.s32.totalorder %v26, 1
    %v28 = vsel %vm27, 0.0, -1e+09
    %v31 = vunpack.c.l.s4 1966171168
    %v32 = vunpack.c.0.s8 %v31
    %v33 = vlaneseq
    %v34 = vshrl.u32 %v33, 7
    %v35 = vsub.s32 %v32, %v34
    %v36 = vrot.slane %v28, %v35
    %v37 = vcombine.high %v36, %v36
    %v39 = vunpack.c.l.s4 1966171168
    %v40 = vunpack.c.0.s8 %v39
    %v41 = vlaneseq
    %v42 = vshrl.u32 %v41, 7
    %v43 = vsub.s32 %v40, %v42
    %v44 = vrot.slane %v36, %v43
    %v46 = vunpack.c.l.s4 1966171168
    %v47 = vunpack.c.0.s8 %v46
    %v48 = vlaneseq
    %v49 = vshrl.u32 %v48, 7
    %v50 = vsub.s32 %v47, %v49
    %v51 = vrot.slane %v37, %v50
    %v52 = vlaneseq
    %v53 = vshrl.u32 %v52, 7
    %v54 = vlaneseq
    %v55 = vand.u32 %v54, 127
    %vm56 = vcmp.le.s32.totalorder %v55, %v53
    %v57 = vsel %vm56, 0.0, -1e+09
    %v58 = vld [vmem:[%s0] sm:$0xff]
    %v59 = vld [vmem:[%s0 + $0x8] sm:$0xff]
    %v60 = vld [vmem:[%s5 + $0x40] sm:$0xff]
    %v61 = vadd.f32 %v58, %v60
    %v62 = vadd.f32 %v59, %v60
    %vm63 = vcmask 261120
    %v64 = vsel %vm63, %v61, 0.0
    %65 = vadd.xlane.f32.xlu0 %v64
    %v66 = vpop.xlane.xlu0 %65
    %v67 = vsel %vm63, %v62, 0.0
    %68 = vadd.xlane.f32.xlu0 %v67
    %v69 = vpop.xlane.xlu0 %68
    %v70 = vrcp.pop 32.0
    %v71 = vmul.f32 %v66, %v70
    %v72 = vmul.f32 %v69, %v70
    %v73 = vsub.f32 %v61, %v71
    %v74 = vsub.f32 %v62, %v72
    %v75 = vmul.f32 %v73, %v73
    %v76 = vmul.f32 %v74, %v74
    %v77 = vsel %vm63, %v75, 0.0
    %78 = vadd.xlane.f32.xlu0 %v77
    %v79 = vpop.xlane.xlu0 %78
    %v80 = vsel %vm63, %v76, 0.0
    %81 = vadd.xlane.f32.xlu0 %v80
    %v82 = vpop.xlane.xlu0 %81
    %v83 = vmul.f32 %v79, %v70
    %v84 = vmul.f32 %v82, %v70
    %v85 = vadd.f32 %v83, 1e-05
    %v86 = vadd.f32 %v84, 1e-05
    %v87 = vrsqrt.pop %v85
    %v88 = vrsqrt.pop %v86
    %v89 = vmul.f32 %v73, %v87
    %v90 = vmul.f32 %v74, %v88
    %v91 = vld [vmem:[%s4 + $0x1] sm:$0x1]
    %v92 = vlaneseq
    %v93 = vshrl.u32 %v92, 7
    %v94 = vsub.s32 0, %v93
    %v95 = vrot.slane %v91, %v94
    %v96 = vmul.f32 %v89, %v95
    %v97 = vmul.f32 %v90, %v95
    %v98 = vld [vmem:[%s4 + $0x2] sm:$0x1]
    %v99 = vlaneseq
    %v100 = vshrl.u32 %v99, 7
    %v101 = vsub.s32 0, %v100
    %v102 = vrot.slane %v98, %v101
    %v103 = vadd.f32 %v96, %v102
    %v104 = vadd.f32 %v97, %v102
    %v105 = vsel %vm63, %v103, 0.0
    %106 = vadd.xlane.f32.xlu0 %v105
    %v107 = vpop.xlane.xlu0 %106
    %v108 = vsel %vm63, %v104, 0.0
    %109 = vadd.xlane.f32.xlu0 %v108
    %v110 = vpop.xlane.xlu0 %109
    %v111 = vmul.f32 %v107, %v70
    %v112 = vmul.f32 %v110, %v70
    %v113 = vsub.f32 %v103, %v111
    %v114 = vsub.f32 %v104, %v112
    %v115 = vmul.f32 %v113, %v113
    %v116 = vmul.f32 %v114, %v114
    %v117 = vsel %vm63, %v115, 0.0
    %118 = vadd.xlane.f32.xlu0 %v117
    %v119 = vpop.xlane.xlu0 %118
    %v120 = vsel %vm63, %v116, 0.0
    %121 = vadd.xlane.f32.xlu0 %v120
    %v122 = vpop.xlane.xlu0 %121
    %v123 = vmul.f32 %v119, %v70
    %v124 = vmul.f32 %v122, %v70
    %v125 = vadd.f32 %v123, 1e-05
    %v126 = vadd.f32 %v124, 1e-05
    %v127 = vrsqrt.pop %v125
    %v128 = vrsqrt.pop %v126
    %v129 = vmul.f32 %v113, %v127
    %v130 = vmul.f32 %v114, %v128
    %v131 = vld [vmem:[%s4 + $0x9] sm:$0x1]
    %v132 = vlaneseq
    %v133 = vshrl.u32 %v132, 7
    %v134 = vsub.s32 0, %v133
    %v135 = vrot.slane %v131, %v134
    %v136 = vmul.f32 %v129, %v135
    %v137 = vmul.f32 %v130, %v135
    %v138 = vld [vmem:[%s4 + $0xa] sm:$0x1]
    %v139 = vlaneseq
    %v140 = vshrl.u32 %v139, 7
    %v141 = vsub.s32 0, %v140
    %v142 = vrot.slane %v138, %v141
    %v143 = vadd.f32 %v136, %v142
    %v144 = vadd.f32 %v137, %v142
    %v145 = vld [vmem:[%s5 + $0x50] sm:$0xff]
    %v146 = vld [vmem:[%s5 + $0x58] sm:$0xff]
    %v147 = vld [vmem:[%s5 + $0x60] sm:$0xff]
    %v148 = vld [vmem:[%s5 + $0x68] sm:$0xff]
    %v149 = vld [vmem:[%s4 + $0xb] sm:$0x1]
    %v150 = vlaneseq
    %v151 = vshrl.u32 %v150, 7
    %v152 = vsub.s32 0, %v151
    %v153 = vrot.slane %v149, %v152
    %v155 = vsel %vm63, %v143, 0
    %v158 = vsel %vm63, %v144, 0
    %160 = vmatprep.subr.mxu0 0.0
    %161 = vmatpush1.msra.mxu0 0.0
    %162 = vmatprep.subr.mxu0 0.0
    %163 = vmatpush1.msra.mxu0 0.0
    %164 = vmatprep.subr.mxu0 0.0
    %165 = vmatpush1.msra.mxu0 0.0
    %166 = vmatprep.subr.mxu0 0.0
    %167 = vmatpush1.msra.mxu0 0.0
    %168 = vmatprep.subr.mxu0 0.0
    %169 = vmatpush1.msra.mxu0 0.0
    %170 = vmatprep.subr.mxu0 0.0
    %171 = vmatpush1.msra.mxu0 0.0
    %172 = vmatprep.subr.mxu0 0.0
    %173 = vmatpush1.msra.mxu0 0.0
    %174 = vmatprep.subr.mxu0 0.0
    %175 = vmatpush1.msra.mxu0 0.0
    %176 = vmatprep.subr.mxu0 0.0
    %177 = vmatpush1.msra.mxu0 0.0
    %178 = vmatprep.subr.mxu0 0.0
    %179 = vmatpush1.msra.mxu0 0.0
    %180 = vmatprep.subr.mxu0 0.0
    %181 = vmatpush1.msra.mxu0 0.0
    %182 = vmatprep.subr.mxu0 0.0
    %183 = vmatpush1.msra.mxu0 0.0
    %184 = vmatprep.subr.mxu0 0.0
    %185 = vmatpush1.msra.mxu0 %v148
    %186 = vmatprep.subr.mxu0 0.0
    %187 = vmatpush1.msra.mxu0 %v147
    %188 = vmatprep.subr.mxu0 0.0
    %189 = vmatpush1.msra.mxu0 %v146
    %190 = vmatprep.subr.mxu0 0.0
    %191 = vmatpush1.msra.mxu0 %v145
    %192 = vmatprep.subr.mxu0 0.0
    %193 = vmatpush2.msra.mxu0 0.0
    %194 = vmatprep.subr.mxu0 0.0
    %195 = vmatpush2.msra.mxu0 0.0
    %196 = vmatprep.subr.mxu0 0.0
    %197 = vmatpush2.msra.mxu0 0.0
    %198 = vmatprep.subr.mxu0 0.0
    %199 = vmatpush2.msra.mxu0 0.0
    %200 = vmatprep.subr.mxu0 0.0
    %201 = vmatpush2.msra.mxu0 0.0
    %202 = vmatprep.subr.mxu0 0.0
    %203 = vmatpush2.msra.mxu0 0.0
    %204 = vmatprep.subr.mxu0 0.0
    %205 = vmatpush2.msra.mxu0 0.0
    %206 = vmatprep.subr.mxu0 0.0
    %207 = vmatpush2.msra.mxu0 0.0
    %208 = vmatprep.subr.mxu0 0.0
    %209 = vmatpush2.msra.mxu0 0.0
    %210 = vmatprep.subr.mxu0 0.0
    %211 = vmatpush2.msra.mxu0 0.0
    %212 = vmatprep.subr.mxu0 0.0
    %213 = vmatpush2.msra.mxu0 0.0
    %214 = vmatprep.subr.mxu0 0.0
    %215 = vmatpush2.msra.mxu0 0.0
    %216 = vmatprep.subr.mxu0 0.0
    %217 = vmatpush2.msra.mxu0 0.0
    %218 = vmatprep.subr.mxu0 0.0
    %219 = vmatpush2.msra.mxu0 0.0
    %220 = vmatprep.subr.mxu0 0.0
    %221 = vmatpush2.msra.mxu0 0.0
    %222 = vmatprep.subr.mxu0 0.0
    %223 = vmatpush2.msra.mxu0 0.0
    %224 = vmatprep.mubr.f32.mxu0 0.0
    %225 = vmatmul.mubr.f32.gmra.mxu0 %v155
    %v226 = vpop.f32.mrf.mxu0
    %v227 = vadd.f32 %v153, %v226
    %v228 = vpop.f32.mrf.mxu0
    %229 = vmatprep.mubr.f32.mxu0 0.0
    %230 = vmatmul.mubr.f32.gmra.mxu0 %v158
    %v231 = vpop.f32.mrf.mxu0
    %v232 = vadd.f32 %v153, %v231
    %v233 = vpop.f32.mrf.mxu0
    %234 = vdwg.mxu0
    %236 = vrot.lane.b32.xlu0 %v227, 96
    %v237 = vpop.permute.xlu0 %236
    %vm238 = vcmask 64512
    %v239 = vsel %vm238, %v227, 0
    %v241 = vsel %vm238, %v237, 0
    %243 = vmatprep.subr.mxu0 0.0
    %244 = vmatpush1.xpose.msra.mxu0 0.0
    %245 = vmatprep.subr.mxu0 0.0
    %246 = vmatpush1.xpose.msra.mxu0 0.0
    %247 = vmatprep.subr.mxu0 0.0
    %248 = vmatpush1.xpose.msra.mxu0 0.0
    %249 = vmatprep.subr.mxu0 0.0
    %250 = vmatpush1.xpose.msra.mxu0 0.0
    %251 = vmatprep.subr.mxu0 0.0
    %252 = vmatpush1.xpose.msra.mxu0 0.0
    %253 = vmatprep.subr.mxu0 0.0
    %254 = vmatpush1.xpose.msra.mxu0 0.0
    %255 = vmatprep.subr.mxu0 0.0
    %256 = vmatpush1.xpose.msra.mxu0 0.0
    %257 = vmatprep.subr.mxu0 0.0
    %258 = vmatpush1.xpose.msra.mxu0 0.0
    %259 = vmatprep.subr.mxu0 0.0
    %260 = vmatpush1.xpose.msra.mxu0 0.0
    %261 = vmatprep.subr.mxu0 0.0
    %262 = vmatpush1.xpose.msra.mxu0 0.0
    %263 = vmatprep.subr.mxu0 0.0
    %264 = vmatpush1.xpose.msra.mxu0 0.0
    %265 = vmatprep.subr.mxu0 0.0
    %266 = vmatpush1.xpose.msra.mxu0 0.0
    %267 = vmatprep.subr.mxu0 0.0
    %268 = vmatpush1.xpose.msra.mxu0 0.0
    %269 = vmatprep.subr.mxu0 0.0
    %270 = vmatpush1.xpose.msra.mxu0 0.0
    %271 = vmatprep.subr.mxu0 0.0
    %272 = vmatpush1.xpose.msra.mxu0 0.0
    %273 = vmatprep.subr.mxu0 0.0
    %274 = vmatpush1.xpose.msra.mxu0 %v241
    %275 = vmatprep.subr.mxu0 0.0
    %276 = vmatpush2.xpose.msra.mxu0 0.0
    %277 = vmatprep.subr.mxu0 0.0
    %278 = vmatpush2.xpose.msra.mxu0 0.0
    %279 = vmatprep.subr.mxu0 0.0
    %280 = vmatpush2.xpose.msra.mxu0 0.0
    %281 = vmatprep.subr.mxu0 0.0
    %282 = vmatpush2.xpose.msra.mxu0 0.0
    %283 = vmatprep.subr.mxu0 0.0
    %284 = vmatpush2.xpose.msra.mxu0 0.0
    %285 = vmatprep.subr.mxu0 0.0
    %286 = vmatpush2.xpose.msra.mxu0 0.0
    %287 = vmatprep.subr.mxu0 0.0
    %288 = vmatpush2.xpose.msra.mxu0 0.0
    %289 = vmatprep.subr.mxu0 0.0
    %290 = vmatpush2.xpose.msra.mxu0 0.0
    %291 = vmatprep.subr.mxu0 0.0
    %292 = vmatpush2.xpose.msra.mxu0 0.0
    %293 = vmatprep.subr.mxu0 0.0
    %294 = vmatpush2.xpose.msra.mxu0 0.0
    %295 = vmatprep.subr.mxu0 0.0
    %296 = vmatpush2.xpose.msra.mxu0 0.0
    %297 = vmatprep.subr.mxu0 0.0
    %298 = vmatpush2.xpose.msra.mxu0 0.0
    %299 = vmatprep.subr.mxu0 0.0
    %300 = vmatpush2.xpose.msra.mxu0 0.0
    %301 = vmatprep.subr.mxu0 0.0
    %302 = vmatpush2.xpose.msra.mxu0 0.0
    %303 = vmatprep.subr.mxu0 0.0
    %304 = vmatpush2.xpose.msra.mxu0 0.0
    %305 = vmatprep.subr.mxu0 0.0
    %306 = vmatpush2.xpose.msra.mxu0 0.0
    %307 = vmatprep.mubr.f32.mxu0 0.0
    %308 = vmatmul.mubr.f32.gmra.mxu0 %v239
    %v309 = vpop.f32.mrf.mxu0
    %v310 = vadd.f32 0.0, %v309
    %v311 = vpop.f32.mrf.mxu0
    %312 = vdwg.mxu0
    %314 = vrot.lane.b32.xlu0 %v232, 96
    %v315 = vpop.permute.xlu0 %314
    %v316 = vsel %vm238, %v232, 0
    %v318 = vsel %vm238, %v315, 0
    %320 = vmatprep.subr.mxu0 0.0
    %321 = vmatpush1.xpose.msra.mxu0 0.0
    %322 = vmatprep.subr.mxu0 0.0
    %323 = vmatpush1.xpose.msra.mxu0 0.0
    %324 = vmatprep.subr.mxu0 0.0
    %325 = vmatpush1.xpose.msra.mxu0 0.0
    %326 = vmatprep.subr.mxu0 0.0
    %327 = vmatpush1.xpose.msra.mxu0 0.0
    %328 = vmatprep.subr.mxu0 0.0
    %329 = vmatpush1.xpose.msra.mxu0 0.0
    %330 = vmatprep.subr.mxu0 0.0
    %331 = vmatpush1.xpose.msra.mxu0 0.0
    %332 = vmatprep.subr.mxu0 0.0
    %333 = vmatpush1.xpose.msra.mxu0 0.0
    %334 = vmatprep.subr.mxu0 0.0
    %335 = vmatpush1.xpose.msra.mxu0 0.0
    %336 = vmatprep.subr.mxu0 0.0
    %337 = vmatpush1.xpose.msra.mxu0 0.0
    %338 = vmatprep.subr.mxu0 0.0
    %339 = vmatpush1.xpose.msra.mxu0 0.0
    %340 = vmatprep.subr.mxu0 0.0
    %341 = vmatpush1.xpose.msra.mxu0 0.0
    %342 = vmatprep.subr.mxu0 0.0
    %343 = vmatpush1.xpose.msra.mxu0 0.0
    %344 = vmatprep.subr.mxu0 0.0
    %345 = vmatpush1.xpose.msra.mxu0 0.0
    %346 = vmatprep.subr.mxu0 0.0
    %347 = vmatpush1.xpose.msra.mxu0 0.0
    %348 = vmatprep.subr.mxu0 0.0
    %349 = vmatpush1.xpose.msra.mxu0 0.0
    %350 = vmatprep.subr.mxu0 0.0
    %351 = vmatpush1.xpose.msra.mxu0 %v318
    %352 = vmatprep.subr.mxu0 0.0
    %353 = vmatpush2.xpose.msra.mxu0 0.0
    %354 = vmatprep.subr.mxu0 0.0
    %355 = vmatpush2.xpose.msra.mxu0 0.0
    %356 = vmatprep.subr.mxu0 0.0
    %357 = vmatpush2.xpose.msra.mxu0 0.0
    %358 = vmatprep.subr.mxu0 0.0
    %359 = vmatpush2.xpose.msra.mxu0 0.0
    %360 = vmatprep.subr.mxu0 0.0
    %361 = vmatpush2.xpose.msra.mxu0 0.0
    %362 = vmatprep.subr.mxu0 0.0
    %363 = vmatpush2.xpose.msra.mxu0 0.0
    %364 = vmatprep.subr.mxu0 0.0
    %365 = vmatpush2.xpose.msra.mxu0 0.0
    %366 = vmatprep.subr.mxu0 0.0
    %367 = vmatpush2.xpose.msra.mxu0 0.0
    %368 = vmatprep.subr.mxu0 0.0
    %369 = vmatpush2.xpose.msra.mxu0 0.0
    %370 = vmatprep.subr.mxu0 0.0
    %371 = vmatpush2.xpose.msra.mxu0 0.0
    %372 = vmatprep.subr.mxu0 0.0
    %373 = vmatpush2.xpose.msra.mxu0 0.0
    %374 = vmatprep.subr.mxu0 0.0
    %375 = vmatpush2.xpose.msra.mxu0 0.0
    %376 = vmatprep.subr.mxu0 0.0
    %377 = vmatpush2.xpose.msra.mxu0 0.0
    %378 = vmatprep.subr.mxu0 0.0
    %379 = vmatpush2.xpose.msra.mxu0 0.0
    %380 = vmatprep.subr.mxu0 0.0
    %381 = vmatpush2.xpose.msra.mxu0 0.0
    %382 = vmatprep.subr.mxu0 0.0
    %383 = vmatpush2.xpose.msra.mxu0 0.0
    %384 = vmatprep.mubr.f32.mxu0 0.0
    %385 = vmatmul.mubr.f32.gmra.mxu0 %v316
    %v386 = vpop.f32.mrf.mxu0
    %v387 = vadd.f32 0.0, %v386
    %v388 = vpop.f32.mrf.mxu0
    %389 = vdwg.mxu0
    %v390 = vmul.f32 %v310, 0.35355338
    %v391 = vmul.f32 %v387, 0.35355338
    %v392 = vlaneseq
    %v393 = vshrl.u32 %v392, 7
    %v394 = vsub.s32 0, %v393
    %v395 = vrot.slane %v44, %v394
    %v396 = vlaneseq
    %v397 = vshrl.u32 %v396, 7
    %v398 = vsub.s32 0, %v397
    %v399 = vrot.slane %v51, %v398
    %v402 = vadd.f32 %v390, %v395
    %v403 = vadd.f32 %v391, %v399
    %v404 = vsel %vm238, %v402, -inf
    %405 = vmax.xlane.f32.xlu0 %v404
    %v406 = vpop.xlane.xlu0 %405
    %v407 = vsel %vm238, %v403, -inf
    %408 = vmax.xlane.f32.xlu0 %v407
    %v409 = vpop.xlane.xlu0 %408
    %v410 = vsub.f32 %v402, %v406
    %v411 = vsub.f32 %v403, %v409
    %v412 = vmul.f32 %v410, 1.442695
    %v413 = vpow.pop %v412
    %v414 = vmul.f32 %v411, 1.442695
    %v415 = vpow.pop %v414
    %v416 = vsel %vm238, %v413, 0.0
    %417 = vadd.xlane.f32.xlu0 %v416
    %v418 = vpop.xlane.xlu0 %417
    %v419 = vsel %vm238, %v415, 0.0
    %420 = vadd.xlane.f32.xlu0 %v419
    %v421 = vpop.xlane.xlu0 %420
    %v422 = vrcp.pop %v418
    %v423 = vrcp.pop %v421
    %v424 = vmul.f32 %v413, %v422
    %v425 = vmul.f32 %v415, %v423
    %426 = vrot.lane.b32.xlu0 %v227, 64
    %v427 = vpop.permute.xlu0 %426
    %v430 = vsel %vm238, %v424, 0
    %432 = vmatprep.subr.mxu0 0.0
    %433 = vmatpush1.msra.mxu0 0.0
    %434 = vmatprep.subr.mxu0 0.0
    %435 = vmatpush1.msra.mxu0 0.0
    %436 = vmatprep.subr.mxu0 0.0
    %437 = vmatpush1.msra.mxu0 0.0
    %438 = vmatprep.subr.mxu0 0.0
    %439 = vmatpush1.msra.mxu0 0.0
    %440 = vmatprep.subr.mxu0 0.0
    %441 = vmatpush1.msra.mxu0 0.0
    %442 = vmatprep.subr.mxu0 0.0
    %443 = vmatpush1.msra.mxu0 0.0
    %444 = vmatprep.subr.mxu0 0.0
    %445 = vmatpush1.msra.mxu0 0.0
    %446 = vmatprep.subr.mxu0 0.0
    %447 = vmatpush1.msra.mxu0 0.0
    %448 = vmatprep.subr.mxu0 0.0
    %449 = vmatpush1.msra.mxu0 0.0
    %450 = vmatprep.subr.mxu0 0.0
    %451 = vmatpush1.msra.mxu0 0.0
    %452 = vmatprep.subr.mxu0 0.0
    %453 = vmatpush1.msra.mxu0 0.0
    %454 = vmatprep.subr.mxu0 0.0
    %455 = vmatpush1.msra.mxu0 0.0
    %456 = vmatprep.subr.mxu0 0.0
    %457 = vmatpush1.msra.mxu0 0.0
    %458 = vmatprep.subr.mxu0 0.0
    %459 = vmatpush1.msra.mxu0 0.0
    %460 = vmatprep.subr.mxu0 0.0
    %461 = vmatpush1.msra.mxu0 0.0
    %462 = vmatprep.subr.mxu0 0.0
    %463 = vmatpush1.msra.mxu0 %v427
    %464 = vmatprep.subr.mxu0 0.0
    %465 = vmatpush2.msra.mxu0 0.0
    %466 = vmatprep.subr.mxu0 0.0
    %467 = vmatpush2.msra.mxu0 0.0
    %468 = vmatprep.subr.mxu0 0.0
    %469 = vmatpush2.msra.mxu0 0.0
    %470 = vmatprep.subr.mxu0 0.0
    %471 = vmatpush2.msra.mxu0 0.0
    %472 = vmatprep.subr.mxu0 0.0
    %473 = vmatpush2.msra.mxu0 0.0
    %474 = vmatprep.subr.mxu0 0.0
    %475 = vmatpush2.msra.mxu0 0.0
    %476 = vmatprep.subr.mxu0 0.0
    %477 = vmatpush2.msra.mxu0 0.0
    %478 = vmatprep.subr.mxu0 0.0
    %479 = vmatpush2.msra.mxu0 0.0
    %480 = vmatprep.subr.mxu0 0.0
    %481 = vmatpush2.msra.mxu0 0.0
    %482 = vmatprep.subr.mxu0 0.0
    %483 = vmatpush2.msra.mxu0 0.0
    %484 = vmatprep.subr.mxu0 0.0
    %485 = vmatpush2.msra.mxu0 0.0
    %486 = vmatprep.subr.mxu0 0.0
    %487 = vmatpush2.msra.mxu0 0.0
    %488 = vmatprep.subr.mxu0 0.0
    %489 = vmatpush2.msra.mxu0 0.0
    %490 = vmatprep.subr.mxu0 0.0
    %491 = vmatpush2.msra.mxu0 0.0
    %492 = vmatprep.subr.mxu0 0.0
    %493 = vmatpush2.msra.mxu0 0.0
    %494 = vmatprep.subr.mxu0 0.0
    %495 = vmatpush2.msra.mxu0 0.0
    %496 = vmatprep.mubr.f32.mxu0 0.0
    %497 = vmatmul.mubr.f32.gmra.mxu0 %v430
    %v498 = vpop.f32.mrf.mxu0
    %v499 = vadd.f32 0.0, %v498
    %v500 = vpop.f32.mrf.mxu0
    %501 = vdwg.mxu0
    %502 = vrot.lane.b32.xlu0 %v232, 64
    %v503 = vpop.permute.xlu0 %502
    %v506 = vsel %vm238, %v425, 0
    %508 = vmatprep.subr.mxu0 0.0
    %509 = vmatpush1.msra.mxu0 0.0
    %510 = vmatprep.subr.mxu0 0.0
    %511 = vmatpush1.msra.mxu0 0.0
    %512 = vmatprep.subr.mxu0 0.0
    %513 = vmatpush1.msra.mxu0 0.0
    %514 = vmatprep.subr.mxu0 0.0
    %515 = vmatpush1.msra.mxu0 0.0
    %516 = vmatprep.subr.mxu0 0.0
    %517 = vmatpush1.msra.mxu0 0.0
    %518 = vmatprep.subr.mxu0 0.0
    %519 = vmatpush1.msra.mxu0 0.0
    %520 = vmatprep.subr.mxu0 0.0
    %521 = vmatpush1.msra.mxu0 0.0
    %522 = vmatprep.subr.mxu0 0.0
    %523 = vmatpush1.msra.mxu0 0.0
    %524 = vmatprep.subr.mxu0 0.0
    %525 = vmatpush1.msra.mxu0 0.0
    %526 = vmatprep.subr.mxu0 0.0
    %527 = vmatpush1.msra.mxu0 0.0
    %528 = vmatprep.subr.mxu0 0.0
    %529 = vmatpush1.msra.mxu0 0.0
    %530 = vmatprep.subr.mxu0 0.0
    %531 = vmatpush1.msra.mxu0 0.0
    %532 = vmatprep.subr.mxu0 0.0
    %533 = vmatpush1.msra.mxu0 0.0
    %534 = vmatprep.subr.mxu0 0.0
    %535 = vmatpush1.msra.mxu0 0.0
    %536 = vmatprep.subr.mxu0 0.0
    %537 = vmatpush1.msra.mxu0 0.0
    %538 = vmatprep.subr.mxu0 0.0
    %539 = vmatpush1.msra.mxu0 %v503
    %540 = vmatprep.subr.mxu0 0.0
    %541 = vmatpush2.msra.mxu0 0.0
    %542 = vmatprep.subr.mxu0 0.0
    %543 = vmatpush2.msra.mxu0 0.0
    %544 = vmatprep.subr.mxu0 0.0
    %545 = vmatpush2.msra.mxu0 0.0
    %546 = vmatprep.subr.mxu0 0.0
    %547 = vmatpush2.msra.mxu0 0.0
    %548 = vmatprep.subr.mxu0 0.0
    %549 = vmatpush2.msra.mxu0 0.0
    %550 = vmatprep.subr.mxu0 0.0
    %551 = vmatpush2.msra.mxu0 0.0
    %552 = vmatprep.subr.mxu0 0.0
    %553 = vmatpush2.msra.mxu0 0.0
    %554 = vmatprep.subr.mxu0 0.0
    %555 = vmatpush2.msra.mxu0 0.0
    %556 = vmatprep.subr.mxu0 0.0
    %557 = vmatpush2.msra.mxu0 0.0
    %558 = vmatprep.subr.mxu0 0.0
    %559 = vmatpush2.msra.mxu0 0.0
    %560 = vmatprep.subr.mxu0 0.0
    %561 = vmatpush2.msra.mxu0 0.0
    %562 = vmatprep.subr.mxu0 0.0
    %563 = vmatpush2.msra.mxu0 0.0
    %564 = vmatprep.subr.mxu0 0.0
    %565 = vmatpush2.msra.mxu0 0.0
    %566 = vmatprep.subr.mxu0 0.0
    %567 = vmatpush2.msra.mxu0 0.0
    %568 = vmatprep.subr.mxu0 0.0
    %569 = vmatpush2.msra.mxu0 0.0
    %570 = vmatprep.subr.mxu0 0.0
    %571 = vmatpush2.msra.mxu0 0.0
    %572 = vmatprep.mubr.f32.mxu0 0.0
    %573 = vmatmul.mubr.f32.gmra.mxu0 %v506
    %v574 = vpop.f32.mrf.mxu0
    %v575 = vadd.f32 0.0, %v574
    %v576 = vpop.f32.mrf.mxu0
    %577 = vdwg.mxu0
    %578 = vrot.lane.b32.xlu0 %v227, 120
    %v579 = vpop.permute.xlu0 %578
    %580 = vrot.lane.b32.xlu0 %v227, 88
    %v581 = vpop.permute.xlu0 %580
    %v582 = vsel %vm238, %v579, 0
    %v584 = vsel %vm238, %v581, 0
    %586 = vmatprep.subr.mxu0 0.0
    %587 = vmatpush1.xpose.msra.mxu0 0.0
    %588 = vmatprep.subr.mxu0 0.0
    %589 = vmatpush1.xpose.msra.mxu0 0.0
    %590 = vmatprep.subr.mxu0 0.0
    %591 = vmatpush1.xpose.msra.mxu0 0.0
    %592 = vmatprep.subr.mxu0 0.0
    %593 = vmatpush1.xpose.msra.mxu0 0.0
    %594 = vmatprep.subr.mxu0 0.0
    %595 = vmatpush1.xpose.msra.mxu0 0.0
    %596 = vmatprep.subr.mxu0 0.0
    %597 = vmatpush1.xpose.msra.mxu0 0.0
    %598 = vmatprep.subr.mxu0 0.0
    %599 = vmatpush1.xpose.msra.mxu0 0.0
    %600 = vmatprep.subr.mxu0 0.0
    %601 = vmatpush1.xpose.msra.mxu0 0.0
    %602 = vmatprep.subr.mxu0 0.0
    %603 = vmatpush1.xpose.msra.mxu0 0.0
    %604 = vmatprep.subr.mxu0 0.0
    %605 = vmatpush1.xpose.msra.mxu0 0.0
    %606 = vmatprep.subr.mxu0 0.0
    %607 = vmatpush1.xpose.msra.mxu0 0.0
    %608 = vmatprep.subr.mxu0 0.0
    %609 = vmatpush1.xpose.msra.mxu0 0.0
    %610 = vmatprep.subr.mxu0 0.0
    %611 = vmatpush1.xpose.msra.mxu0 0.0
    %612 = vmatprep.subr.mxu0 0.0
    %613 = vmatpush1.xpose.msra.mxu0 0.0
    %614 = vmatprep.subr.mxu0 0.0
    %615 = vmatpush1.xpose.msra.mxu0 0.0
    %616 = vmatprep.subr.mxu0 0.0
    %617 = vmatpush1.xpose.msra.mxu0 %v584
    %618 = vmatprep.subr.mxu0 0.0
    %619 = vmatpush2.xpose.msra.mxu0 0.0
    %620 = vmatprep.subr.mxu0 0.0
    %621 = vmatpush2.xpose.msra.mxu0 0.0
    %622 = vmatprep.subr.mxu0 0.0
    %623 = vmatpush2.xpose.msra.mxu0 0.0
    %624 = vmatprep.subr.mxu0 0.0
    %625 = vmatpush2.xpose.msra.mxu0 0.0
    %626 = vmatprep.subr.mxu0 0.0
    %627 = vmatpush2.xpose.msra.mxu0 0.0
    %628 = vmatprep.subr.mxu0 0.0
    %629 = vmatpush2.xpose.msra.mxu0 0.0
    %630 = vmatprep.subr.mxu0 0.0
    %631 = vmatpush2.xpose.msra.mxu0 0.0
    %632 = vmatprep.subr.mxu0 0.0
    %633 = vmatpush2.xpose.msra.mxu0 0.0
    %634 = vmatprep.subr.mxu0 0.0
    %635 = vmatpush2.xpose.msra.mxu0 0.0
    %636 = vmatprep.subr.mxu0 0.0
    %637 = vmatpush2.xpose.msra.mxu0 0.0
    %638 = vmatprep.subr.mxu0 0.0
    %639 = vmatpush2.xpose.msra.mxu0 0.0
    %640 = vmatprep.subr.mxu0 0.0
    %641 = vmatpush2.xpose.msra.mxu0 0.0
    %642 = vmatprep.subr.mxu0 0.0
    %643 = vmatpush2.xpose.msra.mxu0 0.0
    %644 = vmatprep.subr.mxu0 0.0
    %645 = vmatpush2.xpose.msra.mxu0 0.0
    %646 = vmatprep.subr.mxu0 0.0
    %647 = vmatpush2.xpose.msra.mxu0 0.0
    %648 = vmatprep.subr.mxu0 0.0
    %649 = vmatpush2.xpose.msra.mxu0 0.0
    %650 = vmatprep.mubr.f32.mxu0 0.0
    %651 = vmatmul.mubr.f32.gmra.mxu0 %v582
    %v652 = vpop.f32.mrf.mxu0
    %v653 = vadd.f32 0.0, %v652
    %v654 = vpop.f32.mrf.mxu0
    %655 = vdwg.mxu0
    %656 = vrot.lane.b32.xlu0 %v232, 120
    %v657 = vpop.permute.xlu0 %656
    %658 = vrot.lane.b32.xlu0 %v232, 88
    %v659 = vpop.permute.xlu0 %658
    %v660 = vsel %vm238, %v657, 0
    %v662 = vsel %vm238, %v659, 0
    %664 = vmatprep.subr.mxu0 0.0
    %665 = vmatpush1.xpose.msra.mxu0 0.0
    %666 = vmatprep.subr.mxu0 0.0
    %667 = vmatpush1.xpose.msra.mxu0 0.0
    %668 = vmatprep.subr.mxu0 0.0
    %669 = vmatpush1.xpose.msra.mxu0 0.0
    %670 = vmatprep.subr.mxu0 0.0
    %671 = vmatpush1.xpose.msra.mxu0 0.0
    %672 = vmatprep.subr.mxu0 0.0
    %673 = vmatpush1.xpose.msra.mxu0 0.0
    %674 = vmatprep.subr.mxu0 0.0
    %675 = vmatpush1.xpose.msra.mxu0 0.0
    %676 = vmatprep.subr.mxu0 0.0
    %677 = vmatpush1.xpose.msra.mxu0 0.0
    %678 = vmatprep.subr.mxu0 0.0
    %679 = vmatpush1.xpose.msra.mxu0 0.0
    %680 = vmatprep.subr.mxu0 0.0
    %681 = vmatpush1.xpose.msra.mxu0 0.0
    %682 = vmatprep.subr.mxu0 0.0
    %683 = vmatpush1.xpose.msra.mxu0 0.0
    %684 = vmatprep.subr.mxu0 0.0
    %685 = vmatpush1.xpose.msra.mxu0 0.0
    %686 = vmatprep.subr.mxu0 0.0
    %687 = vmatpush1.xpose.msra.mxu0 0.0
    %688 = vmatprep.subr.mxu0 0.0
    %689 = vmatpush1.xpose.msra.mxu0 0.0
    %690 = vmatprep.subr.mxu0 0.0
    %691 = vmatpush1.xpose.msra.mxu0 0.0
    %692 = vmatprep.subr.mxu0 0.0
    %693 = vmatpush1.xpose.msra.mxu0 0.0
    %694 = vmatprep.subr.mxu0 0.0
    %695 = vmatpush1.xpose.msra.mxu0 %v662
    %696 = vmatprep.subr.mxu0 0.0
    %697 = vmatpush2.xpose.msra.mxu0 0.0
    %698 = vmatprep.subr.mxu0 0.0
    %699 = vmatpush2.xpose.msra.mxu0 0.0
    %700 = vmatprep.subr.mxu0 0.0
    %701 = vmatpush2.xpose.msra.mxu0 0.0
    %702 = vmatprep.subr.mxu0 0.0
    %703 = vmatpush2.xpose.msra.mxu0 0.0
    %704 = vmatprep.subr.mxu0 0.0
    %705 = vmatpush2.xpose.msra.mxu0 0.0
    %706 = vmatprep.subr.mxu0 0.0
    %707 = vmatpush2.xpose.msra.mxu0 0.0
    %708 = vmatprep.subr.mxu0 0.0
    %709 = vmatpush2.xpose.msra.mxu0 0.0
    %710 = vmatprep.subr.mxu0 0.0
    %711 = vmatpush2.xpose.msra.mxu0 0.0
    %712 = vmatprep.subr.mxu0 0.0
    %713 = vmatpush2.xpose.msra.mxu0 0.0
    %714 = vmatprep.subr.mxu0 0.0
    %715 = vmatpush2.xpose.msra.mxu0 0.0
    %716 = vmatprep.subr.mxu0 0.0
    %717 = vmatpush2.xpose.msra.mxu0 0.0
    %718 = vmatprep.subr.mxu0 0.0
    %719 = vmatpush2.xpose.msra.mxu0 0.0
    %720 = vmatprep.subr.mxu0 0.0
    %721 = vmatpush2.xpose.msra.mxu0 0.0
    %722 = vmatprep.subr.mxu0 0.0
    %723 = vmatpush2.xpose.msra.mxu0 0.0
    %724 = vmatprep.subr.mxu0 0.0
    %725 = vmatpush2.xpose.msra.mxu0 0.0
    %726 = vmatprep.subr.mxu0 0.0
    %727 = vmatpush2.xpose.msra.mxu0 0.0
    %728 = vmatprep.mubr.f32.mxu0 0.0
    %729 = vmatmul.mubr.f32.gmra.mxu0 %v660
    %v730 = vpop.f32.mrf.mxu0
    %v731 = vadd.f32 0.0, %v730
    %v732 = vpop.f32.mrf.mxu0
    %733 = vdwg.mxu0
    %v734 = vmul.f32 %v653, 0.35355338
    %v735 = vmul.f32 %v731, 0.35355338
    %v736 = vadd.f32 %v734, %v395
    %v737 = vadd.f32 %v735, %v399
    %v738 = vsel %vm238, %v736, -inf
    %739 = vmax.xlane.f32.xlu0 %v738
    %v740 = vpop.xlane.xlu0 %739
    %v741 = vsel %vm238, %v737, -inf
    %742 = vmax.xlane.f32.xlu0 %v741
    %v743 = vpop.xlane.xlu0 %742
    %v744 = vsub.f32 %v736, %v740
    %v745 = vsub.f32 %v737, %v743
    %v746 = vmul.f32 %v744, 1.442695
    %v747 = vpow.pop %v746
    %v748 = vmul.f32 %v745, 1.442695
    %v749 = vpow.pop %v748
    %v750 = vsel %vm238, %v747, 0.0
    %751 = vadd.xlane.f32.xlu0 %v750
    %v752 = vpop.xlane.xlu0 %751
    %v753 = vsel %vm238, %v749, 0.0
    %754 = vadd.xlane.f32.xlu0 %v753
    %v755 = vpop.xlane.xlu0 %754
    %v756 = vrcp.pop %v752
    %v757 = vrcp.pop %v755
    %v758 = vmul.f32 %v747, %v756
    %v759 = vmul.f32 %v749, %v757
    %760 = vrot.lane.b32.xlu0 %v227, 56
    %v761 = vpop.permute.xlu0 %760
    %v764 = vsel %vm238, %v758, 0
    %766 = vmatprep.subr.mxu0 0.0
    %767 = vmatpush1.msra.mxu0 0.0
    %768 = vmatprep.subr.mxu0 0.0
    %769 = vmatpush1.msra.mxu0 0.0
    %770 = vmatprep.subr.mxu0 0.0
    %771 = vmatpush1.msra.mxu0 0.0
    %772 = vmatprep.subr.mxu0 0.0
    %773 = vmatpush1.msra.mxu0 0.0
    %774 = vmatprep.subr.mxu0 0.0
    %775 = vmatpush1.msra.mxu0 0.0
    %776 = vmatprep.subr.mxu0 0.0
    %777 = vmatpush1.msra.mxu0 0.0
    %778 = vmatprep.subr.mxu0 0.0
    %779 = vmatpush1.msra.mxu0 0.0
    %780 = vmatprep.subr.mxu0 0.0
    %781 = vmatpush1.msra.mxu0 0.0
    %782 = vmatprep.subr.mxu0 0.0
    %783 = vmatpush1.msra.mxu0 0.0
    %784 = vmatprep.subr.mxu0 0.0
    %785 = vmatpush1.msra.mxu0 0.0
    %786 = vmatprep.subr.mxu0 0.0
    %787 = vmatpush1.msra.mxu0 0.0
    %788 = vmatprep.subr.mxu0 0.0
    %789 = vmatpush1.msra.mxu0 0.0
    %790 = vmatprep.subr.mxu0 0.0
    %791 = vmatpush1.msra.mxu0 0.0
    %792 = vmatprep.subr.mxu0 0.0
    %793 = vmatpush1.msra.mxu0 0.0
    %794 = vmatprep.subr.mxu0 0.0
    %795 = vmatpush1.msra.mxu0 0.0
    %796 = vmatprep.subr.mxu0 0.0
    %797 = vmatpush1.msra.mxu0 %v761
    %798 = vmatprep.subr.mxu0 0.0
    %799 = vmatpush2.msra.mxu0 0.0
    %800 = vmatprep.subr.mxu0 0.0
    %801 = vmatpush2.msra.mxu0 0.0
    %802 = vmatprep.subr.mxu0 0.0
    %803 = vmatpush2.msra.mxu0 0.0
    %804 = vmatprep.subr.mxu0 0.0
    %805 = vmatpush2.msra.mxu0 0.0
    %806 = vmatprep.subr.mxu0 0.0
    %807 = vmatpush2.msra.mxu0 0.0
    %808 = vmatprep.subr.mxu0 0.0
    %809 = vmatpush2.msra.mxu0 0.0
    %810 = vmatprep.subr.mxu0 0.0
    %811 = vmatpush2.msra.mxu0 0.0
    %812 = vmatprep.subr.mxu0 0.0
    %813 = vmatpush2.msra.mxu0 0.0
    %814 = vmatprep.subr.mxu0 0.0
    %815 = vmatpush2.msra.mxu0 0.0
    %816 = vmatprep.subr.mxu0 0.0
    %817 = vmatpush2.msra.mxu0 0.0
    %818 = vmatprep.subr.mxu0 0.0
    %819 = vmatpush2.msra.mxu0 0.0
    %820 = vmatprep.subr.mxu0 0.0
    %821 = vmatpush2.msra.mxu0 0.0
    %822 = vmatprep.subr.mxu0 0.0
    %823 = vmatpush2.msra.mxu0 0.0
    %824 = vmatprep.subr.mxu0 0.0
    %825 = vmatpush2.msra.mxu0 0.0
    %826 = vmatprep.subr.mxu0 0.0
    %827 = vmatpush2.msra.mxu0 0.0
    %828 = vmatprep.subr.mxu0 0.0
    %829 = vmatpush2.msra.mxu0 0.0
    %830 = vmatprep.mubr.f32.mxu0 0.0
    %831 = vmatmul.mubr.f32.gmra.mxu0 %v764
    %v832 = vpop.f32.mrf.mxu0
    %v833 = vadd.f32 0.0, %v832
    %v834 = vpop.f32.mrf.mxu0
    %835 = vdwg.mxu0
    %836 = vrot.lane.b32.xlu0 %v232, 56
    %v837 = vpop.permute.xlu0 %836
    %v840 = vsel %vm238, %v759, 0
    %842 = vmatprep.subr.mxu0 0.0
    %843 = vmatpush1.msra.mxu0 0.0
    %844 = vmatprep.subr.mxu0 0.0
    %845 = vmatpush1.msra.mxu0 0.0
    %846 = vmatprep.subr.mxu0 0.0
    %847 = vmatpush1.msra.mxu0 0.0
    %848 = vmatprep.subr.mxu0 0.0
    %849 = vmatpush1.msra.mxu0 0.0
    %850 = vmatprep.subr.mxu0 0.0
    %851 = vmatpush1.msra.mxu0 0.0
    %852 = vmatprep.subr.mxu0 0.0
    %853 = vmatpush1.msra.mxu0 0.0
    %854 = vmatprep.subr.mxu0 0.0
    %855 = vmatpush1.msra.mxu0 0.0
    %856 = vmatprep.subr.mxu0 0.0
    %857 = vmatpush1.msra.mxu0 0.0
    %858 = vmatprep.subr.mxu0 0.0
    %859 = vmatpush1.msra.mxu0 0.0
    %860 = vmatprep.subr.mxu0 0.0
    %861 = vmatpush1.msra.mxu0 0.0
    %862 = vmatprep.subr.mxu0 0.0
    %863 = vmatpush1.msra.mxu0 0.0
    %864 = vmatprep.subr.mxu0 0.0
    %865 = vmatpush1.msra.mxu0 0.0
    %866 = vmatprep.subr.mxu0 0.0
    %867 = vmatpush1.msra.mxu0 0.0
    %868 = vmatprep.subr.mxu0 0.0
    %869 = vmatpush1.msra.mxu0 0.0
    %870 = vmatprep.subr.mxu0 0.0
    %871 = vmatpush1.msra.mxu0 0.0
    %872 = vmatprep.subr.mxu0 0.0
    %873 = vmatpush1.msra.mxu0 %v837
    %874 = vmatprep.subr.mxu0 0.0
    %875 = vmatpush2.msra.mxu0 0.0
    %876 = vmatprep.subr.mxu0 0.0
    %877 = vmatpush2.msra.mxu0 0.0
    %878 = vmatprep.subr.mxu0 0.0
    %879 = vmatpush2.msra.mxu0 0.0
    %880 = vmatprep.subr.mxu0 0.0
    %881 = vmatpush2.msra.mxu0 0.0
    %882 = vmatprep.subr.mxu0 0.0
    %883 = vmatpush2.msra.mxu0 0.0
    %884 = vmatprep.subr.mxu0 0.0
    %885 = vmatpush2.msra.mxu0 0.0
    %886 = vmatprep.subr.mxu0 0.0
    %887 = vmatpush2.msra.mxu0 0.0
    %888 = vmatprep.subr.mxu0 0.0
    %889 = vmatpush2.msra.mxu0 0.0
    %890 = vmatprep.subr.mxu0 0.0
    %891 = vmatpush2.msra.mxu0 0.0
    %892 = vmatprep.subr.mxu0 0.0
    %893 = vmatpush2.msra.mxu0 0.0
    %894 = vmatprep.subr.mxu0 0.0
    %895 = vmatpush2.msra.mxu0 0.0
    %896 = vmatprep.subr.mxu0 0.0
    %897 = vmatpush2.msra.mxu0 0.0
    %898 = vmatprep.subr.mxu0 0.0
    %899 = vmatpush2.msra.mxu0 0.0
    %900 = vmatprep.subr.mxu0 0.0
    %901 = vmatpush2.msra.mxu0 0.0
    %902 = vmatprep.subr.mxu0 0.0
    %903 = vmatpush2.msra.mxu0 0.0
    %904 = vmatprep.subr.mxu0 0.0
    %905 = vmatpush2.msra.mxu0 0.0
    %906 = vmatprep.mubr.f32.mxu0 0.0
    %907 = vmatmul.mubr.f32.gmra.mxu0 %v840
    %v908 = vpop.f32.mrf.mxu0
    %v909 = vadd.f32 0.0, %v908
    %v910 = vpop.f32.mrf.mxu0
    %911 = vdwg.mxu0
    %912 = vrot.lane.b32.xlu0 %v227, 112
    %v913 = vpop.permute.xlu0 %912
    %914 = vrot.lane.b32.xlu0 %v227, 80
    %v915 = vpop.permute.xlu0 %914
    %v916 = vsel %vm238, %v913, 0
    %v918 = vsel %vm238, %v915, 0
    %920 = vmatprep.subr.mxu0 0.0
    %921 = vmatpush1.xpose.msra.mxu0 0.0
    %922 = vmatprep.subr.mxu0 0.0
    %923 = vmatpush1.xpose.msra.mxu0 0.0
    %924 = vmatprep.subr.mxu0 0.0
    %925 = vmatpush1.xpose.msra.mxu0 0.0
    %926 = vmatprep.subr.mxu0 0.0
    %927 = vmatpush1.xpose.msra.mxu0 0.0
    %928 = vmatprep.subr.mxu0 0.0
    %929 = vmatpush1.xpose.msra.mxu0 0.0
    %930 = vmatprep.subr.mxu0 0.0
    %931 = vmatpush1.xpose.msra.mxu0 0.0
    %932 = vmatprep.subr.mxu0 0.0
    %933 = vmatpush1.xpose.msra.mxu0 0.0
    %934 = vmatprep.subr.mxu0 0.0
    %935 = vmatpush1.xpose.msra.mxu0 0.0
    %936 = vmatprep.subr.mxu0 0.0
    %937 = vmatpush1.xpose.msra.mxu0 0.0
    %938 = vmatprep.subr.mxu0 0.0
    %939 = vmatpush1.xpose.msra.mxu0 0.0
    %940 = vmatprep.subr.mxu0 0.0
    %941 = vmatpush1.xpose.msra.mxu0 0.0
    %942 = vmatprep.subr.mxu0 0.0
    %943 = vmatpush1.xpose.msra.mxu0 0.0
    %944 = vmatprep.subr.mxu0 0.0
    %945 = vmatpush1.xpose.msra.mxu0 0.0
    %946 = vmatprep.subr.mxu0 0.0
    %947 = vmatpush1.xpose.msra.mxu0 0.0
    %948 = vmatprep.subr.mxu0 0.0
    %949 = vmatpush1.xpose.msra.mxu0 0.0
    %950 = vmatprep.subr.mxu0 0.0
    %951 = vmatpush1.xpose.msra.mxu0 %v918
    %952 = vmatprep.subr.mxu0 0.0
    %953 = vmatpush2.xpose.msra.mxu0 0.0
    %954 = vmatprep.subr.mxu0 0.0
    %955 = vmatpush2.xpose.msra.mxu0 0.0
    %956 = vmatprep.subr.mxu0 0.0
    %957 = vmatpush2.xpose.msra.mxu0 0.0
    %958 = vmatprep.subr.mxu0 0.0
    %959 = vmatpush2.xpose.msra.mxu0 0.0
    %960 = vmatprep.subr.mxu0 0.0
    %961 = vmatpush2.xpose.msra.mxu0 0.0
    %962 = vmatprep.subr.mxu0 0.0
    %963 = vmatpush2.xpose.msra.mxu0 0.0
    %964 = vmatprep.subr.mxu0 0.0
    %965 = vmatpush2.xpose.msra.mxu0 0.0
    %966 = vmatprep.subr.mxu0 0.0
    %967 = vmatpush2.xpose.msra.mxu0 0.0
    %968 = vmatprep.subr.mxu0 0.0
    %969 = vmatpush2.xpose.msra.mxu0 0.0
    %970 = vmatprep.subr.mxu0 0.0
    %971 = vmatpush2.xpose.msra.mxu0 0.0
    %972 = vmatprep.subr.mxu0 0.0
    %973 = vmatpush2.xpose.msra.mxu0 0.0
    %974 = vmatprep.subr.mxu0 0.0
    %975 = vmatpush2.xpose.msra.mxu0 0.0
    %976 = vmatprep.subr.mxu0 0.0
    %977 = vmatpush2.xpose.msra.mxu0 0.0
    %978 = vmatprep.subr.mxu0 0.0
    %979 = vmatpush2.xpose.msra.mxu0 0.0
    %980 = vmatprep.subr.mxu0 0.0
    %981 = vmatpush2.xpose.msra.mxu0 0.0
    %982 = vmatprep.subr.mxu0 0.0
    %983 = vmatpush2.xpose.msra.mxu0 0.0
    %984 = vmatprep.mubr.f32.mxu0 0.0
    %985 = vmatmul.mubr.f32.gmra.mxu0 %v916
    %v986 = vpop.f32.mrf.mxu0
    %v987 = vadd.f32 0.0, %v986
    %v988 = vpop.f32.mrf.mxu0
    %989 = vdwg.mxu0
    %990 = vrot.lane.b32.xlu0 %v232, 112
    %v991 = vpop.permute.xlu0 %990
    %992 = vrot.lane.b32.xlu0 %v232, 80
    %v993 = vpop.permute.xlu0 %992
    %v994 = vsel %vm238, %v991, 0
    %v996 = vsel %vm238, %v993, 0
    %998 = vmatprep.subr.mxu0 0.0
    %999 = vmatpush1.xpose.msra.mxu0 0.0
    %1000 = vmatprep.subr.mxu0 0.0
    %1001 = vmatpush1.xpose.msra.mxu0 0.0
    %1002 = vmatprep.subr.mxu0 0.0
    %1003 = vmatpush1.xpose.msra.mxu0 0.0
    %1004 = vmatprep.subr.mxu0 0.0
    %1005 = vmatpush1.xpose.msra.mxu0 0.0
    %1006 = vmatprep.subr.mxu0 0.0
    %1007 = vmatpush1.xpose.msra.mxu0 0.0
    %1008 = vmatprep.subr.mxu0 0.0
    %1009 = vmatpush1.xpose.msra.mxu0 0.0
    %1010 = vmatprep.subr.mxu0 0.0
    %1011 = vmatpush1.xpose.msra.mxu0 0.0
    %1012 = vmatprep.subr.mxu0 0.0
    %1013 = vmatpush1.xpose.msra.mxu0 0.0
    %1014 = vmatprep.subr.mxu0 0.0
    %1015 = vmatpush1.xpose.msra.mxu0 0.0
    %1016 = vmatprep.subr.mxu0 0.0
    %1017 = vmatpush1.xpose.msra.mxu0 0.0
    %1018 = vmatprep.subr.mxu0 0.0
    %1019 = vmatpush1.xpose.msra.mxu0 0.0
    %1020 = vmatprep.subr.mxu0 0.0
    %1021 = vmatpush1.xpose.msra.mxu0 0.0
    %1022 = vmatprep.subr.mxu0 0.0
    %1023 = vmatpush1.xpose.msra.mxu0 0.0
    %1024 = vmatprep.subr.mxu0 0.0
    %1025 = vmatpush1.xpose.msra.mxu0 0.0
    %1026 = vmatprep.subr.mxu0 0.0
    %1027 = vmatpush1.xpose.msra.mxu0 0.0
    %1028 = vmatprep.subr.mxu0 0.0
    %1029 = vmatpush1.xpose.msra.mxu0 %v996
    %1030 = vmatprep.subr.mxu0 0.0
    %1031 = vmatpush2.xpose.msra.mxu0 0.0
    %1032 = vmatprep.subr.mxu0 0.0
    %1033 = vmatpush2.xpose.msra.mxu0 0.0
    %1034 = vmatprep.subr.mxu0 0.0
    %1035 = vmatpush2.xpose.msra.mxu0 0.0
    %1036 = vmatprep.subr.mxu0 0.0
    %1037 = vmatpush2.xpose.msra.mxu0 0.0
    %1038 = vmatprep.subr.mxu0 0.0
    %1039 = vmatpush2.xpose.msra.mxu0 0.0
    %1040 = vmatprep.subr.mxu0 0.0
    %1041 = vmatpush2.xpose.msra.mxu0 0.0
    %1042 = vmatprep.subr.mxu0 0.0
    %1043 = vmatpush2.xpose.msra.mxu0 0.0
    %1044 = vmatprep.subr.mxu0 0.0
    %1045 = vmatpush2.xpose.msra.mxu0 0.0
    %1046 = vmatprep.subr.mxu0 0.0
    %1047 = vmatpush2.xpose.msra.mxu0 0.0
    %1048 = vmatprep.subr.mxu0 0.0
    %1049 = vmatpush2.xpose.msra.mxu0 0.0
    %1050 = vmatprep.subr.mxu0 0.0
    %1051 = vmatpush2.xpose.msra.mxu0 0.0
    %1052 = vmatprep.subr.mxu0 0.0
    %1053 = vmatpush2.xpose.msra.mxu0 0.0
    %1054 = vmatprep.subr.mxu0 0.0
    %1055 = vmatpush2.xpose.msra.mxu0 0.0
    %1056 = vmatprep.subr.mxu0 0.0
    %1057 = vmatpush2.xpose.msra.mxu0 0.0
    %1058 = vmatprep.subr.mxu0 0.0
    %1059 = vmatpush2.xpose.msra.mxu0 0.0
    %1060 = vmatprep.subr.mxu0 0.0
    %1061 = vmatpush2.xpose.msra.mxu0 0.0
    %1062 = vmatprep.mubr.f32.mxu0 0.0
    %1063 = vmatmul.mubr.f32.gmra.mxu0 %v994
    %v1064 = vpop.f32.mrf.mxu0
    %v1065 = vadd.f32 0.0, %v1064
    %v1066 = vpop.f32.mrf.mxu0
    %1067 = vdwg.mxu0
    %v1068 = vmul.f32 %v987, 0.35355338
    %v1069 = vmul.f32 %v1065, 0.35355338
    %v1070 = vadd.f32 %v1068, %v395
    %v1071 = vadd.f32 %v1069, %v399
    %v1072 = vsel %vm238, %v1070, -inf
    %1073 = vmax.xlane.f32.xlu0 %v1072
    %v1074 = vpop.xlane.xlu0 %1073
    %v1075 = vsel %vm238, %v1071, -inf
    %1076 = vmax.xlane.f32.xlu0 %v1075
    %v1077 = vpop.xlane.xlu0 %1076
    %v1078 = vsub.f32 %v1070, %v1074
    %v1079 = vsub.f32 %v1071, %v1077
    %v1080 = vmul.f32 %v1078, 1.442695
    %v1081 = vpow.pop %v1080
    %v1082 = vmul.f32 %v1079, 1.442695
    %v1083 = vpow.pop %v1082
    %v1084 = vsel %vm238, %v1081, 0.0
    %1085 = vadd.xlane.f32.xlu0 %v1084
    %v1086 = vpop.xlane.xlu0 %1085
    %v1087 = vsel %vm238, %v1083, 0.0
    %1088 = vadd.xlane.f32.xlu0 %v1087
    %v1089 = vpop.xlane.xlu0 %1088
    %v1090 = vrcp.pop %v1086
    %v1091 = vrcp.pop %v1089
    %v1092 = vmul.f32 %v1081, %v1090
    %v1093 = vmul.f32 %v1083, %v1091
    %1094 = vrot.lane.b32.xlu0 %v227, 48
    %v1095 = vpop.permute.xlu0 %1094
    %v1098 = vsel %vm238, %v1092, 0
    %1100 = vmatprep.subr.mxu0 0.0
    %1101 = vmatpush1.msra.mxu0 0.0
    %1102 = vmatprep.subr.mxu0 0.0
    %1103 = vmatpush1.msra.mxu0 0.0
    %1104 = vmatprep.subr.mxu0 0.0
    %1105 = vmatpush1.msra.mxu0 0.0
    %1106 = vmatprep.subr.mxu0 0.0
    %1107 = vmatpush1.msra.mxu0 0.0
    %1108 = vmatprep.subr.mxu0 0.0
    %1109 = vmatpush1.msra.mxu0 0.0
    %1110 = vmatprep.subr.mxu0 0.0
    %1111 = vmatpush1.msra.mxu0 0.0
    %1112 = vmatprep.subr.mxu0 0.0
    %1113 = vmatpush1.msra.mxu0 0.0
    %1114 = vmatprep.subr.mxu0 0.0
    %1115 = vmatpush1.msra.mxu0 0.0
    %1116 = vmatprep.subr.mxu0 0.0
    %1117 = vmatpush1.msra.mxu0 0.0
    %1118 = vmatprep.subr.mxu0 0.0
    %1119 = vmatpush1.msra.mxu0 0.0
    %1120 = vmatprep.subr.mxu0 0.0
    %1121 = vmatpush1.msra.mxu0 0.0
    %1122 = vmatprep.subr.mxu0 0.0
    %1123 = vmatpush1.msra.mxu0 0.0
    %1124 = vmatprep.subr.mxu0 0.0
    %1125 = vmatpush1.msra.mxu0 0.0
    %1126 = vmatprep.subr.mxu0 0.0
    %1127 = vmatpush1.msra.mxu0 0.0
    %1128 = vmatprep.subr.mxu0 0.0
    %1129 = vmatpush1.msra.mxu0 0.0
    %1130 = vmatprep.subr.mxu0 0.0
    %1131 = vmatpush1.msra.mxu0 %v1095
    %1132 = vmatprep.subr.mxu0 0.0
    %1133 = vmatpush2.msra.mxu0 0.0
    %1134 = vmatprep.subr.mxu0 0.0
    %1135 = vmatpush2.msra.mxu0 0.0
    %1136 = vmatprep.subr.mxu0 0.0
    %1137 = vmatpush2.msra.mxu0 0.0
    %1138 = vmatprep.subr.mxu0 0.0
    %1139 = vmatpush2.msra.mxu0 0.0
    %1140 = vmatprep.subr.mxu0 0.0
    %1141 = vmatpush2.msra.mxu0 0.0
    %1142 = vmatprep.subr.mxu0 0.0
    %1143 = vmatpush2.msra.mxu0 0.0
    %1144 = vmatprep.subr.mxu0 0.0
    %1145 = vmatpush2.msra.mxu0 0.0
    %1146 = vmatprep.subr.mxu0 0.0
    %1147 = vmatpush2.msra.mxu0 0.0
    %1148 = vmatprep.subr.mxu0 0.0
    %1149 = vmatpush2.msra.mxu0 0.0
    %1150 = vmatprep.subr.mxu0 0.0
    %1151 = vmatpush2.msra.mxu0 0.0
    %1152 = vmatprep.subr.mxu0 0.0
    %1153 = vmatpush2.msra.mxu0 0.0
    %1154 = vmatprep.subr.mxu0 0.0
    %1155 = vmatpush2.msra.mxu0 0.0
    %1156 = vmatprep.subr.mxu0 0.0
    %1157 = vmatpush2.msra.mxu0 0.0
    %1158 = vmatprep.subr.mxu0 0.0
    %1159 = vmatpush2.msra.mxu0 0.0
    %1160 = vmatprep.subr.mxu0 0.0
    %1161 = vmatpush2.msra.mxu0 0.0
    %1162 = vmatprep.subr.mxu0 0.0
    %1163 = vmatpush2.msra.mxu0 0.0
    %1164 = vmatprep.mubr.f32.mxu0 0.0
    %1165 = vmatmul.mubr.f32.gmra.mxu0 %v1098
    %v1166 = vpop.f32.mrf.mxu0
    %v1167 = vadd.f32 0.0, %v1166
    %v1168 = vpop.f32.mrf.mxu0
    %1169 = vdwg.mxu0
    %1170 = vrot.lane.b32.xlu0 %v232, 48
    %v1171 = vpop.permute.xlu0 %1170
    %v1174 = vsel %vm238, %v1093, 0
    %1176 = vmatprep.subr.mxu0 0.0
    %1177 = vmatpush1.msra.mxu0 0.0
    %1178 = vmatprep.subr.mxu0 0.0
    %1179 = vmatpush1.msra.mxu0 0.0
    %1180 = vmatprep.subr.mxu0 0.0
    %1181 = vmatpush1.msra.mxu0 0.0
    %1182 = vmatprep.subr.mxu0 0.0
    %1183 = vmatpush1.msra.mxu0 0.0
    %1184 = vmatprep.subr.mxu0 0.0
    %1185 = vmatpush1.msra.mxu0 0.0
    %1186 = vmatprep.subr.mxu0 0.0
    %1187 = vmatpush1.msra.mxu0 0.0
    %1188 = vmatprep.subr.mxu0 0.0
    %1189 = vmatpush1.msra.mxu0 0.0
    %1190 = vmatprep.subr.mxu0 0.0
    %1191 = vmatpush1.msra.mxu0 0.0
    %1192 = vmatprep.subr.mxu0 0.0
    %1193 = vmatpush1.msra.mxu0 0.0
    %1194 = vmatprep.subr.mxu0 0.0
    %1195 = vmatpush1.msra.mxu0 0.0
    %1196 = vmatprep.subr.mxu0 0.0
    %1197 = vmatpush1.msra.mxu0 0.0
    %1198 = vmatprep.subr.mxu0 0.0
    %1199 = vmatpush1.msra.mxu0 0.0
    %1200 = vmatprep.subr.mxu0 0.0
    %1201 = vmatpush1.msra.mxu0 0.0
    %1202 = vmatprep.subr.mxu0 0.0
    %1203 = vmatpush1.msra.mxu0 0.0
    %1204 = vmatprep.subr.mxu0 0.0
    %1205 = vmatpush1.msra.mxu0 0.0
    %1206 = vmatprep.subr.mxu0 0.0
    %1207 = vmatpush1.msra.mxu0 %v1171
    %1208 = vmatprep.subr.mxu0 0.0
    %1209 = vmatpush2.msra.mxu0 0.0
    %1210 = vmatprep.subr.mxu0 0.0
    %1211 = vmatpush2.msra.mxu0 0.0
    %1212 = vmatprep.subr.mxu0 0.0
    %1213 = vmatpush2.msra.mxu0 0.0
    %1214 = vmatprep.subr.mxu0 0.0
    %1215 = vmatpush2.msra.mxu0 0.0
    %1216 = vmatprep.subr.mxu0 0.0
    %1217 = vmatpush2.msra.mxu0 0.0
    %1218 = vmatprep.subr.mxu0 0.0
    %1219 = vmatpush2.msra.mxu0 0.0
    %1220 = vmatprep.subr.mxu0 0.0
    %1221 = vmatpush2.msra.mxu0 0.0
    %1222 = vmatprep.subr.mxu0 0.0
    %1223 = vmatpush2.msra.mxu0 0.0
    %1224 = vmatprep.subr.mxu0 0.0
    %1225 = vmatpush2.msra.mxu0 0.0
    %1226 = vmatprep.subr.mxu0 0.0
    %1227 = vmatpush2.msra.mxu0 0.0
    %1228 = vmatprep.subr.mxu0 0.0
    %1229 = vmatpush2.msra.mxu0 0.0
    %1230 = vmatprep.subr.mxu0 0.0
    %1231 = vmatpush2.msra.mxu0 0.0
    %1232 = vmatprep.subr.mxu0 0.0
    %1233 = vmatpush2.msra.mxu0 0.0
    %1234 = vmatprep.subr.mxu0 0.0
    %1235 = vmatpush2.msra.mxu0 0.0
    %1236 = vmatprep.subr.mxu0 0.0
    %1237 = vmatpush2.msra.mxu0 0.0
    %1238 = vmatprep.subr.mxu0 0.0
    %1239 = vmatpush2.msra.mxu0 0.0
    %1240 = vmatprep.mubr.f32.mxu0 0.0
    %1241 = vmatmul.mubr.f32.gmra.mxu0 %v1174
    %v1242 = vpop.f32.mrf.mxu0
    %v1243 = vadd.f32 0.0, %v1242
    %v1244 = vpop.f32.mrf.mxu0
    %1245 = vdwg.mxu0
    %1246 = vrot.lane.b32.xlu0 %v227, 104
    %v1247 = vpop.permute.xlu0 %1246
    %1248 = vrot.lane.b32.xlu0 %v227, 72
    %v1249 = vpop.permute.xlu0 %1248
    %v1250 = vsel %vm238, %v1247, 0
    %v1252 = vsel %vm238, %v1249, 0
    %1254 = vmatprep.subr.mxu0 0.0
    %1255 = vmatpush1.xpose.msra.mxu0 0.0
    %1256 = vmatprep.subr.mxu0 0.0
    %1257 = vmatpush1.xpose.msra.mxu0 0.0
    %1258 = vmatprep.subr.mxu0 0.0
    %1259 = vmatpush1.xpose.msra.mxu0 0.0
    %1260 = vmatprep.subr.mxu0 0.0
    %1261 = vmatpush1.xpose.msra.mxu0 0.0
    %1262 = vmatprep.subr.mxu0 0.0
    %1263 = vmatpush1.xpose.msra.mxu0 0.0
    %1264 = vmatprep.subr.mxu0 0.0
    %1265 = vmatpush1.xpose.msra.mxu0 0.0
    %1266 = vmatprep.subr.mxu0 0.0
    %1267 = vmatpush1.xpose.msra.mxu0 0.0
    %1268 = vmatprep.subr.mxu0 0.0
    %1269 = vmatpush1.xpose.msra.mxu0 0.0
    %1270 = vmatprep.subr.mxu0 0.0
    %1271 = vmatpush1.xpose.msra.mxu0 0.0
    %1272 = vmatprep.subr.mxu0 0.0
    %1273 = vmatpush1.xpose.msra.mxu0 0.0
    %1274 = vmatprep.subr.mxu0 0.0
    %1275 = vmatpush1.xpose.msra.mxu0 0.0
    %1276 = vmatprep.subr.mxu0 0.0
    %1277 = vmatpush1.xpose.msra.mxu0 0.0
    %1278 = vmatprep.subr.mxu0 0.0
    %1279 = vmatpush1.xpose.msra.mxu0 0.0
    %1280 = vmatprep.subr.mxu0 0.0
    %1281 = vmatpush1.xpose.msra.mxu0 0.0
    %1282 = vmatprep.subr.mxu0 0.0
    %1283 = vmatpush1.xpose.msra.mxu0 0.0
    %1284 = vmatprep.subr.mxu0 0.0
    %1285 = vmatpush1.xpose.msra.mxu0 %v1252
    %1286 = vmatprep.subr.mxu0 0.0
    %1287 = vmatpush2.xpose.msra.mxu0 0.0
    %1288 = vmatprep.subr.mxu0 0.0
    %1289 = vmatpush2.xpose.msra.mxu0 0.0
    %1290 = vmatprep.subr.mxu0 0.0
    %1291 = vmatpush2.xpose.msra.mxu0 0.0
    %1292 = vmatprep.subr.mxu0 0.0
    %1293 = vmatpush2.xpose.msra.mxu0 0.0
    %1294 = vmatprep.subr.mxu0 0.0
    %1295 = vmatpush2.xpose.msra.mxu0 0.0
    %1296 = vmatprep.subr.mxu0 0.0
    %1297 = vmatpush2.xpose.msra.mxu0 0.0
    %1298 = vmatprep.subr.mxu0 0.0
    %1299 = vmatpush2.xpose.msra.mxu0 0.0
    %1300 = vmatprep.subr.mxu0 0.0
    %1301 = vmatpush2.xpose.msra.mxu0 0.0
    %1302 = vmatprep.subr.mxu0 0.0
    %1303 = vmatpush2.xpose.msra.mxu0 0.0
    %1304 = vmatprep.subr.mxu0 0.0
    %1305 = vmatpush2.xpose.msra.mxu0 0.0
    %1306 = vmatprep.subr.mxu0 0.0
    %1307 = vmatpush2.xpose.msra.mxu0 0.0
    %1308 = vmatprep.subr.mxu0 0.0
    %1309 = vmatpush2.xpose.msra.mxu0 0.0
    %1310 = vmatprep.subr.mxu0 0.0
    %1311 = vmatpush2.xpose.msra.mxu0 0.0
    %1312 = vmatprep.subr.mxu0 0.0
    %1313 = vmatpush2.xpose.msra.mxu0 0.0
    %1314 = vmatprep.subr.mxu0 0.0
    %1315 = vmatpush2.xpose.msra.mxu0 0.0
    %1316 = vmatprep.subr.mxu0 0.0
    %1317 = vmatpush2.xpose.msra.mxu0 0.0
    %1318 = vmatprep.mubr.f32.mxu0 0.0
    %1319 = vmatmul.mubr.f32.gmra.mxu0 %v1250
    %v1320 = vpop.f32.mrf.mxu0
    %v1321 = vadd.f32 0.0, %v1320
    %v1322 = vpop.f32.mrf.mxu0
    %1323 = vdwg.mxu0
    %1324 = vrot.lane.b32.xlu0 %v232, 104
    %v1325 = vpop.permute.xlu0 %1324
    %1326 = vrot.lane.b32.xlu0 %v232, 72
    %v1327 = vpop.permute.xlu0 %1326
    %v1328 = vsel %vm238, %v1325, 0
    %v1330 = vsel %vm238, %v1327, 0
    %1332 = vmatprep.subr.mxu0 0.0
    %1333 = vmatpush1.xpose.msra.mxu0 0.0
    %1334 = vmatprep.subr.mxu0 0.0
    %1335 = vmatpush1.xpose.msra.mxu0 0.0
    %1336 = vmatprep.subr.mxu0 0.0
    %1337 = vmatpush1.xpose.msra.mxu0 0.0
    %1338 = vmatprep.subr.mxu0 0.0
    %1339 = vmatpush1.xpose.msra.mxu0 0.0
    %1340 = vmatprep.subr.mxu0 0.0
    %1341 = vmatpush1.xpose.msra.mxu0 0.0
    %1342 = vmatprep.subr.mxu0 0.0
    %1343 = vmatpush1.xpose.msra.mxu0 0.0
    %1344 = vmatprep.subr.mxu0 0.0
    %1345 = vmatpush1.xpose.msra.mxu0 0.0
    %1346 = vmatprep.subr.mxu0 0.0
    %1347 = vmatpush1.xpose.msra.mxu0 0.0
    %1348 = vmatprep.subr.mxu0 0.0
    %1349 = vmatpush1.xpose.msra.mxu0 0.0
    %1350 = vmatprep.subr.mxu0 0.0
    %1351 = vmatpush1.xpose.msra.mxu0 0.0
    %1352 = vmatprep.subr.mxu0 0.0
    %1353 = vmatpush1.xpose.msra.mxu0 0.0
    %1354 = vmatprep.subr.mxu0 0.0
    %1355 = vmatpush1.xpose.msra.mxu0 0.0
    %1356 = vmatprep.subr.mxu0 0.0
    %1357 = vmatpush1.xpose.msra.mxu0 0.0
    %1358 = vmatprep.subr.mxu0 0.0
    %1359 = vmatpush1.xpose.msra.mxu0 0.0
    %1360 = vmatprep.subr.mxu0 0.0
    %1361 = vmatpush1.xpose.msra.mxu0 0.0
    %1362 = vmatprep.subr.mxu0 0.0
    %1363 = vmatpush1.xpose.msra.mxu0 %v1330
    %1364 = vmatprep.subr.mxu0 0.0
    %1365 = vmatpush2.xpose.msra.mxu0 0.0
    %1366 = vmatprep.subr.mxu0 0.0
    %1367 = vmatpush2.xpose.msra.mxu0 0.0
    %1368 = vmatprep.subr.mxu0 0.0
    %1369 = vmatpush2.xpose.msra.mxu0 0.0
    %1370 = vmatprep.subr.mxu0 0.0
    %1371 = vmatpush2.xpose.msra.mxu0 0.0
    %1372 = vmatprep.subr.mxu0 0.0
    %1373 = vmatpush2.xpose.msra.mxu0 0.0
    %1374 = vmatprep.subr.mxu0 0.0
    %1375 = vmatpush2.xpose.msra.mxu0 0.0
    %1376 = vmatprep.subr.mxu0 0.0
    %1377 = vmatpush2.xpose.msra.mxu0 0.0
    %1378 = vmatprep.subr.mxu0 0.0
    %1379 = vmatpush2.xpose.msra.mxu0 0.0
    %1380 = vmatprep.subr.mxu0 0.0
    %1381 = vmatpush2.xpose.msra.mxu0 0.0
    %1382 = vmatprep.subr.mxu0 0.0
    %1383 = vmatpush2.xpose.msra.mxu0 0.0
    %1384 = vmatprep.subr.mxu0 0.0
    %1385 = vmatpush2.xpose.msra.mxu0 0.0
    %1386 = vmatprep.subr.mxu0 0.0
    %1387 = vmatpush2.xpose.msra.mxu0 0.0
    %1388 = vmatprep.subr.mxu0 0.0
    %1389 = vmatpush2.xpose.msra.mxu0 0.0
    %1390 = vmatprep.subr.mxu0 0.0
    %1391 = vmatpush2.xpose.msra.mxu0 0.0
    %1392 = vmatprep.subr.mxu0 0.0
    %1393 = vmatpush2.xpose.msra.mxu0 0.0
    %1394 = vmatprep.subr.mxu0 0.0
    %1395 = vmatpush2.xpose.msra.mxu0 0.0
    %1396 = vmatprep.mubr.f32.mxu0 0.0
    %1397 = vmatmul.mubr.f32.gmra.mxu0 %v1328
    %v1398 = vpop.f32.mrf.mxu0
    %v1399 = vadd.f32 0.0, %v1398
    %v1400 = vpop.f32.mrf.mxu0
    %1401 = vdwg.mxu0
    %v1402 = vmul.f32 %v1321, 0.35355338
    %v1403 = vmul.f32 %v1399, 0.35355338
    %v1404 = vadd.f32 %v1402, %v395
    %v1405 = vadd.f32 %v1403, %v399
    %v1406 = vsel %vm238, %v1404, -inf
    %1407 = vmax.xlane.f32.xlu0 %v1406
    %v1408 = vpop.xlane.xlu0 %1407
    %v1409 = vsel %vm238, %v1405, -inf
    %1410 = vmax.xlane.f32.xlu0 %v1409
    %v1411 = vpop.xlane.xlu0 %1410
    %v1412 = vsub.f32 %v1404, %v1408
    %v1413 = vsub.f32 %v1405, %v1411
    %v1414 = vmul.f32 %v1412, 1.442695
    %v1415 = vpow.pop %v1414
    %v1416 = vmul.f32 %v1413, 1.442695
    %v1417 = vpow.pop %v1416
    %v1418 = vsel %vm238, %v1415, 0.0
    %1419 = vadd.xlane.f32.xlu0 %v1418
    %v1420 = vpop.xlane.xlu0 %1419
    %v1421 = vsel %vm238, %v1417, 0.0
    %1422 = vadd.xlane.f32.xlu0 %v1421
    %v1423 = vpop.xlane.xlu0 %1422
    %v1424 = vrcp.pop %v1420
    %v1425 = vrcp.pop %v1423
    %v1426 = vmul.f32 %v1415, %v1424
    %v1427 = vmul.f32 %v1417, %v1425
    %1428 = vrot.lane.b32.xlu0 %v227, 40
    %v1429 = vpop.permute.xlu0 %1428
    %v1432 = vsel %vm238, %v1426, 0
    %1434 = vmatprep.subr.mxu0 0.0
    %1435 = vmatpush1.msra.mxu0 0.0
    %1436 = vmatprep.subr.mxu0 0.0
    %1437 = vmatpush1.msra.mxu0 0.0
    %1438 = vmatprep.subr.mxu0 0.0
    %1439 = vmatpush1.msra.mxu0 0.0
    %1440 = vmatprep.subr.mxu0 0.0
    %1441 = vmatpush1.msra.mxu0 0.0
    %1442 = vmatprep.subr.mxu0 0.0
    %1443 = vmatpush1.msra.mxu0 0.0
    %1444 = vmatprep.subr.mxu0 0.0
    %1445 = vmatpush1.msra.mxu0 0.0
    %1446 = vmatprep.subr.mxu0 0.0
    %1447 = vmatpush1.msra.mxu0 0.0
    %1448 = vmatprep.subr.mxu0 0.0
    %1449 = vmatpush1.msra.mxu0 0.0
    %1450 = vmatprep.subr.mxu0 0.0
    %1451 = vmatpush1.msra.mxu0 0.0
    %1452 = vmatprep.subr.mxu0 0.0
    %1453 = vmatpush1.msra.mxu0 0.0
    %1454 = vmatprep.subr.mxu0 0.0
    %1455 = vmatpush1.msra.mxu0 0.0
    %1456 = vmatprep.subr.mxu0 0.0
    %1457 = vmatpush1.msra.mxu0 0.0
    %1458 = vmatprep.subr.mxu0 0.0
    %1459 = vmatpush1.msra.mxu0 0.0
    %1460 = vmatprep.subr.mxu0 0.0
    %1461 = vmatpush1.msra.mxu0 0.0
    %1462 = vmatprep.subr.mxu0 0.0
    %1463 = vmatpush1.msra.mxu0 0.0
    %1464 = vmatprep.subr.mxu0 0.0
    %1465 = vmatpush1.msra.mxu0 %v1429
    %1466 = vmatprep.subr.mxu0 0.0
    %1467 = vmatpush2.msra.mxu0 0.0
    %1468 = vmatprep.subr.mxu0 0.0
    %1469 = vmatpush2.msra.mxu0 0.0
    %1470 = vmatprep.subr.mxu0 0.0
    %1471 = vmatpush2.msra.mxu0 0.0
    %1472 = vmatprep.subr.mxu0 0.0
    %1473 = vmatpush2.msra.mxu0 0.0
    %1474 = vmatprep.subr.mxu0 0.0
    %1475 = vmatpush2.msra.mxu0 0.0
    %1476 = vmatprep.subr.mxu0 0.0
    %1477 = vmatpush2.msra.mxu0 0.0
    %1478 = vmatprep.subr.mxu0 0.0
    %1479 = vmatpush2.msra.mxu0 0.0
    %1480 = vmatprep.subr.mxu0 0.0
    %1481 = vmatpush2.msra.mxu0 0.0
    %1482 = vmatprep.subr.mxu0 0.0
    %1483 = vmatpush2.msra.mxu0 0.0
    %1484 = vmatprep.subr.mxu0 0.0
    %1485 = vmatpush2.msra.mxu0 0.0
    %1486 = vmatprep.subr.mxu0 0.0
    %1487 = vmatpush2.msra.mxu0 0.0
    %1488 = vmatprep.subr.mxu0 0.0
    %1489 = vmatpush2.msra.mxu0 0.0
    %1490 = vmatprep.subr.mxu0 0.0
    %1491 = vmatpush2.msra.mxu0 0.0
    %1492 = vmatprep.subr.mxu0 0.0
    %1493 = vmatpush2.msra.mxu0 0.0
    %1494 = vmatprep.subr.mxu0 0.0
    %1495 = vmatpush2.msra.mxu0 0.0
    %1496 = vmatprep.subr.mxu0 0.0
    %1497 = vmatpush2.msra.mxu0 0.0
    %1498 = vmatprep.mubr.f32.mxu0 0.0
    %1499 = vmatmul.mubr.f32.gmra.mxu0 %v1432
    %v1500 = vpop.f32.mrf.mxu0
    %v1501 = vadd.f32 0.0, %v1500
    %v1502 = vpop.f32.mrf.mxu0
    %1503 = vdwg.mxu0
    %1504 = vrot.lane.b32.xlu0 %v232, 40
    %v1505 = vpop.permute.xlu0 %1504
    %v1508 = vsel %vm238, %v1427, 0
    %1510 = vmatprep.subr.mxu0 0.0
    %1511 = vmatpush1.msra.mxu0 0.0
    %1512 = vmatprep.subr.mxu0 0.0
    %1513 = vmatpush1.msra.mxu0 0.0
    %1514 = vmatprep.subr.mxu0 0.0
    %1515 = vmatpush1.msra.mxu0 0.0
    %1516 = vmatprep.subr.mxu0 0.0
    %1517 = vmatpush1.msra.mxu0 0.0
    %1518 = vmatprep.subr.mxu0 0.0
    %1519 = vmatpush1.msra.mxu0 0.0
    %1520 = vmatprep.subr.mxu0 0.0
    %1521 = vmatpush1.msra.mxu0 0.0
    %1522 = vmatprep.subr.mxu0 0.0
    %1523 = vmatpush1.msra.mxu0 0.0
    %1524 = vmatprep.subr.mxu0 0.0
    %1525 = vmatpush1.msra.mxu0 0.0
    %1526 = vmatprep.subr.mxu0 0.0
    %1527 = vmatpush1.msra.mxu0 0.0
    %1528 = vmatprep.subr.mxu0 0.0
    %1529 = vmatpush1.msra.mxu0 0.0
    %1530 = vmatprep.subr.mxu0 0.0
    %1531 = vmatpush1.msra.mxu0 0.0
    %1532 = vmatprep.subr.mxu0 0.0
    %1533 = vmatpush1.msra.mxu0 0.0
    %1534 = vmatprep.subr.mxu0 0.0
    %1535 = vmatpush1.msra.mxu0 0.0
    %1536 = vmatprep.subr.mxu0 0.0
    %1537 = vmatpush1.msra.mxu0 0.0
    %1538 = vmatprep.subr.mxu0 0.0
    %1539 = vmatpush1.msra.mxu0 0.0
    %1540 = vmatprep.subr.mxu0 0.0
    %1541 = vmatpush1.msra.mxu0 %v1505
    %1542 = vmatprep.subr.mxu0 0.0
    %1543 = vmatpush2.msra.mxu0 0.0
    %1544 = vmatprep.subr.mxu0 0.0
    %1545 = vmatpush2.msra.mxu0 0.0
    %1546 = vmatprep.subr.mxu0 0.0
    %1547 = vmatpush2.msra.mxu0 0.0
    %1548 = vmatprep.subr.mxu0 0.0
    %1549 = vmatpush2.msra.mxu0 0.0
    %1550 = vmatprep.subr.mxu0 0.0
    %1551 = vmatpush2.msra.mxu0 0.0
    %1552 = vmatprep.subr.mxu0 0.0
    %1553 = vmatpush2.msra.mxu0 0.0
    %1554 = vmatprep.subr.mxu0 0.0
    %1555 = vmatpush2.msra.mxu0 0.0
    %1556 = vmatprep.subr.mxu0 0.0
    %1557 = vmatpush2.msra.mxu0 0.0
    %1558 = vmatprep.subr.mxu0 0.0
    %1559 = vmatpush2.msra.mxu0 0.0
    %1560 = vmatprep.subr.mxu0 0.0
    %1561 = vmatpush2.msra.mxu0 0.0
    %1562 = vmatprep.subr.mxu0 0.0
    %1563 = vmatpush2.msra.mxu0 0.0
    %1564 = vmatprep.subr.mxu0 0.0
    %1565 = vmatpush2.msra.mxu0 0.0
    %1566 = vmatprep.subr.mxu0 0.0
    %1567 = vmatpush2.msra.mxu0 0.0
    %1568 = vmatprep.subr.mxu0 0.0
    %1569 = vmatpush2.msra.mxu0 0.0
    %1570 = vmatprep.subr.mxu0 0.0
    %1571 = vmatpush2.msra.mxu0 0.0
    %1572 = vmatprep.subr.mxu0 0.0
    %1573 = vmatpush2.msra.mxu0 0.0
    %1574 = vmatprep.mubr.f32.mxu0 0.0
    %1575 = vmatmul.mubr.f32.gmra.mxu0 %v1508
    %v1576 = vpop.f32.mrf.mxu0
    %v1577 = vadd.f32 0.0, %v1576
    %v1578 = vpop.f32.mrf.mxu0
    %1579 = vdwg.mxu0
    %1582 = vrot.lane.b32.xlu0 %v833, 8
    %v1583 = vpop.permute.xlu0 %1582
    %1584 = vrot.lane.b32.xlu0 %v909, 8
    %v1585 = vpop.permute.xlu0 %1584
    %1590 = vrot.lane.b32.xlu0 %v1167, 16
    %v1591 = vpop.permute.xlu0 %1590
    %1592 = vrot.lane.b32.xlu0 %v1243, 16
    %v1593 = vpop.permute.xlu0 %1592
    %1598 = vrot.lane.b32.xlu0 %v1501, 24
    %v1599 = vpop.permute.xlu0 %1598
    %1600 = vrot.lane.b32.xlu0 %v1577, 24
    %v1601 = vpop.permute.xlu0 %1600
    %v1604 = vsel %vm238, %v499, %v1583
    %v1605 = vsel %vm238, %v575, %v1585
    %vm1606 = vcmask 130048
    %v1607 = vsel %vm1606, %v1604, %v1591
    %v1608 = vsel %vm1606, %v1605, %v1593
    %vm1609 = vcmask 195584
    %v1610 = vsel %vm1609, %v1607, %v1599
    %v1611 = vsel %vm1609, %v1608, %v1601
    %v1612 = vld [vmem:[%s5 + $0x70] sm:$0xff]
    %v1613 = vld [vmem:[%s5 + $0x78] sm:$0xff]
    %v1614 = vld [vmem:[%s5 + $0x80] sm:$0xff]
    %v1615 = vld [vmem:[%s5 + $0x88] sm:$0xff]
    %v1616 = vld [vmem:[%s4 + $0xc] sm:$0x1]
    %v1617 = vlaneseq
    %v1618 = vshrl.u32 %v1617, 7
    %v1619 = vsub.s32 0, %v1618
    %v1620 = vrot.slane %v1616, %v1619
    %v1622 = vsel %vm63, %v1610, 0
    %v1625 = vsel %vm63, %v1611, 0
    %1627 = vmatprep.subr.mxu0 0.0
    %1628 = vmatpush1.msra.mxu0 0.0
    %1629 = vmatprep.subr.mxu0 0.0
    %1630 = vmatpush1.msra.mxu0 0.0
    %1631 = vmatprep.subr.mxu0 0.0
    %1632 = vmatpush1.msra.mxu0 0.0
    %1633 = vmatprep.subr.mxu0 0.0
    %1634 = vmatpush1.msra.mxu0 0.0
    %1635 = vmatprep.subr.mxu0 0.0
    %1636 = vmatpush1.msra.mxu0 0.0
    %1637 = vmatprep.subr.mxu0 0.0
    %1638 = vmatpush1.msra.mxu0 0.0
    %1639 = vmatprep.subr.mxu0 0.0
    %1640 = vmatpush1.msra.mxu0 0.0
    %1641 = vmatprep.subr.mxu0 0.0
    %1642 = vmatpush1.msra.mxu0 0.0
    %1643 = vmatprep.subr.mxu0 0.0
    %1644 = vmatpush1.msra.mxu0 0.0
    %1645 = vmatprep.subr.mxu0 0.0
    %1646 = vmatpush1.msra.mxu0 0.0
    %1647 = vmatprep.subr.mxu0 0.0
    %1648 = vmatpush1.msra.mxu0 0.0
    %1649 = vmatprep.subr.mxu0 0.0
    %1650 = vmatpush1.msra.mxu0 0.0
    %1651 = vmatprep.subr.mxu0 0.0
    %1652 = vmatpush1.msra.mxu0 %v1615
    %1653 = vmatprep.subr.mxu0 0.0
    %1654 = vmatpush1.msra.mxu0 %v1614
    %1655 = vmatprep.subr.mxu0 0.0
    %1656 = vmatpush1.msra.mxu0 %v1613
    %1657 = vmatprep.subr.mxu0 0.0
    %1658 = vmatpush1.msra.mxu0 %v1612
    %1659 = vmatprep.subr.mxu0 0.0
    %1660 = vmatpush2.msra.mxu0 0.0
    %1661 = vmatprep.subr.mxu0 0.0
    %1662 = vmatpush2.msra.mxu0 0.0
    %1663 = vmatprep.subr.mxu0 0.0
    %1664 = vmatpush2.msra.mxu0 0.0
    %1665 = vmatprep.subr.mxu0 0.0
    %1666 = vmatpush2.msra.mxu0 0.0
    %1667 = vmatprep.subr.mxu0 0.0
    %1668 = vmatpush2.msra.mxu0 0.0
    %1669 = vmatprep.subr.mxu0 0.0
    %1670 = vmatpush2.msra.mxu0 0.0
    %1671 = vmatprep.subr.mxu0 0.0
    %1672 = vmatpush2.msra.mxu0 0.0
    %1673 = vmatprep.subr.mxu0 0.0
    %1674 = vmatpush2.msra.mxu0 0.0
    %1675 = vmatprep.subr.mxu0 0.0
    %1676 = vmatpush2.msra.mxu0 0.0
    %1677 = vmatprep.subr.mxu0 0.0
    %1678 = vmatpush2.msra.mxu0 0.0
    %1679 = vmatprep.subr.mxu0 0.0
    %1680 = vmatpush2.msra.mxu0 0.0
    %1681 = vmatprep.subr.mxu0 0.0
    %1682 = vmatpush2.msra.mxu0 0.0
    %1683 = vmatprep.subr.mxu0 0.0
    %1684 = vmatpush2.msra.mxu0 0.0
    %1685 = vmatprep.subr.mxu0 0.0
    %1686 = vmatpush2.msra.mxu0 0.0
    %1687 = vmatprep.subr.mxu0 0.0
    %1688 = vmatpush2.msra.mxu0 0.0
    %1689 = vmatprep.subr.mxu0 0.0
    %1690 = vmatpush2.msra.mxu0 0.0
    %1691 = vmatprep.mubr.f32.mxu0 0.0
    %1692 = vmatmul.mubr.f32.gmra.mxu0 %v1622
    %v1693 = vpop.f32.mrf.mxu0
    %v1694 = vadd.f32 %v1620, %v1693
    %v1695 = vpop.f32.mrf.mxu0
    %1696 = vmatprep.mubr.f32.mxu0 0.0
    %1697 = vmatmul.mubr.f32.gmra.mxu0 %v1625
    %v1698 = vpop.f32.mrf.mxu0
    %v1699 = vadd.f32 %v1620, %v1698
    %v1700 = vpop.f32.mrf.mxu0
    %1701 = vdwg.mxu0
    %v1702 = vadd.f32 %v103, %v1694
    %v1703 = vadd.f32 %v104, %v1699
    %v1704 = vsel %vm63, %v1702, 0.0
    %1705 = vadd.xlane.f32.xlu0 %v1704
    %v1706 = vpop.xlane.xlu0 %1705
    %v1707 = vsel %vm63, %v1703, 0.0
    %1708 = vadd.xlane.f32.xlu0 %v1707
    %v1709 = vpop.xlane.xlu0 %1708
    %v1710 = vmul.f32 %v1706, %v70
    %v1711 = vmul.f32 %v1709, %v70
    %v1712 = vsub.f32 %v1702, %v1710
    %v1713 = vsub.f32 %v1703, %v1711
    %v1714 = vmul.f32 %v1712, %v1712
    %v1715 = vmul.f32 %v1713, %v1713
    %v1716 = vsel %vm63, %v1714, 0.0
    %1717 = vadd.xlane.f32.xlu0 %v1716
    %v1718 = vpop.xlane.xlu0 %1717
    %v1719 = vsel %vm63, %v1715, 0.0
    %1720 = vadd.xlane.f32.xlu0 %v1719
    %v1721 = vpop.xlane.xlu0 %1720
    %v1722 = vmul.f32 %v1718, %v70
    %v1723 = vmul.f32 %v1721, %v70
    %v1724 = vadd.f32 %v1722, 1e-05
    %v1725 = vadd.f32 %v1723, 1e-05
    %v1726 = vrsqrt.pop %v1724
    %v1727 = vrsqrt.pop %v1725
    %v1728 = vmul.f32 %v1712, %v1726
    %v1729 = vmul.f32 %v1713, %v1727
    %v1730 = vld [vmem:[%s4 + $0xd] sm:$0x1]
    %v1731 = vlaneseq
    %v1732 = vshrl.u32 %v1731, 7
    %v1733 = vsub.s32 0, %v1732
    %v1734 = vrot.slane %v1730, %v1733
    %v1735 = vmul.f32 %v1728, %v1734
    %v1736 = vmul.f32 %v1729, %v1734
    %v1737 = vld [vmem:[%s4 + $0xe] sm:$0x1]
    %v1738 = vlaneseq
    %v1739 = vshrl.u32 %v1738, 7
    %v1740 = vsub.s32 0, %v1739
    %v1741 = vrot.slane %v1737, %v1740
    %v1742 = vadd.f32 %v1735, %v1741
    %v1743 = vadd.f32 %v1736, %v1741
    %v1744 = vld [vmem:[%s5 + $0x90] sm:$0xff]
    %v1745 = vld [vmem:[%s5 + $0x98] sm:$0xff]
    %v1746 = vld [vmem:[%s5 + $0xa0] sm:$0xff]
    %v1747 = vld [vmem:[%s5 + $0xa8] sm:$0xff]
    %v1748 = vld [vmem:[%s4 + $0xf] sm:$0x1]
    %v1749 = vlaneseq
    %v1750 = vshrl.u32 %v1749, 7
    %v1751 = vsub.s32 0, %v1750
    %v1752 = vrot.slane %v1748, %v1751
    %v1754 = vsel %vm63, %v1742, 0
    %v1757 = vsel %vm63, %v1743, 0
    %1759 = vmatprep.subr.mxu0 0.0
    %1760 = vmatpush1.msra.mxu0 0.0
    %1761 = vmatprep.subr.mxu0 0.0
    %1762 = vmatpush1.msra.mxu0 0.0
    %1763 = vmatprep.subr.mxu0 0.0
    %1764 = vmatpush1.msra.mxu0 0.0
    %1765 = vmatprep.subr.mxu0 0.0
    %1766 = vmatpush1.msra.mxu0 0.0
    %1767 = vmatprep.subr.mxu0 0.0
    %1768 = vmatpush1.msra.mxu0 0.0
    %1769 = vmatprep.subr.mxu0 0.0
    %1770 = vmatpush1.msra.mxu0 0.0
    %1771 = vmatprep.subr.mxu0 0.0
    %1772 = vmatpush1.msra.mxu0 0.0
    %1773 = vmatprep.subr.mxu0 0.0
    %1774 = vmatpush1.msra.mxu0 0.0
    %1775 = vmatprep.subr.mxu0 0.0
    %1776 = vmatpush1.msra.mxu0 0.0
    %1777 = vmatprep.subr.mxu0 0.0
    %1778 = vmatpush1.msra.mxu0 0.0
    %1779 = vmatprep.subr.mxu0 0.0
    %1780 = vmatpush1.msra.mxu0 0.0
    %1781 = vmatprep.subr.mxu0 0.0
    %1782 = vmatpush1.msra.mxu0 0.0
    %1783 = vmatprep.subr.mxu0 0.0
    %1784 = vmatpush1.msra.mxu0 %v1747
    %1785 = vmatprep.subr.mxu0 0.0
    %1786 = vmatpush1.msra.mxu0 %v1746
    %1787 = vmatprep.subr.mxu0 0.0
    %1788 = vmatpush1.msra.mxu0 %v1745
    %1789 = vmatprep.subr.mxu0 0.0
    %1790 = vmatpush1.msra.mxu0 %v1744
    %1791 = vmatprep.subr.mxu0 0.0
    %1792 = vmatpush2.msra.mxu0 0.0
    %1793 = vmatprep.subr.mxu0 0.0
    %1794 = vmatpush2.msra.mxu0 0.0
    %1795 = vmatprep.subr.mxu0 0.0
    %1796 = vmatpush2.msra.mxu0 0.0
    %1797 = vmatprep.subr.mxu0 0.0
    %1798 = vmatpush2.msra.mxu0 0.0
    %1799 = vmatprep.subr.mxu0 0.0
    %1800 = vmatpush2.msra.mxu0 0.0
    %1801 = vmatprep.subr.mxu0 0.0
    %1802 = vmatpush2.msra.mxu0 0.0
    %1803 = vmatprep.subr.mxu0 0.0
    %1804 = vmatpush2.msra.mxu0 0.0
    %1805 = vmatprep.subr.mxu0 0.0
    %1806 = vmatpush2.msra.mxu0 0.0
    %1807 = vmatprep.subr.mxu0 0.0
    %1808 = vmatpush2.msra.mxu0 0.0
    %1809 = vmatprep.subr.mxu0 0.0
    %1810 = vmatpush2.msra.mxu0 0.0
    %1811 = vmatprep.subr.mxu0 0.0
    %1812 = vmatpush2.msra.mxu0 0.0
    %1813 = vmatprep.subr.mxu0 0.0
    %1814 = vmatpush2.msra.mxu0 0.0
    %1815 = vmatprep.subr.mxu0 0.0
    %1816 = vmatpush2.msra.mxu0 0.0
    %1817 = vmatprep.subr.mxu0 0.0
    %1818 = vmatpush2.msra.mxu0 0.0
    %1819 = vmatprep.subr.mxu0 0.0
    %1820 = vmatpush2.msra.mxu0 0.0
    %1821 = vmatprep.subr.mxu0 0.0
    %1822 = vmatpush2.msra.mxu0 0.0
    %1823 = vmatprep.mubr.f32.mxu0 0.0
    %1824 = vmatmul.mubr.f32.gmra.mxu0 %v1754
    %v1825 = vpop.f32.mrf.mxu0
    %v1826 = vadd.f32 %v1752, %v1825
    %v1827 = vpop.f32.mrf.mxu0
    %1828 = vmatprep.mubr.f32.mxu0 0.0
    %1829 = vmatmul.mubr.f32.gmra.mxu0 %v1757
    %v1830 = vpop.f32.mrf.mxu0
    %v1831 = vadd.f32 %v1752, %v1830
    %v1832 = vpop.f32.mrf.mxu0
    %1833 = vdwg.mxu0
    %v1834 = vmul.f32 %v1826, %v1826
    %v1835 = vmul.f32 %v1831, %v1831
    %v1836 = vmul.f32 %v1826, %v1834
    %v1837 = vmul.f32 %v1831, %v1835
    %v1838 = vmul.f32 %v1836, 0.044715
    %v1839 = vmul.f32 %v1837, 0.044715
    %v1840 = vadd.f32 %v1826, %v1838
    %v1841 = vadd.f32 %v1831, %v1839
    %v1842 = vmul.f32 %v1840, 0.7978846
    %v1843 = vmul.f32 %v1841, 0.7978846
    %v1844 = vtanh.pop %v1842
    %v1845 = vtanh.pop %v1843
    %v1846 = vadd.f32 %v1844, 1.0
    %v1847 = vadd.f32 %v1845, 1.0
    %v1848 = vmul.f32 %v1846, 0.5
    %v1849 = vmul.f32 %v1847, 0.5
    %v1850 = vmul.f32 %v1826, %v1848
    %v1851 = vmul.f32 %v1831, %v1849
    %v1852 = vld [vmem:[%s5 + $0xb0] sm:$0xff]
    %v1853 = vld [vmem:[%s5 + $0xb8] sm:$0xff]
    %v1854 = vld [vmem:[%s5 + $0xc0] sm:$0xff]
    %v1855 = vld [vmem:[%s5 + $0xc8] sm:$0xff]
    %v1856 = vld [vmem:[%s5 + $0xd0] sm:$0xff]
    %v1857 = vld [vmem:[%s5 + $0xd8] sm:$0xff]
    %v1858 = vld [vmem:[%s5 + $0xe0] sm:$0xff]
    %v1859 = vld [vmem:[%s5 + $0xe8] sm:$0xff]
    %v1860 = vld [vmem:[%s4 + $0x10] sm:$0x1]
    %v1861 = vlaneseq
    %v1862 = vshrl.u32 %v1861, 7
    %v1863 = vsub.s32 0, %v1862
    %v1864 = vrot.slane %v1860, %v1863
    %vm1865 = vcmask 523264
    %v1867 = vsel %vm1865, %v1850, 0
    %v1870 = vsel %vm1865, %v1851, 0
    %1872 = vmatprep.subr.mxu0 0.0
    %1873 = vmatpush1.msra.mxu0 0.0
    %1874 = vmatprep.subr.mxu0 0.0
    %1875 = vmatpush1.msra.mxu0 0.0
    %1876 = vmatprep.subr.mxu0 0.0
    %1877 = vmatpush1.msra.mxu0 0.0
    %1878 = vmatprep.subr.mxu0 0.0
    %1879 = vmatpush1.msra.mxu0 0.0
    %1880 = vmatprep.subr.mxu0 0.0
    %1881 = vmatpush1.msra.mxu0 0.0
    %1882 = vmatprep.subr.mxu0 0.0
    %1883 = vmatpush1.msra.mxu0 0.0
    %1884 = vmatprep.subr.mxu0 0.0
    %1885 = vmatpush1.msra.mxu0 0.0
    %1886 = vmatprep.subr.mxu0 0.0
    %1887 = vmatpush1.msra.mxu0 0.0
    %1888 = vmatprep.subr.mxu0 0.0
    %1889 = vmatpush1.msra.mxu0 %v1859
    %1890 = vmatprep.subr.mxu0 0.0
    %1891 = vmatpush1.msra.mxu0 %v1858
    %1892 = vmatprep.subr.mxu0 0.0
    %1893 = vmatpush1.msra.mxu0 %v1857
    %1894 = vmatprep.subr.mxu0 0.0
    %1895 = vmatpush1.msra.mxu0 %v1856
    %1896 = vmatprep.subr.mxu0 0.0
    %1897 = vmatpush1.msra.mxu0 %v1855
    %1898 = vmatprep.subr.mxu0 0.0
    %1899 = vmatpush1.msra.mxu0 %v1854
    %1900 = vmatprep.subr.mxu0 0.0
    %1901 = vmatpush1.msra.mxu0 %v1853
    %1902 = vmatprep.subr.mxu0 0.0
    %1903 = vmatpush1.msra.mxu0 %v1852
    %1904 = vmatprep.subr.mxu0 0.0
    %1905 = vmatpush2.msra.mxu0 0.0
    %1906 = vmatprep.subr.mxu0 0.0
    %1907 = vmatpush2.msra.mxu0 0.0
    %1908 = vmatprep.subr.mxu0 0.0
    %1909 = vmatpush2.msra.mxu0 0.0
    %1910 = vmatprep.subr.mxu0 0.0
    %1911 = vmatpush2.msra.mxu0 0.0
    %1912 = vmatprep.subr.mxu0 0.0
    %1913 = vmatpush2.msra.mxu0 0.0
    %1914 = vmatprep.subr.mxu0 0.0
    %1915 = vmatpush2.msra.mxu0 0.0
    %1916 = vmatprep.subr.mxu0 0.0
    %1917 = vmatpush2.msra.mxu0 0.0
    %1918 = vmatprep.subr.mxu0 0.0
    %1919 = vmatpush2.msra.mxu0 0.0
    %1920 = vmatprep.subr.mxu0 0.0
    %1921 = vmatpush2.msra.mxu0 0.0
    %1922 = vmatprep.subr.mxu0 0.0
    %1923 = vmatpush2.msra.mxu0 0.0
    %1924 = vmatprep.subr.mxu0 0.0
    %1925 = vmatpush2.msra.mxu0 0.0
    %1926 = vmatprep.subr.mxu0 0.0
    %1927 = vmatpush2.msra.mxu0 0.0
    %1928 = vmatprep.subr.mxu0 0.0
    %1929 = vmatpush2.msra.mxu0 0.0
    %1930 = vmatprep.subr.mxu0 0.0
    %1931 = vmatpush2.msra.mxu0 0.0
    %1932 = vmatprep.subr.mxu0 0.0
    %1933 = vmatpush2.msra.mxu0 0.0
    %1934 = vmatprep.subr.mxu0 0.0
    %1935 = vmatpush2.msra.mxu0 0.0
    %1936 = vmatprep.mubr.f32.mxu0 0.0
    %1937 = vmatmul.mubr.f32.gmra.mxu0 %v1867
    %v1938 = vpop.f32.mrf.mxu0
    %v1939 = vadd.f32 %v1864, %v1938
    %v1940 = vpop.f32.mrf.mxu0
    %1941 = vmatprep.mubr.f32.mxu0 0.0
    %1942 = vmatmul.mubr.f32.gmra.mxu0 %v1870
    %v1943 = vpop.f32.mrf.mxu0
    %v1944 = vadd.f32 %v1864, %v1943
    %v1945 = vpop.f32.mrf.mxu0
    %1946 = vdwg.mxu0
    %v1947 = vadd.f32 %v1702, %v1939
    %v1948 = vadd.f32 %v1703, %v1944
    %v1949 = vsel %vm63, %v1947, 0.0
    %1950 = vadd.xlane.f32.xlu0 %v1949
    %v1951 = vpop.xlane.xlu0 %1950
    %v1952 = vsel %vm63, %v1948, 0.0
    %1953 = vadd.xlane.f32.xlu0 %v1952
    %v1954 = vpop.xlane.xlu0 %1953
    %v1955 = vmul.f32 %v1951, %v70
    %v1956 = vmul.f32 %v1954, %v70
    %v1957 = vsub.f32 %v1947, %v1955
    %v1958 = vsub.f32 %v1948, %v1956
    %v1959 = vmul.f32 %v1957, %v1957
    %v1960 = vmul.f32 %v1958, %v1958
    %v1961 = vsel %vm63, %v1959, 0.0
    %1962 = vadd.xlane.f32.xlu0 %v1961
    %v1963 = vpop.xlane.xlu0 %1962
    %v1964 = vsel %vm63, %v1960, 0.0
    %1965 = vadd.xlane.f32.xlu0 %v1964
    %v1966 = vpop.xlane.xlu0 %1965
    %v1967 = vmul.f32 %v1963, %v70
    %v1968 = vmul.f32 %v1966, %v70
    %v1969 = vadd.f32 %v1967, 1e-05
    %v1970 = vadd.f32 %v1968, 1e-05
    %v1971 = vrsqrt.pop %v1969
    %v1972 = vrsqrt.pop %v1970
    %v1973 = vmul.f32 %v1957, %v1971
    %v1974 = vmul.f32 %v1958, %v1972
    %v1975 = vld [vmem:[%s4 + $0x3] sm:$0x1]
    %v1976 = vlaneseq
    %v1977 = vshrl.u32 %v1976, 7
    %v1978 = vsub.s32 0, %v1977
    %v1979 = vrot.slane %v1975, %v1978
    %v1980 = vmul.f32 %v1973, %v1979
    %v1981 = vmul.f32 %v1974, %v1979
    %v1982 = vld [vmem:[%s4 + $0x4] sm:$0x1]
    %v1983 = vlaneseq
    %v1984 = vshrl.u32 %v1983, 7
    %v1985 = vsub.s32 0, %v1984
    %v1986 = vrot.slane %v1982, %v1985
    %v1987 = vadd.f32 %v1980, %v1986
    %v1988 = vadd.f32 %v1981, %v1986
    %v1989 = vld [vmem:[%s1] sm:$0xff]
    %v1990 = vld [vmem:[%s1 + $0x8] sm:$0xff]
    %v1991 = vld [vmem:[%s5 + $0x48] sm:$0xff]
    %v1992 = vadd.f32 %v1989, %v1991
    %v1993 = vadd.f32 %v1990, %v1991
    %v1994 = vsel %vm63, %v1992, 0.0
    %1995 = vadd.xlane.f32.xlu0 %v1994
    %v1996 = vpop.xlane.xlu0 %1995
    %v1997 = vsel %vm63, %v1993, 0.0
    %1998 = vadd.xlane.f32.xlu0 %v1997
    %v1999 = vpop.xlane.xlu0 %1998
    %v2000 = vmul.f32 %v1996, %v70
    %v2001 = vmul.f32 %v1999, %v70
    %v2002 = vsub.f32 %v1992, %v2000
    %v2003 = vsub.f32 %v1993, %v2001
    %v2004 = vmul.f32 %v2002, %v2002
    %v2005 = vmul.f32 %v2003, %v2003
    %v2006 = vsel %vm63, %v2004, 0.0
    %2007 = vadd.xlane.f32.xlu0 %v2006
    %v2008 = vpop.xlane.xlu0 %2007
    %v2009 = vsel %vm63, %v2005, 0.0
    %2010 = vadd.xlane.f32.xlu0 %v2009
    %v2011 = vpop.xlane.xlu0 %2010
    %v2012 = vmul.f32 %v2008, %v70
    %v2013 = vmul.f32 %v2011, %v70
    %v2014 = vadd.f32 %v2012, 1e-05
    %v2015 = vadd.f32 %v2013, 1e-05
    %v2016 = vrsqrt.pop %v2014
    %v2017 = vrsqrt.pop %v2015
    %v2018 = vmul.f32 %v2002, %v2016
    %v2019 = vmul.f32 %v2003, %v2017
    %v2020 = vld [vmem:[%s4 + $0x5] sm:$0x1]
    %v2021 = vlaneseq
    %v2022 = vshrl.u32 %v2021, 7
    %v2023 = vsub.s32 0, %v2022
    %v2024 = vrot.slane %v2020, %v2023
    %v2025 = vmul.f32 %v2018, %v2024
    %v2026 = vmul.f32 %v2019, %v2024
    %v2027 = vld [vmem:[%s4 + $0x6] sm:$0x1]
    %v2028 = vlaneseq
    %v2029 = vshrl.u32 %v2028, 7
    %v2030 = vsub.s32 0, %v2029
    %v2031 = vrot.slane %v2027, %v2030
    %v2032 = vadd.f32 %v2025, %v2031
    %v2033 = vadd.f32 %v2026, %v2031
    %v2034 = vsel %vm63, %v2032, 0.0
    %2035 = vadd.xlane.f32.xlu0 %v2034
    %v2036 = vpop.xlane.xlu0 %2035
    %v2037 = vsel %vm63, %v2033, 0.0
    %2038 = vadd.xlane.f32.xlu0 %v2037
    %v2039 = vpop.xlane.xlu0 %2038
    %v2040 = vmul.f32 %v2036, %v70
    %v2041 = vmul.f32 %v2039, %v70
    %v2042 = vsub.f32 %v2032, %v2040
    %v2043 = vsub.f32 %v2033, %v2041
    %v2044 = vmul.f32 %v2042, %v2042
    %v2045 = vmul.f32 %v2043, %v2043
    %v2046 = vsel %vm63, %v2044, 0.0
    %2047 = vadd.xlane.f32.xlu0 %v2046
    %v2048 = vpop.xlane.xlu0 %2047
    %v2049 = vsel %vm63, %v2045, 0.0
    %2050 = vadd.xlane.f32.xlu0 %v2049
    %v2051 = vpop.xlane.xlu0 %2050
    %v2052 = vmul.f32 %v2048, %v70
    %v2053 = vmul.f32 %v2051, %v70
    %v2054 = vadd.f32 %v2052, 1e-05
    %v2055 = vadd.f32 %v2053, 1e-05
    %v2056 = vrsqrt.pop %v2054
    %v2057 = vrsqrt.pop %v2055
    %v2058 = vmul.f32 %v2042, %v2056
    %v2059 = vmul.f32 %v2043, %v2057
    %v2060 = vld [vmem:[%s4 + $0x11] sm:$0x1]
    %v2061 = vlaneseq
    %v2062 = vshrl.u32 %v2061, 7
    %v2063 = vsub.s32 0, %v2062
    %v2064 = vrot.slane %v2060, %v2063
    %v2065 = vmul.f32 %v2058, %v2064
    %v2066 = vmul.f32 %v2059, %v2064
    %v2067 = vld [vmem:[%s4 + $0x12] sm:$0x1]
    %v2068 = vlaneseq
    %v2069 = vshrl.u32 %v2068, 7
    %v2070 = vsub.s32 0, %v2069
    %v2071 = vrot.slane %v2067, %v2070
    %v2072 = vadd.f32 %v2065, %v2071
    %v2073 = vadd.f32 %v2066, %v2071
    %v2074 = vld [vmem:[%s5 + $0xf0] sm:$0xff]
    %v2075 = vld [vmem:[%s5 + $0xf8] sm:$0xff]
    %v2076 = vld [vmem:[%s5 + $0x100] sm:$0xff]
    %v2077 = vld [vmem:[%s5 + $0x108] sm:$0xff]
    %v2078 = vld [vmem:[%s4 + $0x13] sm:$0x1]
    %v2079 = vlaneseq
    %v2080 = vshrl.u32 %v2079, 7
    %v2081 = vsub.s32 0, %v2080
    %v2082 = vrot.slane %v2078, %v2081
    %v2084 = vsel %vm63, %v2072, 0
    %v2087 = vsel %vm63, %v2073, 0
    %2089 = vmatprep.subr.mxu0 0.0
    %2090 = vmatpush1.msra.mxu0 0.0
    %2091 = vmatprep.subr.mxu0 0.0
    %2092 = vmatpush1.msra.mxu0 0.0
    %2093 = vmatprep.subr.mxu0 0.0
    %2094 = vmatpush1.msra.mxu0 0.0
    %2095 = vmatprep.subr.mxu0 0.0
    %2096 = vmatpush1.msra.mxu0 0.0
    %2097 = vmatprep.subr.mxu0 0.0
    %2098 = vmatpush1.msra.mxu0 0.0
    %2099 = vmatprep.subr.mxu0 0.0
    %2100 = vmatpush1.msra.mxu0 0.0
    %2101 = vmatprep.subr.mxu0 0.0
    %2102 = vmatpush1.msra.mxu0 0.0
    %2103 = vmatprep.subr.mxu0 0.0
    %2104 = vmatpush1.msra.mxu0 0.0
    %2105 = vmatprep.subr.mxu0 0.0
    %2106 = vmatpush1.msra.mxu0 0.0
    %2107 = vmatprep.subr.mxu0 0.0
    %2108 = vmatpush1.msra.mxu0 0.0
    %2109 = vmatprep.subr.mxu0 0.0
    %2110 = vmatpush1.msra.mxu0 0.0
    %2111 = vmatprep.subr.mxu0 0.0
    %2112 = vmatpush1.msra.mxu0 0.0
    %2113 = vmatprep.subr.mxu0 0.0
    %2114 = vmatpush1.msra.mxu0 %v2077
    %2115 = vmatprep.subr.mxu0 0.0
    %2116 = vmatpush1.msra.mxu0 %v2076
    %2117 = vmatprep.subr.mxu0 0.0
    %2118 = vmatpush1.msra.mxu0 %v2075
    %2119 = vmatprep.subr.mxu0 0.0
    %2120 = vmatpush1.msra.mxu0 %v2074
    %2121 = vmatprep.subr.mxu0 0.0
    %2122 = vmatpush2.msra.mxu0 0.0
    %2123 = vmatprep.subr.mxu0 0.0
    %2124 = vmatpush2.msra.mxu0 0.0
    %2125 = vmatprep.subr.mxu0 0.0
    %2126 = vmatpush2.msra.mxu0 0.0
    %2127 = vmatprep.subr.mxu0 0.0
    %2128 = vmatpush2.msra.mxu0 0.0
    %2129 = vmatprep.subr.mxu0 0.0
    %2130 = vmatpush2.msra.mxu0 0.0
    %2131 = vmatprep.subr.mxu0 0.0
    %2132 = vmatpush2.msra.mxu0 0.0
    %2133 = vmatprep.subr.mxu0 0.0
    %2134 = vmatpush2.msra.mxu0 0.0
    %2135 = vmatprep.subr.mxu0 0.0
    %2136 = vmatpush2.msra.mxu0 0.0
    %2137 = vmatprep.subr.mxu0 0.0
    %2138 = vmatpush2.msra.mxu0 0.0
    %2139 = vmatprep.subr.mxu0 0.0
    %2140 = vmatpush2.msra.mxu0 0.0
    %2141 = vmatprep.subr.mxu0 0.0
    %2142 = vmatpush2.msra.mxu0 0.0
    %2143 = vmatprep.subr.mxu0 0.0
    %2144 = vmatpush2.msra.mxu0 0.0
    %2145 = vmatprep.subr.mxu0 0.0
    %2146 = vmatpush2.msra.mxu0 0.0
    %2147 = vmatprep.subr.mxu0 0.0
    %2148 = vmatpush2.msra.mxu0 0.0
    %2149 = vmatprep.subr.mxu0 0.0
    %2150 = vmatpush2.msra.mxu0 0.0
    %2151 = vmatprep.subr.mxu0 0.0
    %2152 = vmatpush2.msra.mxu0 0.0
    %2153 = vmatprep.mubr.f32.mxu0 0.0
    %2154 = vmatmul.mubr.f32.gmra.mxu0 %v2084
    %v2155 = vpop.f32.mrf.mxu0
    %v2156 = vadd.f32 %v2082, %v2155
    %v2157 = vpop.f32.mrf.mxu0
    %2158 = vmatprep.mubr.f32.mxu0 0.0
    %2159 = vmatmul.mubr.f32.gmra.mxu0 %v2087
    %v2160 = vpop.f32.mrf.mxu0
    %v2161 = vadd.f32 %v2082, %v2160
    %v2162 = vpop.f32.mrf.mxu0
    %2163 = vdwg.mxu0
    %2165 = vrot.lane.b32.xlu0 %v2156, 96
    %v2166 = vpop.permute.xlu0 %2165
    %v2167 = vsel %vm238, %v2156, 0
    %v2169 = vsel %vm238, %v2166, 0
    %2171 = vmatprep.subr.mxu0 0.0
    %2172 = vmatpush1.xpose.msra.mxu0 0.0
    %2173 = vmatprep.subr.mxu0 0.0
    %2174 = vmatpush1.xpose.msra.mxu0 0.0
    %2175 = vmatprep.subr.mxu0 0.0
    %2176 = vmatpush1.xpose.msra.mxu0 0.0
    %2177 = vmatprep.subr.mxu0 0.0
    %2178 = vmatpush1.xpose.msra.mxu0 0.0
    %2179 = vmatprep.subr.mxu0 0.0
    %2180 = vmatpush1.xpose.msra.mxu0 0.0
    %2181 = vmatprep.subr.mxu0 0.0
    %2182 = vmatpush1.xpose.msra.mxu0 0.0
    %2183 = vmatprep.subr.mxu0 0.0
    %2184 = vmatpush1.xpose.msra.mxu0 0.0
    %2185 = vmatprep.subr.mxu0 0.0
    %2186 = vmatpush1.xpose.msra.mxu0 0.0
    %2187 = vmatprep.subr.mxu0 0.0
    %2188 = vmatpush1.xpose.msra.mxu0 0.0
    %2189 = vmatprep.subr.mxu0 0.0
    %2190 = vmatpush1.xpose.msra.mxu0 0.0
    %2191 = vmatprep.subr.mxu0 0.0
    %2192 = vmatpush1.xpose.msra.mxu0 0.0
    %2193 = vmatprep.subr.mxu0 0.0
    %2194 = vmatpush1.xpose.msra.mxu0 0.0
    %2195 = vmatprep.subr.mxu0 0.0
    %2196 = vmatpush1.xpose.msra.mxu0 0.0
    %2197 = vmatprep.subr.mxu0 0.0
    %2198 = vmatpush1.xpose.msra.mxu0 0.0
    %2199 = vmatprep.subr.mxu0 0.0
    %2200 = vmatpush1.xpose.msra.mxu0 0.0
    %2201 = vmatprep.subr.mxu0 0.0
    %2202 = vmatpush1.xpose.msra.mxu0 %v2169
    %2203 = vmatprep.subr.mxu0 0.0
    %2204 = vmatpush2.xpose.msra.mxu0 0.0
    %2205 = vmatprep.subr.mxu0 0.0
    %2206 = vmatpush2.xpose.msra.mxu0 0.0
    %2207 = vmatprep.subr.mxu0 0.0
    %2208 = vmatpush2.xpose.msra.mxu0 0.0
    %2209 = vmatprep.subr.mxu0 0.0
    %2210 = vmatpush2.xpose.msra.mxu0 0.0
    %2211 = vmatprep.subr.mxu0 0.0
    %2212 = vmatpush2.xpose.msra.mxu0 0.0
    %2213 = vmatprep.subr.mxu0 0.0
    %2214 = vmatpush2.xpose.msra.mxu0 0.0
    %2215 = vmatprep.subr.mxu0 0.0
    %2216 = vmatpush2.xpose.msra.mxu0 0.0
    %2217 = vmatprep.subr.mxu0 0.0
    %2218 = vmatpush2.xpose.msra.mxu0 0.0
    %2219 = vmatprep.subr.mxu0 0.0
    %2220 = vmatpush2.xpose.msra.mxu0 0.0
    %2221 = vmatprep.subr.mxu0 0.0
    %2222 = vmatpush2.xpose.msra.mxu0 0.0
    %2223 = vmatprep.subr.mxu0 0.0
    %2224 = vmatpush2.xpose.msra.mxu0 0.0
    %2225 = vmatprep.subr.mxu0 0.0
    %2226 = vmatpush2.xpose.msra.mxu0 0.0
    %2227 = vmatprep.subr.mxu0 0.0
    %2228 = vmatpush2.xpose.msra.mxu0 0.0
    %2229 = vmatprep.subr.mxu0 0.0
    %2230 = vmatpush2.xpose.msra.mxu0 0.0
    %2231 = vmatprep.subr.mxu0 0.0
    %2232 = vmatpush2.xpose.msra.mxu0 0.0
    %2233 = vmatprep.subr.mxu0 0.0
    %2234 = vmatpush2.xpose.msra.mxu0 0.0
    %2235 = vmatprep.mubr.f32.mxu0 0.0
    %2236 = vmatmul.mubr.f32.gmra.mxu0 %v2167
    %v2237 = vpop.f32.mrf.mxu0
    %v2238 = vadd.f32 0.0, %v2237
    %v2239 = vpop.f32.mrf.mxu0
    %2240 = vdwg.mxu0
    %2242 = vrot.lane.b32.xlu0 %v2161, 96
    %v2243 = vpop.permute.xlu0 %2242
    %v2244 = vsel %vm238, %v2161, 0
    %v2246 = vsel %vm238, %v2243, 0
    %2248 = vmatprep.subr.mxu0 0.0
    %2249 = vmatpush1.xpose.msra.mxu0 0.0
    %2250 = vmatprep.subr.mxu0 0.0
    %2251 = vmatpush1.xpose.msra.mxu0 0.0
    %2252 = vmatprep.subr.mxu0 0.0
    %2253 = vmatpush1.xpose.msra.mxu0 0.0
    %2254 = vmatprep.subr.mxu0 0.0
    %2255 = vmatpush1.xpose.msra.mxu0 0.0
    %2256 = vmatprep.subr.mxu0 0.0
    %2257 = vmatpush1.xpose.msra.mxu0 0.0
    %2258 = vmatprep.subr.mxu0 0.0
    %2259 = vmatpush1.xpose.msra.mxu0 0.0
    %2260 = vmatprep.subr.mxu0 0.0
    %2261 = vmatpush1.xpose.msra.mxu0 0.0
    %2262 = vmatprep.subr.mxu0 0.0
    %2263 = vmatpush1.xpose.msra.mxu0 0.0
    %2264 = vmatprep.subr.mxu0 0.0
    %2265 = vmatpush1.xpose.msra.mxu0 0.0
    %2266 = vmatprep.subr.mxu0 0.0
    %2267 = vmatpush1.xpose.msra.mxu0 0.0
    %2268 = vmatprep.subr.mxu0 0.0
    %2269 = vmatpush1.xpose.msra.mxu0 0.0
    %2270 = vmatprep.subr.mxu0 0.0
    %2271 = vmatpush1.xpose.msra.mxu0 0.0
    %2272 = vmatprep.subr.mxu0 0.0
    %2273 = vmatpush1.xpose.msra.mxu0 0.0
    %2274 = vmatprep.subr.mxu0 0.0
    %2275 = vmatpush1.xpose.msra.mxu0 0.0
    %2276 = vmatprep.subr.mxu0 0.0
    %2277 = vmatpush1.xpose.msra.mxu0 0.0
    %2278 = vmatprep.subr.mxu0 0.0
    %2279 = vmatpush1.xpose.msra.mxu0 %v2246
    %2280 = vmatprep.subr.mxu0 0.0
    %2281 = vmatpush2.xpose.msra.mxu0 0.0
    %2282 = vmatprep.subr.mxu0 0.0
    %2283 = vmatpush2.xpose.msra.mxu0 0.0
    %2284 = vmatprep.subr.mxu0 0.0
    %2285 = vmatpush2.xpose.msra.mxu0 0.0
    %2286 = vmatprep.subr.mxu0 0.0
    %2287 = vmatpush2.xpose.msra.mxu0 0.0
    %2288 = vmatprep.subr.mxu0 0.0
    %2289 = vmatpush2.xpose.msra.mxu0 0.0
    %2290 = vmatprep.subr.mxu0 0.0
    %2291 = vmatpush2.xpose.msra.mxu0 0.0
    %2292 = vmatprep.subr.mxu0 0.0
    %2293 = vmatpush2.xpose.msra.mxu0 0.0
    %2294 = vmatprep.subr.mxu0 0.0
    %2295 = vmatpush2.xpose.msra.mxu0 0.0
    %2296 = vmatprep.subr.mxu0 0.0
    %2297 = vmatpush2.xpose.msra.mxu0 0.0
    %2298 = vmatprep.subr.mxu0 0.0
    %2299 = vmatpush2.xpose.msra.mxu0 0.0
    %2300 = vmatprep.subr.mxu0 0.0
    %2301 = vmatpush2.xpose.msra.mxu0 0.0
    %2302 = vmatprep.subr.mxu0 0.0
    %2303 = vmatpush2.xpose.msra.mxu0 0.0
    %2304 = vmatprep.subr.mxu0 0.0
    %2305 = vmatpush2.xpose.msra.mxu0 0.0
    %2306 = vmatprep.subr.mxu0 0.0
    %2307 = vmatpush2.xpose.msra.mxu0 0.0
    %2308 = vmatprep.subr.mxu0 0.0
    %2309 = vmatpush2.xpose.msra.mxu0 0.0
    %2310 = vmatprep.subr.mxu0 0.0
    %2311 = vmatpush2.xpose.msra.mxu0 0.0
    %2312 = vmatprep.mubr.f32.mxu0 0.0
    %2313 = vmatmul.mubr.f32.gmra.mxu0 %v2244
    %v2314 = vpop.f32.mrf.mxu0
    %v2315 = vadd.f32 0.0, %v2314
    %v2316 = vpop.f32.mrf.mxu0
    %2317 = vdwg.mxu0
    %v2318 = vmul.f32 %v2238, 0.35355338
    %v2319 = vmul.f32 %v2315, 0.35355338
    %v2320 = vadd.f32 %v2318, %v57
    %v2321 = vadd.f32 %v2319, %v57
    %v2322 = vsel %vm238, %v2320, -inf
    %2323 = vmax.xlane.f32.xlu0 %v2322
    %v2324 = vpop.xlane.xlu0 %2323
    %v2325 = vsel %vm238, %v2321, -inf
    %2326 = vmax.xlane.f32.xlu0 %v2325
    %v2327 = vpop.xlane.xlu0 %2326
    %v2328 = vsub.f32 %v2320, %v2324
    %v2329 = vsub.f32 %v2321, %v2327
    %v2330 = vmul.f32 %v2328, 1.442695
    %v2331 = vpow.pop %v2330
    %v2332 = vmul.f32 %v2329, 1.442695
    %v2333 = vpow.pop %v2332
    %v2334 = vsel %vm238, %v2331, 0.0
    %2335 = vadd.xlane.f32.xlu0 %v2334
    %v2336 = vpop.xlane.xlu0 %2335
    %v2337 = vsel %vm238, %v2333, 0.0
    %2338 = vadd.xlane.f32.xlu0 %v2337
    %v2339 = vpop.xlane.xlu0 %2338
    %v2340 = vrcp.pop %v2336
    %v2341 = vrcp.pop %v2339
    %v2342 = vmul.f32 %v2331, %v2340
    %v2343 = vmul.f32 %v2333, %v2341
    %2344 = vrot.lane.b32.xlu0 %v2156, 64
    %v2345 = vpop.permute.xlu0 %2344
    %v2348 = vsel %vm238, %v2342, 0
    %2350 = vmatprep.subr.mxu0 0.0
    %2351 = vmatpush1.msra.mxu0 0.0
    %2352 = vmatprep.subr.mxu0 0.0
    %2353 = vmatpush1.msra.mxu0 0.0
    %2354 = vmatprep.subr.mxu0 0.0
    %2355 = vmatpush1.msra.mxu0 0.0
    %2356 = vmatprep.subr.mxu0 0.0
    %2357 = vmatpush1.msra.mxu0 0.0
    %2358 = vmatprep.subr.mxu0 0.0
    %2359 = vmatpush1.msra.mxu0 0.0
    %2360 = vmatprep.subr.mxu0 0.0
    %2361 = vmatpush1.msra.mxu0 0.0
    %2362 = vmatprep.subr.mxu0 0.0
    %2363 = vmatpush1.msra.mxu0 0.0
    %2364 = vmatprep.subr.mxu0 0.0
    %2365 = vmatpush1.msra.mxu0 0.0
    %2366 = vmatprep.subr.mxu0 0.0
    %2367 = vmatpush1.msra.mxu0 0.0
    %2368 = vmatprep.subr.mxu0 0.0
    %2369 = vmatpush1.msra.mxu0 0.0
    %2370 = vmatprep.subr.mxu0 0.0
    %2371 = vmatpush1.msra.mxu0 0.0
    %2372 = vmatprep.subr.mxu0 0.0
    %2373 = vmatpush1.msra.mxu0 0.0
    %2374 = vmatprep.subr.mxu0 0.0
    %2375 = vmatpush1.msra.mxu0 0.0
    %2376 = vmatprep.subr.mxu0 0.0
    %2377 = vmatpush1.msra.mxu0 0.0
    %2378 = vmatprep.subr.mxu0 0.0
    %2379 = vmatpush1.msra.mxu0 0.0
    %2380 = vmatprep.subr.mxu0 0.0
    %2381 = vmatpush1.msra.mxu0 %v2345
    %2382 = vmatprep.subr.mxu0 0.0
    %2383 = vmatpush2.msra.mxu0 0.0
    %2384 = vmatprep.subr.mxu0 0.0
    %2385 = vmatpush2.msra.mxu0 0.0
    %2386 = vmatprep.subr.mxu0 0.0
    %2387 = vmatpush2.msra.mxu0 0.0
    %2388 = vmatprep.subr.mxu0 0.0
    %2389 = vmatpush2.msra.mxu0 0.0
    %2390 = vmatprep.subr.mxu0 0.0
    %2391 = vmatpush2.msra.mxu0 0.0
    %2392 = vmatprep.subr.mxu0 0.0
    %2393 = vmatpush2.msra.mxu0 0.0
    %2394 = vmatprep.subr.mxu0 0.0
    %2395 = vmatpush2.msra.mxu0 0.0
    %2396 = vmatprep.subr.mxu0 0.0
    %2397 = vmatpush2.msra.mxu0 0.0
    %2398 = vmatprep.subr.mxu0 0.0
    %2399 = vmatpush2.msra.mxu0 0.0
    %2400 = vmatprep.subr.mxu0 0.0
    %2401 = vmatpush2.msra.mxu0 0.0
    %2402 = vmatprep.subr.mxu0 0.0
    %2403 = vmatpush2.msra.mxu0 0.0
    %2404 = vmatprep.subr.mxu0 0.0
    %2405 = vmatpush2.msra.mxu0 0.0
    %2406 = vmatprep.subr.mxu0 0.0
    %2407 = vmatpush2.msra.mxu0 0.0
    %2408 = vmatprep.subr.mxu0 0.0
    %2409 = vmatpush2.msra.mxu0 0.0
    %2410 = vmatprep.subr.mxu0 0.0
    %2411 = vmatpush2.msra.mxu0 0.0
    %2412 = vmatprep.subr.mxu0 0.0
    %2413 = vmatpush2.msra.mxu0 0.0
    %2414 = vmatprep.mubr.f32.mxu0 0.0
    %2415 = vmatmul.mubr.f32.gmra.mxu0 %v2348
    %v2416 = vpop.f32.mrf.mxu0
    %v2417 = vadd.f32 0.0, %v2416
    %v2418 = vpop.f32.mrf.mxu0
    %2419 = vdwg.mxu0
    %2420 = vrot.lane.b32.xlu0 %v2161, 64
    %v2421 = vpop.permute.xlu0 %2420
    %v2424 = vsel %vm238, %v2343, 0
    %2426 = vmatprep.subr.mxu0 0.0
    %2427 = vmatpush1.msra.mxu0 0.0
    %2428 = vmatprep.subr.mxu0 0.0
    %2429 = vmatpush1.msra.mxu0 0.0
    %2430 = vmatprep.subr.mxu0 0.0
    %2431 = vmatpush1.msra.mxu0 0.0
    %2432 = vmatprep.subr.mxu0 0.0
    %2433 = vmatpush1.msra.mxu0 0.0
    %2434 = vmatprep.subr.mxu0 0.0
    %2435 = vmatpush1.msra.mxu0 0.0
    %2436 = vmatprep.subr.mxu0 0.0
    %2437 = vmatpush1.msra.mxu0 0.0
    %2438 = vmatprep.subr.mxu0 0.0
    %2439 = vmatpush1.msra.mxu0 0.0
    %2440 = vmatprep.subr.mxu0 0.0
    %2441 = vmatpush1.msra.mxu0 0.0
    %2442 = vmatprep.subr.mxu0 0.0
    %2443 = vmatpush1.msra.mxu0 0.0
    %2444 = vmatprep.subr.mxu0 0.0
    %2445 = vmatpush1.msra.mxu0 0.0
    %2446 = vmatprep.subr.mxu0 0.0
    %2447 = vmatpush1.msra.mxu0 0.0
    %2448 = vmatprep.subr.mxu0 0.0
    %2449 = vmatpush1.msra.mxu0 0.0
    %2450 = vmatprep.subr.mxu0 0.0
    %2451 = vmatpush1.msra.mxu0 0.0
    %2452 = vmatprep.subr.mxu0 0.0
    %2453 = vmatpush1.msra.mxu0 0.0
    %2454 = vmatprep.subr.mxu0 0.0
    %2455 = vmatpush1.msra.mxu0 0.0
    %2456 = vmatprep.subr.mxu0 0.0
    %2457 = vmatpush1.msra.mxu0 %v2421
    %2458 = vmatprep.subr.mxu0 0.0
    %2459 = vmatpush2.msra.mxu0 0.0
    %2460 = vmatprep.subr.mxu0 0.0
    %2461 = vmatpush2.msra.mxu0 0.0
    %2462 = vmatprep.subr.mxu0 0.0
    %2463 = vmatpush2.msra.mxu0 0.0
    %2464 = vmatprep.subr.mxu0 0.0
    %2465 = vmatpush2.msra.mxu0 0.0
    %2466 = vmatprep.subr.mxu0 0.0
    %2467 = vmatpush2.msra.mxu0 0.0
    %2468 = vmatprep.subr.mxu0 0.0
    %2469 = vmatpush2.msra.mxu0 0.0
    %2470 = vmatprep.subr.mxu0 0.0
    %2471 = vmatpush2.msra.mxu0 0.0
    %2472 = vmatprep.subr.mxu0 0.0
    %2473 = vmatpush2.msra.mxu0 0.0
    %2474 = vmatprep.subr.mxu0 0.0
    %2475 = vmatpush2.msra.mxu0 0.0
    %2476 = vmatprep.subr.mxu0 0.0
    %2477 = vmatpush2.msra.mxu0 0.0
    %2478 = vmatprep.subr.mxu0 0.0
    %2479 = vmatpush2.msra.mxu0 0.0
    %2480 = vmatprep.subr.mxu0 0.0
    %2481 = vmatpush2.msra.mxu0 0.0
    %2482 = vmatprep.subr.mxu0 0.0
    %2483 = vmatpush2.msra.mxu0 0.0
    %2484 = vmatprep.subr.mxu0 0.0
    %2485 = vmatpush2.msra.mxu0 0.0
    %2486 = vmatprep.subr.mxu0 0.0
    %2487 = vmatpush2.msra.mxu0 0.0
    %2488 = vmatprep.subr.mxu0 0.0
    %2489 = vmatpush2.msra.mxu0 0.0
    %2490 = vmatprep.mubr.f32.mxu0 0.0
    %2491 = vmatmul.mubr.f32.gmra.mxu0 %v2424
    %v2492 = vpop.f32.mrf.mxu0
    %v2493 = vadd.f32 0.0, %v2492
    %v2494 = vpop.f32.mrf.mxu0
    %2495 = vdwg.mxu0
    %2496 = vrot.lane.b32.xlu0 %v2156, 120
    %v2497 = vpop.permute.xlu0 %2496
    %2498 = vrot.lane.b32.xlu0 %v2156, 88
    %v2499 = vpop.permute.xlu0 %2498
    %v2500 = vsel %vm238, %v2497, 0
    %v2502 = vsel %vm238, %v2499, 0
    %2504 = vmatprep.subr.mxu0 0.0
    %2505 = vmatpush1.xpose.msra.mxu0 0.0
    %2506 = vmatprep.subr.mxu0 0.0
    %2507 = vmatpush1.xpose.msra.mxu0 0.0
    %2508 = vmatprep.subr.mxu0 0.0
    %2509 = vmatpush1.xpose.msra.mxu0 0.0
    %2510 = vmatprep.subr.mxu0 0.0
    %2511 = vmatpush1.xpose.msra.mxu0 0.0
    %2512 = vmatprep.subr.mxu0 0.0
    %2513 = vmatpush1.xpose.msra.mxu0 0.0
    %2514 = vmatprep.subr.mxu0 0.0
    %2515 = vmatpush1.xpose.msra.mxu0 0.0
    %2516 = vmatprep.subr.mxu0 0.0
    %2517 = vmatpush1.xpose.msra.mxu0 0.0
    %2518 = vmatprep.subr.mxu0 0.0
    %2519 = vmatpush1.xpose.msra.mxu0 0.0
    %2520 = vmatprep.subr.mxu0 0.0
    %2521 = vmatpush1.xpose.msra.mxu0 0.0
    %2522 = vmatprep.subr.mxu0 0.0
    %2523 = vmatpush1.xpose.msra.mxu0 0.0
    %2524 = vmatprep.subr.mxu0 0.0
    %2525 = vmatpush1.xpose.msra.mxu0 0.0
    %2526 = vmatprep.subr.mxu0 0.0
    %2527 = vmatpush1.xpose.msra.mxu0 0.0
    %2528 = vmatprep.subr.mxu0 0.0
    %2529 = vmatpush1.xpose.msra.mxu0 0.0
    %2530 = vmatprep.subr.mxu0 0.0
    %2531 = vmatpush1.xpose.msra.mxu0 0.0
    %2532 = vmatprep.subr.mxu0 0.0
    %2533 = vmatpush1.xpose.msra.mxu0 0.0
    %2534 = vmatprep.subr.mxu0 0.0
    %2535 = vmatpush1.xpose.msra.mxu0 %v2502
    %2536 = vmatprep.subr.mxu0 0.0
    %2537 = vmatpush2.xpose.msra.mxu0 0.0
    %2538 = vmatprep.subr.mxu0 0.0
    %2539 = vmatpush2.xpose.msra.mxu0 0.0
    %2540 = vmatprep.subr.mxu0 0.0
    %2541 = vmatpush2.xpose.msra.mxu0 0.0
    %2542 = vmatprep.subr.mxu0 0.0
    %2543 = vmatpush2.xpose.msra.mxu0 0.0
    %2544 = vmatprep.subr.mxu0 0.0
    %2545 = vmatpush2.xpose.msra.mxu0 0.0
    %2546 = vmatprep.subr.mxu0 0.0
    %2547 = vmatpush2.xpose.msra.mxu0 0.0
    %2548 = vmatprep.subr.mxu0 0.0
    %2549 = vmatpush2.xpose.msra.mxu0 0.0
    %2550 = vmatprep.subr.mxu0 0.0
    %2551 = vmatpush2.xpose.msra.mxu0 0.0
    %2552 = vmatprep.subr.mxu0 0.0
    %2553 = vmatpush2.xpose.msra.mxu0 0.0
    %2554 = vmatprep.subr.mxu0 0.0
    %2555 = vmatpush2.xpose.msra.mxu0 0.0
    %2556 = vmatprep.subr.mxu0 0.0
    %2557 = vmatpush2.xpose.msra.mxu0 0.0
    %2558 = vmatprep.subr.mxu0 0.0
    %2559 = vmatpush2.xpose.msra.mxu0 0.0
    %2560 = vmatprep.subr.mxu0 0.0
    %2561 = vmatpush2.xpose.msra.mxu0 0.0
    %2562 = vmatprep.subr.mxu0 0.0
    %2563 = vmatpush2.xpose.msra.mxu0 0.0
    %2564 = vmatprep.subr.mxu0 0.0
    %2565 = vmatpush2.xpose.msra.mxu0 0.0
    %2566 = vmatprep.subr.mxu0 0.0
    %2567 = vmatpush2.xpose.msra.mxu0 0.0
    %2568 = vmatprep.mubr.f32.mxu0 0.0
    %2569 = vmatmul.mubr.f32.gmra.mxu0 %v2500
    %v2570 = vpop.f32.mrf.mxu0
    %v2571 = vadd.f32 0.0, %v2570
    %v2572 = vpop.f32.mrf.mxu0
    %2573 = vdwg.mxu0
    %2574 = vrot.lane.b32.xlu0 %v2161, 120
    %v2575 = vpop.permute.xlu0 %2574
    %2576 = vrot.lane.b32.xlu0 %v2161, 88
    %v2577 = vpop.permute.xlu0 %2576
    %v2578 = vsel %vm238, %v2575, 0
    %v2580 = vsel %vm238, %v2577, 0
    %2582 = vmatprep.subr.mxu0 0.0
    %2583 = vmatpush1.xpose.msra.mxu0 0.0
    %2584 = vmatprep.subr.mxu0 0.0
    %2585 = vmatpush1.xpose.msra.mxu0 0.0
    %2586 = vmatprep.subr.mxu0 0.0
    %2587 = vmatpush1.xpose.msra.mxu0 0.0
    %2588 = vmatprep.subr.mxu0 0.0
    %2589 = vmatpush1.xpose.msra.mxu0 0.0
    %2590 = vmatprep.subr.mxu0 0.0
    %2591 = vmatpush1.xpose.msra.mxu0 0.0
    %2592 = vmatprep.subr.mxu0 0.0
    %2593 = vmatpush1.xpose.msra.mxu0 0.0
    %2594 = vmatprep.subr.mxu0 0.0
    %2595 = vmatpush1.xpose.msra.mxu0 0.0
    %2596 = vmatprep.subr.mxu0 0.0
    %2597 = vmatpush1.xpose.msra.mxu0 0.0
    %2598 = vmatprep.subr.mxu0 0.0
    %2599 = vmatpush1.xpose.msra.mxu0 0.0
    %2600 = vmatprep.subr.mxu0 0.0
    %2601 = vmatpush1.xpose.msra.mxu0 0.0
    %2602 = vmatprep.subr.mxu0 0.0
    %2603 = vmatpush1.xpose.msra.mxu0 0.0
    %2604 = vmatprep.subr.mxu0 0.0
    %2605 = vmatpush1.xpose.msra.mxu0 0.0
    %2606 = vmatprep.subr.mxu0 0.0
    %2607 = vmatpush1.xpose.msra.mxu0 0.0
    %2608 = vmatprep.subr.mxu0 0.0
    %2609 = vmatpush1.xpose.msra.mxu0 0.0
    %2610 = vmatprep.subr.mxu0 0.0
    %2611 = vmatpush1.xpose.msra.mxu0 0.0
    %2612 = vmatprep.subr.mxu0 0.0
    %2613 = vmatpush1.xpose.msra.mxu0 %v2580
    %2614 = vmatprep.subr.mxu0 0.0
    %2615 = vmatpush2.xpose.msra.mxu0 0.0
    %2616 = vmatprep.subr.mxu0 0.0
    %2617 = vmatpush2.xpose.msra.mxu0 0.0
    %2618 = vmatprep.subr.mxu0 0.0
    %2619 = vmatpush2.xpose.msra.mxu0 0.0
    %2620 = vmatprep.subr.mxu0 0.0
    %2621 = vmatpush2.xpose.msra.mxu0 0.0
    %2622 = vmatprep.subr.mxu0 0.0
    %2623 = vmatpush2.xpose.msra.mxu0 0.0
    %2624 = vmatprep.subr.mxu0 0.0
    %2625 = vmatpush2.xpose.msra.mxu0 0.0
    %2626 = vmatprep.subr.mxu0 0.0
    %2627 = vmatpush2.xpose.msra.mxu0 0.0
    %2628 = vmatprep.subr.mxu0 0.0
    %2629 = vmatpush2.xpose.msra.mxu0 0.0
    %2630 = vmatprep.subr.mxu0 0.0
    %2631 = vmatpush2.xpose.msra.mxu0 0.0
    %2632 = vmatprep.subr.mxu0 0.0
    %2633 = vmatpush2.xpose.msra.mxu0 0.0
    %2634 = vmatprep.subr.mxu0 0.0
    %2635 = vmatpush2.xpose.msra.mxu0 0.0
    %2636 = vmatprep.subr.mxu0 0.0
    %2637 = vmatpush2.xpose.msra.mxu0 0.0
    %2638 = vmatprep.subr.mxu0 0.0
    %2639 = vmatpush2.xpose.msra.mxu0 0.0
    %2640 = vmatprep.subr.mxu0 0.0
    %2641 = vmatpush2.xpose.msra.mxu0 0.0
    %2642 = vmatprep.subr.mxu0 0.0
    %2643 = vmatpush2.xpose.msra.mxu0 0.0
    %2644 = vmatprep.subr.mxu0 0.0
    %2645 = vmatpush2.xpose.msra.mxu0 0.0
    %2646 = vmatprep.mubr.f32.mxu0 0.0
    %2647 = vmatmul.mubr.f32.gmra.mxu0 %v2578
    %v2648 = vpop.f32.mrf.mxu0
    %v2649 = vadd.f32 0.0, %v2648
    %v2650 = vpop.f32.mrf.mxu0
    %2651 = vdwg.mxu0
    %v2652 = vmul.f32 %v2571, 0.35355338
    %v2653 = vmul.f32 %v2649, 0.35355338
    %v2654 = vadd.f32 %v2652, %v57
    %v2655 = vadd.f32 %v2653, %v57
    %v2656 = vsel %vm238, %v2654, -inf
    %2657 = vmax.xlane.f32.xlu0 %v2656
    %v2658 = vpop.xlane.xlu0 %2657
    %v2659 = vsel %vm238, %v2655, -inf
    %2660 = vmax.xlane.f32.xlu0 %v2659
    %v2661 = vpop.xlane.xlu0 %2660
    %v2662 = vsub.f32 %v2654, %v2658
    %v2663 = vsub.f32 %v2655, %v2661
    %v2664 = vmul.f32 %v2662, 1.442695
    %v2665 = vpow.pop %v2664
    %v2666 = vmul.f32 %v2663, 1.442695
    %v2667 = vpow.pop %v2666
    %v2668 = vsel %vm238, %v2665, 0.0
    %2669 = vadd.xlane.f32.xlu0 %v2668
    %v2670 = vpop.xlane.xlu0 %2669
    %v2671 = vsel %vm238, %v2667, 0.0
    %2672 = vadd.xlane.f32.xlu0 %v2671
    %v2673 = vpop.xlane.xlu0 %2672
    %v2674 = vrcp.pop %v2670
    %v2675 = vrcp.pop %v2673
    %v2676 = vmul.f32 %v2665, %v2674
    %v2677 = vmul.f32 %v2667, %v2675
    %2678 = vrot.lane.b32.xlu0 %v2156, 56
    %v2679 = vpop.permute.xlu0 %2678
    %v2682 = vsel %vm238, %v2676, 0
    %2684 = vmatprep.subr.mxu0 0.0
    %2685 = vmatpush1.msra.mxu0 0.0
    %2686 = vmatprep.subr.mxu0 0.0
    %2687 = vmatpush1.msra.mxu0 0.0
    %2688 = vmatprep.subr.mxu0 0.0
    %2689 = vmatpush1.msra.mxu0 0.0
    %2690 = vmatprep.subr.mxu0 0.0
    %2691 = vmatpush1.msra.mxu0 0.0
    %2692 = vmatprep.subr.mxu0 0.0
    %2693 = vmatpush1.msra.mxu0 0.0
    %2694 = vmatprep.subr.mxu0 0.0
    %2695 = vmatpush1.msra.mxu0 0.0
    %2696 = vmatprep.subr.mxu0 0.0
    %2697 = vmatpush1.msra.mxu0 0.0
    %2698 = vmatprep.subr.mxu0 0.0
    %2699 = vmatpush1.msra.mxu0 0.0
    %2700 = vmatprep.subr.mxu0 0.0
    %2701 = vmatpush1.msra.mxu0 0.0
    %2702 = vmatprep.subr.mxu0 0.0
    %2703 = vmatpush1.msra.mxu0 0.0
    %2704 = vmatprep.subr.mxu0 0.0
    %2705 = vmatpush1.msra.mxu0 0.0
    %2706 = vmatprep.subr.mxu0 0.0
    %2707 = vmatpush1.msra.mxu0 0.0
    %2708 = vmatprep.subr.mxu0 0.0
    %2709 = vmatpush1.msra.mxu0 0.0
    %2710 = vmatprep.subr.mxu0 0.0
    %2711 = vmatpush1.msra.mxu0 0.0
    %2712 = vmatprep.subr.mxu0 0.0
    %2713 = vmatpush1.msra.mxu0 0.0
    %2714 = vmatprep.subr.mxu0 0.0
    %2715 = vmatpush1.msra.mxu0 %v2679
    %2716 = vmatprep.subr.mxu0 0.0
    %2717 = vmatpush2.msra.mxu0 0.0
    %2718 = vmatprep.subr.mxu0 0.0
    %2719 = vmatpush2.msra.mxu0 0.0
    %2720 = vmatprep.subr.mxu0 0.0
    %2721 = vmatpush2.msra.mxu0 0.0
    %2722 = vmatprep.subr.mxu0 0.0
    %2723 = vmatpush2.msra.mxu0 0.0
    %2724 = vmatprep.subr.mxu0 0.0
    %2725 = vmatpush2.msra.mxu0 0.0
    %2726 = vmatprep.subr.mxu0 0.0
    %2727 = vmatpush2.msra.mxu0 0.0
    %2728 = vmatprep.subr.mxu0 0.0
    %2729 = vmatpush2.msra.mxu0 0.0
    %2730 = vmatprep.subr.mxu0 0.0
    %2731 = vmatpush2.msra.mxu0 0.0
    %2732 = vmatprep.subr.mxu0 0.0
    %2733 = vmatpush2.msra.mxu0 0.0
    %2734 = vmatprep.subr.mxu0 0.0
    %2735 = vmatpush2.msra.mxu0 0.0
    %2736 = vmatprep.subr.mxu0 0.0
    %2737 = vmatpush2.msra.mxu0 0.0
    %2738 = vmatprep.subr.mxu0 0.0
    %2739 = vmatpush2.msra.mxu0 0.0
    %2740 = vmatprep.subr.mxu0 0.0
    %2741 = vmatpush2.msra.mxu0 0.0
    %2742 = vmatprep.subr.mxu0 0.0
    %2743 = vmatpush2.msra.mxu0 0.0
    %2744 = vmatprep.subr.mxu0 0.0
    %2745 = vmatpush2.msra.mxu0 0.0
    %2746 = vmatprep.subr.mxu0 0.0
    %2747 = vmatpush2.msra.mxu0 0.0
    %2748 = vmatprep.mubr.f32.mxu0 0.0
    %2749 = vmatmul.mubr.f32.gmra.mxu0 %v2682
    %v2750 = vpop.f32.mrf.mxu0
    %v2751 = vadd.f32 0.0, %v2750
    %v2752 = vpop.f32.mrf.mxu0
    %2753 = vdwg.mxu0
    %2754 = vrot.lane.b32.xlu0 %v2161, 56
    %v2755 = vpop.permute.xlu0 %2754
    %v2758 = vsel %vm238, %v2677, 0
    %2760 = vmatprep.subr.mxu0 0.0
    %2761 = vmatpush1.msra.mxu0 0.0
    %2762 = vmatprep.subr.mxu0 0.0
    %2763 = vmatpush1.msra.mxu0 0.0
    %2764 = vmatprep.subr.mxu0 0.0
    %2765 = vmatpush1.msra.mxu0 0.0
    %2766 = vmatprep.subr.mxu0 0.0
    %2767 = vmatpush1.msra.mxu0 0.0
    %2768 = vmatprep.subr.mxu0 0.0
    %2769 = vmatpush1.msra.mxu0 0.0
    %2770 = vmatprep.subr.mxu0 0.0
    %2771 = vmatpush1.msra.mxu0 0.0
    %2772 = vmatprep.subr.mxu0 0.0
    %2773 = vmatpush1.msra.mxu0 0.0
    %2774 = vmatprep.subr.mxu0 0.0
    %2775 = vmatpush1.msra.mxu0 0.0
    %2776 = vmatprep.subr.mxu0 0.0
    %2777 = vmatpush1.msra.mxu0 0.0
    %2778 = vmatprep.subr.mxu0 0.0
    %2779 = vmatpush1.msra.mxu0 0.0
    %2780 = vmatprep.subr.mxu0 0.0
    %2781 = vmatpush1.msra.mxu0 0.0
    %2782 = vmatprep.subr.mxu0 0.0
    %2783 = vmatpush1.msra.mxu0 0.0
    %2784 = vmatprep.subr.mxu0 0.0
    %2785 = vmatpush1.msra.mxu0 0.0
    %2786 = vmatprep.subr.mxu0 0.0
    %2787 = vmatpush1.msra.mxu0 0.0
    %2788 = vmatprep.subr.mxu0 0.0
    %2789 = vmatpush1.msra.mxu0 0.0
    %2790 = vmatprep.subr.mxu0 0.0
    %2791 = vmatpush1.msra.mxu0 %v2755
    %2792 = vmatprep.subr.mxu0 0.0
    %2793 = vmatpush2.msra.mxu0 0.0
    %2794 = vmatprep.subr.mxu0 0.0
    %2795 = vmatpush2.msra.mxu0 0.0
    %2796 = vmatprep.subr.mxu0 0.0
    %2797 = vmatpush2.msra.mxu0 0.0
    %2798 = vmatprep.subr.mxu0 0.0
    %2799 = vmatpush2.msra.mxu0 0.0
    %2800 = vmatprep.subr.mxu0 0.0
    %2801 = vmatpush2.msra.mxu0 0.0
    %2802 = vmatprep.subr.mxu0 0.0
    %2803 = vmatpush2.msra.mxu0 0.0
    %2804 = vmatprep.subr.mxu0 0.0
    %2805 = vmatpush2.msra.mxu0 0.0
    %2806 = vmatprep.subr.mxu0 0.0
    %2807 = vmatpush2.msra.mxu0 0.0
    %2808 = vmatprep.subr.mxu0 0.0
    %2809 = vmatpush2.msra.mxu0 0.0
    %2810 = vmatprep.subr.mxu0 0.0
    %2811 = vmatpush2.msra.mxu0 0.0
    %2812 = vmatprep.subr.mxu0 0.0
    %2813 = vmatpush2.msra.mxu0 0.0
    %2814 = vmatprep.subr.mxu0 0.0
    %2815 = vmatpush2.msra.mxu0 0.0
    %2816 = vmatprep.subr.mxu0 0.0
    %2817 = vmatpush2.msra.mxu0 0.0
    %2818 = vmatprep.subr.mxu0 0.0
    %2819 = vmatpush2.msra.mxu0 0.0
    %2820 = vmatprep.subr.mxu0 0.0
    %2821 = vmatpush2.msra.mxu0 0.0
    %2822 = vmatprep.subr.mxu0 0.0
    %2823 = vmatpush2.msra.mxu0 0.0
    %2824 = vmatprep.mubr.f32.mxu0 0.0
    %2825 = vmatmul.mubr.f32.gmra.mxu0 %v2758
    %v2826 = vpop.f32.mrf.mxu0
    %v2827 = vadd.f32 0.0, %v2826
    %v2828 = vpop.f32.mrf.mxu0
    %2829 = vdwg.mxu0
    %2830 = vrot.lane.b32.xlu0 %v2156, 112
    %v2831 = vpop.permute.xlu0 %2830
    %2832 = vrot.lane.b32.xlu0 %v2156, 80
    %v2833 = vpop.permute.xlu0 %2832
    %v2834 = vsel %vm238, %v2831, 0
    %v2836 = vsel %vm238, %v2833, 0
    %2838 = vmatprep.subr.mxu0 0.0
    %2839 = vmatpush1.xpose.msra.mxu0 0.0
    %2840 = vmatprep.subr.mxu0 0.0
    %2841 = vmatpush1.xpose.msra.mxu0 0.0
    %2842 = vmatprep.subr.mxu0 0.0
    %2843 = vmatpush1.xpose.msra.mxu0 0.0
    %2844 = vmatprep.subr.mxu0 0.0
    %2845 = vmatpush1.xpose.msra.mxu0 0.0
    %2846 = vmatprep.subr.mxu0 0.0
    %2847 = vmatpush1.xpose.msra.mxu0 0.0
    %2848 = vmatprep.subr.mxu0 0.0
    %2849 = vmatpush1.xpose.msra.mxu0 0.0
    %2850 = vmatprep.subr.mxu0 0.0
    %2851 = vmatpush1.xpose.msra.mxu0 0.0
    %2852 = vmatprep.subr.mxu0 0.0
    %2853 = vmatpush1.xpose.msra.mxu0 0.0
    %2854 = vmatprep.subr.mxu0 0.0
    %2855 = vmatpush1.xpose.msra.mxu0 0.0
    %2856 = vmatprep.subr.mxu0 0.0
    %2857 = vmatpush1.xpose.msra.mxu0 0.0
    %2858 = vmatprep.subr.mxu0 0.0
    %2859 = vmatpush1.xpose.msra.mxu0 0.0
    %2860 = vmatprep.subr.mxu0 0.0
    %2861 = vmatpush1.xpose.msra.mxu0 0.0
    %2862 = vmatprep.subr.mxu0 0.0
    %2863 = vmatpush1.xpose.msra.mxu0 0.0
    %2864 = vmatprep.subr.mxu0 0.0
    %2865 = vmatpush1.xpose.msra.mxu0 0.0
    %2866 = vmatprep.subr.mxu0 0.0
    %2867 = vmatpush1.xpose.msra.mxu0 0.0
    %2868 = vmatprep.subr.mxu0 0.0
    %2869 = vmatpush1.xpose.msra.mxu0 %v2836
    %2870 = vmatprep.subr.mxu0 0.0
    %2871 = vmatpush2.xpose.msra.mxu0 0.0
    %2872 = vmatprep.subr.mxu0 0.0
    %2873 = vmatpush2.xpose.msra.mxu0 0.0
    %2874 = vmatprep.subr.mxu0 0.0
    %2875 = vmatpush2.xpose.msra.mxu0 0.0
    %2876 = vmatprep.subr.mxu0 0.0
    %2877 = vmatpush2.xpose.msra.mxu0 0.0
    %2878 = vmatprep.subr.mxu0 0.0
    %2879 = vmatpush2.xpose.msra.mxu0 0.0
    %2880 = vmatprep.subr.mxu0 0.0
    %2881 = vmatpush2.xpose.msra.mxu0 0.0
    %2882 = vmatprep.subr.mxu0 0.0
    %2883 = vmatpush2.xpose.msra.mxu0 0.0
    %2884 = vmatprep.subr.mxu0 0.0
    %2885 = vmatpush2.xpose.msra.mxu0 0.0
    %2886 = vmatprep.subr.mxu0 0.0
    %2887 = vmatpush2.xpose.msra.mxu0 0.0
    %2888 = vmatprep.subr.mxu0 0.0
    %2889 = vmatpush2.xpose.msra.mxu0 0.0
    %2890 = vmatprep.subr.mxu0 0.0
    %2891 = vmatpush2.xpose.msra.mxu0 0.0
    %2892 = vmatprep.subr.mxu0 0.0
    %2893 = vmatpush2.xpose.msra.mxu0 0.0
    %2894 = vmatprep.subr.mxu0 0.0
    %2895 = vmatpush2.xpose.msra.mxu0 0.0
    %2896 = vmatprep.subr.mxu0 0.0
    %2897 = vmatpush2.xpose.msra.mxu0 0.0
    %2898 = vmatprep.subr.mxu0 0.0
    %2899 = vmatpush2.xpose.msra.mxu0 0.0
    %2900 = vmatprep.subr.mxu0 0.0
    %2901 = vmatpush2.xpose.msra.mxu0 0.0
    %2902 = vmatprep.mubr.f32.mxu0 0.0
    %2903 = vmatmul.mubr.f32.gmra.mxu0 %v2834
    %v2904 = vpop.f32.mrf.mxu0
    %v2905 = vadd.f32 0.0, %v2904
    %v2906 = vpop.f32.mrf.mxu0
    %2907 = vdwg.mxu0
    %2908 = vrot.lane.b32.xlu0 %v2161, 112
    %v2909 = vpop.permute.xlu0 %2908
    %2910 = vrot.lane.b32.xlu0 %v2161, 80
    %v2911 = vpop.permute.xlu0 %2910
    %v2912 = vsel %vm238, %v2909, 0
    %v2914 = vsel %vm238, %v2911, 0
    %2916 = vmatprep.subr.mxu0 0.0
    %2917 = vmatpush1.xpose.msra.mxu0 0.0
    %2918 = vmatprep.subr.mxu0 0.0
    %2919 = vmatpush1.xpose.msra.mxu0 0.0
    %2920 = vmatprep.subr.mxu0 0.0
    %2921 = vmatpush1.xpose.msra.mxu0 0.0
    %2922 = vmatprep.subr.mxu0 0.0
    %2923 = vmatpush1.xpose.msra.mxu0 0.0
    %2924 = vmatprep.subr.mxu0 0.0
    %2925 = vmatpush1.xpose.msra.mxu0 0.0
    %2926 = vmatprep.subr.mxu0 0.0
    %2927 = vmatpush1.xpose.msra.mxu0 0.0
    %2928 = vmatprep.subr.mxu0 0.0
    %2929 = vmatpush1.xpose.msra.mxu0 0.0
    %2930 = vmatprep.subr.mxu0 0.0
    %2931 = vmatpush1.xpose.msra.mxu0 0.0
    %2932 = vmatprep.subr.mxu0 0.0
    %2933 = vmatpush1.xpose.msra.mxu0 0.0
    %2934 = vmatprep.subr.mxu0 0.0
    %2935 = vmatpush1.xpose.msra.mxu0 0.0
    %2936 = vmatprep.subr.mxu0 0.0
    %2937 = vmatpush1.xpose.msra.mxu0 0.0
    %2938 = vmatprep.subr.mxu0 0.0
    %2939 = vmatpush1.xpose.msra.mxu0 0.0
    %2940 = vmatprep.subr.mxu0 0.0
    %2941 = vmatpush1.xpose.msra.mxu0 0.0
    %2942 = vmatprep.subr.mxu0 0.0
    %2943 = vmatpush1.xpose.msra.mxu0 0.0
    %2944 = vmatprep.subr.mxu0 0.0
    %2945 = vmatpush1.xpose.msra.mxu0 0.0
    %2946 = vmatprep.subr.mxu0 0.0
    %2947 = vmatpush1.xpose.msra.mxu0 %v2914
    %2948 = vmatprep.subr.mxu0 0.0
    %2949 = vmatpush2.xpose.msra.mxu0 0.0
    %2950 = vmatprep.subr.mxu0 0.0
    %2951 = vmatpush2.xpose.msra.mxu0 0.0
    %2952 = vmatprep.subr.mxu0 0.0
    %2953 = vmatpush2.xpose.msra.mxu0 0.0
    %2954 = vmatprep.subr.mxu0 0.0
    %2955 = vmatpush2.xpose.msra.mxu0 0.0
    %2956 = vmatprep.subr.mxu0 0.0
    %2957 = vmatpush2.xpose.msra.mxu0 0.0
    %2958 = vmatprep.subr.mxu0 0.0
    %2959 = vmatpush2.xpose.msra.mxu0 0.0
    %2960 = vmatprep.subr.mxu0 0.0
    %2961 = vmatpush2.xpose.msra.mxu0 0.0
    %2962 = vmatprep.subr.mxu0 0.0
    %2963 = vmatpush2.xpose.msra.mxu0 0.0
    %2964 = vmatprep.subr.mxu0 0.0
    %2965 = vmatpush2.xpose.msra.mxu0 0.0
    %2966 = vmatprep.subr.mxu0 0.0
    %2967 = vmatpush2.xpose.msra.mxu0 0.0
    %2968 = vmatprep.subr.mxu0 0.0
    %2969 = vmatpush2.xpose.msra.mxu0 0.0
    %2970 = vmatprep.subr.mxu0 0.0
    %2971 = vmatpush2.xpose.msra.mxu0 0.0
    %2972 = vmatprep.subr.mxu0 0.0
    %2973 = vmatpush2.xpose.msra.mxu0 0.0
    %2974 = vmatprep.subr.mxu0 0.0
    %2975 = vmatpush2.xpose.msra.mxu0 0.0
    %2976 = vmatprep.subr.mxu0 0.0
    %2977 = vmatpush2.xpose.msra.mxu0 0.0
    %2978 = vmatprep.subr.mxu0 0.0
    %2979 = vmatpush2.xpose.msra.mxu0 0.0
    %2980 = vmatprep.mubr.f32.mxu0 0.0
    %2981 = vmatmul.mubr.f32.gmra.mxu0 %v2912
    %v2982 = vpop.f32.mrf.mxu0
    %v2983 = vadd.f32 0.0, %v2982
    %v2984 = vpop.f32.mrf.mxu0
    %2985 = vdwg.mxu0
    %v2986 = vmul.f32 %v2905, 0.35355338
    %v2987 = vmul.f32 %v2983, 0.35355338
    %v2988 = vadd.f32 %v2986, %v57
    %v2989 = vadd.f32 %v2987, %v57
    %v2990 = vsel %vm238, %v2988, -inf
    %2991 = vmax.xlane.f32.xlu0 %v2990
    %v2992 = vpop.xlane.xlu0 %2991
    %v2993 = vsel %vm238, %v2989, -inf
    %2994 = vmax.xlane.f32.xlu0 %v2993
    %v2995 = vpop.xlane.xlu0 %2994
    %v2996 = vsub.f32 %v2988, %v2992
    %v2997 = vsub.f32 %v2989, %v2995
    %v2998 = vmul.f32 %v2996, 1.442695
    %v2999 = vpow.pop %v2998
    %v3000 = vmul.f32 %v2997, 1.442695
    %v3001 = vpow.pop %v3000
    %v3002 = vsel %vm238, %v2999, 0.0
    %3003 = vadd.xlane.f32.xlu0 %v3002
    %v3004 = vpop.xlane.xlu0 %3003
    %v3005 = vsel %vm238, %v3001, 0.0
    %3006 = vadd.xlane.f32.xlu0 %v3005
    %v3007 = vpop.xlane.xlu0 %3006
    %v3008 = vrcp.pop %v3004
    %v3009 = vrcp.pop %v3007
    %v3010 = vmul.f32 %v2999, %v3008
    %v3011 = vmul.f32 %v3001, %v3009
    %3012 = vrot.lane.b32.xlu0 %v2156, 48
    %v3013 = vpop.permute.xlu0 %3012
    %v3016 = vsel %vm238, %v3010, 0
    %3018 = vmatprep.subr.mxu0 0.0
    %3019 = vmatpush1.msra.mxu0 0.0
    %3020 = vmatprep.subr.mxu0 0.0
    %3021 = vmatpush1.msra.mxu0 0.0
    %3022 = vmatprep.subr.mxu0 0.0
    %3023 = vmatpush1.msra.mxu0 0.0
    %3024 = vmatprep.subr.mxu0 0.0
    %3025 = vmatpush1.msra.mxu0 0.0
    %3026 = vmatprep.subr.mxu0 0.0
    %3027 = vmatpush1.msra.mxu0 0.0
    %3028 = vmatprep.subr.mxu0 0.0
    %3029 = vmatpush1.msra.mxu0 0.0
    %3030 = vmatprep.subr.mxu0 0.0
    %3031 = vmatpush1.msra.mxu0 0.0
    %3032 = vmatprep.subr.mxu0 0.0
    %3033 = vmatpush1.msra.mxu0 0.0
    %3034 = vmatprep.subr.mxu0 0.0
    %3035 = vmatpush1.msra.mxu0 0.0
    %3036 = vmatprep.subr.mxu0 0.0
    %3037 = vmatpush1.msra.mxu0 0.0
    %3038 = vmatprep.subr.mxu0 0.0
    %3039 = vmatpush1.msra.mxu0 0.0
    %3040 = vmatprep.subr.mxu0 0.0
    %3041 = vmatpush1.msra.mxu0 0.0
    %3042 = vmatprep.subr.mxu0 0.0
    %3043 = vmatpush1.msra.mxu0 0.0
    %3044 = vmatprep.subr.mxu0 0.0
    %3045 = vmatpush1.msra.mxu0 0.0
    %3046 = vmatprep.subr.mxu0 0.0
    %3047 = vmatpush1.msra.mxu0 0.0
    %3048 = vmatprep.subr.mxu0 0.0
    %3049 = vmatpush1.msra.mxu0 %v3013
    %3050 = vmatprep.subr.mxu0 0.0
    %3051 = vmatpush2.msra.mxu0 0.0
    %3052 = vmatprep.subr.mxu0 0.0
    %3053 = vmatpush2.msra.mxu0 0.0
    %3054 = vmatprep.subr.mxu0 0.0
    %3055 = vmatpush2.msra.mxu0 0.0
    %3056 = vmatprep.subr.mxu0 0.0
    %3057 = vmatpush2.msra.mxu0 0.0
    %3058 = vmatprep.subr.mxu0 0.0
    %3059 = vmatpush2.msra.mxu0 0.0
    %3060 = vmatprep.subr.mxu0 0.0
    %3061 = vmatpush2.msra.mxu0 0.0
    %3062 = vmatprep.subr.mxu0 0.0
    %3063 = vmatpush2.msra.mxu0 0.0
    %3064 = vmatprep.subr.mxu0 0.0
    %3065 = vmatpush2.msra.mxu0 0.0
    %3066 = vmatprep.subr.mxu0 0.0
    %3067 = vmatpush2.msra.mxu0 0.0
    %3068 = vmatprep.subr.mxu0 0.0
    %3069 = vmatpush2.msra.mxu0 0.0
    %3070 = vmatprep.subr.mxu0 0.0
    %3071 = vmatpush2.msra.mxu0 0.0
    %3072 = vmatprep.subr.mxu0 0.0
    %3073 = vmatpush2.msra.mxu0 0.0
    %3074 = vmatprep.subr.mxu0 0.0
    %3075 = vmatpush2.msra.mxu0 0.0
    %3076 = vmatprep.subr.mxu0 0.0
    %3077 = vmatpush2.msra.mxu0 0.0
    %3078 = vmatprep.subr.mxu0 0.0
    %3079 = vmatpush2.msra.mxu0 0.0
    %3080 = vmatprep.subr.mxu0 0.0
    %3081 = vmatpush2.msra.mxu0 0.0
    %3082 = vmatprep.mubr.f32.mxu0 0.0
    %3083 = vmatmul.mubr.f32.gmra.mxu0 %v3016
    %v3084 = vpop.f32.mrf.mxu0
    %v3085 = vadd.f32 0.0, %v3084
    %v3086 = vpop.f32.mrf.mxu0
    %3087 = vdwg.mxu0
    %3088 = vrot.lane.b32.xlu0 %v2161, 48
    %v3089 = vpop.permute.xlu0 %3088
    %v3092 = vsel %vm238, %v3011, 0
    %3094 = vmatprep.subr.mxu0 0.0
    %3095 = vmatpush1.msra.mxu0 0.0
    %3096 = vmatprep.subr.mxu0 0.0
    %3097 = vmatpush1.msra.mxu0 0.0
    %3098 = vmatprep.subr.mxu0 0.0
    %3099 = vmatpush1.msra.mxu0 0.0
    %3100 = vmatprep.subr.mxu0 0.0
    %3101 = vmatpush1.msra.mxu0 0.0
    %3102 = vmatprep.subr.mxu0 0.0
    %3103 = vmatpush1.msra.mxu0 0.0
    %3104 = vmatprep.subr.mxu0 0.0
    %3105 = vmatpush1.msra.mxu0 0.0
    %3106 = vmatprep.subr.mxu0 0.0
    %3107 = vmatpush1.msra.mxu0 0.0
    %3108 = vmatprep.subr.mxu0 0.0
    %3109 = vmatpush1.msra.mxu0 0.0
    %3110 = vmatprep.subr.mxu0 0.0
    %3111 = vmatpush1.msra.mxu0 0.0
    %3112 = vmatprep.subr.mxu0 0.0
    %3113 = vmatpush1.msra.mxu0 0.0
    %3114 = vmatprep.subr.mxu0 0.0
    %3115 = vmatpush1.msra.mxu0 0.0
    %3116 = vmatprep.subr.mxu0 0.0
    %3117 = vmatpush1.msra.mxu0 0.0
    %3118 = vmatprep.subr.mxu0 0.0
    %3119 = vmatpush1.msra.mxu0 0.0
    %3120 = vmatprep.subr.mxu0 0.0
    %3121 = vmatpush1.msra.mxu0 0.0
    %3122 = vmatprep.subr.mxu0 0.0
    %3123 = vmatpush1.msra.mxu0 0.0
    %3124 = vmatprep.subr.mxu0 0.0
    %3125 = vmatpush1.msra.mxu0 %v3089
    %3126 = vmatprep.subr.mxu0 0.0
    %3127 = vmatpush2.msra.mxu0 0.0
    %3128 = vmatprep.subr.mxu0 0.0
    %3129 = vmatpush2.msra.mxu0 0.0
    %3130 = vmatprep.subr.mxu0 0.0
    %3131 = vmatpush2.msra.mxu0 0.0
    %3132 = vmatprep.subr.mxu0 0.0
    %3133 = vmatpush2.msra.mxu0 0.0
    %3134 = vmatprep.subr.mxu0 0.0
    %3135 = vmatpush2.msra.mxu0 0.0
    %3136 = vmatprep.subr.mxu0 0.0
    %3137 = vmatpush2.msra.mxu0 0.0
    %3138 = vmatprep.subr.mxu0 0.0
    %3139 = vmatpush2.msra.mxu0 0.0
    %3140 = vmatprep.subr.mxu0 0.0
    %3141 = vmatpush2.msra.mxu0 0.0
    %3142 = vmatprep.subr.mxu0 0.0
    %3143 = vmatpush2.msra.mxu0 0.0
    %3144 = vmatprep.subr.mxu0 0.0
    %3145 = vmatpush2.msra.mxu0 0.0
    %3146 = vmatprep.subr.mxu0 0.0
    %3147 = vmatpush2.msra.mxu0 0.0
    %3148 = vmatprep.subr.mxu0 0.0
    %3149 = vmatpush2.msra.mxu0 0.0
    %3150 = vmatprep.subr.mxu0 0.0
    %3151 = vmatpush2.msra.mxu0 0.0
    %3152 = vmatprep.subr.mxu0 0.0
    %3153 = vmatpush2.msra.mxu0 0.0
    %3154 = vmatprep.subr.mxu0 0.0
    %3155 = vmatpush2.msra.mxu0 0.0
    %3156 = vmatprep.subr.mxu0 0.0
    %3157 = vmatpush2.msra.mxu0 0.0
    %3158 = vmatprep.mubr.f32.mxu0 0.0
    %3159 = vmatmul.mubr.f32.gmra.mxu0 %v3092
    %v3160 = vpop.f32.mrf.mxu0
    %v3161 = vadd.f32 0.0, %v3160
    %v3162 = vpop.f32.mrf.mxu0
    %3163 = vdwg.mxu0
    %3164 = vrot.lane.b32.xlu0 %v2156, 104
    %v3165 = vpop.permute.xlu0 %3164
    %3166 = vrot.lane.b32.xlu0 %v2156, 72
    %v3167 = vpop.permute.xlu0 %3166
    %v3168 = vsel %vm238, %v3165, 0
    %v3170 = vsel %vm238, %v3167, 0
    %3172 = vmatprep.subr.mxu0 0.0
    %3173 = vmatpush1.xpose.msra.mxu0 0.0
    %3174 = vmatprep.subr.mxu0 0.0
    %3175 = vmatpush1.xpose.msra.mxu0 0.0
    %3176 = vmatprep.subr.mxu0 0.0
    %3177 = vmatpush1.xpose.msra.mxu0 0.0
    %3178 = vmatprep.subr.mxu0 0.0
    %3179 = vmatpush1.xpose.msra.mxu0 0.0
    %3180 = vmatprep.subr.mxu0 0.0
    %3181 = vmatpush1.xpose.msra.mxu0 0.0
    %3182 = vmatprep.subr.mxu0 0.0
    %3183 = vmatpush1.xpose.msra.mxu0 0.0
    %3184 = vmatprep.subr.mxu0 0.0
    %3185 = vmatpush1.xpose.msra.mxu0 0.0
    %3186 = vmatprep.subr.mxu0 0.0
    %3187 = vmatpush1.xpose.msra.mxu0 0.0
    %3188 = vmatprep.subr.mxu0 0.0
    %3189 = vmatpush1.xpose.msra.mxu0 0.0
    %3190 = vmatprep.subr.mxu0 0.0
    %3191 = vmatpush1.xpose.msra.mxu0 0.0
    %3192 = vmatprep.subr.mxu0 0.0
    %3193 = vmatpush1.xpose.msra.mxu0 0.0
    %3194 = vmatprep.subr.mxu0 0.0
    %3195 = vmatpush1.xpose.msra.mxu0 0.0
    %3196 = vmatprep.subr.mxu0 0.0
    %3197 = vmatpush1.xpose.msra.mxu0 0.0
    %3198 = vmatprep.subr.mxu0 0.0
    %3199 = vmatpush1.xpose.msra.mxu0 0.0
    %3200 = vmatprep.subr.mxu0 0.0
    %3201 = vmatpush1.xpose.msra.mxu0 0.0
    %3202 = vmatprep.subr.mxu0 0.0
    %3203 = vmatpush1.xpose.msra.mxu0 %v3170
    %3204 = vmatprep.subr.mxu0 0.0
    %3205 = vmatpush2.xpose.msra.mxu0 0.0
    %3206 = vmatprep.subr.mxu0 0.0
    %3207 = vmatpush2.xpose.msra.mxu0 0.0
    %3208 = vmatprep.subr.mxu0 0.0
    %3209 = vmatpush2.xpose.msra.mxu0 0.0
    %3210 = vmatprep.subr.mxu0 0.0
    %3211 = vmatpush2.xpose.msra.mxu0 0.0
    %3212 = vmatprep.subr.mxu0 0.0
    %3213 = vmatpush2.xpose.msra.mxu0 0.0
    %3214 = vmatprep.subr.mxu0 0.0
    %3215 = vmatpush2.xpose.msra.mxu0 0.0
    %3216 = vmatprep.subr.mxu0 0.0
    %3217 = vmatpush2.xpose.msra.mxu0 0.0
    %3218 = vmatprep.subr.mxu0 0.0
    %3219 = vmatpush2.xpose.msra.mxu0 0.0
    %3220 = vmatprep.subr.mxu0 0.0
    %3221 = vmatpush2.xpose.msra.mxu0 0.0
    %3222 = vmatprep.subr.mxu0 0.0
    %3223 = vmatpush2.xpose.msra.mxu0 0.0
    %3224 = vmatprep.subr.mxu0 0.0
    %3225 = vmatpush2.xpose.msra.mxu0 0.0
    %3226 = vmatprep.subr.mxu0 0.0
    %3227 = vmatpush2.xpose.msra.mxu0 0.0
    %3228 = vmatprep.subr.mxu0 0.0
    %3229 = vmatpush2.xpose.msra.mxu0 0.0
    %3230 = vmatprep.subr.mxu0 0.0
    %3231 = vmatpush2.xpose.msra.mxu0 0.0
    %3232 = vmatprep.subr.mxu0 0.0
    %3233 = vmatpush2.xpose.msra.mxu0 0.0
    %3234 = vmatprep.subr.mxu0 0.0
    %3235 = vmatpush2.xpose.msra.mxu0 0.0
    %3236 = vmatprep.mubr.f32.mxu0 0.0
    %3237 = vmatmul.mubr.f32.gmra.mxu0 %v3168
    %v3238 = vpop.f32.mrf.mxu0
    %v3239 = vadd.f32 0.0, %v3238
    %v3240 = vpop.f32.mrf.mxu0
    %3241 = vdwg.mxu0
    %3242 = vrot.lane.b32.xlu0 %v2161, 104
    %v3243 = vpop.permute.xlu0 %3242
    %3244 = vrot.lane.b32.xlu0 %v2161, 72
    %v3245 = vpop.permute.xlu0 %3244
    %v3246 = vsel %vm238, %v3243, 0
    %v3248 = vsel %vm238, %v3245, 0
    %3250 = vmatprep.subr.mxu0 0.0
    %3251 = vmatpush1.xpose.msra.mxu0 0.0
    %3252 = vmatprep.subr.mxu0 0.0
    %3253 = vmatpush1.xpose.msra.mxu0 0.0
    %3254 = vmatprep.subr.mxu0 0.0
    %3255 = vmatpush1.xpose.msra.mxu0 0.0
    %3256 = vmatprep.subr.mxu0 0.0
    %3257 = vmatpush1.xpose.msra.mxu0 0.0
    %3258 = vmatprep.subr.mxu0 0.0
    %3259 = vmatpush1.xpose.msra.mxu0 0.0
    %3260 = vmatprep.subr.mxu0 0.0
    %3261 = vmatpush1.xpose.msra.mxu0 0.0
    %3262 = vmatprep.subr.mxu0 0.0
    %3263 = vmatpush1.xpose.msra.mxu0 0.0
    %3264 = vmatprep.subr.mxu0 0.0
    %3265 = vmatpush1.xpose.msra.mxu0 0.0
    %3266 = vmatprep.subr.mxu0 0.0
    %3267 = vmatpush1.xpose.msra.mxu0 0.0
    %3268 = vmatprep.subr.mxu0 0.0
    %3269 = vmatpush1.xpose.msra.mxu0 0.0
    %3270 = vmatprep.subr.mxu0 0.0
    %3271 = vmatpush1.xpose.msra.mxu0 0.0
    %3272 = vmatprep.subr.mxu0 0.0
    %3273 = vmatpush1.xpose.msra.mxu0 0.0
    %3274 = vmatprep.subr.mxu0 0.0
    %3275 = vmatpush1.xpose.msra.mxu0 0.0
    %3276 = vmatprep.subr.mxu0 0.0
    %3277 = vmatpush1.xpose.msra.mxu0 0.0
    %3278 = vmatprep.subr.mxu0 0.0
    %3279 = vmatpush1.xpose.msra.mxu0 0.0
    %3280 = vmatprep.subr.mxu0 0.0
    %3281 = vmatpush1.xpose.msra.mxu0 %v3248
    %3282 = vmatprep.subr.mxu0 0.0
    %3283 = vmatpush2.xpose.msra.mxu0 0.0
    %3284 = vmatprep.subr.mxu0 0.0
    %3285 = vmatpush2.xpose.msra.mxu0 0.0
    %3286 = vmatprep.subr.mxu0 0.0
    %3287 = vmatpush2.xpose.msra.mxu0 0.0
    %3288 = vmatprep.subr.mxu0 0.0
    %3289 = vmatpush2.xpose.msra.mxu0 0.0
    %3290 = vmatprep.subr.mxu0 0.0
    %3291 = vmatpush2.xpose.msra.mxu0 0.0
    %3292 = vmatprep.subr.mxu0 0.0
    %3293 = vmatpush2.xpose.msra.mxu0 0.0
    %3294 = vmatprep.subr.mxu0 0.0
    %3295 = vmatpush2.xpose.msra.mxu0 0.0
    %3296 = vmatprep.subr.mxu0 0.0
    %3297 = vmatpush2.xpose.msra.mxu0 0.0
    %3298 = vmatprep.subr.mxu0 0.0
    %3299 = vmatpush2.xpose.msra.mxu0 0.0
    %3300 = vmatprep.subr.mxu0 0.0
    %3301 = vmatpush2.xpose.msra.mxu0 0.0
    %3302 = vmatprep.subr.mxu0 0.0
    %3303 = vmatpush2.xpose.msra.mxu0 0.0
    %3304 = vmatprep.subr.mxu0 0.0
    %3305 = vmatpush2.xpose.msra.mxu0 0.0
    %3306 = vmatprep.subr.mxu0 0.0
    %3307 = vmatpush2.xpose.msra.mxu0 0.0
    %3308 = vmatprep.subr.mxu0 0.0
    %3309 = vmatpush2.xpose.msra.mxu0 0.0
    %3310 = vmatprep.subr.mxu0 0.0
    %3311 = vmatpush2.xpose.msra.mxu0 0.0
    %3312 = vmatprep.subr.mxu0 0.0
    %3313 = vmatpush2.xpose.msra.mxu0 0.0
    %3314 = vmatprep.mubr.f32.mxu0 0.0
    %3315 = vmatmul.mubr.f32.gmra.mxu0 %v3246
    %v3316 = vpop.f32.mrf.mxu0
    %v3317 = vadd.f32 0.0, %v3316
    %v3318 = vpop.f32.mrf.mxu0
    %3319 = vdwg.mxu0
    %v3320 = vmul.f32 %v3239, 0.35355338
    %v3321 = vmul.f32 %v3317, 0.35355338
    %v3322 = vadd.f32 %v3320, %v57
    %v3323 = vadd.f32 %v3321, %v57
    %v3324 = vsel %vm238, %v3322, -inf
    %3325 = vmax.xlane.f32.xlu0 %v3324
    %v3326 = vpop.xlane.xlu0 %3325
    %v3327 = vsel %vm238, %v3323, -inf
    %3328 = vmax.xlane.f32.xlu0 %v3327
    %v3329 = vpop.xlane.xlu0 %3328
    %v3330 = vsub.f32 %v3322, %v3326
    %v3331 = vsub.f32 %v3323, %v3329
    %v3332 = vmul.f32 %v3330, 1.442695
    %v3333 = vpow.pop %v3332
    %v3334 = vmul.f32 %v3331, 1.442695
    %v3335 = vpow.pop %v3334
    %v3336 = vsel %vm238, %v3333, 0.0
    %3337 = vadd.xlane.f32.xlu0 %v3336
    %v3338 = vpop.xlane.xlu0 %3337
    %v3339 = vsel %vm238, %v3335, 0.0
    %3340 = vadd.xlane.f32.xlu0 %v3339
    %v3341 = vpop.xlane.xlu0 %3340
    %v3342 = vrcp.pop %v3338
    %v3343 = vrcp.pop %v3341
    %v3344 = vmul.f32 %v3333, %v3342
    %v3345 = vmul.f32 %v3335, %v3343
    %3346 = vrot.lane.b32.xlu0 %v2156, 40
    %v3347 = vpop.permute.xlu0 %3346
    %v3350 = vsel %vm238, %v3344, 0
    %3352 = vmatprep.subr.mxu0 0.0
    %3353 = vmatpush1.msra.mxu0 0.0
    %3354 = vmatprep.subr.mxu0 0.0
    %3355 = vmatpush1.msra.mxu0 0.0
    %3356 = vmatprep.subr.mxu0 0.0
    %3357 = vmatpush1.msra.mxu0 0.0
    %3358 = vmatprep.subr.mxu0 0.0
    %3359 = vmatpush1.msra.mxu0 0.0
    %3360 = vmatprep.subr.mxu0 0.0
    %3361 = vmatpush1.msra.mxu0 0.0
    %3362 = vmatprep.subr.mxu0 0.0
    %3363 = vmatpush1.msra.mxu0 0.0
    %3364 = vmatprep.subr.mxu0 0.0
    %3365 = vmatpush1.msra.mxu0 0.0
    %3366 = vmatprep.subr.mxu0 0.0
    %3367 = vmatpush1.msra.mxu0 0.0
    %3368 = vmatprep.subr.mxu0 0.0
    %3369 = vmatpush1.msra.mxu0 0.0
    %3370 = vmatprep.subr.mxu0 0.0
    %3371 = vmatpush1.msra.mxu0 0.0
    %3372 = vmatprep.subr.mxu0 0.0
    %3373 = vmatpush1.msra.mxu0 0.0
    %3374 = vmatprep.subr.mxu0 0.0
    %3375 = vmatpush1.msra.mxu0 0.0
    %3376 = vmatprep.subr.mxu0 0.0
    %3377 = vmatpush1.msra.mxu0 0.0
    %3378 = vmatprep.subr.mxu0 0.0
    %3379 = vmatpush1.msra.mxu0 0.0
    %3380 = vmatprep.subr.mxu0 0.0
    %3381 = vmatpush1.msra.mxu0 0.0
    %3382 = vmatprep.subr.mxu0 0.0
    %3383 = vmatpush1.msra.mxu0 %v3347
    %3384 = vmatprep.subr.mxu0 0.0
    %3385 = vmatpush2.msra.mxu0 0.0
    %3386 = vmatprep.subr.mxu0 0.0
    %3387 = vmatpush2.msra.mxu0 0.0
    %3388 = vmatprep.subr.mxu0 0.0
    %3389 = vmatpush2.msra.mxu0 0.0
    %3390 = vmatprep.subr.mxu0 0.0
    %3391 = vmatpush2.msra.mxu0 0.0
    %3392 = vmatprep.subr.mxu0 0.0
    %3393 = vmatpush2.msra.mxu0 0.0
    %3394 = vmatprep.subr.mxu0 0.0
    %3395 = vmatpush2.msra.mxu0 0.0
    %3396 = vmatprep.subr.mxu0 0.0
    %3397 = vmatpush2.msra.mxu0 0.0
    %3398 = vmatprep.subr.mxu0 0.0
    %3399 = vmatpush2.msra.mxu0 0.0
    %3400 = vmatprep.subr.mxu0 0.0
    %3401 = vmatpush2.msra.mxu0 0.0
    %3402 = vmatprep.subr.mxu0 0.0
    %3403 = vmatpush2.msra.mxu0 0.0
    %3404 = vmatprep.subr.mxu0 0.0
    %3405 = vmatpush2.msra.mxu0 0.0
    %3406 = vmatprep.subr.mxu0 0.0
    %3407 = vmatpush2.msra.mxu0 0.0
    %3408 = vmatprep.subr.mxu0 0.0
    %3409 = vmatpush2.msra.mxu0 0.0
    %3410 = vmatprep.subr.mxu0 0.0
    %3411 = vmatpush2.msra.mxu0 0.0
    %3412 = vmatprep.subr.mxu0 0.0
    %3413 = vmatpush2.msra.mxu0 0.0
    %3414 = vmatprep.subr.mxu0 0.0
    %3415 = vmatpush2.msra.mxu0 0.0
    %3416 = vmatprep.mubr.f32.mxu0 0.0
    %3417 = vmatmul.mubr.f32.gmra.mxu0 %v3350
    %v3418 = vpop.f32.mrf.mxu0
    %v3419 = vadd.f32 0.0, %v3418
    %v3420 = vpop.f32.mrf.mxu0
    %3421 = vdwg.mxu0
    %3422 = vrot.lane.b32.xlu0 %v2161, 40
    %v3423 = vpop.permute.xlu0 %3422
    %v3426 = vsel %vm238, %v3345, 0
    %3428 = vmatprep.subr.mxu0 0.0
    %3429 = vmatpush1.msra.mxu0 0.0
    %3430 = vmatprep.subr.mxu0 0.0
    %3431 = vmatpush1.msra.mxu0 0.0
    %3432 = vmatprep.subr.mxu0 0.0
    %3433 = vmatpush1.msra.mxu0 0.0
    %3434 = vmatprep.subr.mxu0 0.0
    %3435 = vmatpush1.msra.mxu0 0.0
    %3436 = vmatprep.subr.mxu0 0.0
    %3437 = vmatpush1.msra.mxu0 0.0
    %3438 = vmatprep.subr.mxu0 0.0
    %3439 = vmatpush1.msra.mxu0 0.0
    %3440 = vmatprep.subr.mxu0 0.0
    %3441 = vmatpush1.msra.mxu0 0.0
    %3442 = vmatprep.subr.mxu0 0.0
    %3443 = vmatpush1.msra.mxu0 0.0
    %3444 = vmatprep.subr.mxu0 0.0
    %3445 = vmatpush1.msra.mxu0 0.0
    %3446 = vmatprep.subr.mxu0 0.0
    %3447 = vmatpush1.msra.mxu0 0.0
    %3448 = vmatprep.subr.mxu0 0.0
    %3449 = vmatpush1.msra.mxu0 0.0
    %3450 = vmatprep.subr.mxu0 0.0
    %3451 = vmatpush1.msra.mxu0 0.0
    %3452 = vmatprep.subr.mxu0 0.0
    %3453 = vmatpush1.msra.mxu0 0.0
    %3454 = vmatprep.subr.mxu0 0.0
    %3455 = vmatpush1.msra.mxu0 0.0
    %3456 = vmatprep.subr.mxu0 0.0
    %3457 = vmatpush1.msra.mxu0 0.0
    %3458 = vmatprep.subr.mxu0 0.0
    %3459 = vmatpush1.msra.mxu0 %v3423
    %3460 = vmatprep.subr.mxu0 0.0
    %3461 = vmatpush2.msra.mxu0 0.0
    %3462 = vmatprep.subr.mxu0 0.0
    %3463 = vmatpush2.msra.mxu0 0.0
    %3464 = vmatprep.subr.mxu0 0.0
    %3465 = vmatpush2.msra.mxu0 0.0
    %3466 = vmatprep.subr.mxu0 0.0
    %3467 = vmatpush2.msra.mxu0 0.0
    %3468 = vmatprep.subr.mxu0 0.0
    %3469 = vmatpush2.msra.mxu0 0.0
    %3470 = vmatprep.subr.mxu0 0.0
    %3471 = vmatpush2.msra.mxu0 0.0
    %3472 = vmatprep.subr.mxu0 0.0
    %3473 = vmatpush2.msra.mxu0 0.0
    %3474 = vmatprep.subr.mxu0 0.0
    %3475 = vmatpush2.msra.mxu0 0.0
    %3476 = vmatprep.subr.mxu0 0.0
    %3477 = vmatpush2.msra.mxu0 0.0
    %3478 = vmatprep.subr.mxu0 0.0
    %3479 = vmatpush2.msra.mxu0 0.0
    %3480 = vmatprep.subr.mxu0 0.0
    %3481 = vmatpush2.msra.mxu0 0.0
    %3482 = vmatprep.subr.mxu0 0.0
    %3483 = vmatpush2.msra.mxu0 0.0
    %3484 = vmatprep.subr.mxu0 0.0
    %3485 = vmatpush2.msra.mxu0 0.0
    %3486 = vmatprep.subr.mxu0 0.0
    %3487 = vmatpush2.msra.mxu0 0.0
    %3488 = vmatprep.subr.mxu0 0.0
    %3489 = vmatpush2.msra.mxu0 0.0
    %3490 = vmatprep.subr.mxu0 0.0
    %3491 = vmatpush2.msra.mxu0 0.0
    %3492 = vmatprep.mubr.f32.mxu0 0.0
    %3493 = vmatmul.mubr.f32.gmra.mxu0 %v3426
    %v3494 = vpop.f32.mrf.mxu0
    %v3495 = vadd.f32 0.0, %v3494
    %v3496 = vpop.f32.mrf.mxu0
    %3497 = vdwg.mxu0
    %3500 = vrot.lane.b32.xlu0 %v2751, 8
    %v3501 = vpop.permute.xlu0 %3500
    %3502 = vrot.lane.b32.xlu0 %v2827, 8
    %v3503 = vpop.permute.xlu0 %3502
    %3508 = vrot.lane.b32.xlu0 %v3085, 16
    %v3509 = vpop.permute.xlu0 %3508
    %3510 = vrot.lane.b32.xlu0 %v3161, 16
    %v3511 = vpop.permute.xlu0 %3510
    %3516 = vrot.lane.b32.xlu0 %v3419, 24
    %v3517 = vpop.permute.xlu0 %3516
    %3518 = vrot.lane.b32.xlu0 %v3495, 24
    %v3519 = vpop.permute.xlu0 %3518
    %v3522 = vsel %vm238, %v2417, %v3501
    %v3523 = vsel %vm238, %v2493, %v3503
    %v3524 = vsel %vm1606, %v3522, %v3509
    %v3525 = vsel %vm1606, %v3523, %v3511
    %v3526 = vsel %vm1609, %v3524, %v3517
    %v3527 = vsel %vm1609, %v3525, %v3519
    %v3528 = vld [vmem:[%s5 + $0x110] sm:$0xff]
    %v3529 = vld [vmem:[%s5 + $0x118] sm:$0xff]
    %v3530 = vld [vmem:[%s5 + $0x120] sm:$0xff]
    %v3531 = vld [vmem:[%s5 + $0x128] sm:$0xff]
    %v3532 = vld [vmem:[%s4 + $0x14] sm:$0x1]
    %v3533 = vlaneseq
    %v3534 = vshrl.u32 %v3533, 7
    %v3535 = vsub.s32 0, %v3534
    %v3536 = vrot.slane %v3532, %v3535
    %v3538 = vsel %vm63, %v3526, 0
    %v3541 = vsel %vm63, %v3527, 0
    %3543 = vmatprep.subr.mxu0 0.0
    %3544 = vmatpush1.msra.mxu0 0.0
    %3545 = vmatprep.subr.mxu0 0.0
    %3546 = vmatpush1.msra.mxu0 0.0
    %3547 = vmatprep.subr.mxu0 0.0
    %3548 = vmatpush1.msra.mxu0 0.0
    %3549 = vmatprep.subr.mxu0 0.0
    %3550 = vmatpush1.msra.mxu0 0.0
    %3551 = vmatprep.subr.mxu0 0.0
    %3552 = vmatpush1.msra.mxu0 0.0
    %3553 = vmatprep.subr.mxu0 0.0
    %3554 = vmatpush1.msra.mxu0 0.0
    %3555 = vmatprep.subr.mxu0 0.0
    %3556 = vmatpush1.msra.mxu0 0.0
    %3557 = vmatprep.subr.mxu0 0.0
    %3558 = vmatpush1.msra.mxu0 0.0
    %3559 = vmatprep.subr.mxu0 0.0
    %3560 = vmatpush1.msra.mxu0 0.0
    %3561 = vmatprep.subr.mxu0 0.0
    %3562 = vmatpush1.msra.mxu0 0.0
    %3563 = vmatprep.subr.mxu0 0.0
    %3564 = vmatpush1.msra.mxu0 0.0
    %3565 = vmatprep.subr.mxu0 0.0
    %3566 = vmatpush1.msra.mxu0 0.0
    %3567 = vmatprep.subr.mxu0 0.0
    %3568 = vmatpush1.msra.mxu0 %v3531
    %3569 = vmatprep.subr.mxu0 0.0
    %3570 = vmatpush1.msra.mxu0 %v3530
    %3571 = vmatprep.subr.mxu0 0.0
    %3572 = vmatpush1.msra.mxu0 %v3529
    %3573 = vmatprep.subr.mxu0 0.0
    %3574 = vmatpush1.msra.mxu0 %v3528
    %3575 = vmatprep.subr.mxu0 0.0
    %3576 = vmatpush2.msra.mxu0 0.0
    %3577 = vmatprep.subr.mxu0 0.0
    %3578 = vmatpush2.msra.mxu0 0.0
    %3579 = vmatprep.subr.mxu0 0.0
    %3580 = vmatpush2.msra.mxu0 0.0
    %3581 = vmatprep.subr.mxu0 0.0
    %3582 = vmatpush2.msra.mxu0 0.0
    %3583 = vmatprep.subr.mxu0 0.0
    %3584 = vmatpush2.msra.mxu0 0.0
    %3585 = vmatprep.subr.mxu0 0.0
    %3586 = vmatpush2.msra.mxu0 0.0
    %3587 = vmatprep.subr.mxu0 0.0
    %3588 = vmatpush2.msra.mxu0 0.0
    %3589 = vmatprep.subr.mxu0 0.0
    %3590 = vmatpush2.msra.mxu0 0.0
    %3591 = vmatprep.subr.mxu0 0.0
    %3592 = vmatpush2.msra.mxu0 0.0
    %3593 = vmatprep.subr.mxu0 0.0
    %3594 = vmatpush2.msra.mxu0 0.0
    %3595 = vmatprep.subr.mxu0 0.0
    %3596 = vmatpush2.msra.mxu0 0.0
    %3597 = vmatprep.subr.mxu0 0.0
    %3598 = vmatpush2.msra.mxu0 0.0
    %3599 = vmatprep.subr.mxu0 0.0
    %3600 = vmatpush2.msra.mxu0 0.0
    %3601 = vmatprep.subr.mxu0 0.0
    %3602 = vmatpush2.msra.mxu0 0.0
    %3603 = vmatprep.subr.mxu0 0.0
    %3604 = vmatpush2.msra.mxu0 0.0
    %3605 = vmatprep.subr.mxu0 0.0
    %3606 = vmatpush2.msra.mxu0 0.0
    %3607 = vmatprep.mubr.f32.mxu0 0.0
    %3608 = vmatmul.mubr.f32.gmra.mxu0 %v3538
    %v3609 = vpop.f32.mrf.mxu0
    %v3610 = vadd.f32 %v3536, %v3609
    %v3611 = vpop.f32.mrf.mxu0
    %3612 = vmatprep.mubr.f32.mxu0 0.0
    %3613 = vmatmul.mubr.f32.gmra.mxu0 %v3541
    %v3614 = vpop.f32.mrf.mxu0
    %v3615 = vadd.f32 %v3536, %v3614
    %v3616 = vpop.f32.mrf.mxu0
    %3617 = vdwg.mxu0
    %v3618 = vadd.f32 %v2032, %v3610
    %v3619 = vadd.f32 %v2033, %v3615
    %v3620 = vsel %vm63, %v3618, 0.0
    %3621 = vadd.xlane.f32.xlu0 %v3620
    %v3622 = vpop.xlane.xlu0 %3621
    %v3623 = vsel %vm63, %v3619, 0.0
    %3624 = vadd.xlane.f32.xlu0 %v3623
    %v3625 = vpop.xlane.xlu0 %3624
    %v3626 = vmul.f32 %v3622, %v70
    %v3627 = vmul.f32 %v3625, %v70
    %v3628 = vsub.f32 %v3618, %v3626
    %v3629 = vsub.f32 %v3619, %v3627
    %v3630 = vmul.f32 %v3628, %v3628
    %v3631 = vmul.f32 %v3629, %v3629
    %v3632 = vsel %vm63, %v3630, 0.0
    %3633 = vadd.xlane.f32.xlu0 %v3632
    %v3634 = vpop.xlane.xlu0 %3633
    %v3635 = vsel %vm63, %v3631, 0.0
    %3636 = vadd.xlane.f32.xlu0 %v3635
    %v3637 = vpop.xlane.xlu0 %3636
    %v3638 = vmul.f32 %v3634, %v70
    %v3639 = vmul.f32 %v3637, %v70
    %v3640 = vadd.f32 %v3638, 1e-05
    %v3641 = vadd.f32 %v3639, 1e-05
    %v3642 = vrsqrt.pop %v3640
    %v3643 = vrsqrt.pop %v3641
    %v3644 = vmul.f32 %v3628, %v3642
    %v3645 = vmul.f32 %v3629, %v3643
    %v3646 = vld [vmem:[%s4 + $0x15] sm:$0x1]
    %v3647 = vlaneseq
    %v3648 = vshrl.u32 %v3647, 7
    %v3649 = vsub.s32 0, %v3648
    %v3650 = vrot.slane %v3646, %v3649
    %v3651 = vmul.f32 %v3644, %v3650
    %v3652 = vmul.f32 %v3645, %v3650
    %v3653 = vld [vmem:[%s4 + $0x16] sm:$0x1]
    %v3654 = vlaneseq
    %v3655 = vshrl.u32 %v3654, 7
    %v3656 = vsub.s32 0, %v3655
    %v3657 = vrot.slane %v3653, %v3656
    %v3658 = vadd.f32 %v3651, %v3657
    %v3659 = vadd.f32 %v3652, %v3657
    %v3660 = vld [vmem:[%s5 + $0x130] sm:$0xff]
    %v3661 = vld [vmem:[%s5 + $0x138] sm:$0xff]
    %v3662 = vld [vmem:[%s5 + $0x140] sm:$0xff]
    %v3663 = vld [vmem:[%s5 + $0x148] sm:$0xff]
    %v3664 = vld [vmem:[%s4 + $0x17] sm:$0x1]
    %v3665 = vlaneseq
    %v3666 = vshrl.u32 %v3665, 7
    %v3667 = vsub.s32 0, %v3666
    %v3668 = vrot.slane %v3664, %v3667
    %v3670 = vsel %vm63, %v3658, 0
    %v3673 = vsel %vm63, %v3659, 0
    %3675 = vmatprep.subr.mxu0 0.0
    %3676 = vmatpush1.msra.mxu0 0.0
    %3677 = vmatprep.subr.mxu0 0.0
    %3678 = vmatpush1.msra.mxu0 0.0
    %3679 = vmatprep.subr.mxu0 0.0
    %3680 = vmatpush1.msra.mxu0 0.0
    %3681 = vmatprep.subr.mxu0 0.0
    %3682 = vmatpush1.msra.mxu0 0.0
    %3683 = vmatprep.subr.mxu0 0.0
    %3684 = vmatpush1.msra.mxu0 0.0
    %3685 = vmatprep.subr.mxu0 0.0
    %3686 = vmatpush1.msra.mxu0 0.0
    %3687 = vmatprep.subr.mxu0 0.0
    %3688 = vmatpush1.msra.mxu0 0.0
    %3689 = vmatprep.subr.mxu0 0.0
    %3690 = vmatpush1.msra.mxu0 0.0
    %3691 = vmatprep.subr.mxu0 0.0
    %3692 = vmatpush1.msra.mxu0 0.0
    %3693 = vmatprep.subr.mxu0 0.0
    %3694 = vmatpush1.msra.mxu0 0.0
    %3695 = vmatprep.subr.mxu0 0.0
    %3696 = vmatpush1.msra.mxu0 0.0
    %3697 = vmatprep.subr.mxu0 0.0
    %3698 = vmatpush1.msra.mxu0 0.0
    %3699 = vmatprep.subr.mxu0 0.0
    %3700 = vmatpush1.msra.mxu0 %v3663
    %3701 = vmatprep.subr.mxu0 0.0
    %3702 = vmatpush1.msra.mxu0 %v3662
    %3703 = vmatprep.subr.mxu0 0.0
    %3704 = vmatpush1.msra.mxu0 %v3661
    %3705 = vmatprep.subr.mxu0 0.0
    %3706 = vmatpush1.msra.mxu0 %v3660
    %3707 = vmatprep.subr.mxu0 0.0
    %3708 = vmatpush2.msra.mxu0 0.0
    %3709 = vmatprep.subr.mxu0 0.0
    %3710 = vmatpush2.msra.mxu0 0.0
    %3711 = vmatprep.subr.mxu0 0.0
    %3712 = vmatpush2.msra.mxu0 0.0
    %3713 = vmatprep.subr.mxu0 0.0
    %3714 = vmatpush2.msra.mxu0 0.0
    %3715 = vmatprep.subr.mxu0 0.0
    %3716 = vmatpush2.msra.mxu0 0.0
    %3717 = vmatprep.subr.mxu0 0.0
    %3718 = vmatpush2.msra.mxu0 0.0
    %3719 = vmatprep.subr.mxu0 0.0
    %3720 = vmatpush2.msra.mxu0 0.0
    %3721 = vmatprep.subr.mxu0 0.0
    %3722 = vmatpush2.msra.mxu0 0.0
    %3723 = vmatprep.subr.mxu0 0.0
    %3724 = vmatpush2.msra.mxu0 0.0
    %3725 = vmatprep.subr.mxu0 0.0
    %3726 = vmatpush2.msra.mxu0 0.0
    %3727 = vmatprep.subr.mxu0 0.0
    %3728 = vmatpush2.msra.mxu0 0.0
    %3729 = vmatprep.subr.mxu0 0.0
    %3730 = vmatpush2.msra.mxu0 0.0
    %3731 = vmatprep.subr.mxu0 0.0
    %3732 = vmatpush2.msra.mxu0 0.0
    %3733 = vmatprep.subr.mxu0 0.0
    %3734 = vmatpush2.msra.mxu0 0.0
    %3735 = vmatprep.subr.mxu0 0.0
    %3736 = vmatpush2.msra.mxu0 0.0
    %3737 = vmatprep.subr.mxu0 0.0
    %3738 = vmatpush2.msra.mxu0 0.0
    %3739 = vmatprep.mubr.f32.mxu0 0.0
    %3740 = vmatmul.mubr.f32.gmra.mxu0 %v3670
    %v3741 = vpop.f32.mrf.mxu0
    %v3742 = vadd.f32 %v3668, %v3741
    %v3743 = vpop.f32.mrf.mxu0
    %3744 = vmatprep.mubr.f32.mxu0 0.0
    %3745 = vmatmul.mubr.f32.gmra.mxu0 %v3673
    %v3746 = vpop.f32.mrf.mxu0
    %v3747 = vadd.f32 %v3668, %v3746
    %v3748 = vpop.f32.mrf.mxu0
    %3749 = vdwg.mxu0
    %v3750 = vld [vmem:[%s5 + $0x150] sm:$0xff]
    %v3751 = vld [vmem:[%s5 + $0x158] sm:$0xff]
    %v3752 = vld [vmem:[%s5 + $0x160] sm:$0xff]
    %v3753 = vld [vmem:[%s5 + $0x168] sm:$0xff]
    %v3754 = vld [vmem:[%s4 + $0x18] sm:$0x1]
    %v3755 = vlaneseq
    %v3756 = vshrl.u32 %v3755, 7
    %v3757 = vsub.s32 0, %v3756
    %v3758 = vrot.slane %v3754, %v3757
    %v3760 = vsel %vm63, %v1987, 0
    %v3763 = vsel %vm63, %v1988, 0
    %3765 = vmatprep.subr.mxu0 0.0
    %3766 = vmatpush1.msra.mxu0 0.0
    %3767 = vmatprep.subr.mxu0 0.0
    %3768 = vmatpush1.msra.mxu0 0.0
    %3769 = vmatprep.subr.mxu0 0.0
    %3770 = vmatpush1.msra.mxu0 0.0
    %3771 = vmatprep.subr.mxu0 0.0
    %3772 = vmatpush1.msra.mxu0 0.0
    %3773 = vmatprep.subr.mxu0 0.0
    %3774 = vmatpush1.msra.mxu0 0.0
    %3775 = vmatprep.subr.mxu0 0.0
    %3776 = vmatpush1.msra.mxu0 0.0
    %3777 = vmatprep.subr.mxu0 0.0
    %3778 = vmatpush1.msra.mxu0 0.0
    %3779 = vmatprep.subr.mxu0 0.0
    %3780 = vmatpush1.msra.mxu0 0.0
    %3781 = vmatprep.subr.mxu0 0.0
    %3782 = vmatpush1.msra.mxu0 0.0
    %3783 = vmatprep.subr.mxu0 0.0
    %3784 = vmatpush1.msra.mxu0 0.0
    %3785 = vmatprep.subr.mxu0 0.0
    %3786 = vmatpush1.msra.mxu0 0.0
    %3787 = vmatprep.subr.mxu0 0.0
    %3788 = vmatpush1.msra.mxu0 0.0
    %3789 = vmatprep.subr.mxu0 0.0
    %3790 = vmatpush1.msra.mxu0 %v3753
    %3791 = vmatprep.subr.mxu0 0.0
    %3792 = vmatpush1.msra.mxu0 %v3752
    %3793 = vmatprep.subr.mxu0 0.0
    %3794 = vmatpush1.msra.mxu0 %v3751
    %3795 = vmatprep.subr.mxu0 0.0
    %3796 = vmatpush1.msra.mxu0 %v3750
    %3797 = vmatprep.subr.mxu0 0.0
    %3798 = vmatpush2.msra.mxu0 0.0
    %3799 = vmatprep.subr.mxu0 0.0
    %3800 = vmatpush2.msra.mxu0 0.0
    %3801 = vmatprep.subr.mxu0 0.0
    %3802 = vmatpush2.msra.mxu0 0.0
    %3803 = vmatprep.subr.mxu0 0.0
    %3804 = vmatpush2.msra.mxu0 0.0
    %3805 = vmatprep.subr.mxu0 0.0
    %3806 = vmatpush2.msra.mxu0 0.0
    %3807 = vmatprep.subr.mxu0 0.0
    %3808 = vmatpush2.msra.mxu0 0.0
    %3809 = vmatprep.subr.mxu0 0.0
    %3810 = vmatpush2.msra.mxu0 0.0
    %3811 = vmatprep.subr.mxu0 0.0
    %3812 = vmatpush2.msra.mxu0 0.0
    %3813 = vmatprep.subr.mxu0 0.0
    %3814 = vmatpush2.msra.mxu0 0.0
    %3815 = vmatprep.subr.mxu0 0.0
    %3816 = vmatpush2.msra.mxu0 0.0
    %3817 = vmatprep.subr.mxu0 0.0
    %3818 = vmatpush2.msra.mxu0 0.0
    %3819 = vmatprep.subr.mxu0 0.0
    %3820 = vmatpush2.msra.mxu0 0.0
    %3821 = vmatprep.subr.mxu0 0.0
    %3822 = vmatpush2.msra.mxu0 0.0
    %3823 = vmatprep.subr.mxu0 0.0
    %3824 = vmatpush2.msra.mxu0 0.0
    %3825 = vmatprep.subr.mxu0 0.0
    %3826 = vmatpush2.msra.mxu0 0.0
    %3827 = vmatprep.subr.mxu0 0.0
    %3828 = vmatpush2.msra.mxu0 0.0
    %3829 = vmatprep.mubr.f32.mxu0 0.0
    %3830 = vmatmul.mubr.f32.gmra.mxu0 %v3760
    %v3831 = vpop.f32.mrf.mxu0
    %v3832 = vadd.f32 %v3758, %v3831
    %v3833 = vpop.f32.mrf.mxu0
    %3834 = vmatprep.mubr.f32.mxu0 0.0
    %3835 = vmatmul.mubr.f32.gmra.mxu0 %v3763
    %v3836 = vpop.f32.mrf.mxu0
    %v3837 = vadd.f32 %v3758, %v3836
    %v3838 = vpop.f32.mrf.mxu0
    %3839 = vdwg.mxu0
    %v3841 = vsel %vm238, %v3742, 0
    %v3844 = vsel %vm238, %v3832, 0
    %3846 = vmatprep.subr.mxu0 0.0
    %3847 = vmatpush1.xpose.msra.mxu0 0.0
    %3848 = vmatprep.subr.mxu0 0.0
    %3849 = vmatpush1.xpose.msra.mxu0 0.0
    %3850 = vmatprep.subr.mxu0 0.0
    %3851 = vmatpush1.xpose.msra.mxu0 0.0
    %3852 = vmatprep.subr.mxu0 0.0
    %3853 = vmatpush1.xpose.msra.mxu0 0.0
    %3854 = vmatprep.subr.mxu0 0.0
    %3855 = vmatpush1.xpose.msra.mxu0 0.0
    %3856 = vmatprep.subr.mxu0 0.0
    %3857 = vmatpush1.xpose.msra.mxu0 0.0
    %3858 = vmatprep.subr.mxu0 0.0
    %3859 = vmatpush1.xpose.msra.mxu0 0.0
    %3860 = vmatprep.subr.mxu0 0.0
    %3861 = vmatpush1.xpose.msra.mxu0 0.0
    %3862 = vmatprep.subr.mxu0 0.0
    %3863 = vmatpush1.xpose.msra.mxu0 0.0
    %3864 = vmatprep.subr.mxu0 0.0
    %3865 = vmatpush1.xpose.msra.mxu0 0.0
    %3866 = vmatprep.subr.mxu0 0.0
    %3867 = vmatpush1.xpose.msra.mxu0 0.0
    %3868 = vmatprep.subr.mxu0 0.0
    %3869 = vmatpush1.xpose.msra.mxu0 0.0
    %3870 = vmatprep.subr.mxu0 0.0
    %3871 = vmatpush1.xpose.msra.mxu0 0.0
    %3872 = vmatprep.subr.mxu0 0.0
    %3873 = vmatpush1.xpose.msra.mxu0 0.0
    %3874 = vmatprep.subr.mxu0 0.0
    %3875 = vmatpush1.xpose.msra.mxu0 0.0
    %3876 = vmatprep.subr.mxu0 0.0
    %3877 = vmatpush1.xpose.msra.mxu0 %v3844
    %3878 = vmatprep.subr.mxu0 0.0
    %3879 = vmatpush2.xpose.msra.mxu0 0.0
    %3880 = vmatprep.subr.mxu0 0.0
    %3881 = vmatpush2.xpose.msra.mxu0 0.0
    %3882 = vmatprep.subr.mxu0 0.0
    %3883 = vmatpush2.xpose.msra.mxu0 0.0
    %3884 = vmatprep.subr.mxu0 0.0
    %3885 = vmatpush2.xpose.msra.mxu0 0.0
    %3886 = vmatprep.subr.mxu0 0.0
    %3887 = vmatpush2.xpose.msra.mxu0 0.0
    %3888 = vmatprep.subr.mxu0 0.0
    %3889 = vmatpush2.xpose.msra.mxu0 0.0
    %3890 = vmatprep.subr.mxu0 0.0
    %3891 = vmatpush2.xpose.msra.mxu0 0.0
    %3892 = vmatprep.subr.mxu0 0.0
    %3893 = vmatpush2.xpose.msra.mxu0 0.0
    %3894 = vmatprep.subr.mxu0 0.0
    %3895 = vmatpush2.xpose.msra.mxu0 0.0
    %3896 = vmatprep.subr.mxu0 0.0
    %3897 = vmatpush2.xpose.msra.mxu0 0.0
    %3898 = vmatprep.subr.mxu0 0.0
    %3899 = vmatpush2.xpose.msra.mxu0 0.0
    %3900 = vmatprep.subr.mxu0 0.0
    %3901 = vmatpush2.xpose.msra.mxu0 0.0
    %3902 = vmatprep.subr.mxu0 0.0
    %3903 = vmatpush2.xpose.msra.mxu0 0.0
    %3904 = vmatprep.subr.mxu0 0.0
    %3905 = vmatpush2.xpose.msra.mxu0 0.0
    %3906 = vmatprep.subr.mxu0 0.0
    %3907 = vmatpush2.xpose.msra.mxu0 0.0
    %3908 = vmatprep.subr.mxu0 0.0
    %3909 = vmatpush2.xpose.msra.mxu0 0.0
    %3910 = vmatprep.mubr.f32.mxu0 0.0
    %3911 = vmatmul.mubr.f32.gmra.mxu0 %v3841
    %v3912 = vpop.f32.mrf.mxu0
    %v3913 = vadd.f32 0.0, %v3912
    %v3914 = vpop.f32.mrf.mxu0
    %3915 = vdwg.mxu0
    %v3917 = vsel %vm238, %v3747, 0
    %v3920 = vsel %vm238, %v3837, 0
    %3922 = vmatprep.subr.mxu0 0.0
    %3923 = vmatpush1.xpose.msra.mxu0 0.0
    %3924 = vmatprep.subr.mxu0 0.0
    %3925 = vmatpush1.xpose.msra.mxu0 0.0
    %3926 = vmatprep.subr.mxu0 0.0
    %3927 = vmatpush1.xpose.msra.mxu0 0.0
    %3928 = vmatprep.subr.mxu0 0.0
    %3929 = vmatpush1.xpose.msra.mxu0 0.0
    %3930 = vmatprep.subr.mxu0 0.0
    %3931 = vmatpush1.xpose.msra.mxu0 0.0
    %3932 = vmatprep.subr.mxu0 0.0
    %3933 = vmatpush1.xpose.msra.mxu0 0.0
    %3934 = vmatprep.subr.mxu0 0.0
    %3935 = vmatpush1.xpose.msra.mxu0 0.0
    %3936 = vmatprep.subr.mxu0 0.0
    %3937 = vmatpush1.xpose.msra.mxu0 0.0
    %3938 = vmatprep.subr.mxu0 0.0
    %3939 = vmatpush1.xpose.msra.mxu0 0.0
    %3940 = vmatprep.subr.mxu0 0.0
    %3941 = vmatpush1.xpose.msra.mxu0 0.0
    %3942 = vmatprep.subr.mxu0 0.0
    %3943 = vmatpush1.xpose.msra.mxu0 0.0
    %3944 = vmatprep.subr.mxu0 0.0
    %3945 = vmatpush1.xpose.msra.mxu0 0.0
    %3946 = vmatprep.subr.mxu0 0.0
    %3947 = vmatpush1.xpose.msra.mxu0 0.0
    %3948 = vmatprep.subr.mxu0 0.0
    %3949 = vmatpush1.xpose.msra.mxu0 0.0
    %3950 = vmatprep.subr.mxu0 0.0
    %3951 = vmatpush1.xpose.msra.mxu0 0.0
    %3952 = vmatprep.subr.mxu0 0.0
    %3953 = vmatpush1.xpose.msra.mxu0 %v3920
    %3954 = vmatprep.subr.mxu0 0.0
    %3955 = vmatpush2.xpose.msra.mxu0 0.0
    %3956 = vmatprep.subr.mxu0 0.0
    %3957 = vmatpush2.xpose.msra.mxu0 0.0
    %3958 = vmatprep.subr.mxu0 0.0
    %3959 = vmatpush2.xpose.msra.mxu0 0.0
    %3960 = vmatprep.subr.mxu0 0.0
    %3961 = vmatpush2.xpose.msra.mxu0 0.0
    %3962 = vmatprep.subr.mxu0 0.0
    %3963 = vmatpush2.xpose.msra.mxu0 0.0
    %3964 = vmatprep.subr.mxu0 0.0
    %3965 = vmatpush2.xpose.msra.mxu0 0.0
    %3966 = vmatprep.subr.mxu0 0.0
    %3967 = vmatpush2.xpose.msra.mxu0 0.0
    %3968 = vmatprep.subr.mxu0 0.0
    %3969 = vmatpush2.xpose.msra.mxu0 0.0
    %3970 = vmatprep.subr.mxu0 0.0
    %3971 = vmatpush2.xpose.msra.mxu0 0.0
    %3972 = vmatprep.subr.mxu0 0.0
    %3973 = vmatpush2.xpose.msra.mxu0 0.0
    %3974 = vmatprep.subr.mxu0 0.0
    %3975 = vmatpush2.xpose.msra.mxu0 0.0
    %3976 = vmatprep.subr.mxu0 0.0
    %3977 = vmatpush2.xpose.msra.mxu0 0.0
    %3978 = vmatprep.subr.mxu0 0.0
    %3979 = vmatpush2.xpose.msra.mxu0 0.0
    %3980 = vmatprep.subr.mxu0 0.0
    %3981 = vmatpush2.xpose.msra.mxu0 0.0
    %3982 = vmatprep.subr.mxu0 0.0
    %3983 = vmatpush2.xpose.msra.mxu0 0.0
    %3984 = vmatprep.subr.mxu0 0.0
    %3985 = vmatpush2.xpose.msra.mxu0 0.0
    %3986 = vmatprep.mubr.f32.mxu0 0.0
    %3987 = vmatmul.mubr.f32.gmra.mxu0 %v3917
    %v3988 = vpop.f32.mrf.mxu0
    %v3989 = vadd.f32 0.0, %v3988
    %v3990 = vpop.f32.mrf.mxu0
    %3991 = vdwg.mxu0
    %v3992 = vmul.f32 %v3913, 0.35355338
    %v3993 = vmul.f32 %v3989, 0.35355338
    %v3994 = vadd.f32 %v3992, %v395
    %v3995 = vadd.f32 %v3993, %v399
    %v3996 = vsel %vm238, %v3994, -inf
    %3997 = vmax.xlane.f32.xlu0 %v3996
    %v3998 = vpop.xlane.xlu0 %3997
    %v3999 = vsel %vm238, %v3995, -inf
    %4000 = vmax.xlane.f32.xlu0 %v3999
    %v4001 = vpop.xlane.xlu0 %4000
    %v4002 = vsub.f32 %v3994, %v3998
    %v4003 = vsub.f32 %v3995, %v4001
    %v4004 = vmul.f32 %v4002, 1.442695
    %v4005 = vpow.pop %v4004
    %v4006 = vmul.f32 %v4003, 1.442695
    %v4007 = vpow.pop %v4006
    %v4008 = vsel %vm238, %v4005, 0.0
    %4009 = vadd.xlane.f32.xlu0 %v4008
    %v4010 = vpop.xlane.xlu0 %4009
    %v4011 = vsel %vm238, %v4007, 0.0
    %4012 = vadd.xlane.f32.xlu0 %v4011
    %v4013 = vpop.xlane.xlu0 %4012
    %v4014 = vrcp.pop %v4010
    %v4015 = vrcp.pop %v4013
    %v4016 = vmul.f32 %v4005, %v4014
    %v4017 = vmul.f32 %v4007, %v4015
    %4018 = vrot.lane.b32.xlu0 %v3832, 96
    %v4019 = vpop.permute.xlu0 %4018
    %v4022 = vsel %vm238, %v4016, 0
    %4024 = vmatprep.subr.mxu0 0.0
    %4025 = vmatpush1.msra.mxu0 0.0
    %4026 = vmatprep.subr.mxu0 0.0
    %4027 = vmatpush1.msra.mxu0 0.0
    %4028 = vmatprep.subr.mxu0 0.0
    %4029 = vmatpush1.msra.mxu0 0.0
    %4030 = vmatprep.subr.mxu0 0.0
    %4031 = vmatpush1.msra.mxu0 0.0
    %4032 = vmatprep.subr.mxu0 0.0
    %4033 = vmatpush1.msra.mxu0 0.0
    %4034 = vmatprep.subr.mxu0 0.0
    %4035 = vmatpush1.msra.mxu0 0.0
    %4036 = vmatprep.subr.mxu0 0.0
    %4037 = vmatpush1.msra.mxu0 0.0
    %4038 = vmatprep.subr.mxu0 0.0
    %4039 = vmatpush1.msra.mxu0 0.0
    %4040 = vmatprep.subr.mxu0 0.0
    %4041 = vmatpush1.msra.mxu0 0.0
    %4042 = vmatprep.subr.mxu0 0.0
    %4043 = vmatpush1.msra.mxu0 0.0
    %4044 = vmatprep.subr.mxu0 0.0
    %4045 = vmatpush1.msra.mxu0 0.0
    %4046 = vmatprep.subr.mxu0 0.0
    %4047 = vmatpush1.msra.mxu0 0.0
    %4048 = vmatprep.subr.mxu0 0.0
    %4049 = vmatpush1.msra.mxu0 0.0
    %4050 = vmatprep.subr.mxu0 0.0
    %4051 = vmatpush1.msra.mxu0 0.0
    %4052 = vmatprep.subr.mxu0 0.0
    %4053 = vmatpush1.msra.mxu0 0.0
    %4054 = vmatprep.subr.mxu0 0.0
    %4055 = vmatpush1.msra.mxu0 %v4019
    %4056 = vmatprep.subr.mxu0 0.0
    %4057 = vmatpush2.msra.mxu0 0.0
    %4058 = vmatprep.subr.mxu0 0.0
    %4059 = vmatpush2.msra.mxu0 0.0
    %4060 = vmatprep.subr.mxu0 0.0
    %4061 = vmatpush2.msra.mxu0 0.0
    %4062 = vmatprep.subr.mxu0 0.0
    %4063 = vmatpush2.msra.mxu0 0.0
    %4064 = vmatprep.subr.mxu0 0.0
    %4065 = vmatpush2.msra.mxu0 0.0
    %4066 = vmatprep.subr.mxu0 0.0
    %4067 = vmatpush2.msra.mxu0 0.0
    %4068 = vmatprep.subr.mxu0 0.0
    %4069 = vmatpush2.msra.mxu0 0.0
    %4070 = vmatprep.subr.mxu0 0.0
    %4071 = vmatpush2.msra.mxu0 0.0
    %4072 = vmatprep.subr.mxu0 0.0
    %4073 = vmatpush2.msra.mxu0 0.0
    %4074 = vmatprep.subr.mxu0 0.0
    %4075 = vmatpush2.msra.mxu0 0.0
    %4076 = vmatprep.subr.mxu0 0.0
    %4077 = vmatpush2.msra.mxu0 0.0
    %4078 = vmatprep.subr.mxu0 0.0
    %4079 = vmatpush2.msra.mxu0 0.0
    %4080 = vmatprep.subr.mxu0 0.0
    %4081 = vmatpush2.msra.mxu0 0.0
    %4082 = vmatprep.subr.mxu0 0.0
    %4083 = vmatpush2.msra.mxu0 0.0
    %4084 = vmatprep.subr.mxu0 0.0
    %4085 = vmatpush2.msra.mxu0 0.0
    %4086 = vmatprep.subr.mxu0 0.0
    %4087 = vmatpush2.msra.mxu0 0.0
    %4088 = vmatprep.mubr.f32.mxu0 0.0
    %4089 = vmatmul.mubr.f32.gmra.mxu0 %v4022
    %v4090 = vpop.f32.mrf.mxu0
    %v4091 = vadd.f32 0.0, %v4090
    %v4092 = vpop.f32.mrf.mxu0
    %4093 = vdwg.mxu0
    %4094 = vrot.lane.b32.xlu0 %v3837, 96
    %v4095 = vpop.permute.xlu0 %4094
    %v4098 = vsel %vm238, %v4017, 0
    %4100 = vmatprep.subr.mxu0 0.0
    %4101 = vmatpush1.msra.mxu0 0.0
    %4102 = vmatprep.subr.mxu0 0.0
    %4103 = vmatpush1.msra.mxu0 0.0
    %4104 = vmatprep.subr.mxu0 0.0
    %4105 = vmatpush1.msra.mxu0 0.0
    %4106 = vmatprep.subr.mxu0 0.0
    %4107 = vmatpush1.msra.mxu0 0.0
    %4108 = vmatprep.subr.mxu0 0.0
    %4109 = vmatpush1.msra.mxu0 0.0
    %4110 = vmatprep.subr.mxu0 0.0
    %4111 = vmatpush1.msra.mxu0 0.0
    %4112 = vmatprep.subr.mxu0 0.0
    %4113 = vmatpush1.msra.mxu0 0.0
    %4114 = vmatprep.subr.mxu0 0.0
    %4115 = vmatpush1.msra.mxu0 0.0
    %4116 = vmatprep.subr.mxu0 0.0
    %4117 = vmatpush1.msra.mxu0 0.0
    %4118 = vmatprep.subr.mxu0 0.0
    %4119 = vmatpush1.msra.mxu0 0.0
    %4120 = vmatprep.subr.mxu0 0.0
    %4121 = vmatpush1.msra.mxu0 0.0
    %4122 = vmatprep.subr.mxu0 0.0
    %4123 = vmatpush1.msra.mxu0 0.0
    %4124 = vmatprep.subr.mxu0 0.0
    %4125 = vmatpush1.msra.mxu0 0.0
    %4126 = vmatprep.subr.mxu0 0.0
    %4127 = vmatpush1.msra.mxu0 0.0
    %4128 = vmatprep.subr.mxu0 0.0
    %4129 = vmatpush1.msra.mxu0 0.0
    %4130 = vmatprep.subr.mxu0 0.0
    %4131 = vmatpush1.msra.mxu0 %v4095
    %4132 = vmatprep.subr.mxu0 0.0
    %4133 = vmatpush2.msra.mxu0 0.0
    %4134 = vmatprep.subr.mxu0 0.0
    %4135 = vmatpush2.msra.mxu0 0.0
    %4136 = vmatprep.subr.mxu0 0.0
    %4137 = vmatpush2.msra.mxu0 0.0
    %4138 = vmatprep.subr.mxu0 0.0
    %4139 = vmatpush2.msra.mxu0 0.0
    %4140 = vmatprep.subr.mxu0 0.0
    %4141 = vmatpush2.msra.mxu0 0.0
    %4142 = vmatprep.subr.mxu0 0.0
    %4143 = vmatpush2.msra.mxu0 0.0
    %4144 = vmatprep.subr.mxu0 0.0
    %4145 = vmatpush2.msra.mxu0 0.0
    %4146 = vmatprep.subr.mxu0 0.0
    %4147 = vmatpush2.msra.mxu0 0.0
    %4148 = vmatprep.subr.mxu0 0.0
    %4149 = vmatpush2.msra.mxu0 0.0
    %4150 = vmatprep.subr.mxu0 0.0
    %4151 = vmatpush2.msra.mxu0 0.0
    %4152 = vmatprep.subr.mxu0 0.0
    %4153 = vmatpush2.msra.mxu0 0.0
    %4154 = vmatprep.subr.mxu0 0.0
    %4155 = vmatpush2.msra.mxu0 0.0
    %4156 = vmatprep.subr.mxu0 0.0
    %4157 = vmatpush2.msra.mxu0 0.0
    %4158 = vmatprep.subr.mxu0 0.0
    %4159 = vmatpush2.msra.mxu0 0.0
    %4160 = vmatprep.subr.mxu0 0.0
    %4161 = vmatpush2.msra.mxu0 0.0
    %4162 = vmatprep.subr.mxu0 0.0
    %4163 = vmatpush2.msra.mxu0 0.0
    %4164 = vmatprep.mubr.f32.mxu0 0.0
    %4165 = vmatmul.mubr.f32.gmra.mxu0 %v4098
    %v4166 = vpop.f32.mrf.mxu0
    %v4167 = vadd.f32 0.0, %v4166
    %v4168 = vpop.f32.mrf.mxu0
    %4169 = vdwg.mxu0
    %4170 = vrot.lane.b32.xlu0 %v3742, 120
    %v4171 = vpop.permute.xlu0 %4170
    %4172 = vrot.lane.b32.xlu0 %v3832, 120
    %v4173 = vpop.permute.xlu0 %4172
    %v4174 = vsel %vm238, %v4171, 0
    %v4176 = vsel %vm238, %v4173, 0
    %4178 = vmatprep.subr.mxu0 0.0
    %4179 = vmatpush1.xpose.msra.mxu0 0.0
    %4180 = vmatprep.subr.mxu0 0.0
    %4181 = vmatpush1.xpose.msra.mxu0 0.0
    %4182 = vmatprep.subr.mxu0 0.0
    %4183 = vmatpush1.xpose.msra.mxu0 0.0
    %4184 = vmatprep.subr.mxu0 0.0
    %4185 = vmatpush1.xpose.msra.mxu0 0.0
    %4186 = vmatprep.subr.mxu0 0.0
    %4187 = vmatpush1.xpose.msra.mxu0 0.0
    %4188 = vmatprep.subr.mxu0 0.0
    %4189 = vmatpush1.xpose.msra.mxu0 0.0
    %4190 = vmatprep.subr.mxu0 0.0
    %4191 = vmatpush1.xpose.msra.mxu0 0.0
    %4192 = vmatprep.subr.mxu0 0.0
    %4193 = vmatpush1.xpose.msra.mxu0 0.0
    %4194 = vmatprep.subr.mxu0 0.0
    %4195 = vmatpush1.xpose.msra.mxu0 0.0
    %4196 = vmatprep.subr.mxu0 0.0
    %4197 = vmatpush1.xpose.msra.mxu0 0.0
    %4198 = vmatprep.subr.mxu0 0.0
    %4199 = vmatpush1.xpose.msra.mxu0 0.0
    %4200 = vmatprep.subr.mxu0 0.0
    %4201 = vmatpush1.xpose.msra.mxu0 0.0
    %4202 = vmatprep.subr.mxu0 0.0
    %4203 = vmatpush1.xpose.msra.mxu0 0.0
    %4204 = vmatprep.subr.mxu0 0.0
    %4205 = vmatpush1.xpose.msra.mxu0 0.0
    %4206 = vmatprep.subr.mxu0 0.0
    %4207 = vmatpush1.xpose.msra.mxu0 0.0
    %4208 = vmatprep.subr.mxu0 0.0
    %4209 = vmatpush1.xpose.msra.mxu0 %v4176
    %4210 = vmatprep.subr.mxu0 0.0
    %4211 = vmatpush2.xpose.msra.mxu0 0.0
    %4212 = vmatprep.subr.mxu0 0.0
    %4213 = vmatpush2.xpose.msra.mxu0 0.0
    %4214 = vmatprep.subr.mxu0 0.0
    %4215 = vmatpush2.xpose.msra.mxu0 0.0
    %4216 = vmatprep.subr.mxu0 0.0
    %4217 = vmatpush2.xpose.msra.mxu0 0.0
    %4218 = vmatprep.subr.mxu0 0.0
    %4219 = vmatpush2.xpose.msra.mxu0 0.0
    %4220 = vmatprep.subr.mxu0 0.0
    %4221 = vmatpush2.xpose.msra.mxu0 0.0
    %4222 = vmatprep.subr.mxu0 0.0
    %4223 = vmatpush2.xpose.msra.mxu0 0.0
    %4224 = vmatprep.subr.mxu0 0.0
    %4225 = vmatpush2.xpose.msra.mxu0 0.0
    %4226 = vmatprep.subr.mxu0 0.0
    %4227 = vmatpush2.xpose.msra.mxu0 0.0
    %4228 = vmatprep.subr.mxu0 0.0
    %4229 = vmatpush2.xpose.msra.mxu0 0.0
    %4230 = vmatprep.subr.mxu0 0.0
    %4231 = vmatpush2.xpose.msra.mxu0 0.0
    %4232 = vmatprep.subr.mxu0 0.0
    %4233 = vmatpush2.xpose.msra.mxu0 0.0
    %4234 = vmatprep.subr.mxu0 0.0
    %4235 = vmatpush2.xpose.msra.mxu0 0.0
    %4236 = vmatprep.subr.mxu0 0.0
    %4237 = vmatpush2.xpose.msra.mxu0 0.0
    %4238 = vmatprep.subr.mxu0 0.0
    %4239 = vmatpush2.xpose.msra.mxu0 0.0
    %4240 = vmatprep.subr.mxu0 0.0
    %4241 = vmatpush2.xpose.msra.mxu0 0.0
    %4242 = vmatprep.mubr.f32.mxu0 0.0
    %4243 = vmatmul.mubr.f32.gmra.mxu0 %v4174
    %v4244 = vpop.f32.mrf.mxu0
    %v4245 = vadd.f32 0.0, %v4244
    %v4246 = vpop.f32.mrf.mxu0
    %4247 = vdwg.mxu0
    %4248 = vrot.lane.b32.xlu0 %v3747, 120
    %v4249 = vpop.permute.xlu0 %4248
    %4250 = vrot.lane.b32.xlu0 %v3837, 120
    %v4251 = vpop.permute.xlu0 %4250
    %v4252 = vsel %vm238, %v4249, 0
    %v4254 = vsel %vm238, %v4251, 0
    %4256 = vmatprep.subr.mxu0 0.0
    %4257 = vmatpush1.xpose.msra.mxu0 0.0
    %4258 = vmatprep.subr.mxu0 0.0
    %4259 = vmatpush1.xpose.msra.mxu0 0.0
    %4260 = vmatprep.subr.mxu0 0.0
    %4261 = vmatpush1.xpose.msra.mxu0 0.0
    %4262 = vmatprep.subr.mxu0 0.0
    %4263 = vmatpush1.xpose.msra.mxu0 0.0
    %4264 = vmatprep.subr.mxu0 0.0
    %4265 = vmatpush1.xpose.msra.mxu0 0.0
    %4266 = vmatprep.subr.mxu0 0.0
    %4267 = vmatpush1.xpose.msra.mxu0 0.0
    %4268 = vmatprep.subr.mxu0 0.0
    %4269 = vmatpush1.xpose.msra.mxu0 0.0
    %4270 = vmatprep.subr.mxu0 0.0
    %4271 = vmatpush1.xpose.msra.mxu0 0.0
    %4272 = vmatprep.subr.mxu0 0.0
    %4273 = vmatpush1.xpose.msra.mxu0 0.0
    %4274 = vmatprep.subr.mxu0 0.0
    %4275 = vmatpush1.xpose.msra.mxu0 0.0
    %4276 = vmatprep.subr.mxu0 0.0
    %4277 = vmatpush1.xpose.msra.mxu0 0.0
    %4278 = vmatprep.subr.mxu0 0.0
    %4279 = vmatpush1.xpose.msra.mxu0 0.0
    %4280 = vmatprep.subr.mxu0 0.0
    %4281 = vmatpush1.xpose.msra.mxu0 0.0
    %4282 = vmatprep.subr.mxu0 0.0
    %4283 = vmatpush1.xpose.msra.mxu0 0.0
    %4284 = vmatprep.subr.mxu0 0.0
    %4285 = vmatpush1.xpose.msra.mxu0 0.0
    %4286 = vmatprep.subr.mxu0 0.0
    %4287 = vmatpush1.xpose.msra.mxu0 %v4254
    %4288 = vmatprep.subr.mxu0 0.0
    %4289 = vmatpush2.xpose.msra.mxu0 0.0
    %4290 = vmatprep.subr.mxu0 0.0
    %4291 = vmatpush2.xpose.msra.mxu0 0.0
    %4292 = vmatprep.subr.mxu0 0.0
    %4293 = vmatpush2.xpose.msra.mxu0 0.0
    %4294 = vmatprep.subr.mxu0 0.0
    %4295 = vmatpush2.xpose.msra.mxu0 0.0
    %4296 = vmatprep.subr.mxu0 0.0
    %4297 = vmatpush2.xpose.msra.mxu0 0.0
    %4298 = vmatprep.subr.mxu0 0.0
    %4299 = vmatpush2.xpose.msra.mxu0 0.0
    %4300 = vmatprep.subr.mxu0 0.0
    %4301 = vmatpush2.xpose.msra.mxu0 0.0
    %4302 = vmatprep.subr.mxu0 0.0
    %4303 = vmatpush2.xpose.msra.mxu0 0.0
    %4304 = vmatprep.subr.mxu0 0.0
    %4305 = vmatpush2.xpose.msra.mxu0 0.0
    %4306 = vmatprep.subr.mxu0 0.0
    %4307 = vmatpush2.xpose.msra.mxu0 0.0
    %4308 = vmatprep.subr.mxu0 0.0
    %4309 = vmatpush2.xpose.msra.mxu0 0.0
    %4310 = vmatprep.subr.mxu0 0.0
    %4311 = vmatpush2.xpose.msra.mxu0 0.0
    %4312 = vmatprep.subr.mxu0 0.0
    %4313 = vmatpush2.xpose.msra.mxu0 0.0
    %4314 = vmatprep.subr.mxu0 0.0
    %4315 = vmatpush2.xpose.msra.mxu0 0.0
    %4316 = vmatprep.subr.mxu0 0.0
    %4317 = vmatpush2.xpose.msra.mxu0 0.0
    %4318 = vmatprep.subr.mxu0 0.0
    %4319 = vmatpush2.xpose.msra.mxu0 0.0
    %4320 = vmatprep.mubr.f32.mxu0 0.0
    %4321 = vmatmul.mubr.f32.gmra.mxu0 %v4252
    %v4322 = vpop.f32.mrf.mxu0
    %v4323 = vadd.f32 0.0, %v4322
    %v4324 = vpop.f32.mrf.mxu0
    %4325 = vdwg.mxu0
    %v4326 = vmul.f32 %v4245, 0.35355338
    %v4327 = vmul.f32 %v4323, 0.35355338
    %v4328 = vadd.f32 %v4326, %v395
    %v4329 = vadd.f32 %v4327, %v399
    %v4330 = vsel %vm238, %v4328, -inf
    %4331 = vmax.xlane.f32.xlu0 %v4330
    %v4332 = vpop.xlane.xlu0 %4331
    %v4333 = vsel %vm238, %v4329, -inf
    %4334 = vmax.xlane.f32.xlu0 %v4333
    %v4335 = vpop.xlane.xlu0 %4334
    %v4336 = vsub.f32 %v4328, %v4332
    %v4337 = vsub.f32 %v4329, %v4335
    %v4338 = vmul.f32 %v4336, 1.442695
    %v4339 = vpow.pop %v4338
    %v4340 = vmul.f32 %v4337, 1.442695
    %v4341 = vpow.pop %v4340
    %v4342 = vsel %vm238, %v4339, 0.0
    %4343 = vadd.xlane.f32.xlu0 %v4342
    %v4344 = vpop.xlane.xlu0 %4343
    %v4345 = vsel %vm238, %v4341, 0.0
    %4346 = vadd.xlane.f32.xlu0 %v4345
    %v4347 = vpop.xlane.xlu0 %4346
    %v4348 = vrcp.pop %v4344
    %v4349 = vrcp.pop %v4347
    %v4350 = vmul.f32 %v4339, %v4348
    %v4351 = vmul.f32 %v4341, %v4349
    %4352 = vrot.lane.b32.xlu0 %v3832, 88
    %v4353 = vpop.permute.xlu0 %4352
    %v4356 = vsel %vm238, %v4350, 0
    %4358 = vmatprep.subr.mxu0 0.0
    %4359 = vmatpush1.msra.mxu0 0.0
    %4360 = vmatprep.subr.mxu0 0.0
    %4361 = vmatpush1.msra.mxu0 0.0
    %4362 = vmatprep.subr.mxu0 0.0
    %4363 = vmatpush1.msra.mxu0 0.0
    %4364 = vmatprep.subr.mxu0 0.0
    %4365 = vmatpush1.msra.mxu0 0.0
    %4366 = vmatprep.subr.mxu0 0.0
    %4367 = vmatpush1.msra.mxu0 0.0
    %4368 = vmatprep.subr.mxu0 0.0
    %4369 = vmatpush1.msra.mxu0 0.0
    %4370 = vmatprep.subr.mxu0 0.0
    %4371 = vmatpush1.msra.mxu0 0.0
    %4372 = vmatprep.subr.mxu0 0.0
    %4373 = vmatpush1.msra.mxu0 0.0
    %4374 = vmatprep.subr.mxu0 0.0
    %4375 = vmatpush1.msra.mxu0 0.0
    %4376 = vmatprep.subr.mxu0 0.0
    %4377 = vmatpush1.msra.mxu0 0.0
    %4378 = vmatprep.subr.mxu0 0.0
    %4379 = vmatpush1.msra.mxu0 0.0
    %4380 = vmatprep.subr.mxu0 0.0
    %4381 = vmatpush1.msra.mxu0 0.0
    %4382 = vmatprep.subr.mxu0 0.0
    %4383 = vmatpush1.msra.mxu0 0.0
    %4384 = vmatprep.subr.mxu0 0.0
    %4385 = vmatpush1.msra.mxu0 0.0
    %4386 = vmatprep.subr.mxu0 0.0
    %4387 = vmatpush1.msra.mxu0 0.0
    %4388 = vmatprep.subr.mxu0 0.0
    %4389 = vmatpush1.msra.mxu0 %v4353
    %4390 = vmatprep.subr.mxu0 0.0
    %4391 = vmatpush2.msra.mxu0 0.0
    %4392 = vmatprep.subr.mxu0 0.0
    %4393 = vmatpush2.msra.mxu0 0.0
    %4394 = vmatprep.subr.mxu0 0.0
    %4395 = vmatpush2.msra.mxu0 0.0
    %4396 = vmatprep.subr.mxu0 0.0
    %4397 = vmatpush2.msra.mxu0 0.0
    %4398 = vmatprep.subr.mxu0 0.0
    %4399 = vmatpush2.msra.mxu0 0.0
    %4400 = vmatprep.subr.mxu0 0.0
    %4401 = vmatpush2.msra.mxu0 0.0
    %4402 = vmatprep.subr.mxu0 0.0
    %4403 = vmatpush2.msra.mxu0 0.0
    %4404 = vmatprep.subr.mxu0 0.0
    %4405 = vmatpush2.msra.mxu0 0.0
    %4406 = vmatprep.subr.mxu0 0.0
    %4407 = vmatpush2.msra.mxu0 0.0
    %4408 = vmatprep.subr.mxu0 0.0
    %4409 = vmatpush2.msra.mxu0 0.0
    %4410 = vmatprep.subr.mxu0 0.0
    %4411 = vmatpush2.msra.mxu0 0.0
    %4412 = vmatprep.subr.mxu0 0.0
    %4413 = vmatpush2.msra.mxu0 0.0
    %4414 = vmatprep.subr.mxu0 0.0
    %4415 = vmatpush2.msra.mxu0 0.0
    %4416 = vmatprep.subr.mxu0 0.0
    %4417 = vmatpush2.msra.mxu0 0.0
    %4418 = vmatprep.subr.mxu0 0.0
    %4419 = vmatpush2.msra.mxu0 0.0
    %4420 = vmatprep.subr.mxu0 0.0
    %4421 = vmatpush2.msra.mxu0 0.0
    %4422 = vmatprep.mubr.f32.mxu0 0.0
    %4423 = vmatmul.mubr.f32.gmra.mxu0 %v4356
    %v4424 = vpop.f32.mrf.mxu0
    %v4425 = vadd.f32 0.0, %v4424
    %v4426 = vpop.f32.mrf.mxu0
    %4427 = vdwg.mxu0
    %4428 = vrot.lane.b32.xlu0 %v3837, 88
    %v4429 = vpop.permute.xlu0 %4428
    %v4432 = vsel %vm238, %v4351, 0
    %4434 = vmatprep.subr.mxu0 0.0
    %4435 = vmatpush1.msra.mxu0 0.0
    %4436 = vmatprep.subr.mxu0 0.0
    %4437 = vmatpush1.msra.mxu0 0.0
    %4438 = vmatprep.subr.mxu0 0.0
    %4439 = vmatpush1.msra.mxu0 0.0
    %4440 = vmatprep.subr.mxu0 0.0
    %4441 = vmatpush1.msra.mxu0 0.0
    %4442 = vmatprep.subr.mxu0 0.0
    %4443 = vmatpush1.msra.mxu0 0.0
    %4444 = vmatprep.subr.mxu0 0.0
    %4445 = vmatpush1.msra.mxu0 0.0
    %4446 = vmatprep.subr.mxu0 0.0
    %4447 = vmatpush1.msra.mxu0 0.0
    %4448 = vmatprep.subr.mxu0 0.0
    %4449 = vmatpush1.msra.mxu0 0.0
    %4450 = vmatprep.subr.mxu0 0.0
    %4451 = vmatpush1.msra.mxu0 0.0
    %4452 = vmatprep.subr.mxu0 0.0
    %4453 = vmatpush1.msra.mxu0 0.0
    %4454 = vmatprep.subr.mxu0 0.0
    %4455 = vmatpush1.msra.mxu0 0.0
    %4456 = vmatprep.subr.mxu0 0.0
    %4457 = vmatpush1.msra.mxu0 0.0
    %4458 = vmatprep.subr.mxu0 0.0
    %4459 = vmatpush1.msra.mxu0 0.0
    %4460 = vmatprep.subr.mxu0 0.0
    %4461 = vmatpush1.msra.mxu0 0.0
    %4462 = vmatprep.subr.mxu0 0.0
    %4463 = vmatpush1.msra.mxu0 0.0
    %4464 = vmatprep.subr.mxu0 0.0
    %4465 = vmatpush1.msra.mxu0 %v4429
    %4466 = vmatprep.subr.mxu0 0.0
    %4467 = vmatpush2.msra.mxu0 0.0
    %4468 = vmatprep.subr.mxu0 0.0
    %4469 = vmatpush2.msra.mxu0 0.0
    %4470 = vmatprep.subr.mxu0 0.0
    %4471 = vmatpush2.msra.mxu0 0.0
    %4472 = vmatprep.subr.mxu0 0.0
    %4473 = vmatpush2.msra.mxu0 0.0
    %4474 = vmatprep.subr.mxu0 0.0
    %4475 = vmatpush2.msra.mxu0 0.0
    %4476 = vmatprep.subr.mxu0 0.0
    %4477 = vmatpush2.msra.mxu0 0.0
    %4478 = vmatprep.subr.mxu0 0.0
    %4479 = vmatpush2.msra.mxu0 0.0
    %4480 = vmatprep.subr.mxu0 0.0
    %4481 = vmatpush2.msra.mxu0 0.0
    %4482 = vmatprep.subr.mxu0 0.0
    %4483 = vmatpush2.msra.mxu0 0.0
    %4484 = vmatprep.subr.mxu0 0.0
    %4485 = vmatpush2.msra.mxu0 0.0
    %4486 = vmatprep.subr.mxu0 0.0
    %4487 = vmatpush2.msra.mxu0 0.0
    %4488 = vmatprep.subr.mxu0 0.0
    %4489 = vmatpush2.msra.mxu0 0.0
    %4490 = vmatprep.subr.mxu0 0.0
    %4491 = vmatpush2.msra.mxu0 0.0
    %4492 = vmatprep.subr.mxu0 0.0
    %4493 = vmatpush2.msra.mxu0 0.0
    %4494 = vmatprep.subr.mxu0 0.0
    %4495 = vmatpush2.msra.mxu0 0.0
    %4496 = vmatprep.subr.mxu0 0.0
    %4497 = vmatpush2.msra.mxu0 0.0
    %4498 = vmatprep.mubr.f32.mxu0 0.0
    %4499 = vmatmul.mubr.f32.gmra.mxu0 %v4432
    %v4500 = vpop.f32.mrf.mxu0
    %v4501 = vadd.f32 0.0, %v4500
    %v4502 = vpop.f32.mrf.mxu0
    %4503 = vdwg.mxu0
    %4504 = vrot.lane.b32.xlu0 %v3742, 112
    %v4505 = vpop.permute.xlu0 %4504
    %4506 = vrot.lane.b32.xlu0 %v3832, 112
    %v4507 = vpop.permute.xlu0 %4506
    %v4508 = vsel %vm238, %v4505, 0
    %v4510 = vsel %vm238, %v4507, 0
    %4512 = vmatprep.subr.mxu0 0.0
    %4513 = vmatpush1.xpose.msra.mxu0 0.0
    %4514 = vmatprep.subr.mxu0 0.0
    %4515 = vmatpush1.xpose.msra.mxu0 0.0
    %4516 = vmatprep.subr.mxu0 0.0
    %4517 = vmatpush1.xpose.msra.mxu0 0.0
    %4518 = vmatprep.subr.mxu0 0.0
    %4519 = vmatpush1.xpose.msra.mxu0 0.0
    %4520 = vmatprep.subr.mxu0 0.0
    %4521 = vmatpush1.xpose.msra.mxu0 0.0
    %4522 = vmatprep.subr.mxu0 0.0
    %4523 = vmatpush1.xpose.msra.mxu0 0.0
    %4524 = vmatprep.subr.mxu0 0.0
    %4525 = vmatpush1.xpose.msra.mxu0 0.0
    %4526 = vmatprep.subr.mxu0 0.0
    %4527 = vmatpush1.xpose.msra.mxu0 0.0
    %4528 = vmatprep.subr.mxu0 0.0
    %4529 = vmatpush1.xpose.msra.mxu0 0.0
    %4530 = vmatprep.subr.mxu0 0.0
    %4531 = vmatpush1.xpose.msra.mxu0 0.0
    %4532 = vmatprep.subr.mxu0 0.0
    %4533 = vmatpush1.xpose.msra.mxu0 0.0
    %4534 = vmatprep.subr.mxu0 0.0
    %4535 = vmatpush1.xpose.msra.mxu0 0.0
    %4536 = vmatprep.subr.mxu0 0.0
    %4537 = vmatpush1.xpose.msra.mxu0 0.0
    %4538 = vmatprep.subr.mxu0 0.0
    %4539 = vmatpush1.xpose.msra.mxu0 0.0
    %4540 = vmatprep.subr.mxu0 0.0
    %4541 = vmatpush1.xpose.msra.mxu0 0.0
    %4542 = vmatprep.subr.mxu0 0.0
    %4543 = vmatpush1.xpose.msra.mxu0 %v4510
    %4544 = vmatprep.subr.mxu0 0.0
    %4545 = vmatpush2.xpose.msra.mxu0 0.0
    %4546 = vmatprep.subr.mxu0 0.0
    %4547 = vmatpush2.xpose.msra.mxu0 0.0
    %4548 = vmatprep.subr.mxu0 0.0
    %4549 = vmatpush2.xpose.msra.mxu0 0.0
    %4550 = vmatprep.subr.mxu0 0.0
    %4551 = vmatpush2.xpose.msra.mxu0 0.0
    %4552 = vmatprep.subr.mxu0 0.0
    %4553 = vmatpush2.xpose.msra.mxu0 0.0
    %4554 = vmatprep.subr.mxu0 0.0
    %4555 = vmatpush2.xpose.msra.mxu0 0.0
    %4556 = vmatprep.subr.mxu0 0.0
    %4557 = vmatpush2.xpose.msra.mxu0 0.0
    %4558 = vmatprep.subr.mxu0 0.0
    %4559 = vmatpush2.xpose.msra.mxu0 0.0
    %4560 = vmatprep.subr.mxu0 0.0
    %4561 = vmatpush2.xpose.msra.mxu0 0.0
    %4562 = vmatprep.subr.mxu0 0.0
    %4563 = vmatpush2.xpose.msra.mxu0 0.0
    %4564 = vmatprep.subr.mxu0 0.0
    %4565 = vmatpush2.xpose.msra.mxu0 0.0
    %4566 = vmatprep.subr.mxu0 0.0
    %4567 = vmatpush2.xpose.msra.mxu0 0.0
    %4568 = vmatprep.subr.mxu0 0.0
    %4569 = vmatpush2.xpose.msra.mxu0 0.0
    %4570 = vmatprep.subr.mxu0 0.0
    %4571 = vmatpush2.xpose.msra.mxu0 0.0
    %4572 = vmatprep.subr.mxu0 0.0
    %4573 = vmatpush2.xpose.msra.mxu0 0.0
    %4574 = vmatprep.subr.mxu0 0.0
    %4575 = vmatpush2.xpose.msra.mxu0 0.0
    %4576 = vmatprep.mubr.f32.mxu0 0.0
    %4577 = vmatmul.mubr.f32.gmra.mxu0 %v4508
    %v4578 = vpop.f32.mrf.mxu0
    %v4579 = vadd.f32 0.0, %v4578
    %v4580 = vpop.f32.mrf.mxu0
    %4581 = vdwg.mxu0
    %4582 = vrot.lane.b32.xlu0 %v3747, 112
    %v4583 = vpop.permute.xlu0 %4582
    %4584 = vrot.lane.b32.xlu0 %v3837, 112
    %v4585 = vpop.permute.xlu0 %4584
    %v4586 = vsel %vm238, %v4583, 0
    %v4588 = vsel %vm238, %v4585, 0
    %4590 = vmatprep.subr.mxu0 0.0
    %4591 = vmatpush1.xpose.msra.mxu0 0.0
    %4592 = vmatprep.subr.mxu0 0.0
    %4593 = vmatpush1.xpose.msra.mxu0 0.0
    %4594 = vmatprep.subr.mxu0 0.0
    %4595 = vmatpush1.xpose.msra.mxu0 0.0
    %4596 = vmatprep.subr.mxu0 0.0
    %4597 = vmatpush1.xpose.msra.mxu0 0.0
    %4598 = vmatprep.subr.mxu0 0.0
    %4599 = vmatpush1.xpose.msra.mxu0 0.0
    %4600 = vmatprep.subr.mxu0 0.0
    %4601 = vmatpush1.xpose.msra.mxu0 0.0
    %4602 = vmatprep.subr.mxu0 0.0
    %4603 = vmatpush1.xpose.msra.mxu0 0.0
    %4604 = vmatprep.subr.mxu0 0.0
    %4605 = vmatpush1.xpose.msra.mxu0 0.0
    %4606 = vmatprep.subr.mxu0 0.0
    %4607 = vmatpush1.xpose.msra.mxu0 0.0
    %4608 = vmatprep.subr.mxu0 0.0
    %4609 = vmatpush1.xpose.msra.mxu0 0.0
    %4610 = vmatprep.subr.mxu0 0.0
    %4611 = vmatpush1.xpose.msra.mxu0 0.0
    %4612 = vmatprep.subr.mxu0 0.0
    %4613 = vmatpush1.xpose.msra.mxu0 0.0
    %4614 = vmatprep.subr.mxu0 0.0
    %4615 = vmatpush1.xpose.msra.mxu0 0.0
    %4616 = vmatprep.subr.mxu0 0.0
    %4617 = vmatpush1.xpose.msra.mxu0 0.0
    %4618 = vmatprep.subr.mxu0 0.0
    %4619 = vmatpush1.xpose.msra.mxu0 0.0
    %4620 = vmatprep.subr.mxu0 0.0
    %4621 = vmatpush1.xpose.msra.mxu0 %v4588
    %4622 = vmatprep.subr.mxu0 0.0
    %4623 = vmatpush2.xpose.msra.mxu0 0.0
    %4624 = vmatprep.subr.mxu0 0.0
    %4625 = vmatpush2.xpose.msra.mxu0 0.0
    %4626 = vmatprep.subr.mxu0 0.0
    %4627 = vmatpush2.xpose.msra.mxu0 0.0
    %4628 = vmatprep.subr.mxu0 0.0
    %4629 = vmatpush2.xpose.msra.mxu0 0.0
    %4630 = vmatprep.subr.mxu0 0.0
    %4631 = vmatpush2.xpose.msra.mxu0 0.0
    %4632 = vmatprep.subr.mxu0 0.0
    %4633 = vmatpush2.xpose.msra.mxu0 0.0
    %4634 = vmatprep.subr.mxu0 0.0
    %4635 = vmatpush2.xpose.msra.mxu0 0.0
    %4636 = vmatprep.subr.mxu0 0.0
    %4637 = vmatpush2.xpose.msra.mxu0 0.0
    %4638 = vmatprep.subr.mxu0 0.0
    %4639 = vmatpush2.xpose.msra.mxu0 0.0
    %4640 = vmatprep.subr.mxu0 0.0
    %4641 = vmatpush2.xpose.msra.mxu0 0.0
    %4642 = vmatprep.subr.mxu0 0.0
    %4643 = vmatpush2.xpose.msra.mxu0 0.0
    %4644 = vmatprep.subr.mxu0 0.0
    %4645 = vmatpush2.xpose.msra.mxu0 0.0
    %4646 = vmatprep.subr.mxu0 0.0
    %4647 = vmatpush2.xpose.msra.mxu0 0.0
    %4648 = vmatprep.subr.mxu0 0.0
    %4649 = vmatpush2.xpose.msra.mxu0 0.0
    %4650 = vmatprep.subr.mxu0 0.0
    %4651 = vmatpush2.xpose.msra.mxu0 0.0
    %4652 = vmatprep.subr.mxu0 0.0
    %4653 = vmatpush2.xpose.msra.mxu0 0.0
    %4654 = vmatprep.mubr.f32.mxu0 0.0
    %4655 = vmatmul.mubr.f32.gmra.mxu0 %v4586
    %v4656 = vpop.f32.mrf.mxu0
    %v4657 = vadd.f32 0.0, %v4656
    %v4658 = vpop.f32.mrf.mxu0
    %4659 = vdwg.mxu0
    %v4660 = vmul.f32 %v4579, 0.35355338
    %v4661 = vmul.f32 %v4657, 0.35355338
    %v4662 = vadd.f32 %v4660, %v395
    %v4663 = vadd.f32 %v4661, %v399
    %v4664 = vsel %vm238, %v4662, -inf
    %4665 = vmax.xlane.f32.xlu0 %v4664
    %v4666 = vpop.xlane.xlu0 %4665
    %v4667 = vsel %vm238, %v4663, -inf
    %4668 = vmax.xlane.f32.xlu0 %v4667
    %v4669 = vpop.xlane.xlu0 %4668
    %v4670 = vsub.f32 %v4662, %v4666
    %v4671 = vsub.f32 %v4663, %v4669
    %v4672 = vmul.f32 %v4670, 1.442695
    %v4673 = vpow.pop %v4672
    %v4674 = vmul.f32 %v4671, 1.442695
    %v4675 = vpow.pop %v4674
    %v4676 = vsel %vm238, %v4673, 0.0
    %4677 = vadd.xlane.f32.xlu0 %v4676
    %v4678 = vpop.xlane.xlu0 %4677
    %v4679 = vsel %vm238, %v4675, 0.0
    %4680 = vadd.xlane.f32.xlu0 %v4679
    %v4681 = vpop.xlane.xlu0 %4680
    %v4682 = vrcp.pop %v4678
    %v4683 = vrcp.pop %v4681
    %v4684 = vmul.f32 %v4673, %v4682
    %v4685 = vmul.f32 %v4675, %v4683
    %4686 = vrot.lane.b32.xlu0 %v3832, 80
    %v4687 = vpop.permute.xlu0 %4686
    %v4690 = vsel %vm238, %v4684, 0
    %4692 = vmatprep.subr.mxu0 0.0
    %4693 = vmatpush1.msra.mxu0 0.0
    %4694 = vmatprep.subr.mxu0 0.0
    %4695 = vmatpush1.msra.mxu0 0.0
    %4696 = vmatprep.subr.mxu0 0.0
    %4697 = vmatpush1.msra.mxu0 0.0
    %4698 = vmatprep.subr.mxu0 0.0
    %4699 = vmatpush1.msra.mxu0 0.0
    %4700 = vmatprep.subr.mxu0 0.0
    %4701 = vmatpush1.msra.mxu0 0.0
    %4702 = vmatprep.subr.mxu0 0.0
    %4703 = vmatpush1.msra.mxu0 0.0
    %4704 = vmatprep.subr.mxu0 0.0
    %4705 = vmatpush1.msra.mxu0 0.0
    %4706 = vmatprep.subr.mxu0 0.0
    %4707 = vmatpush1.msra.mxu0 0.0
    %4708 = vmatprep.subr.mxu0 0.0
    %4709 = vmatpush1.msra.mxu0 0.0
    %4710 = vmatprep.subr.mxu0 0.0
    %4711 = vmatpush1.msra.mxu0 0.0
    %4712 = vmatprep.subr.mxu0 0.0
    %4713 = vmatpush1.msra.mxu0 0.0
    %4714 = vmatprep.subr.mxu0 0.0
    %4715 = vmatpush1.msra.mxu0 0.0
    %4716 = vmatprep.subr.mxu0 0.0
    %4717 = vmatpush1.msra.mxu0 0.0
    %4718 = vmatprep.subr.mxu0 0.0
    %4719 = vmatpush1.msra.mxu0 0.0
    %4720 = vmatprep.subr.mxu0 0.0
    %4721 = vmatpush1.msra.mxu0 0.0
    %4722 = vmatprep.subr.mxu0 0.0
    %4723 = vmatpush1.msra.mxu0 %v4687
    %4724 = vmatprep.subr.mxu0 0.0
    %4725 = vmatpush2.msra.mxu0 0.0
    %4726 = vmatprep.subr.mxu0 0.0
    %4727 = vmatpush2.msra.mxu0 0.0
    %4728 = vmatprep.subr.mxu0 0.0
    %4729 = vmatpush2.msra.mxu0 0.0
    %4730 = vmatprep.subr.mxu0 0.0
    %4731 = vmatpush2.msra.mxu0 0.0
    %4732 = vmatprep.subr.mxu0 0.0
    %4733 = vmatpush2.msra.mxu0 0.0
    %4734 = vmatprep.subr.mxu0 0.0
    %4735 = vmatpush2.msra.mxu0 0.0
    %4736 = vmatprep.subr.mxu0 0.0
    %4737 = vmatpush2.msra.mxu0 0.0
    %4738 = vmatprep.subr.mxu0 0.0
    %4739 = vmatpush2.msra.mxu0 0.0
    %4740 = vmatprep.subr.mxu0 0.0
    %4741 = vmatpush2.msra.mxu0 0.0
    %4742 = vmatprep.subr.mxu0 0.0
    %4743 = vmatpush2.msra.mxu0 0.0
    %4744 = vmatprep.subr.mxu0 0.0
    %4745 = vmatpush2.msra.mxu0 0.0
    %4746 = vmatprep.subr.mxu0 0.0
    %4747 = vmatpush2.msra.mxu0 0.0
    %4748 = vmatprep.subr.mxu0 0.0
    %4749 = vmatpush2.msra.mxu0 0.0
    %4750 = vmatprep.subr.mxu0 0.0
    %4751 = vmatpush2.msra.mxu0 0.0
    %4752 = vmatprep.subr.mxu0 0.0
    %4753 = vmatpush2.msra.mxu0 0.0
    %4754 = vmatprep.subr.mxu0 0.0
    %4755 = vmatpush2.msra.mxu0 0.0
    %4756 = vmatprep.mubr.f32.mxu0 0.0
    %4757 = vmatmul.mubr.f32.gmra.mxu0 %v4690
    %v4758 = vpop.f32.mrf.mxu0
    %v4759 = vadd.f32 0.0, %v4758
    %v4760 = vpop.f32.mrf.mxu0
    %4761 = vdwg.mxu0
    %4762 = vrot.lane.b32.xlu0 %v3837, 80
    %v4763 = vpop.permute.xlu0 %4762
    %v4766 = vsel %vm238, %v4685, 0
    %4768 = vmatprep.subr.mxu0 0.0
    %4769 = vmatpush1.msra.mxu0 0.0
    %4770 = vmatprep.subr.mxu0 0.0
    %4771 = vmatpush1.msra.mxu0 0.0
    %4772 = vmatprep.subr.mxu0 0.0
    %4773 = vmatpush1.msra.mxu0 0.0
    %4774 = vmatprep.subr.mxu0 0.0
    %4775 = vmatpush1.msra.mxu0 0.0
    %4776 = vmatprep.subr.mxu0 0.0
    %4777 = vmatpush1.msra.mxu0 0.0
    %4778 = vmatprep.subr.mxu0 0.0
    %4779 = vmatpush1.msra.mxu0 0.0
    %4780 = vmatprep.subr.mxu0 0.0
    %4781 = vmatpush1.msra.mxu0 0.0
    %4782 = vmatprep.subr.mxu0 0.0
    %4783 = vmatpush1.msra.mxu0 0.0
    %4784 = vmatprep.subr.mxu0 0.0
    %4785 = vmatpush1.msra.mxu0 0.0
    %4786 = vmatprep.subr.mxu0 0.0
    %4787 = vmatpush1.msra.mxu0 0.0
    %4788 = vmatprep.subr.mxu0 0.0
    %4789 = vmatpush1.msra.mxu0 0.0
    %4790 = vmatprep.subr.mxu0 0.0
    %4791 = vmatpush1.msra.mxu0 0.0
    %4792 = vmatprep.subr.mxu0 0.0
    %4793 = vmatpush1.msra.mxu0 0.0
    %4794 = vmatprep.subr.mxu0 0.0
    %4795 = vmatpush1.msra.mxu0 0.0
    %4796 = vmatprep.subr.mxu0 0.0
    %4797 = vmatpush1.msra.mxu0 0.0
    %4798 = vmatprep.subr.mxu0 0.0
    %4799 = vmatpush1.msra.mxu0 %v4763
    %4800 = vmatprep.subr.mxu0 0.0
    %4801 = vmatpush2.msra.mxu0 0.0
    %4802 = vmatprep.subr.mxu0 0.0
    %4803 = vmatpush2.msra.mxu0 0.0
    %4804 = vmatprep.subr.mxu0 0.0
    %4805 = vmatpush2.msra.mxu0 0.0
    %4806 = vmatprep.subr.mxu0 0.0
    %4807 = vmatpush2.msra.mxu0 0.0
    %4808 = vmatprep.subr.mxu0 0.0
    %4809 = vmatpush2.msra.mxu0 0.0
    %4810 = vmatprep.subr.mxu0 0.0
    %4811 = vmatpush2.msra.mxu0 0.0
    %4812 = vmatprep.subr.mxu0 0.0
    %4813 = vmatpush2.msra.mxu0 0.0
    %4814 = vmatprep.subr.mxu0 0.0
    %4815 = vmatpush2.msra.mxu0 0.0
    %4816 = vmatprep.subr.mxu0 0.0
    %4817 = vmatpush2.msra.mxu0 0.0
    %4818 = vmatprep.subr.mxu0 0.0
    %4819 = vmatpush2.msra.mxu0 0.0
    %4820 = vmatprep.subr.mxu0 0.0
    %4821 = vmatpush2.msra.mxu0 0.0
    %4822 = vmatprep.subr.mxu0 0.0
    %4823 = vmatpush2.msra.mxu0 0.0
    %4824 = vmatprep.subr.mxu0 0.0
    %4825 = vmatpush2.msra.mxu0 0.0
    %4826 = vmatprep.subr.mxu0 0.0
    %4827 = vmatpush2.msra.mxu0 0.0
    %4828 = vmatprep.subr.mxu0 0.0
    %4829 = vmatpush2.msra.mxu0 0.0
    %4830 = vmatprep.subr.mxu0 0.0
    %4831 = vmatpush2.msra.mxu0 0.0
    %4832 = vmatprep.mubr.f32.mxu0 0.0
    %4833 = vmatmul.mubr.f32.gmra.mxu0 %v4766
    %v4834 = vpop.f32.mrf.mxu0
    %v4835 = vadd.f32 0.0, %v4834
    %v4836 = vpop.f32.mrf.mxu0
    %4837 = vdwg.mxu0
    %4838 = vrot.lane.b32.xlu0 %v3742, 104
    %v4839 = vpop.permute.xlu0 %4838
    %4840 = vrot.lane.b32.xlu0 %v3832, 104
    %v4841 = vpop.permute.xlu0 %4840
    %v4842 = vsel %vm238, %v4839, 0
    %v4844 = vsel %vm238, %v4841, 0
    %4846 = vmatprep.subr.mxu0 0.0
    %4847 = vmatpush1.xpose.msra.mxu0 0.0
    %4848 = vmatprep.subr.mxu0 0.0
    %4849 = vmatpush1.xpose.msra.mxu0 0.0
    %4850 = vmatprep.subr.mxu0 0.0
    %4851 = vmatpush1.xpose.msra.mxu0 0.0
    %4852 = vmatprep.subr.mxu0 0.0
    %4853 = vmatpush1.xpose.msra.mxu0 0.0
    %4854 = vmatprep.subr.mxu0 0.0
    %4855 = vmatpush1.xpose.msra.mxu0 0.0
    %4856 = vmatprep.subr.mxu0 0.0
    %4857 = vmatpush1.xpose.msra.mxu0 0.0
    %4858 = vmatprep.subr.mxu0 0.0
    %4859 = vmatpush1.xpose.msra.mxu0 0.0
    %4860 = vmatprep.subr.mxu0 0.0
    %4861 = vmatpush1.xpose.msra.mxu0 0.0
    %4862 = vmatprep.subr.mxu0 0.0
    %4863 = vmatpush1.xpose.msra.mxu0 0.0
    %4864 = vmatprep.subr.mxu0 0.0
    %4865 = vmatpush1.xpose.msra.mxu0 0.0
    %4866 = vmatprep.subr.mxu0 0.0
    %4867 = vmatpush1.xpose.msra.mxu0 0.0
    %4868 = vmatprep.subr.mxu0 0.0
    %4869 = vmatpush1.xpose.msra.mxu0 0.0
    %4870 = vmatprep.subr.mxu0 0.0
    %4871 = vmatpush1.xpose.msra.mxu0 0.0
    %4872 = vmatprep.subr.mxu0 0.0
    %4873 = vmatpush1.xpose.msra.mxu0 0.0
    %4874 = vmatprep.subr.mxu0 0.0
    %4875 = vmatpush1.xpose.msra.mxu0 0.0
    %4876 = vmatprep.subr.mxu0 0.0
    %4877 = vmatpush1.xpose.msra.mxu0 %v4844
    %4878 = vmatprep.subr.mxu0 0.0
    %4879 = vmatpush2.xpose.msra.mxu0 0.0
    %4880 = vmatprep.subr.mxu0 0.0
    %4881 = vmatpush2.xpose.msra.mxu0 0.0
    %4882 = vmatprep.subr.mxu0 0.0
    %4883 = vmatpush2.xpose.msra.mxu0 0.0
    %4884 = vmatprep.subr.mxu0 0.0
    %4885 = vmatpush2.xpose.msra.mxu0 0.0
    %4886 = vmatprep.subr.mxu0 0.0
    %4887 = vmatpush2.xpose.msra.mxu0 0.0
    %4888 = vmatprep.subr.mxu0 0.0
    %4889 = vmatpush2.xpose.msra.mxu0 0.0
    %4890 = vmatprep.subr.mxu0 0.0
    %4891 = vmatpush2.xpose.msra.mxu0 0.0
    %4892 = vmatprep.subr.mxu0 0.0
    %4893 = vmatpush2.xpose.msra.mxu0 0.0
    %4894 = vmatprep.subr.mxu0 0.0
    %4895 = vmatpush2.xpose.msra.mxu0 0.0
    %4896 = vmatprep.subr.mxu0 0.0
    %4897 = vmatpush2.xpose.msra.mxu0 0.0
    %4898 = vmatprep.subr.mxu0 0.0
    %4899 = vmatpush2.xpose.msra.mxu0 0.0
    %4900 = vmatprep.subr.mxu0 0.0
    %4901 = vmatpush2.xpose.msra.mxu0 0.0
    %4902 = vmatprep.subr.mxu0 0.0
    %4903 = vmatpush2.xpose.msra.mxu0 0.0
    %4904 = vmatprep.subr.mxu0 0.0
    %4905 = vmatpush2.xpose.msra.mxu0 0.0
    %4906 = vmatprep.subr.mxu0 0.0
    %4907 = vmatpush2.xpose.msra.mxu0 0.0
    %4908 = vmatprep.subr.mxu0 0.0
    %4909 = vmatpush2.xpose.msra.mxu0 0.0
    %4910 = vmatprep.mubr.f32.mxu0 0.0
    %4911 = vmatmul.mubr.f32.gmra.mxu0 %v4842
    %v4912 = vpop.f32.mrf.mxu0
    %v4913 = vadd.f32 0.0, %v4912
    %v4914 = vpop.f32.mrf.mxu0
    %4915 = vdwg.mxu0
    %4916 = vrot.lane.b32.xlu0 %v3747, 104
    %v4917 = vpop.permute.xlu0 %4916
    %4918 = vrot.lane.b32.xlu0 %v3837, 104
    %v4919 = vpop.permute.xlu0 %4918
    %v4920 = vsel %vm238, %v4917, 0
    %v4922 = vsel %vm238, %v4919, 0
    %4924 = vmatprep.subr.mxu0 0.0
    %4925 = vmatpush1.xpose.msra.mxu0 0.0
    %4926 = vmatprep.subr.mxu0 0.0
    %4927 = vmatpush1.xpose.msra.mxu0 0.0
    %4928 = vmatprep.subr.mxu0 0.0
    %4929 = vmatpush1.xpose.msra.mxu0 0.0
    %4930 = vmatprep.subr.mxu0 0.0
    %4931 = vmatpush1.xpose.msra.mxu0 0.0
    %4932 = vmatprep.subr.mxu0 0.0
    %4933 = vmatpush1.xpose.msra.mxu0 0.0
    %4934 = vmatprep.subr.mxu0 0.0
    %4935 = vmatpush1.xpose.msra.mxu0 0.0
    %4936 = vmatprep.subr.mxu0 0.0
    %4937 = vmatpush1.xpose.msra.mxu0 0.0
    %4938 = vmatprep.subr.mxu0 0.0
    %4939 = vmatpush1.xpose.msra.mxu0 0.0
    %4940 = vmatprep.subr.mxu0 0.0
    %4941 = vmatpush1.xpose.msra.mxu0 0.0
    %4942 = vmatprep.subr.mxu0 0.0
    %4943 = vmatpush1.xpose.msra.mxu0 0.0
    %4944 = vmatprep.subr.mxu0 0.0
    %4945 = vmatpush1.xpose.msra.mxu0 0.0
    %4946 = vmatprep.subr.mxu0 0.0
    %4947 = vmatpush1.xpose.msra.mxu0 0.0
    %4948 = vmatprep.subr.mxu0 0.0
    %4949 = vmatpush1.xpose.msra.mxu0 0.0
    %4950 = vmatprep.subr.mxu0 0.0
    %4951 = vmatpush1.xpose.msra.mxu0 0.0
    %4952 = vmatprep.subr.mxu0 0.0
    %4953 = vmatpush1.xpose.msra.mxu0 0.0
    %4954 = vmatprep.subr.mxu0 0.0
    %4955 = vmatpush1.xpose.msra.mxu0 %v4922
    %4956 = vmatprep.subr.mxu0 0.0
    %4957 = vmatpush2.xpose.msra.mxu0 0.0
    %4958 = vmatprep.subr.mxu0 0.0
    %4959 = vmatpush2.xpose.msra.mxu0 0.0
    %4960 = vmatprep.subr.mxu0 0.0
    %4961 = vmatpush2.xpose.msra.mxu0 0.0
    %4962 = vmatprep.subr.mxu0 0.0
    %4963 = vmatpush2.xpose.msra.mxu0 0.0
    %4964 = vmatprep.subr.mxu0 0.0
    %4965 = vmatpush2.xpose.msra.mxu0 0.0
    %4966 = vmatprep.subr.mxu0 0.0
    %4967 = vmatpush2.xpose.msra.mxu0 0.0
    %4968 = vmatprep.subr.mxu0 0.0
    %4969 = vmatpush2.xpose.msra.mxu0 0.0
    %4970 = vmatprep.subr.mxu0 0.0
    %4971 = vmatpush2.xpose.msra.mxu0 0.0
    %4972 = vmatprep.subr.mxu0 0.0
    %4973 = vmatpush2.xpose.msra.mxu0 0.0
    %4974 = vmatprep.subr.mxu0 0.0
    %4975 = vmatpush2.xpose.msra.mxu0 0.0
    %4976 = vmatprep.subr.mxu0 0.0
    %4977 = vmatpush2.xpose.msra.mxu0 0.0
    %4978 = vmatprep.subr.mxu0 0.0
    %4979 = vmatpush2.xpose.msra.mxu0 0.0
    %4980 = vmatprep.subr.mxu0 0.0
    %4981 = vmatpush2.xpose.msra.mxu0 0.0
    %4982 = vmatprep.subr.mxu0 0.0
    %4983 = vmatpush2.xpose.msra.mxu0 0.0
    %4984 = vmatprep.subr.mxu0 0.0
    %4985 = vmatpush2.xpose.msra.mxu0 0.0
    %4986 = vmatprep.subr.mxu0 0.0
    %4987 = vmatpush2.xpose.msra.mxu0 0.0
    %4988 = vmatprep.mubr.f32.mxu0 0.0
    %4989 = vmatmul.mubr.f32.gmra.mxu0 %v4920
    %v4990 = vpop.f32.mrf.mxu0
    %v4991 = vadd.f32 0.0, %v4990
    %v4992 = vpop.f32.mrf.mxu0
    %4993 = vdwg.mxu0
    %v4994 = vmul.f32 %v4913, 0.35355338
    %v4995 = vmul.f32 %v4991, 0.35355338
    %v4996 = vadd.f32 %v4994, %v395
    %v4997 = vadd.f32 %v4995, %v399
    %v4998 = vsel %vm238, %v4996, -inf
    %4999 = vmax.xlane.f32.xlu0 %v4998
    %v5000 = vpop.xlane.xlu0 %4999
    %v5001 = vsel %vm238, %v4997, -inf
    %5002 = vmax.xlane.f32.xlu0 %v5001
    %v5003 = vpop.xlane.xlu0 %5002
    %v5004 = vsub.f32 %v4996, %v5000
    %v5005 = vsub.f32 %v4997, %v5003
    %v5006 = vmul.f32 %v5004, 1.442695
    %v5007 = vpow.pop %v5006
    %v5008 = vmul.f32 %v5005, 1.442695
    %v5009 = vpow.pop %v5008
    %v5010 = vsel %vm238, %v5007, 0.0
    %5011 = vadd.xlane.f32.xlu0 %v5010
    %v5012 = vpop.xlane.xlu0 %5011
    %v5013 = vsel %vm238, %v5009, 0.0
    %5014 = vadd.xlane.f32.xlu0 %v5013
    %v5015 = vpop.xlane.xlu0 %5014
    %v5016 = vrcp.pop %v5012
    %v5017 = vrcp.pop %v5015
    %v5018 = vmul.f32 %v5007, %v5016
    %v5019 = vmul.f32 %v5009, %v5017
    %5020 = vrot.lane.b32.xlu0 %v3832, 72
    %v5021 = vpop.permute.xlu0 %5020
    %v5024 = vsel %vm238, %v5018, 0
    %5026 = vmatprep.subr.mxu0 0.0
    %5027 = vmatpush1.msra.mxu0 0.0
    %5028 = vmatprep.subr.mxu0 0.0
    %5029 = vmatpush1.msra.mxu0 0.0
    %5030 = vmatprep.subr.mxu0 0.0
    %5031 = vmatpush1.msra.mxu0 0.0
    %5032 = vmatprep.subr.mxu0 0.0
    %5033 = vmatpush1.msra.mxu0 0.0
    %5034 = vmatprep.subr.mxu0 0.0
    %5035 = vmatpush1.msra.mxu0 0.0
    %5036 = vmatprep.subr.mxu0 0.0
    %5037 = vmatpush1.msra.mxu0 0.0
    %5038 = vmatprep.subr.mxu0 0.0
    %5039 = vmatpush1.msra.mxu0 0.0
    %5040 = vmatprep.subr.mxu0 0.0
    %5041 = vmatpush1.msra.mxu0 0.0
    %5042 = vmatprep.subr.mxu0 0.0
    %5043 = vmatpush1.msra.mxu0 0.0
    %5044 = vmatprep.subr.mxu0 0.0
    %5045 = vmatpush1.msra.mxu0 0.0
    %5046 = vmatprep.subr.mxu0 0.0
    %5047 = vmatpush1.msra.mxu0 0.0
    %5048 = vmatprep.subr.mxu0 0.0
    %5049 = vmatpush1.msra.mxu0 0.0
    %5050 = vmatprep.subr.mxu0 0.0
    %5051 = vmatpush1.msra.mxu0 0.0
    %5052 = vmatprep.subr.mxu0 0.0
    %5053 = vmatpush1.msra.mxu0 0.0
    %5054 = vmatprep.subr.mxu0 0.0
    %5055 = vmatpush1.msra.mxu0 0.0
    %5056 = vmatprep.subr.mxu0 0.0
    %5057 = vmatpush1.msra.mxu0 %v5021
    %5058 = vmatprep.subr.mxu0 0.0
    %5059 = vmatpush2.msra.mxu0 0.0
    %5060 = vmatprep.subr.mxu0 0.0
    %5061 = vmatpush2.msra.mxu0 0.0
    %5062 = vmatprep.subr.mxu0 0.0
    %5063 = vmatpush2.msra.mxu0 0.0
    %5064 = vmatprep.subr.mxu0 0.0
    %5065 = vmatpush2.msra.mxu0 0.0
    %5066 = vmatprep.subr.mxu0 0.0
    %5067 = vmatpush2.msra.mxu0 0.0
    %5068 = vmatprep.subr.mxu0 0.0
    %5069 = vmatpush2.msra.mxu0 0.0
    %5070 = vmatprep.subr.mxu0 0.0
    %5071 = vmatpush2.msra.mxu0 0.0
    %5072 = vmatprep.subr.mxu0 0.0
    %5073 = vmatpush2.msra.mxu0 0.0
    %5074 = vmatprep.subr.mxu0 0.0
    %5075 = vmatpush2.msra.mxu0 0.0
    %5076 = vmatprep.subr.mxu0 0.0
    %5077 = vmatpush2.msra.mxu0 0.0
    %5078 = vmatprep.subr.mxu0 0.0
    %5079 = vmatpush2.msra.mxu0 0.0
    %5080 = vmatprep.subr.mxu0 0.0
    %5081 = vmatpush2.msra.mxu0 0.0
    %5082 = vmatprep.subr.mxu0 0.0
    %5083 = vmatpush2.msra.mxu0 0.0
    %5084 = vmatprep.subr.mxu0 0.0
    %5085 = vmatpush2.msra.mxu0 0.0
    %5086 = vmatprep.subr.mxu0 0.0
    %5087 = vmatpush2.msra.mxu0 0.0
    %5088 = vmatprep.subr.mxu0 0.0
    %5089 = vmatpush2.msra.mxu0 0.0
    %5090 = vmatprep.mubr.f32.mxu0 0.0
    %5091 = vmatmul.mubr.f32.gmra.mxu0 %v5024
    %v5092 = vpop.f32.mrf.mxu0
    %v5093 = vadd.f32 0.0, %v5092
    %v5094 = vpop.f32.mrf.mxu0
    %5095 = vdwg.mxu0
    %5096 = vrot.lane.b32.xlu0 %v3837, 72
    %v5097 = vpop.permute.xlu0 %5096
    %v5100 = vsel %vm238, %v5019, 0
    %5102 = vmatprep.subr.mxu0 0.0
    %5103 = vmatpush1.msra.mxu0 0.0
    %5104 = vmatprep.subr.mxu0 0.0
    %5105 = vmatpush1.msra.mxu0 0.0
    %5106 = vmatprep.subr.mxu0 0.0
    %5107 = vmatpush1.msra.mxu0 0.0
    %5108 = vmatprep.subr.mxu0 0.0
    %5109 = vmatpush1.msra.mxu0 0.0
    %5110 = vmatprep.subr.mxu0 0.0
    %5111 = vmatpush1.msra.mxu0 0.0
    %5112 = vmatprep.subr.mxu0 0.0
    %5113 = vmatpush1.msra.mxu0 0.0
    %5114 = vmatprep.subr.mxu0 0.0
    %5115 = vmatpush1.msra.mxu0 0.0
    %5116 = vmatprep.subr.mxu0 0.0
    %5117 = vmatpush1.msra.mxu0 0.0
    %5118 = vmatprep.subr.mxu0 0.0
    %5119 = vmatpush1.msra.mxu0 0.0
    %5120 = vmatprep.subr.mxu0 0.0
    %5121 = vmatpush1.msra.mxu0 0.0
    %5122 = vmatprep.subr.mxu0 0.0
    %5123 = vmatpush1.msra.mxu0 0.0
    %5124 = vmatprep.subr.mxu0 0.0
    %5125 = vmatpush1.msra.mxu0 0.0
    %5126 = vmatprep.subr.mxu0 0.0
    %5127 = vmatpush1.msra.mxu0 0.0
    %5128 = vmatprep.subr.mxu0 0.0
    %5129 = vmatpush1.msra.mxu0 0.0
    %5130 = vmatprep.subr.mxu0 0.0
    %5131 = vmatpush1.msra.mxu0 0.0
    %5132 = vmatprep.subr.mxu0 0.0
    %5133 = vmatpush1.msra.mxu0 %v5097
    %5134 = vmatprep.subr.mxu0 0.0
    %5135 = vmatpush2.msra.mxu0 0.0
    %5136 = vmatprep.subr.mxu0 0.0
    %5137 = vmatpush2.msra.mxu0 0.0
    %5138 = vmatprep.subr.mxu0 0.0
    %5139 = vmatpush2.msra.mxu0 0.0
    %5140 = vmatprep.subr.mxu0 0.0
    %5141 = vmatpush2.msra.mxu0 0.0
    %5142 = vmatprep.subr.mxu0 0.0
    %5143 = vmatpush2.msra.mxu0 0.0
    %5144 = vmatprep.subr.mxu0 0.0
    %5145 = vmatpush2.msra.mxu0 0.0
    %5146 = vmatprep.subr.mxu0 0.0
    %5147 = vmatpush2.msra.mxu0 0.0
    %5148 = vmatprep.subr.mxu0 0.0
    %5149 = vmatpush2.msra.mxu0 0.0
    %5150 = vmatprep.subr.mxu0 0.0
    %5151 = vmatpush2.msra.mxu0 0.0
    %5152 = vmatprep.subr.mxu0 0.0
    %5153 = vmatpush2.msra.mxu0 0.0
    %5154 = vmatprep.subr.mxu0 0.0
    %5155 = vmatpush2.msra.mxu0 0.0
    %5156 = vmatprep.subr.mxu0 0.0
    %5157 = vmatpush2.msra.mxu0 0.0
    %5158 = vmatprep.subr.mxu0 0.0
    %5159 = vmatpush2.msra.mxu0 0.0
    %5160 = vmatprep.subr.mxu0 0.0
    %5161 = vmatpush2.msra.mxu0 0.0
    %5162 = vmatprep.subr.mxu0 0.0
    %5163 = vmatpush2.msra.mxu0 0.0
    %5164 = vmatprep.subr.mxu0 0.0
    %5165 = vmatpush2.msra.mxu0 0.0
    %5166 = vmatprep.mubr.f32.mxu0 0.0
    %5167 = vmatmul.mubr.f32.gmra.mxu0 %v5100
    %v5168 = vpop.f32.mrf.mxu0
    %v5169 = vadd.f32 0.0, %v5168
    %v5170 = vpop.f32.mrf.mxu0
    %5171 = vdwg.mxu0
    %5174 = vrot.lane.b32.xlu0 %v4425, 8
    %v5175 = vpop.permute.xlu0 %5174
    %5176 = vrot.lane.b32.xlu0 %v4501, 8
    %v5177 = vpop.permute.xlu0 %5176
    %5182 = vrot.lane.b32.xlu0 %v4759, 16
    %v5183 = vpop.permute.xlu0 %5182
    %5184 = vrot.lane.b32.xlu0 %v4835, 16
    %v5185 = vpop.permute.xlu0 %5184
    %5190 = vrot.lane.b32.xlu0 %v5093, 24
    %v5191 = vpop.permute.xlu0 %5190
    %5192 = vrot.lane.b32.xlu0 %v5169, 24
    %v5193 = vpop.permute.xlu0 %5192
    %v5196 = vsel %vm238, %v4091, %v5175
    %v5197 = vsel %vm238, %v4167, %v5177
    %v5198 = vsel %vm1606, %v5196, %v5183
    %v5199 = vsel %vm1606, %v5197, %v5185
    %v5200 = vsel %vm1609, %v5198, %v5191
    %v5201 = vsel %vm1609, %v5199, %v5193
    %v5202 = vld [vmem:[%s5 + $0x170] sm:$0xff]
    %v5203 = vld [vmem:[%s5 + $0x178] sm:$0xff]
    %v5204 = vld [vmem:[%s5 + $0x180] sm:$0xff]
    %v5205 = vld [vmem:[%s5 + $0x188] sm:$0xff]
    %v5206 = vld [vmem:[%s4 + $0x19] sm:$0x1]
    %v5207 = vlaneseq
    %v5208 = vshrl.u32 %v5207, 7
    %v5209 = vsub.s32 0, %v5208
    %v5210 = vrot.slane %v5206, %v5209
    %v5212 = vsel %vm63, %v5200, 0
    %v5215 = vsel %vm63, %v5201, 0
    %5217 = vmatprep.subr.mxu0 0.0
    %5218 = vmatpush1.msra.mxu0 0.0
    %5219 = vmatprep.subr.mxu0 0.0
    %5220 = vmatpush1.msra.mxu0 0.0
    %5221 = vmatprep.subr.mxu0 0.0
    %5222 = vmatpush1.msra.mxu0 0.0
    %5223 = vmatprep.subr.mxu0 0.0
    %5224 = vmatpush1.msra.mxu0 0.0
    %5225 = vmatprep.subr.mxu0 0.0
    %5226 = vmatpush1.msra.mxu0 0.0
    %5227 = vmatprep.subr.mxu0 0.0
    %5228 = vmatpush1.msra.mxu0 0.0
    %5229 = vmatprep.subr.mxu0 0.0
    %5230 = vmatpush1.msra.mxu0 0.0
    %5231 = vmatprep.subr.mxu0 0.0
    %5232 = vmatpush1.msra.mxu0 0.0
    %5233 = vmatprep.subr.mxu0 0.0
    %5234 = vmatpush1.msra.mxu0 0.0
    %5235 = vmatprep.subr.mxu0 0.0
    %5236 = vmatpush1.msra.mxu0 0.0
    %5237 = vmatprep.subr.mxu0 0.0
    %5238 = vmatpush1.msra.mxu0 0.0
    %5239 = vmatprep.subr.mxu0 0.0
    %5240 = vmatpush1.msra.mxu0 0.0
    %5241 = vmatprep.subr.mxu0 0.0
    %5242 = vmatpush1.msra.mxu0 %v5205
    %5243 = vmatprep.subr.mxu0 0.0
    %5244 = vmatpush1.msra.mxu0 %v5204
    %5245 = vmatprep.subr.mxu0 0.0
    %5246 = vmatpush1.msra.mxu0 %v5203
    %5247 = vmatprep.subr.mxu0 0.0
    %5248 = vmatpush1.msra.mxu0 %v5202
    %5249 = vmatprep.subr.mxu0 0.0
    %5250 = vmatpush2.msra.mxu0 0.0
    %5251 = vmatprep.subr.mxu0 0.0
    %5252 = vmatpush2.msra.mxu0 0.0
    %5253 = vmatprep.subr.mxu0 0.0
    %5254 = vmatpush2.msra.mxu0 0.0
    %5255 = vmatprep.subr.mxu0 0.0
    %5256 = vmatpush2.msra.mxu0 0.0
    %5257 = vmatprep.subr.mxu0 0.0
    %5258 = vmatpush2.msra.mxu0 0.0
    %5259 = vmatprep.subr.mxu0 0.0
    %5260 = vmatpush2.msra.mxu0 0.0
    %5261 = vmatprep.subr.mxu0 0.0
    %5262 = vmatpush2.msra.mxu0 0.0
    %5263 = vmatprep.subr.mxu0 0.0
    %5264 = vmatpush2.msra.mxu0 0.0
    %5265 = vmatprep.subr.mxu0 0.0
    %5266 = vmatpush2.msra.mxu0 0.0
    %5267 = vmatprep.subr.mxu0 0.0
    %5268 = vmatpush2.msra.mxu0 0.0
    %5269 = vmatprep.subr.mxu0 0.0
    %5270 = vmatpush2.msra.mxu0 0.0
    %5271 = vmatprep.subr.mxu0 0.0
    %5272 = vmatpush2.msra.mxu0 0.0
    %5273 = vmatprep.subr.mxu0 0.0
    %5274 = vmatpush2.msra.mxu0 0.0
    %5275 = vmatprep.subr.mxu0 0.0
    %5276 = vmatpush2.msra.mxu0 0.0
    %5277 = vmatprep.subr.mxu0 0.0
    %5278 = vmatpush2.msra.mxu0 0.0
    %5279 = vmatprep.subr.mxu0 0.0
    %5280 = vmatpush2.msra.mxu0 0.0
    %5281 = vmatprep.mubr.f32.mxu0 0.0
    %5282 = vmatmul.mubr.f32.gmra.mxu0 %v5212
    %v5283 = vpop.f32.mrf.mxu0
    %v5284 = vadd.f32 %v5210, %v5283
    %v5285 = vpop.f32.mrf.mxu0
    %5286 = vmatprep.mubr.f32.mxu0 0.0
    %5287 = vmatmul.mubr.f32.gmra.mxu0 %v5215
    %v5288 = vpop.f32.mrf.mxu0
    %v5289 = vadd.f32 %v5210, %v5288
    %v5290 = vpop.f32.mrf.mxu0
    %5291 = vdwg.mxu0
    %v5292 = vadd.f32 %v3618, %v5284
    %v5293 = vadd.f32 %v3619, %v5289
    %v5294 = vsel %vm63, %v5292, 0.0
    %5295 = vadd.xlane.f32.xlu0 %v5294
    %v5296 = vpop.xlane.xlu0 %5295
    %v5297 = vsel %vm63, %v5293, 0.0
    %5298 = vadd.xlane.f32.xlu0 %v5297
    %v5299 = vpop.xlane.xlu0 %5298
    %v5300 = vmul.f32 %v5296, %v70
    %v5301 = vmul.f32 %v5299, %v70
    %v5302 = vsub.f32 %v5292, %v5300
    %v5303 = vsub.f32 %v5293, %v5301
    %v5304 = vmul.f32 %v5302, %v5302
    %v5305 = vmul.f32 %v5303, %v5303
    %v5306 = vsel %vm63, %v5304, 0.0
    %5307 = vadd.xlane.f32.xlu0 %v5306
    %v5308 = vpop.xlane.xlu0 %5307
    %v5309 = vsel %vm63, %v5305, 0.0
    %5310 = vadd.xlane.f32.xlu0 %v5309
    %v5311 = vpop.xlane.xlu0 %5310
    %v5312 = vmul.f32 %v5308, %v70
    %v5313 = vmul.f32 %v5311, %v70
    %v5314 = vadd.f32 %v5312, 1e-05
    %v5315 = vadd.f32 %v5313, 1e-05
    %v5316 = vrsqrt.pop %v5314
    %v5317 = vrsqrt.pop %v5315
    %v5318 = vmul.f32 %v5302, %v5316
    %v5319 = vmul.f32 %v5303, %v5317
    %v5320 = vld [vmem:[%s4 + $0x1a] sm:$0x1]
    %v5321 = vlaneseq
    %v5322 = vshrl.u32 %v5321, 7
    %v5323 = vsub.s32 0, %v5322
    %v5324 = vrot.slane %v5320, %v5323
    %v5325 = vmul.f32 %v5318, %v5324
    %v5326 = vmul.f32 %v5319, %v5324
    %v5327 = vld [vmem:[%s4 + $0x1b] sm:$0x1]
    %v5328 = vlaneseq
    %v5329 = vshrl.u32 %v5328, 7
    %v5330 = vsub.s32 0, %v5329
    %v5331 = vrot.slane %v5327, %v5330
    %v5332 = vadd.f32 %v5325, %v5331
    %v5333 = vadd.f32 %v5326, %v5331
    %v5334 = vld [vmem:[%s5 + $0x190] sm:$0xff]
    %v5335 = vld [vmem:[%s5 + $0x198] sm:$0xff]
    %v5336 = vld [vmem:[%s5 + $0x1a0] sm:$0xff]
    %v5337 = vld [vmem:[%s5 + $0x1a8] sm:$0xff]
    %v5338 = vld [vmem:[%s4 + $0x1c] sm:$0x1]
    %v5339 = vlaneseq
    %v5340 = vshrl.u32 %v5339, 7
    %v5341 = vsub.s32 0, %v5340
    %v5342 = vrot.slane %v5338, %v5341
    %v5344 = vsel %vm63, %v5332, 0
    %v5347 = vsel %vm63, %v5333, 0
    %5349 = vmatprep.subr.mxu0 0.0
    %5350 = vmatpush1.msra.mxu0 0.0
    %5351 = vmatprep.subr.mxu0 0.0
    %5352 = vmatpush1.msra.mxu0 0.0
    %5353 = vmatprep.subr.mxu0 0.0
    %5354 = vmatpush1.msra.mxu0 0.0
    %5355 = vmatprep.subr.mxu0 0.0
    %5356 = vmatpush1.msra.mxu0 0.0
    %5357 = vmatprep.subr.mxu0 0.0
    %5358 = vmatpush1.msra.mxu0 0.0
    %5359 = vmatprep.subr.mxu0 0.0
    %5360 = vmatpush1.msra.mxu0 0.0
    %5361 = vmatprep.subr.mxu0 0.0
    %5362 = vmatpush1.msra.mxu0 0.0
    %5363 = vmatprep.subr.mxu0 0.0
    %5364 = vmatpush1.msra.mxu0 0.0
    %5365 = vmatprep.subr.mxu0 0.0
    %5366 = vmatpush1.msra.mxu0 0.0
    %5367 = vmatprep.subr.mxu0 0.0
    %5368 = vmatpush1.msra.mxu0 0.0
    %5369 = vmatprep.subr.mxu0 0.0
    %5370 = vmatpush1.msra.mxu0 0.0
    %5371 = vmatprep.subr.mxu0 0.0
    %5372 = vmatpush1.msra.mxu0 0.0
    %5373 = vmatprep.subr.mxu0 0.0
    %5374 = vmatpush1.msra.mxu0 %v5337
    %5375 = vmatprep.subr.mxu0 0.0
    %5376 = vmatpush1.msra.mxu0 %v5336
    %5377 = vmatprep.subr.mxu0 0.0
    %5378 = vmatpush1.msra.mxu0 %v5335
    %5379 = vmatprep.subr.mxu0 0.0
    %5380 = vmatpush1.msra.mxu0 %v5334
    %5381 = vmatprep.subr.mxu0 0.0
    %5382 = vmatpush2.msra.mxu0 0.0
    %5383 = vmatprep.subr.mxu0 0.0
    %5384 = vmatpush2.msra.mxu0 0.0
    %5385 = vmatprep.subr.mxu0 0.0
    %5386 = vmatpush2.msra.mxu0 0.0
    %5387 = vmatprep.subr.mxu0 0.0
    %5388 = vmatpush2.msra.mxu0 0.0
    %5389 = vmatprep.subr.mxu0 0.0
    %5390 = vmatpush2.msra.mxu0 0.0
    %5391 = vmatprep.subr.mxu0 0.0
    %5392 = vmatpush2.msra.mxu0 0.0
    %5393 = vmatprep.subr.mxu0 0.0
    %5394 = vmatpush2.msra.mxu0 0.0
    %5395 = vmatprep.subr.mxu0 0.0
    %5396 = vmatpush2.msra.mxu0 0.0
    %5397 = vmatprep.subr.mxu0 0.0
    %5398 = vmatpush2.msra.mxu0 0.0
    %5399 = vmatprep.subr.mxu0 0.0
    %5400 = vmatpush2.msra.mxu0 0.0
    %5401 = vmatprep.subr.mxu0 0.0
    %5402 = vmatpush2.msra.mxu0 0.0
    %5403 = vmatprep.subr.mxu0 0.0
    %5404 = vmatpush2.msra.mxu0 0.0
    %5405 = vmatprep.subr.mxu0 0.0
    %5406 = vmatpush2.msra.mxu0 0.0
    %5407 = vmatprep.subr.mxu0 0.0
    %5408 = vmatpush2.msra.mxu0 0.0
    %5409 = vmatprep.subr.mxu0 0.0
    %5410 = vmatpush2.msra.mxu0 0.0
    %5411 = vmatprep.subr.mxu0 0.0
    %5412 = vmatpush2.msra.mxu0 0.0
    %5413 = vmatprep.mubr.f32.mxu0 0.0
    %5414 = vmatmul.mubr.f32.gmra.mxu0 %v5344
    %v5415 = vpop.f32.mrf.mxu0
    %v5416 = vadd.f32 %v5342, %v5415
    %v5417 = vpop.f32.mrf.mxu0
    %5418 = vmatprep.mubr.f32.mxu0 0.0
    %5419 = vmatmul.mubr.f32.gmra.mxu0 %v5347
    %v5420 = vpop.f32.mrf.mxu0
    %v5421 = vadd.f32 %v5342, %v5420
    %v5422 = vpop.f32.mrf.mxu0
    %5423 = vdwg.mxu0
    %v5424 = vmul.f32 %v5416, %v5416
    %v5425 = vmul.f32 %v5421, %v5421
    %v5426 = vmul.f32 %v5416, %v5424
    %v5427 = vmul.f32 %v5421, %v5425
    %v5428 = vmul.f32 %v5426, 0.044715
    %v5429 = vmul.f32 %v5427, 0.044715
    %v5430 = vadd.f32 %v5416, %v5428
    %v5431 = vadd.f32 %v5421, %v5429
    %v5432 = vmul.f32 %v5430, 0.7978846
    %v5433 = vmul.f32 %v5431, 0.7978846
    %v5434 = vtanh.pop %v5432
    %v5435 = vtanh.pop %v5433
    %v5436 = vadd.f32 %v5434, 1.0
    %v5437 = vadd.f32 %v5435, 1.0
    %v5438 = vmul.f32 %v5436, 0.5
    %v5439 = vmul.f32 %v5437, 0.5
    %v5440 = vmul.f32 %v5416, %v5438
    %v5441 = vmul.f32 %v5421, %v5439
    %v5442 = vld [vmem:[%s5 + $0x1b0] sm:$0xff]
    %v5443 = vld [vmem:[%s5 + $0x1b8] sm:$0xff]
    %v5444 = vld [vmem:[%s5 + $0x1c0] sm:$0xff]
    %v5445 = vld [vmem:[%s5 + $0x1c8] sm:$0xff]
    %v5446 = vld [vmem:[%s5 + $0x1d0] sm:$0xff]
    %v5447 = vld [vmem:[%s5 + $0x1d8] sm:$0xff]
    %v5448 = vld [vmem:[%s5 + $0x1e0] sm:$0xff]
    %v5449 = vld [vmem:[%s5 + $0x1e8] sm:$0xff]
    %v5450 = vld [vmem:[%s4 + $0x1d] sm:$0x1]
    %v5451 = vlaneseq
    %v5452 = vshrl.u32 %v5451, 7
    %v5453 = vsub.s32 0, %v5452
    %v5454 = vrot.slane %v5450, %v5453
    %v5456 = vsel %vm1865, %v5440, 0
    %v5459 = vsel %vm1865, %v5441, 0
    %5461 = vmatprep.subr.mxu0 0.0
    %5462 = vmatpush1.msra.mxu0 0.0
    %5463 = vmatprep.subr.mxu0 0.0
    %5464 = vmatpush1.msra.mxu0 0.0
    %5465 = vmatprep.subr.mxu0 0.0
    %5466 = vmatpush1.msra.mxu0 0.0
    %5467 = vmatprep.subr.mxu0 0.0
    %5468 = vmatpush1.msra.mxu0 0.0
    %5469 = vmatprep.subr.mxu0 0.0
    %5470 = vmatpush1.msra.mxu0 0.0
    %5471 = vmatprep.subr.mxu0 0.0
    %5472 = vmatpush1.msra.mxu0 0.0
    %5473 = vmatprep.subr.mxu0 0.0
    %5474 = vmatpush1.msra.mxu0 0.0
    %5475 = vmatprep.subr.mxu0 0.0
    %5476 = vmatpush1.msra.mxu0 0.0
    %5477 = vmatprep.subr.mxu0 0.0
    %5478 = vmatpush1.msra.mxu0 %v5449
    %5479 = vmatprep.subr.mxu0 0.0
    %5480 = vmatpush1.msra.mxu0 %v5448
    %5481 = vmatprep.subr.mxu0 0.0
    %5482 = vmatpush1.msra.mxu0 %v5447
    %5483 = vmatprep.subr.mxu0 0.0
    %5484 = vmatpush1.msra.mxu0 %v5446
    %5485 = vmatprep.subr.mxu0 0.0
    %5486 = vmatpush1.msra.mxu0 %v5445
    %5487 = vmatprep.subr.mxu0 0.0
    %5488 = vmatpush1.msra.mxu0 %v5444
    %5489 = vmatprep.subr.mxu0 0.0
    %5490 = vmatpush1.msra.mxu0 %v5443
    %5491 = vmatprep.subr.mxu0 0.0
    %5492 = vmatpush1.msra.mxu0 %v5442
    %5493 = vmatprep.subr.mxu0 0.0
    %5494 = vmatpush2.msra.mxu0 0.0
    %5495 = vmatprep.subr.mxu0 0.0
    %5496 = vmatpush2.msra.mxu0 0.0
    %5497 = vmatprep.subr.mxu0 0.0
    %5498 = vmatpush2.msra.mxu0 0.0
    %5499 = vmatprep.subr.mxu0 0.0
    %5500 = vmatpush2.msra.mxu0 0.0
    %5501 = vmatprep.subr.mxu0 0.0
    %5502 = vmatpush2.msra.mxu0 0.0
    %5503 = vmatprep.subr.mxu0 0.0
    %5504 = vmatpush2.msra.mxu0 0.0
    %5505 = vmatprep.subr.mxu0 0.0
    %5506 = vmatpush2.msra.mxu0 0.0
    %5507 = vmatprep.subr.mxu0 0.0
    %5508 = vmatpush2.msra.mxu0 0.0
    %5509 = vmatprep.subr.mxu0 0.0
    %5510 = vmatpush2.msra.mxu0 0.0
    %5511 = vmatprep.subr.mxu0 0.0
    %5512 = vmatpush2.msra.mxu0 0.0
    %5513 = vmatprep.subr.mxu0 0.0
    %5514 = vmatpush2.msra.mxu0 0.0
    %5515 = vmatprep.subr.mxu0 0.0
    %5516 = vmatpush2.msra.mxu0 0.0
    %5517 = vmatprep.subr.mxu0 0.0
    %5518 = vmatpush2.msra.mxu0 0.0
    %5519 = vmatprep.subr.mxu0 0.0
    %5520 = vmatpush2.msra.mxu0 0.0
    %5521 = vmatprep.subr.mxu0 0.0
    %5522 = vmatpush2.msra.mxu0 0.0
    %5523 = vmatprep.subr.mxu0 0.0
    %5524 = vmatpush2.msra.mxu0 0.0
    %5525 = vmatprep.mubr.f32.mxu0 0.0
    %5526 = vmatmul.mubr.f32.gmra.mxu0 %v5456
    %v5527 = vpop.f32.mrf.mxu0
    %v5528 = vadd.f32 %v5454, %v5527
    %v5529 = vpop.f32.mrf.mxu0
    %5530 = vmatprep.mubr.f32.mxu0 0.0
    %5531 = vmatmul.mubr.f32.gmra.mxu0 %v5459
    %v5532 = vpop.f32.mrf.mxu0
    %v5533 = vadd.f32 %v5454, %v5532
    %v5534 = vpop.f32.mrf.mxu0
    %5535 = vdwg.mxu0
    %v5536 = vadd.f32 %v5292, %v5528
    %v5537 = vadd.f32 %v5293, %v5533
    %v5538 = vsel %vm63, %v5536, 0.0
    %5539 = vadd.xlane.f32.xlu0 %v5538
    %v5540 = vpop.xlane.xlu0 %5539
    %v5541 = vsel %vm63, %v5537, 0.0
    %5542 = vadd.xlane.f32.xlu0 %v5541
    %v5543 = vpop.xlane.xlu0 %5542
    %v5544 = vmul.f32 %v5540, %v70
    %v5545 = vmul.f32 %v5543, %v70
    %v5546 = vsub.f32 %v5536, %v5544
    %v5547 = vsub.f32 %v5537, %v5545
    %v5548 = vmul.f32 %v5546, %v5546
    %v5549 = vmul.f32 %v5547, %v5547
    %v5550 = vsel %vm63, %v5548, 0.0
    %5551 = vadd.xlane.f32.xlu0 %v5550
    %v5552 = vpop.xlane.xlu0 %5551
    %v5553 = vsel %vm63, %v5549, 0.0
    %5554 = vadd.xlane.f32.xlu0 %v5553
    %v5555 = vpop.xlane.xlu0 %5554
    %v5556 = vmul.f32 %v5552, %v70
    %v5557 = vmul.f32 %v5555, %v70
    %v5558 = vadd.f32 %v5556, 1e-05
    %v5559 = vadd.f32 %v5557, 1e-05
    %v5560 = vrsqrt.pop %v5558
    %v5561 = vrsqrt.pop %v5559
    %v5562 = vmul.f32 %v5546, %v5560
    %v5563 = vmul.f32 %v5547, %v5561
    %v5564 = vld [vmem:[%s4 + $0x7] sm:$0x1]
    %v5565 = vlaneseq
    %v5566 = vshrl.u32 %v5565, 7
    %v5567 = vsub.s32 0, %v5566
    %v5568 = vrot.slane %v5564, %v5567
    %v5569 = vmul.f32 %v5562, %v5568
    %v5570 = vmul.f32 %v5563, %v5568
    %v5571 = vld [vmem:[%s4 + $0x8] sm:$0x1]
    %v5572 = vlaneseq
    %v5573 = vshrl.u32 %v5572, 7
    %v5574 = vsub.s32 0, %v5573
    %v5575 = vrot.slane %v5571, %v5574
    %v5576 = vadd.f32 %v5569, %v5575
    %v5577 = vadd.f32 %v5570, %v5575
    %v5578 = vld [vmem:[%s5] sm:$0xff]
    %v5579 = vld [vmem:[%s5 + $0x8] sm:$0xff]
    %v5580 = vld [vmem:[%s5 + $0x10] sm:$0xff]
    %v5581 = vld [vmem:[%s5 + $0x18] sm:$0xff]
    %v5582 = vld [vmem:[%s5 + $0x20] sm:$0xff]
    %v5583 = vld [vmem:[%s5 + $0x28] sm:$0xff]
    %v5584 = vld [vmem:[%s5 + $0x30] sm:$0xff]
    %v5585 = vld [vmem:[%s5 + $0x38] sm:$0xff]
    %v5586 = vld [vmem:[%s4] sm:$0x1]
    %v5587 = vlaneseq
    %v5588 = vshrl.u32 %v5587, 7
    %v5589 = vsub.s32 0, %v5588
    %v5590 = vrot.slane %v5586, %v5589
    %v5592 = vsel %vm63, %v5576, 0
    %v5595 = vsel %vm63, %v5577, 0
    %v5598 = vsel %vm63, %v5578, 0
    %v5601 = vsel %vm63, %v5579, 0
    %v5604 = vsel %vm63, %v5580, 0
    %v5607 = vsel %vm63, %v5581, 0
    %v5610 = vsel %vm63, %v5582, 0
    %v5613 = vsel %vm63, %v5583, 0
    %v5616 = vsel %vm63, %v5584, 0
    %v5619 = vsel %vm63, %v5585, 0
    %5621 = vmatprep.subr.mxu0 0.0
    %5622 = vmatpush1.xpose.msra.mxu0 0.0
    %5623 = vmatprep.subr.mxu0 0.0
    %5624 = vmatpush1.xpose.msra.mxu0 0.0
    %5625 = vmatprep.subr.mxu0 0.0
    %5626 = vmatpush1.xpose.msra.mxu0 0.0
    %5627 = vmatprep.subr.mxu0 0.0
    %5628 = vmatpush1.xpose.msra.mxu0 0.0
    %5629 = vmatprep.subr.mxu0 0.0
    %5630 = vmatpush1.xpose.msra.mxu0 0.0
    %5631 = vmatprep.subr.mxu0 0.0
    %5632 = vmatpush1.xpose.msra.mxu0 0.0
    %5633 = vmatprep.subr.mxu0 0.0
    %5634 = vmatpush1.xpose.msra.mxu0 0.0
    %5635 = vmatprep.subr.mxu0 0.0
    %5636 = vmatpush1.xpose.msra.mxu0 0.0
    %5637 = vmatprep.subr.mxu0 0.0
    %5638 = vmatpush1.xpose.msra.mxu0 %v5619
    %5639 = vmatprep.subr.mxu0 0.0
    %5640 = vmatpush1.xpose.msra.mxu0 %v5616
    %5641 = vmatprep.subr.mxu0 0.0
    %5642 = vmatpush1.xpose.msra.mxu0 %v5613
    %5643 = vmatprep.subr.mxu0 0.0
    %5644 = vmatpush1.xpose.msra.mxu0 %v5610
    %5645 = vmatprep.subr.mxu0 0.0
    %5646 = vmatpush1.xpose.msra.mxu0 %v5607
    %5647 = vmatprep.subr.mxu0 0.0
    %5648 = vmatpush1.xpose.msra.mxu0 %v5604
    %5649 = vmatprep.subr.mxu0 0.0
    %5650 = vmatpush1.xpose.msra.mxu0 %v5601
    %5651 = vmatprep.subr.mxu0 0.0
    %5652 = vmatpush1.xpose.msra.mxu0 %v5598
    %5653 = vmatprep.subr.mxu0 0.0
    %5654 = vmatpush2.xpose.msra.mxu0 0.0
    %5655 = vmatprep.subr.mxu0 0.0
    %5656 = vmatpush2.xpose.msra.mxu0 0.0
    %5657 = vmatprep.subr.mxu0 0.0
    %5658 = vmatpush2.xpose.msra.mxu0 0.0
    %5659 = vmatprep.subr.mxu0 0.0
    %5660 = vmatpush2.xpose.msra.mxu0 0.0
    %5661 = vmatprep.subr.mxu0 0.0
    %5662 = vmatpush2.xpose.msra.mxu0 0.0
    %5663 = vmatprep.subr.mxu0 0.0
    %5664 = vmatpush2.xpose.msra.mxu0 0.0
    %5665 = vmatprep.subr.mxu0 0.0
    %5666 = vmatpush2.xpose.msra.mxu0 0.0
    %5667 = vmatprep.subr.mxu0 0.0
    %5668 = vmatpush2.xpose.msra.mxu0 0.0
    %5669 = vmatprep.subr.mxu0 0.0
    %5670 = vmatpush2.xpose.msra.mxu0 0.0
    %5671 = vmatprep.subr.mxu0 0.0
    %5672 = vmatpush2.xpose.msra.mxu0 0.0
    %5673 = vmatprep.subr.mxu0 0.0
    %5674 = vmatpush2.xpose.msra.mxu0 0.0
    %5675 = vmatprep.subr.mxu0 0.0
    %5676 = vmatpush2.xpose.msra.mxu0 0.0
    %5677 = vmatprep.subr.mxu0 0.0
    %5678 = vmatpush2.xpose.msra.mxu0 0.0
    %5679 = vmatprep.subr.mxu0 0.0
    %5680 = vmatpush2.xpose.msra.mxu0 0.0
    %5681 = vmatprep.subr.mxu0 0.0
    %5682 = vmatpush2.xpose.msra.mxu0 0.0
    %5683 = vmatprep.subr.mxu0 0.0
    %5684 = vmatpush2.xpose.msra.mxu0 0.0
    %5685 = vmatprep.mubr.f32.mxu0 0.0
    %5686 = vmatmul.mubr.f32.gmra.mxu0 %v5592
    %v5687 = vpop.f32.mrf.mxu0
    %v5688 = vadd.f32 %v5590, %v5687
    %v5689 = vpop.f32.mrf.mxu0
    %5690 = vmatprep.mubr.f32.mxu0 0.0
    %5691 = vmatmul.mubr.f32.gmra.mxu0 %v5595
    %v5692 = vpop.f32.mrf.mxu0
    %v5693 = vadd.f32 %v5590, %v5692
    %v5694 = vpop.f32.mrf.mxu0
    %5695 = vdwg.mxu0
    %v5696 = vsel %vm1865, %v5688, -inf
    %5697 = vmax.xlane.f32.xlu0 %v5696
    %v5698 = vpop.xlane.xlu0 %5697
    %v5699 = vsel %vm1865, %v5693, -inf
    %5700 = vmax.xlane.f32.xlu0 %v5699
    %v5701 = vpop.xlane.xlu0 %5700
    %v5702 = vsub.f32 %v5688, %v5698
    %v5703 = vsub.f32 %v5693, %v5701
    %v5704 = vmul.f32 %v5702, 1.442695
    %v5705 = vpow.pop %v5704
    %v5706 = vmul.f32 %v5703, 1.442695
    %v5707 = vpow.pop %v5706
    %v5708 = vsel %vm1865, %v5705, 0.0
    %5709 = vadd.xlane.f32.xlu0 %v5708
    %v5710 = vpop.xlane.xlu0 %5709
    %v5711 = vsel %vm1865, %v5707, 0.0
    %5712 = vadd.xlane.f32.xlu0 %v5711
    %v5713 = vpop.xlane.xlu0 %5712
    %v5714 = vlog2.pop %v5710
    %v5715 = vmul.f32 %v5714, 0.6931472
    %v5716 = vlog2.pop %v5713
    %v5717 = vmul.f32 %v5716, 0.6931472
    %v5718 = vadd.f32 %v5715, %v5698
    %v5719 = vadd.f32 %v5717, %v5701
    %v5720 = vsub.f32 %v5688, %v5718
    %v5721 = vsub.f32 %v5693, %v5719
    %5724 = vrot.lane.b32.xlu0 %v5720, 64
    %v5725 = vpop.permute.xlu0 %5724
    %5726 = vrot.lane.b32.xlu0 %v5721, 64
    %v5727 = vpop.permute.xlu0 %5726
    %v5730 = vsel %vm1865, %v5688, %v5725
    %v5731 = vsel %vm1865, %v5693, %v5727
    %5732 = vst [vmem:[%s6] sm:$0xff] %v5730
    %5733 = vst [vmem:[%s6 + $0x8] sm:$0xff] %v5731
    %v5734 = vld [vmem:[%s2] sm:$0xff]
    %v5735 = vld [vmem:[%s2 + $0x8] sm:$0xff]
    %5736 = vset.pattern.permute.xlu0 0
    %5737 = vperm.xlu0 %5736, %v5734
    %v5738 = vpop.permute.xlu0 %5737
    %5739 = vset.pattern.permute.xlu0 0
    %5740 = vperm.xlu0 %5739, %v5735
    %v5741 = vpop.permute.xlu0 %5740
    %vm5742 = vcmp.eq.s32.totalorder %v55, %v5738
    %vm5743 = vcmp.eq.s32.totalorder %v55, %v5741
    %v5744 = vsel %vm5742, %v5720, 0.0
    %v5745 = vsel %vm5743, %v5721, 0.0
    %v5746 = vsel %vm1865, %v5744, 0.0
    %5747 = vadd.xlane.f32.xlu0 %v5746
    %v5748 = vpop.xlane.xlu0 %5747
    %v5749 = vsel %vm1865, %v5745, 0.0
    %5750 = vadd.xlane.f32.xlu0 %v5749
    %v5751 = vpop.xlane.xlu0 %5750
    %v5752 = vsel %vm1865, %v5720, 0.0
    %5753 = vadd.xlane.f32.xlu0 %v5752
    %v5754 = vpop.xlane.xlu0 %5753
    %v5755 = vsel %vm1865, %v5721, 0.0
    %5756 = vadd.xlane.f32.xlu0 %v5755
    %v5757 = vpop.xlane.xlu0 %5756
    %v5758 = vmul.f32 %v5748, 0.8
    %v5759 = vmul.f32 %v5751, 0.8
    %v5760 = vsub.f32 -1.3258293, %v5758
    %v5761 = vsub.f32 -1.3258293, %v5759
    %v5762 = vsub.f32 %v5754, %v5748
    %v5763 = vsub.f32 %v5757, %v5751
    %v5764 = vsub.f32 %v5762, %v5720
    %v5765 = vsub.f32 %v5763, %v5721
    %v5766 = vmul.f32 %v5764, 0.0032258064
    %v5767 = vmul.f32 %v5765, 0.0032258064
    %v5768 = vsub.f32 %v5760, %v5766
    %v5769 = vsub.f32 %v5761, %v5767
    %vm5770 = vcmp.ne.s32.totalorder %v5734, 1
    %vm5771 = vcmp.ne.s32.totalorder %v5735, 1
    %v5772 = vsel %vm5770, 1, 0
    %v5773 = vsel %vm5771, 1, 0
    %v5774 = vcvt.s32.f32 %v5772
    %v5775 = vcvt.s32.f32 %v5773
    %5778 = vrot.lane.b32.xlu0 %v5774, 1
    %v5779 = vpop.permute.xlu0 %5778
    %5780 = vrot.lane.b32.xlu0 %v5775, 1
    %v5781 = vpop.permute.xlu0 %5780
    %v5784 = vmul.f32 %v5768, %v5779
    %v5785 = vmul.f32 %v5769, %v5781
    %5788 = vrot.lane.b32.xlu0 %v5784, 127
    %v5789 = vpop.permute.xlu0 %5788
    %5790 = vrot.lane.b32.xlu0 %v5785, 127
    %v5791 = vpop.permute.xlu0 %5790
    %vm5794 = vcmask 7168
    %v5795 = vsel %vm5794, %v5789, 0.0
    %v5796 = vsel %vm5794, %v5791, 0.0
    %v5797 = vadd.f32 %v5795, %v5796
    %5798 = vadd.xlane.f32.xlu0 %v5797
    %v5799 = vpop.xlane.xlu0 %5798
    %v5800 = vrot.slane %v5799, 4
    %v5801 = vadd.f32 %v5799, %v5800
    %v5802 = vrot.slane %v5801, 2
    %v5803 = vadd.f32 %v5801, %v5802
    %v5804 = vrot.slane %v5803, 1
    %v5805 = vadd.f32 %v5803, %v5804
    %s5806 = vtos %v5805
    %s5807 = scalar_lea.smem [#allocation2], 0
    %5808 = sst [smem:[%s5807]] %s5806
    // Predicated region
    $region26: #{translation_forward.1} parent=1 // pred_check
      _
    $region27: #{translation_forward.1} parent=1 // pred_check_branch
      %5810 = sbr.rel (0) target = $region29
    $region28: #{translation_forward.1} parent=1 // pred_region
      _
    $region29: #{translation_forward.1} parent=1 // pred_fallthru
      _
    // Predicated region
    $region30: #{translation_forward.1} parent=1 // pred_check
      _
    $region31: #{translation_forward.1} parent=1 // pred_check_branch
      %5812 = sbr.rel (0) target = $region33
    $region32: #{translation_forward.1} parent=1 // pred_region
      %s5814 = ssub.s32 16, 16
      %5815 = vsyncadd [#allocation3], %s5814
      %5818 = dma.smem_to_hbm [#allocation2], 16, %s7, [#allocation3]
    $region33: #{translation_forward.1} parent=1 // pred_fallthru
      _
    // Predicated region
    $region34: #{translation_forward.1} parent=1 // pred_check
      _
    $region35: #{translation_forward.1} parent=1 // pred_check_branch
      %5820 = sbr.rel (0) target = $region37
    $region36: #{translation_forward.1} parent=1 // pred_region
      _
    $region37: #{translation_forward.1} parent=1 // pred_fallthru
      _
    // Predicated region
    $region38: #{translation_forward.1} parent=1 // pred_check
      _
    $region39: #{translation_forward.1} parent=1 // pred_check_branch
      %5822 = sbr.rel (0) target = $region41
    $region40: #{translation_forward.1} parent=1 // pred_region
      %5823 = dma.done [#allocation3], 16
    $region41: #{translation_forward.1} parent=1 // pred_fallthru
      _
    %5824 = sfence
    %5825 = vsyncpa [#allocation3], 1

</llo_original>
